<compile_context>
chip_gen: v7x
topology: tpu7x:2x2x1
jax: 0.10.0
libtpu: 0.0.40
codegen_flags: <defaults>
</compile_context>

<pallas_src>
import functools
import math

import jax
import jax.numpy as jnp
from jax.experimental import pallas as pl
from jax.experimental.pallas import tpu as pltpu


# ---------------------------------------------------------------------------
# Fused kernel: encoder stack + decoder rollout + batched output projection.
# All inputs are whole-array VMEM refs (no grid).
# ---------------------------------------------------------------------------
def _trajectory_predictor_kernel(
    x_ref,
    e_w_in_ref, e_wff2_ref, e_vec_ref,
    d_w_in_ref, d_wff2_ref, d_vec_ref,
    out_wb_ref,
    out_ref,
    *, n_heads, horizon,
):
    B, S, D = x_ref.shape
    n_enc = e_w_in_ref.shape[0]
    n_dec = d_w_in_ref.shape[0]
    d_k = D // n_heads
    scale = 1.0 / math.sqrt(d_k)
    bf16 = jnp.bfloat16
    f32 = jnp.float32

    def layer_norm(y, g, b):
        # Two independent reductions (mean, E[y^2]) pipeline in the XLU;
        # var = E[y^2] - mean^2 (PyTorch LayerNorm: biased variance, eps=1e-5).
        mean = jnp.mean(y, axis=-1, keepdims=True)
        msq = jnp.mean(y * y, axis=-1, keepdims=True)
        var = msq - mean * mean
        return (y - mean) * jax.lax.rsqrt(var + 1e-5) * g + b

    def ffn(x1, w1, b1, w2, b2):
        # bf16 weights / activations on the MXU, f32 accumulation.
        h1 = jnp.dot(x1.astype(bf16), w1, preferred_element_type=f32) + b1
        h1 = jnp.maximum(h1, 0.0)
        return jnp.dot(h1.astype(bf16), w2, preferred_element_type=f32) + b2

    # ---------------- Encoder: batch folded into matmul rows ----------------
    h = x_ref[...].reshape(B * S, D)                       # (B*S, D) f32
    for l in range(n_enc):                                 # static unroll
        w_in = e_w_in_ref[l]                               # (D, 4D+d_ff) bf16
        wqkv = w_in[:, :3 * D]                             # [Wq|Wk|Wv]
        wo = w_in[:, 3 * D:4 * D]
        wff1 = w_in[:, 4 * D:]
        wff2 = e_wff2_ref[l]                               # (d_ff, D) bf16
        vec = e_vec_ref[l]                                 # (8, d_ff) f32
        bqkv = vec[0, :3 * D]
        bo = vec[1, :D]
        g1 = vec[2, :D]
        b1 = vec[3, :D]
        bff1 = vec[4, :]
        bff2 = vec[5, :D]
        g2 = vec[6, :D]
        b2 = vec[7, :D]

        # Fused QKV projection.
        qkv = jnp.dot(h.astype(bf16), wqkv, preferred_element_type=f32) + bqkv
        q = qkv[:, 0:D].reshape(B, S, D)
        k = qkv[:, D:2 * D].reshape(B, S, D)
        v = qkv[:, 2 * D:3 * D].reshape(B, S, D)

        ctx_heads = []
        for hh in range(n_heads):                          # static unroll (small)
            sl = slice(hh * d_k, (hh + 1) * d_k)
            s = jnp.einsum("bqc,bkc->bqk", q[:, :, sl], k[:, :, sl],
                           preferred_element_type=f32) * scale
            s = s - jnp.max(s, axis=-1, keepdims=True)
            p = jnp.exp(s)
            # Softmax denominator on the EUP instead of a VALU divide.
            w = p * pl.reciprocal(jnp.sum(p, axis=-1, keepdims=True), approx=True)
            ctx_heads.append(jnp.einsum("bqk,bkc->bqc", w, v[:, :, sl],
                                        preferred_element_type=f32))
        # Lane-concat all heads, then ONE K=D output projection.
        ctx = jnp.concatenate(ctx_heads, axis=-1).reshape(B * S, D)
        attn = jnp.dot(ctx.astype(bf16), wo, preferred_element_type=f32) + bo

        x1 = layer_norm(h + attn, g1, b1)
        ff = ffn(x1, wff1, bff1, wff2, bff2)
        h = layer_norm(x1 + ff, g2, b2)

    # Last encoder state per batch element.
    dec = h.reshape(B, S, D)[:, S - 1, :]                  # (B, D)

    # ---------------- Decoder rollout (seq_len == 1 specialization) ---------
    # softmax over one key == 1 => context == V; Wv@Wo is fused at pack time,
    # so each layer's attention is a single dot: dec @ W_vo + b_vo.
    # Per-layer slices hoisted out of the t-loop (no re-materialization per step).
    dec_layers = []
    for l in range(n_dec):
        w_in = d_w_in_ref[l]                               # (D, D+d_ff) bf16
        vec = d_vec_ref[l]                                 # (7, d_ff) f32
        dec_layers.append((
            w_in[:, :D],        # W_vo
            vec[0, :D],         # b_vo
            vec[1, :D], vec[2, :D],          # LN1 gamma/beta
            w_in[:, D:],        # Wff1
            vec[3, :],          # bff1
            d_wff2_ref[l],      # Wff2
            vec[4, :D],         # bff2
            vec[5, :D], vec[6, :D],          # LN2 gamma/beta
        ))

    dec_list = []
    for t in range(horizon):                               # static unroll
        for (wvo, bvo, g1, b1, wff1, bff1, wff2, bff2, g2, b2) in dec_layers:
            attn = jnp.dot(dec.astype(bf16), wvo, preferred_element_type=f32) + bvo
            x1 = layer_norm(dec + attn, g1, b1)
            ff = ffn(x1, wff1, bff1, wff2, bff2)
            dec = layer_norm(x1 + ff, g2, b2)
        dec_list.append(dec)

    # ---------------- Batched output projection + single store --------------
    dec_all = jnp.concatenate(dec_list, axis=0)            # (horizon*B, D), t-major
    wb = out_wb_ref[...]                                    # (D+1, 4) f32
    preds = jnp.dot(dec_all.astype(bf16), wb[:D, :].astype(bf16),
                    preferred_element_type=f32) + wb[D, :]  # (horizon*B, 4)
    # Emit (B, horizon*4) so the wrapper reshape to (B, horizon, 4) is a free
    # bitcast (no separate XLA transpose op).
    out_ref[...] = jnp.concatenate(
        [preds[t * B:(t + 1) * B, :] for t in range(horizon)], axis=1)


_PACKED_ORDER = ("e_w_in", "e_wff2", "e_vec", "d_w_in", "d_wff2", "d_vec", "out_wb")


@functools.partial(jax.jit, static_argnames=("n_heads", "prediction_horizon"))
def trajectory_predictor_forward(track_history, packed, *, n_heads,
                                 prediction_horizon):
    """track_history: [B, S, D] -> predictions: [B, prediction_horizon, 4]."""
    B, S, D = track_history.shape
    kernel = functools.partial(_trajectory_predictor_kernel,
                               n_heads=n_heads, horizon=prediction_horizon)
    out = pl.pallas_call(
        kernel,
        out_shape=jax.ShapeDtypeStruct((B, prediction_horizon * 4), jnp.float32),
        # Footprint ~1.5 MiB; safe on v5e/v6e and v7x (64 MiB VMEM).  Re-derive
        # if d_model/d_ff/layers scale up.
        compiler_params=pltpu.CompilerParams(vmem_limit_bytes=16 << 20),
    )(track_history, *[packed[k] for k in _PACKED_ORDER])
    # Contiguous reshape only (bitcast inside the jit executable).
    return out.reshape(B, prediction_horizon, 4)


# ---------------------------------------------------------------------------
# Parameter init (deterministic, synthetic — matches the shapes of the PyTorch
# module's __init__; not a checkpoint load) and packing into the fused layout.
# ---------------------------------------------------------------------------
def _init_block_params(key, d_model, d_ff):
    ks = jax.random.split(key, 12)

    def lin(kw, kb, fan_in, fan_out):
        w = jax.random.normal(kw, (fan_in, fan_out), jnp.float32) / math.sqrt(fan_in)
        b = 0.01 * jax.random.normal(kb, (fan_out,), jnp.float32)
        return w, b

    wq, bq = lin(ks[0], ks[1], d_model, d_model)
    wk, bk = lin(ks[2], ks[3], d_model, d_model)
    wv, bv = lin(ks[4], ks[5], d_model, d_model)
    wo, bo = lin(ks[6], ks[7], d_model, d_model)
    wff1, bff1 = lin(ks[8], ks[9], d_model, d_ff)
    wff2, bff2 = lin(ks[10], ks[11], d_ff, d_model)
    return dict(
        wq=wq, bq=bq, wk=wk, bk=bk, wv=wv, bv=bv, wo=wo, bo=bo,
        g1=jnp.ones((d_model,), jnp.float32), b1=jnp.zeros((d_model,), jnp.float32),
        wff1=wff1, bff1=bff1, wff2=wff2, bff2=bff2,
        g2=jnp.ones((d_model,), jnp.float32), b2=jnp.zeros((d_model,), jnp.float32),
    )


def init_trajectory_predictor_params(key, d_model, n_layers, d_ff=2048):
    keys = jax.random.split(key, n_layers + n_layers // 2 + 2)
    enc = [_init_block_params(keys[i], d_model, d_ff) for i in range(n_layers)]
    dec = [_init_block_params(keys[n_layers + i], d_model, d_ff)
           for i in range(n_layers // 2)]
    w_out = jax.random.normal(keys[-2], (d_model, 4), jnp.float32) / math.sqrt(d_model)
    b_out = 0.01 * jax.random.normal(keys[-1], (4,), jnp.float32)
    return dict(encoder=enc, decoder=dec, w_out=w_out, b_out=b_out)


def pack_params(raw):
    """Pack all params into 7 buffers: fused QKV, lane-concatenated matmul
    weights (bf16), row-packed bias/LN vectors (f32), and pack-time fusion of
    the decoder's Wv@Wo (exact, since decoder seq_len == 1 => context == V)."""
    enc, dec = raw["encoder"], raw["decoder"]
    D = raw["w_out"].shape[0]
    d_ff = enc[0]["wff1"].shape[1]
    assert d_ff >= 3 * D, "bias-row packing assumes d_ff >= 3*d_model"
    hp = jax.lax.Precision.HIGHEST

    def pad(v):
        return jnp.pad(v, (0, d_ff - v.shape[0]))

    # --- encoder ---
    e_w_in = jnp.stack([
        jnp.concatenate([b["wq"], b["wk"], b["wv"], b["wo"], b["wff1"]], axis=1)
        for b in enc]).astype(jnp.bfloat16)                         # (L, D, 4D+d_ff)
    e_wff2 = jnp.stack([b["wff2"] for b in enc]).astype(jnp.bfloat16)
    e_vec = jnp.stack([jnp.stack([
        pad(jnp.concatenate([b["bq"], b["bk"], b["bv"]])),           # row 0: bqkv
        pad(b["bo"]), pad(b["g1"]), pad(b["b1"]),                    # rows 1-3
        pad(b["bff1"]),                                              # row 4
        pad(b["bff2"]), pad(b["g2"]), pad(b["b2"]),                  # rows 5-7
    ]) for b in enc])                                                # (L, 8, d_ff) f32

    # --- decoder (Wv@Wo fused; Wq/Wk/bq/bk mathematically unused) ---
    d_w_in_list, d_vec_list = [], []
    for b in dec:
        wvo = jnp.dot(b["wv"], b["wo"], precision=hp)
        bvo = jnp.dot(b["bv"], b["wo"], precision=hp) + b["bo"]
        d_w_in_list.append(jnp.concatenate([wvo, b["wff1"]], axis=1))
        d_vec_list.append(jnp.stack([
            pad(bvo), pad(b["g1"]), pad(b["b1"]),
            pad(b["bff1"]),
            pad(b["bff2"]), pad(b["g2"]), pad(b["b2"]),
        ]))
    d_w_in = jnp.stack(d_w_in_list).astype(jnp.bfloat16)             # (L, D, D+d_ff)
    d_wff2 = jnp.stack([b["wff2"] for b in dec]).astype(jnp.bfloat16)
    d_vec = jnp.stack(d_vec_list)                                    # (L, 7, d_ff) f32

    out_wb = jnp.concatenate([raw["w_out"], raw["b_out"][None, :]], axis=0)

    return dict(e_w_in=e_w_in, e_wff2=e_wff2, e_vec=e_vec,
                d_w_in=d_w_in, d_wff2=d_wff2, d_vec=d_vec, out_wb=out_wb)


# ---------------------------------------------------------------------------
# Pure-JAX reference (same packed weights, module-faithful structure), for
# checking.  Encoder uses the standard head-split/concat multi-head attention;
# decoder uses the exact seq_len==1 / fused-WvWo specialization.
# ---------------------------------------------------------------------------
def _reference_forward(track_history, packed, n_heads, prediction_horizon):
    hp = jax.lax.Precision.HIGHEST
    f32 = jnp.float32
    B, S, D = track_history.shape
    d_k = D // n_heads
    n_enc = packed["e_w_in"].shape[0]
    n_dec = packed["d_w_in"].shape[0]

    def ln(y, g, b):
        m = jnp.mean(y, -1, keepdims=True)
        v = jnp.mean((y - m) ** 2, -1, keepdims=True)
        return (y - m) * jax.lax.rsqrt(v + 1e-5) * g + b

    def ffn(x1, w1, b1, w2, b2):
        h1 = jnp.dot(x1.astype(jnp.bfloat16).astype(f32), w1, precision=hp) + b1
        h1 = jnp.maximum(h1, 0.0)
        return jnp.dot(h1.astype(jnp.bfloat16).astype(f32), w2, precision=hp) + b2

    h = track_history.astype(f32)
    for l in range(n_enc):
        w_in = packed["e_w_in"][l].astype(f32)
        wqkv, wo, wff1 = w_in[:, :3 * D], w_in[:, 3 * D:4 * D], w_in[:, 4 * D:]
        wff2 = packed["e_wff2"][l].astype(f32)
        vec = packed["e_vec"][l]
        bqkv, bo = vec[0, :3 * D], vec[1, :D]
        g1, b1 = vec[2, :D], vec[3, :D]
        bff1, bff2 = vec[4], vec[5, :D]
        g2, b2 = vec[6, :D], vec[7, :D]

        qkv = jnp.dot(h, wqkv, precision=hp) + bqkv
        q, k, v = qkv[..., :D], qkv[..., D:2 * D], qkv[..., 2 * D:]

        def split(z):
            return z.reshape(B, S, n_heads, d_k).transpose(0, 2, 1, 3)

        qh, kh, vh = split(q), split(k), split(v)
        s = jnp.einsum("bhqc,bhkc->bhqk", qh, kh, precision=hp) / math.sqrt(d_k)
        w = jax.nn.softmax(s, axis=-1)
        ctx = jnp.einsum("bhqk,bhkc->bhqc", w, vh, precision=hp)
        ctx = ctx.transpose(0, 2, 1, 3).reshape(B, S, D)
        a = jnp.dot(ctx, wo, precision=hp) + bo

        x1 = ln(h + a, g1, b1)
        ff = ffn(x1, wff1, bff1, wff2, bff2)
        h = ln(x1 + ff, g2, b2)

    dec = h[:, -1, :]
    w_out = packed["out_wb"][:D].astype(f32)
    b_out = packed["out_wb"][D]
    preds = []
    for _ in range(prediction_horizon):
        for l in range(n_dec):
            w_in = packed["d_w_in"][l].astype(f32)
            wvo, wff1 = w_in[:, :D], w_in[:, D:]
            wff2 = packed["d_wff2"][l].astype(f32)
            vec = packed["d_vec"][l]
            bvo, g1, b1 = vec[0, :D], vec[1, :D], vec[2, :D]
            bff1, bff2 = vec[3], vec[4, :D]
            g2, b2 = vec[5, :D], vec[6, :D]
            # seq_len == 1: softmax over one key == 1 => context == V exactly,
            # so attention == dec @ (Wv@Wo) + (bv@Wo + bo) == dec @ Wvo + bvo.
            a = jnp.dot(dec, wvo, precision=hp) + bvo
            x1 = ln(dec + a, g1, b1)
            ff = ffn(x1, wff1, bff1, wff2, bff2)
            dec = ln(x1 + ff, g2, b2)
        preds.append(jnp.dot(dec, w_out, precision=hp) + b_out)
    return jnp.stack(preds, axis=1)          # (B, horizon, 4)


# ---------------------------------------------------------------------------
if __name__ == "__main__":
    batch = 2
    seq_len = 8
    d_model = 32
    n_heads = 4            # d_model % n_heads == 0
    n_layers = 2           # -> 2 encoder blocks, 1 decoder block
    prediction_horizon = 4
    d_ff = 2048            # TransformerBlock default

    key = jax.random.PRNGKey(0)
    k_params, k_x = jax.random.split(key)
    raw_params = init_trajectory_predictor_params(k_params, d_model, n_layers, d_ff)
    packed = pack_params(raw_params)
    track_history = jax.random.normal(k_x, (batch, seq_len, d_model), jnp.float32)

    preds = trajectory_predictor_forward(track_history, packed, n_heads=n_heads,
                                         prediction_horizon=prediction_horizon)
    preds = jax.block_until_ready(preds)
    assert preds.shape == (batch, prediction_horizon, 4), preds.shape
    assert bool(jnp.all(jnp.isfinite(preds)))

    ref = _reference_forward(track_history, packed, n_heads, prediction_horizon)
    max_err = float(jnp.max(jnp.abs(preds - ref)))
    assert max_err < 5e-2, f"kernel/reference mismatch: max_abs_err={max_err}"

    print("KERNEL_OK")
</pallas_src>

<mosaic_0001>
module attributes {stable_mosaic.version = 11 : i64} {
  func.func @_trajectory_predictor_kernel(%arg0: memref<2x8x32xf32, #tpu.memory_space<vmem>>, %arg1: memref<2x32x2176xbf16, #tpu.memory_space<vmem>>, %arg2: memref<2x2048x32xbf16, #tpu.memory_space<vmem>>, %arg3: memref<2x8x2048xf32, #tpu.memory_space<vmem>>, %arg4: memref<1x32x2080xbf16, #tpu.memory_space<vmem>>, %arg5: memref<1x2048x32xbf16, #tpu.memory_space<vmem>>, %arg6: memref<1x7x2048xf32, #tpu.memory_space<vmem>>, %arg7: memref<33x4xf32, #tpu.memory_space<vmem>>, %arg8: memref<2x16xf32, #tpu.memory_space<vmem>>) attributes {dimension_semantics = [], scalar_prefetch = 0 : i64, scratch_operands = 0 : i64, tpu.core_type = #tpu.core_type<tc>} {
    %c0 = arith.constant 0 : index
    %c0_0 = arith.constant 0 : index
    %c0_1 = arith.constant 0 : index
    %0 = vector.load %arg0[%c0, %c0_0, %c0_1] : memref<2x8x32xf32, #tpu.memory_space<vmem>>, vector<2x8x32xf32>
    %1 = vector.shape_cast %0 : vector<2x8x32xf32> to vector<16x32xf32>
    %c0_2 = arith.constant 0 : index
    %c0_3 = arith.constant 0 : index
    %c0_4 = arith.constant 0 : index
    %2 = vector.load %arg1[%c0_2, %c0_3, %c0_4] : memref<2x32x2176xbf16, #tpu.memory_space<vmem>>, vector<1x32x2176xbf16>
    %3 = vector.shape_cast %2 : vector<1x32x2176xbf16> to vector<32x2176xbf16>
    %4 = vector.extract_strided_slice %3 {offsets = [0, 0], sizes = [32, 96], strides = [1, 1]} : vector<32x2176xbf16> to vector<32x96xbf16>
    %5 = vector.extract_strided_slice %3 {offsets = [0, 96], sizes = [32, 32], strides = [1, 1]} : vector<32x2176xbf16> to vector<32x32xbf16>
    %6 = vector.extract_strided_slice %3 {offsets = [0, 128], sizes = [32, 2048], strides = [1, 1]} : vector<32x2176xbf16> to vector<32x2048xbf16>
    %c0_5 = arith.constant 0 : index
    %c0_6 = arith.constant 0 : index
    %c0_7 = arith.constant 0 : index
    %7 = vector.load %arg2[%c0_5, %c0_6, %c0_7] : memref<2x2048x32xbf16, #tpu.memory_space<vmem>>, vector<1x2048x32xbf16>
    %8 = vector.shape_cast %7 : vector<1x2048x32xbf16> to vector<2048x32xbf16>
    %c0_8 = arith.constant 0 : index
    %c0_9 = arith.constant 0 : index
    %c0_10 = arith.constant 0 : index
    %9 = vector.load %arg3[%c0_8, %c0_9, %c0_10] : memref<2x8x2048xf32, #tpu.memory_space<vmem>>, vector<1x8x2048xf32>
    %10 = vector.shape_cast %9 : vector<1x8x2048xf32> to vector<8x2048xf32>
    %11 = vector.extract_strided_slice %10 {offsets = [0, 0], sizes = [1, 96], strides = [1, 1]} : vector<8x2048xf32> to vector<1x96xf32>
    %12 = vector.shape_cast %11 : vector<1x96xf32> to vector<96xf32>
    %13 = vector.extract_strided_slice %10 {offsets = [1, 0], sizes = [1, 32], strides = [1, 1]} : vector<8x2048xf32> to vector<1x32xf32>
    %14 = vector.shape_cast %13 : vector<1x32xf32> to vector<32xf32>
    %15 = vector.extract_strided_slice %10 {offsets = [2, 0], sizes = [1, 32], strides = [1, 1]} : vector<8x2048xf32> to vector<1x32xf32>
    %16 = vector.shape_cast %15 : vector<1x32xf32> to vector<32xf32>
    %17 = vector.extract_strided_slice %10 {offsets = [3, 0], sizes = [1, 32], strides = [1, 1]} : vector<8x2048xf32> to vector<1x32xf32>
    %18 = vector.shape_cast %17 : vector<1x32xf32> to vector<32xf32>
    %19 = vector.extract_strided_slice %10 {offsets = [4, 0], sizes = [1, 2048], strides = [1, 1]} : vector<8x2048xf32> to vector<1x2048xf32>
    %20 = vector.shape_cast %19 : vector<1x2048xf32> to vector<2048xf32>
    %21 = vector.extract_strided_slice %10 {offsets = [5, 0], sizes = [1, 32], strides = [1, 1]} : vector<8x2048xf32> to vector<1x32xf32>
    %22 = vector.shape_cast %21 : vector<1x32xf32> to vector<32xf32>
    %23 = vector.extract_strided_slice %10 {offsets = [6, 0], sizes = [1, 32], strides = [1, 1]} : vector<8x2048xf32> to vector<1x32xf32>
    %24 = vector.shape_cast %23 : vector<1x32xf32> to vector<32xf32>
    %25 = vector.extract_strided_slice %10 {offsets = [7, 0], sizes = [1, 32], strides = [1, 1]} : vector<8x2048xf32> to vector<1x32xf32>
    %26 = vector.shape_cast %25 : vector<1x32xf32> to vector<32xf32>
    %27 = arith.truncf %1 : vector<16x32xf32> to vector<16x32xbf16>
    %cst = arith.constant dense<0.000000e+00> : vector<16x96xf32>
    %28 = tpu.matmul %27, %4, %cst {dimension_numbers = #tpu.dot_dimension_numbers<[1], [0], [0], [1], [0, 0, 1, 1], [], []>} : vector<16x32xbf16>, vector<32x96xbf16>, vector<16x96xf32> -> vector<16x96xf32>
    %29 = vector.shape_cast %12 : vector<96xf32> to vector<1x96xf32>
    %30 = vector.broadcast %29 : vector<1x96xf32> to vector<16x96xf32>
    %31 = arith.addf %28, %30 : vector<16x96xf32>
    %32 = vector.extract_strided_slice %31 {offsets = [0, 0], sizes = [16, 32], strides = [1, 1]} : vector<16x96xf32> to vector<16x32xf32>
    %33 = vector.shape_cast %32 : vector<16x32xf32> to vector<2x8x32xf32>
    %34 = vector.extract_strided_slice %31 {offsets = [0, 32], sizes = [16, 32], strides = [1, 1]} : vector<16x96xf32> to vector<16x32xf32>
    %35 = vector.shape_cast %34 : vector<16x32xf32> to vector<2x8x32xf32>
    %36 = vector.extract_strided_slice %31 {offsets = [0, 64], sizes = [16, 32], strides = [1, 1]} : vector<16x96xf32> to vector<16x32xf32>
    %37 = vector.shape_cast %36 : vector<16x32xf32> to vector<2x8x32xf32>
    %38 = vector.extract_strided_slice %33 {offsets = [0, 0, 0], sizes = [2, 8, 8], strides = [1, 1, 1]} : vector<2x8x32xf32> to vector<2x8x8xf32>
    %39 = vector.extract_strided_slice %35 {offsets = [0, 0, 0], sizes = [2, 8, 8], strides = [1, 1, 1]} : vector<2x8x32xf32> to vector<2x8x8xf32>
    "tpu.trace_start"() <{level = 10 : i32, message = "bqc,bkc->bqk"}> : () -> ()
    %cst_11 = arith.constant dense<0.000000e+00> : vector<2x8x8xf32>
    %40 = tpu.matmul %38, %39, %cst_11 {dimension_numbers = #tpu.dot_dimension_numbers<[2], [2], [1], [1], [0, 0, 0, 1, 1, 1], [0], [0]>} : vector<2x8x8xf32>, vector<2x8x8xf32>, vector<2x8x8xf32> -> vector<2x8x8xf32>
    "tpu.trace_stop"() : () -> ()
    %cst_12 = arith.constant 0.353553385 : f32
    %41 = vector.broadcast %cst_12 : f32 to vector<2x8x8xf32>
    %42 = arith.mulf %40, %41 : vector<2x8x8xf32>
    %cst_13 = arith.constant dense<0xFF800000> : vector<2x8xf32>
    %43 = vector.multi_reduction <maximumf>, %42, %cst_13 [2] : vector<2x8x8xf32> to vector<2x8xf32>
    %44 = vector.shape_cast %43 : vector<2x8xf32> to vector<2x8x1xf32>
    %45 = vector.broadcast %44 : vector<2x8x1xf32> to vector<2x8x8xf32>
    %46 = arith.subf %42, %45 : vector<2x8x8xf32>
    %47 = math.exp %46 : vector<2x8x8xf32>
    %cst_14 = arith.constant dense<0.000000e+00> : vector<2x8xf32>
    %48 = vector.multi_reduction <add>, %47, %cst_14 [2] : vector<2x8x8xf32> to vector<2x8xf32>
    %49 = vector.shape_cast %48 : vector<2x8xf32> to vector<2x8x1xf32>
    %50 = tpu.reciprocal %49 {approx = true} : vector<2x8x1xf32> -> vector<2x8x1xf32>
    %51 = vector.broadcast %50 : vector<2x8x1xf32> to vector<2x8x8xf32>
    %52 = arith.mulf %47, %51 : vector<2x8x8xf32>
    %53 = vector.extract_strided_slice %37 {offsets = [0, 0, 0], sizes = [2, 8, 8], strides = [1, 1, 1]} : vector<2x8x32xf32> to vector<2x8x8xf32>
    "tpu.trace_start"() <{level = 10 : i32, message = "bqk,bkc->bqc"}> : () -> ()
    %cst_15 = arith.constant dense<0.000000e+00> : vector<2x8x8xf32>
    %54 = tpu.matmul %52, %53, %cst_15 {dimension_numbers = #tpu.dot_dimension_numbers<[2], [1], [1], [2], [0, 0, 0, 1, 1, 2], [0], [0]>} : vector<2x8x8xf32>, vector<2x8x8xf32>, vector<2x8x8xf32> -> vector<2x8x8xf32>
    "tpu.trace_stop"() : () -> ()
    %55 = vector.extract_strided_slice %33 {offsets = [0, 0, 8], sizes = [2, 8, 8], strides = [1, 1, 1]} : vector<2x8x32xf32> to vector<2x8x8xf32>
    %56 = vector.extract_strided_slice %35 {offsets = [0, 0, 8], sizes = [2, 8, 8], strides = [1, 1, 1]} : vector<2x8x32xf32> to vector<2x8x8xf32>
    "tpu.trace_start"() <{level = 10 : i32, message = "bqc,bkc->bqk"}> : () -> ()
    %cst_16 = arith.constant dense<0.000000e+00> : vector<2x8x8xf32>
    %57 = tpu.matmul %55, %56, %cst_16 {dimension_numbers = #tpu.dot_dimension_numbers<[2], [2], [1], [1], [0, 0, 0, 1, 1, 1], [0], [0]>} : vector<2x8x8xf32>, vector<2x8x8xf32>, vector<2x8x8xf32> -> vector<2x8x8xf32>
    "tpu.trace_stop"() : () -> ()
    %cst_17 = arith.constant 0.353553385 : f32
    %58 = vector.broadcast %cst_17 : f32 to vector<2x8x8xf32>
    %59 = arith.mulf %57, %58 : vector<2x8x8xf32>
    %cst_18 = arith.constant dense<0xFF800000> : vector<2x8xf32>
    %60 = vector.multi_reduction <maximumf>, %59, %cst_18 [2] : vector<2x8x8xf32> to vector<2x8xf32>
    %61 = vector.shape_cast %60 : vector<2x8xf32> to vector<2x8x1xf32>
    %62 = vector.broadcast %61 : vector<2x8x1xf32> to vector<2x8x8xf32>
    %63 = arith.subf %59, %62 : vector<2x8x8xf32>
    %64 = math.exp %63 : vector<2x8x8xf32>
    %cst_19 = arith.constant dense<0.000000e+00> : vector<2x8xf32>
    %65 = vector.multi_reduction <add>, %64, %cst_19 [2] : vector<2x8x8xf32> to vector<2x8xf32>
    %66 = vector.shape_cast %65 : vector<2x8xf32> to vector<2x8x1xf32>
    %67 = tpu.reciprocal %66 {approx = true} : vector<2x8x1xf32> -> vector<2x8x1xf32>
    %68 = vector.broadcast %67 : vector<2x8x1xf32> to vector<2x8x8xf32>
    %69 = arith.mulf %64, %68 : vector<2x8x8xf32>
    %70 = vector.extract_strided_slice %37 {offsets = [0, 0, 8], sizes = [2, 8, 8], strides = [1, 1, 1]} : vector<2x8x32xf32> to vector<2x8x8xf32>
    "tpu.trace_start"() <{level = 10 : i32, message = "bqk,bkc->bqc"}> : () -> ()
    %cst_20 = arith.constant dense<0.000000e+00> : vector<2x8x8xf32>
    %71 = tpu.matmul %69, %70, %cst_20 {dimension_numbers = #tpu.dot_dimension_numbers<[2], [1], [1], [2], [0, 0, 0, 1, 1, 2], [0], [0]>} : vector<2x8x8xf32>, vector<2x8x8xf32>, vector<2x8x8xf32> -> vector<2x8x8xf32>
    "tpu.trace_stop"() : () -> ()
    %72 = vector.extract_strided_slice %33 {offsets = [0, 0, 16], sizes = [2, 8, 8], strides = [1, 1, 1]} : vector<2x8x32xf32> to vector<2x8x8xf32>
    %73 = vector.extract_strided_slice %35 {offsets = [0, 0, 16], sizes = [2, 8, 8], strides = [1, 1, 1]} : vector<2x8x32xf32> to vector<2x8x8xf32>
    "tpu.trace_start"() <{level = 10 : i32, message = "bqc,bkc->bqk"}> : () -> ()
    %cst_21 = arith.constant dense<0.000000e+00> : vector<2x8x8xf32>
    %74 = tpu.matmul %72, %73, %cst_21 {dimension_numbers = #tpu.dot_dimension_numbers<[2], [2], [1], [1], [0, 0, 0, 1, 1, 1], [0], [0]>} : vector<2x8x8xf32>, vector<2x8x8xf32>, vector<2x8x8xf32> -> vector<2x8x8xf32>
    "tpu.trace_stop"() : () -> ()
    %cst_22 = arith.constant 0.353553385 : f32
    %75 = vector.broadcast %cst_22 : f32 to vector<2x8x8xf32>
    %76 = arith.mulf %74, %75 : vector<2x8x8xf32>
    %cst_23 = arith.constant dense<0xFF800000> : vector<2x8xf32>
    %77 = vector.multi_reduction <maximumf>, %76, %cst_23 [2] : vector<2x8x8xf32> to vector<2x8xf32>
    %78 = vector.shape_cast %77 : vector<2x8xf32> to vector<2x8x1xf32>
    %79 = vector.broadcast %78 : vector<2x8x1xf32> to vector<2x8x8xf32>
    %80 = arith.subf %76, %79 : vector<2x8x8xf32>
    %81 = math.exp %80 : vector<2x8x8xf32>
    %cst_24 = arith.constant dense<0.000000e+00> : vector<2x8xf32>
    %82 = vector.multi_reduction <add>, %81, %cst_24 [2] : vector<2x8x8xf32> to vector<2x8xf32>
    %83 = vector.shape_cast %82 : vector<2x8xf32> to vector<2x8x1xf32>
    %84 = tpu.reciprocal %83 {approx = true} : vector<2x8x1xf32> -> vector<2x8x1xf32>
    %85 = vector.broadcast %84 : vector<2x8x1xf32> to vector<2x8x8xf32>
    %86 = arith.mulf %81, %85 : vector<2x8x8xf32>
    %87 = vector.extract_strided_slice %37 {offsets = [0, 0, 16], sizes = [2, 8, 8], strides = [1, 1, 1]} : vector<2x8x32xf32> to vector<2x8x8xf32>
    "tpu.trace_start"() <{level = 10 : i32, message = "bqk,bkc->bqc"}> : () -> ()
    %cst_25 = arith.constant dense<0.000000e+00> : vector<2x8x8xf32>
    %88 = tpu.matmul %86, %87, %cst_25 {dimension_numbers = #tpu.dot_dimension_numbers<[2], [1], [1], [2], [0, 0, 0, 1, 1, 2], [0], [0]>} : vector<2x8x8xf32>, vector<2x8x8xf32>, vector<2x8x8xf32> -> vector<2x8x8xf32>
    "tpu.trace_stop"() : () -> ()
    %89 = vector.extract_strided_slice %33 {offsets = [0, 0, 24], sizes = [2, 8, 8], strides = [1, 1, 1]} : vector<2x8x32xf32> to vector<2x8x8xf32>
    %90 = vector.extract_strided_slice %35 {offsets = [0, 0, 24], sizes = [2, 8, 8], strides = [1, 1, 1]} : vector<2x8x32xf32> to vector<2x8x8xf32>
    "tpu.trace_start"() <{level = 10 : i32, message = "bqc,bkc->bqk"}> : () -> ()
    %cst_26 = arith.constant dense<0.000000e+00> : vector<2x8x8xf32>
    %91 = tpu.matmul %89, %90, %cst_26 {dimension_numbers = #tpu.dot_dimension_numbers<[2], [2], [1], [1], [0, 0, 0, 1, 1, 1], [0], [0]>} : vector<2x8x8xf32>, vector<2x8x8xf32>, vector<2x8x8xf32> -> vector<2x8x8xf32>
    "tpu.trace_stop"() : () -> ()
    %cst_27 = arith.constant 0.353553385 : f32
    %92 = vector.broadcast %cst_27 : f32 to vector<2x8x8xf32>
    %93 = arith.mulf %91, %92 : vector<2x8x8xf32>
    %cst_28 = arith.constant dense<0xFF800000> : vector<2x8xf32>
    %94 = vector.multi_reduction <maximumf>, %93, %cst_28 [2] : vector<2x8x8xf32> to vector<2x8xf32>
    %95 = vector.shape_cast %94 : vector<2x8xf32> to vector<2x8x1xf32>
    %96 = vector.broadcast %95 : vector<2x8x1xf32> to vector<2x8x8xf32>
    %97 = arith.subf %93, %96 : vector<2x8x8xf32>
    %98 = math.exp %97 : vector<2x8x8xf32>
    %cst_29 = arith.constant dense<0.000000e+00> : vector<2x8xf32>
    %99 = vector.multi_reduction <add>, %98, %cst_29 [2] : vector<2x8x8xf32> to vector<2x8xf32>
    %100 = vector.shape_cast %99 : vector<2x8xf32> to vector<2x8x1xf32>
    %101 = tpu.reciprocal %100 {approx = true} : vector<2x8x1xf32> -> vector<2x8x1xf32>
    %102 = vector.broadcast %101 : vector<2x8x1xf32> to vector<2x8x8xf32>
    %103 = arith.mulf %98, %102 : vector<2x8x8xf32>
    %104 = vector.extract_strided_slice %37 {offsets = [0, 0, 24], sizes = [2, 8, 8], strides = [1, 1, 1]} : vector<2x8x32xf32> to vector<2x8x8xf32>
    "tpu.trace_start"() <{level = 10 : i32, message = "bqk,bkc->bqc"}> : () -> ()
    %cst_30 = arith.constant dense<0.000000e+00> : vector<2x8x8xf32>
    %105 = tpu.matmul %103, %104, %cst_30 {dimension_numbers = #tpu.dot_dimension_numbers<[2], [1], [1], [2], [0, 0, 0, 1, 1, 2], [0], [0]>} : vector<2x8x8xf32>, vector<2x8x8xf32>, vector<2x8x8xf32> -> vector<2x8x8xf32>
    "tpu.trace_stop"() : () -> ()
    %106 = tpu.concatenate %54, %71, %88, %105 in 2 : vector<2x8x8xf32>, vector<2x8x8xf32>, vector<2x8x8xf32>, vector<2x8x8xf32> -> vector<2x8x32xf32>
    %107 = vector.shape_cast %106 : vector<2x8x32xf32> to vector<16x32xf32>
    %108 = arith.truncf %107 : vector<16x32xf32> to vector<16x32xbf16>
    %cst_31 = arith.constant dense<0.000000e+00> : vector<16x32xf32>
    %109 = tpu.matmul %108, %5, %cst_31 {dimension_numbers = #tpu.dot_dimension_numbers<[1], [0], [0], [1], [0, 0, 1, 1], [], []>} : vector<16x32xbf16>, vector<32x32xbf16>, vector<16x32xf32> -> vector<16x32xf32>
    %110 = vector.shape_cast %14 : vector<32xf32> to vector<1x32xf32>
    %111 = vector.broadcast %110 : vector<1x32xf32> to vector<16x32xf32>
    %112 = arith.addf %109, %111 : vector<16x32xf32>
    %113 = arith.addf %1, %112 : vector<16x32xf32>
    %cst_32 = arith.constant dense<0.000000e+00> : vector<16xf32>
    %114 = vector.multi_reduction <add>, %113, %cst_32 [1] : vector<16x32xf32> to vector<16xf32>
    %115 = vector.shape_cast %114 : vector<16xf32> to vector<16x1xf32>
    %cst_33 = arith.constant 3.200000e+01 : f32
    %116 = vector.broadcast %cst_33 : f32 to vector<16x1xf32>
    %117 = arith.divf %115, %116 : vector<16x1xf32>
    %118 = arith.mulf %113, %113 : vector<16x32xf32>
    %cst_34 = arith.constant dense<0.000000e+00> : vector<16xf32>
    %119 = vector.multi_reduction <add>, %118, %cst_34 [1] : vector<16x32xf32> to vector<16xf32>
    %120 = vector.shape_cast %119 : vector<16xf32> to vector<16x1xf32>
    %cst_35 = arith.constant 3.200000e+01 : f32
    %121 = vector.broadcast %cst_35 : f32 to vector<16x1xf32>
    %122 = arith.divf %120, %121 : vector<16x1xf32>
    %123 = arith.mulf %117, %117 : vector<16x1xf32>
    %124 = arith.subf %122, %123 : vector<16x1xf32>
    %125 = vector.broadcast %117 : vector<16x1xf32> to vector<16x32xf32>
    %126 = arith.subf %113, %125 : vector<16x32xf32>
    %cst_36 = arith.constant 9.99999974E-6 : f32
    %127 = vector.broadcast %cst_36 : f32 to vector<16x1xf32>
    %128 = arith.addf %124, %127 : vector<16x1xf32>
    %129 = math.rsqrt %128 : vector<16x1xf32>
    %130 = vector.broadcast %129 : vector<16x1xf32> to vector<16x32xf32>
    %131 = arith.mulf %126, %130 : vector<16x32xf32>
    %132 = vector.shape_cast %16 : vector<32xf32> to vector<1x32xf32>
    %133 = vector.broadcast %132 : vector<1x32xf32> to vector<16x32xf32>
    %134 = arith.mulf %131, %133 : vector<16x32xf32>
    %135 = vector.shape_cast %18 : vector<32xf32> to vector<1x32xf32>
    %136 = vector.broadcast %135 : vector<1x32xf32> to vector<16x32xf32>
    %137 = arith.addf %134, %136 : vector<16x32xf32>
    %138 = arith.truncf %137 : vector<16x32xf32> to vector<16x32xbf16>
    %cst_37 = arith.constant dense<0.000000e+00> : vector<16x2048xf32>
    %139 = tpu.matmul %138, %6, %cst_37 {dimension_numbers = #tpu.dot_dimension_numbers<[1], [0], [0], [1], [0, 0, 1, 1], [], []>} : vector<16x32xbf16>, vector<32x2048xbf16>, vector<16x2048xf32> -> vector<16x2048xf32>
    %140 = vector.shape_cast %20 : vector<2048xf32> to vector<1x2048xf32>
    %141 = vector.broadcast %140 : vector<1x2048xf32> to vector<16x2048xf32>
    %142 = arith.addf %139, %141 : vector<16x2048xf32>
    %cst_38 = arith.constant 0.000000e+00 : f32
    %143 = vector.broadcast %cst_38 : f32 to vector<16x2048xf32>
    %144 = arith.maximumf %142, %143 : vector<16x2048xf32>
    %145 = arith.truncf %144 : vector<16x2048xf32> to vector<16x2048xbf16>
    %cst_39 = arith.constant dense<0.000000e+00> : vector<16x32xf32>
    %146 = tpu.matmul %145, %8, %cst_39 {dimension_numbers = #tpu.dot_dimension_numbers<[1], [0], [0], [1], [0, 0, 1, 1], [], []>} : vector<16x2048xbf16>, vector<2048x32xbf16>, vector<16x32xf32> -> vector<16x32xf32>
    %147 = vector.shape_cast %22 : vector<32xf32> to vector<1x32xf32>
    %148 = vector.broadcast %147 : vector<1x32xf32> to vector<16x32xf32>
    %149 = arith.addf %146, %148 : vector<16x32xf32>
    %150 = arith.addf %137, %149 : vector<16x32xf32>
    %cst_40 = arith.constant dense<0.000000e+00> : vector<16xf32>
    %151 = vector.multi_reduction <add>, %150, %cst_40 [1] : vector<16x32xf32> to vector<16xf32>
    %152 = vector.shape_cast %151 : vector<16xf32> to vector<16x1xf32>
    %cst_41 = arith.constant 3.200000e+01 : f32
    %153 = vector.broadcast %cst_41 : f32 to vector<16x1xf32>
    %154 = arith.divf %152, %153 : vector<16x1xf32>
    %155 = arith.mulf %150, %150 : vector<16x32xf32>
    %cst_42 = arith.constant dense<0.000000e+00> : vector<16xf32>
    %156 = vector.multi_reduction <add>, %155, %cst_42 [1] : vector<16x32xf32> to vector<16xf32>
    %157 = vector.shape_cast %156 : vector<16xf32> to vector<16x1xf32>
    %cst_43 = arith.constant 3.200000e+01 : f32
    %158 = vector.broadcast %cst_43 : f32 to vector<16x1xf32>
    %159 = arith.divf %157, %158 : vector<16x1xf32>
    %160 = arith.mulf %154, %154 : vector<16x1xf32>
    %161 = arith.subf %159, %160 : vector<16x1xf32>
    %162 = vector.broadcast %154 : vector<16x1xf32> to vector<16x32xf32>
    %163 = arith.subf %150, %162 : vector<16x32xf32>
    %cst_44 = arith.constant 9.99999974E-6 : f32
    %164 = vector.broadcast %cst_44 : f32 to vector<16x1xf32>
    %165 = arith.addf %161, %164 : vector<16x1xf32>
    %166 = math.rsqrt %165 : vector<16x1xf32>
    %167 = vector.broadcast %166 : vector<16x1xf32> to vector<16x32xf32>
    %168 = arith.mulf %163, %167 : vector<16x32xf32>
    %169 = vector.shape_cast %24 : vector<32xf32> to vector<1x32xf32>
    %170 = vector.broadcast %169 : vector<1x32xf32> to vector<16x32xf32>
    %171 = arith.mulf %168, %170 : vector<16x32xf32>
    %172 = vector.shape_cast %26 : vector<32xf32> to vector<1x32xf32>
    %173 = vector.broadcast %172 : vector<1x32xf32> to vector<16x32xf32>
    %174 = arith.addf %171, %173 : vector<16x32xf32>
    %c1 = arith.constant 1 : index
    %c0_45 = arith.constant 0 : index
    %c0_46 = arith.constant 0 : index
    %175 = vector.load %arg1[%c1, %c0_45, %c0_46] : memref<2x32x2176xbf16, #tpu.memory_space<vmem>>, vector<1x32x2176xbf16>
    %176 = vector.shape_cast %175 : vector<1x32x2176xbf16> to vector<32x2176xbf16>
    %177 = vector.extract_strided_slice %176 {offsets = [0, 0], sizes = [32, 96], strides = [1, 1]} : vector<32x2176xbf16> to vector<32x96xbf16>
    %178 = vector.extract_strided_slice %176 {offsets = [0, 96], sizes = [32, 32], strides = [1, 1]} : vector<32x2176xbf16> to vector<32x32xbf16>
    %179 = vector.extract_strided_slice %176 {offsets = [0, 128], sizes = [32, 2048], strides = [1, 1]} : vector<32x2176xbf16> to vector<32x2048xbf16>
    %c1_47 = arith.constant 1 : index
    %c0_48 = arith.constant 0 : index
    %c0_49 = arith.constant 0 : index
    %180 = vector.load %arg2[%c1_47, %c0_48, %c0_49] : memref<2x2048x32xbf16, #tpu.memory_space<vmem>>, vector<1x2048x32xbf16>
    %181 = vector.shape_cast %180 : vector<1x2048x32xbf16> to vector<2048x32xbf16>
    %c1_50 = arith.constant 1 : index
    %c0_51 = arith.constant 0 : index
    %c0_52 = arith.constant 0 : index
    %182 = vector.load %arg3[%c1_50, %c0_51, %c0_52] : memref<2x8x2048xf32, #tpu.memory_space<vmem>>, vector<1x8x2048xf32>
    %183 = vector.shape_cast %182 : vector<1x8x2048xf32> to vector<8x2048xf32>
    %184 = vector.extract_strided_slice %183 {offsets = [0, 0], sizes = [1, 96], strides = [1, 1]} : vector<8x2048xf32> to vector<1x96xf32>
    %185 = vector.shape_cast %184 : vector<1x96xf32> to vector<96xf32>
    %186 = vector.extract_strided_slice %183 {offsets = [1, 0], sizes = [1, 32], strides = [1, 1]} : vector<8x2048xf32> to vector<1x32xf32>
    %187 = vector.shape_cast %186 : vector<1x32xf32> to vector<32xf32>
    %188 = vector.extract_strided_slice %183 {offsets = [2, 0], sizes = [1, 32], strides = [1, 1]} : vector<8x2048xf32> to vector<1x32xf32>
    %189 = vector.shape_cast %188 : vector<1x32xf32> to vector<32xf32>
    %190 = vector.extract_strided_slice %183 {offsets = [3, 0], sizes = [1, 32], strides = [1, 1]} : vector<8x2048xf32> to vector<1x32xf32>
    %191 = vector.shape_cast %190 : vector<1x32xf32> to vector<32xf32>
    %192 = vector.extract_strided_slice %183 {offsets = [4, 0], sizes = [1, 2048], strides = [1, 1]} : vector<8x2048xf32> to vector<1x2048xf32>
    %193 = vector.shape_cast %192 : vector<1x2048xf32> to vector<2048xf32>
    %194 = vector.extract_strided_slice %183 {offsets = [5, 0], sizes = [1, 32], strides = [1, 1]} : vector<8x2048xf32> to vector<1x32xf32>
    %195 = vector.shape_cast %194 : vector<1x32xf32> to vector<32xf32>
    %196 = vector.extract_strided_slice %183 {offsets = [6, 0], sizes = [1, 32], strides = [1, 1]} : vector<8x2048xf32> to vector<1x32xf32>
    %197 = vector.shape_cast %196 : vector<1x32xf32> to vector<32xf32>
    %198 = vector.extract_strided_slice %183 {offsets = [7, 0], sizes = [1, 32], strides = [1, 1]} : vector<8x2048xf32> to vector<1x32xf32>
    %199 = vector.shape_cast %198 : vector<1x32xf32> to vector<32xf32>
    %200 = arith.truncf %174 : vector<16x32xf32> to vector<16x32xbf16>
    %cst_53 = arith.constant dense<0.000000e+00> : vector<16x96xf32>
    %201 = tpu.matmul %200, %177, %cst_53 {dimension_numbers = #tpu.dot_dimension_numbers<[1], [0], [0], [1], [0, 0, 1, 1], [], []>} : vector<16x32xbf16>, vector<32x96xbf16>, vector<16x96xf32> -> vector<16x96xf32>
    %202 = vector.shape_cast %185 : vector<96xf32> to vector<1x96xf32>
    %203 = vector.broadcast %202 : vector<1x96xf32> to vector<16x96xf32>
    %204 = arith.addf %201, %203 : vector<16x96xf32>
    %205 = vector.extract_strided_slice %204 {offsets = [0, 0], sizes = [16, 32], strides = [1, 1]} : vector<16x96xf32> to vector<16x32xf32>
    %206 = vector.shape_cast %205 : vector<16x32xf32> to vector<2x8x32xf32>
    %207 = vector.extract_strided_slice %204 {offsets = [0, 32], sizes = [16, 32], strides = [1, 1]} : vector<16x96xf32> to vector<16x32xf32>
    %208 = vector.shape_cast %207 : vector<16x32xf32> to vector<2x8x32xf32>
    %209 = vector.extract_strided_slice %204 {offsets = [0, 64], sizes = [16, 32], strides = [1, 1]} : vector<16x96xf32> to vector<16x32xf32>
    %210 = vector.shape_cast %209 : vector<16x32xf32> to vector<2x8x32xf32>
    %211 = vector.extract_strided_slice %206 {offsets = [0, 0, 0], sizes = [2, 8, 8], strides = [1, 1, 1]} : vector<2x8x32xf32> to vector<2x8x8xf32>
    %212 = vector.extract_strided_slice %208 {offsets = [0, 0, 0], sizes = [2, 8, 8], strides = [1, 1, 1]} : vector<2x8x32xf32> to vector<2x8x8xf32>
    "tpu.trace_start"() <{level = 10 : i32, message = "bqc,bkc->bqk"}> : () -> ()
    %cst_54 = arith.constant dense<0.000000e+00> : vector<2x8x8xf32>
    %213 = tpu.matmul %211, %212, %cst_54 {dimension_numbers = #tpu.dot_dimension_numbers<[2], [2], [1], [1], [0, 0, 0, 1, 1, 1], [0], [0]>} : vector<2x8x8xf32>, vector<2x8x8xf32>, vector<2x8x8xf32> -> vector<2x8x8xf32>
    "tpu.trace_stop"() : () -> ()
    %cst_55 = arith.constant 0.353553385 : f32
    %214 = vector.broadcast %cst_55 : f32 to vector<2x8x8xf32>
    %215 = arith.mulf %213, %214 : vector<2x8x8xf32>
    %cst_56 = arith.constant dense<0xFF800000> : vector<2x8xf32>
    %216 = vector.multi_reduction <maximumf>, %215, %cst_56 [2] : vector<2x8x8xf32> to vector<2x8xf32>
    %217 = vector.shape_cast %216 : vector<2x8xf32> to vector<2x8x1xf32>
    %218 = vector.broadcast %217 : vector<2x8x1xf32> to vector<2x8x8xf32>
    %219 = arith.subf %215, %218 : vector<2x8x8xf32>
    %220 = math.exp %219 : vector<2x8x8xf32>
    %cst_57 = arith.constant dense<0.000000e+00> : vector<2x8xf32>
    %221 = vector.multi_reduction <add>, %220, %cst_57 [2] : vector<2x8x8xf32> to vector<2x8xf32>
    %222 = vector.shape_cast %221 : vector<2x8xf32> to vector<2x8x1xf32>
    %223 = tpu.reciprocal %222 {approx = true} : vector<2x8x1xf32> -> vector<2x8x1xf32>
    %224 = vector.broadcast %223 : vector<2x8x1xf32> to vector<2x8x8xf32>
    %225 = arith.mulf %220, %224 : vector<2x8x8xf32>
    %226 = vector.extract_strided_slice %210 {offsets = [0, 0, 0], sizes = [2, 8, 8], strides = [1, 1, 1]} : vector<2x8x32xf32> to vector<2x8x8xf32>
    "tpu.trace_start"() <{level = 10 : i32, message = "bqk,bkc->bqc"}> : () -> ()
    %cst_58 = arith.constant dense<0.000000e+00> : vector<2x8x8xf32>
    %227 = tpu.matmul %225, %226, %cst_58 {dimension_numbers = #tpu.dot_dimension_numbers<[2], [1], [1], [2], [0, 0, 0, 1, 1, 2], [0], [0]>} : vector<2x8x8xf32>, vector<2x8x8xf32>, vector<2x8x8xf32> -> vector<2x8x8xf32>
    "tpu.trace_stop"() : () -> ()
    %228 = vector.extract_strided_slice %206 {offsets = [0, 0, 8], sizes = [2, 8, 8], strides = [1, 1, 1]} : vector<2x8x32xf32> to vector<2x8x8xf32>
    %229 = vector.extract_strided_slice %208 {offsets = [0, 0, 8], sizes = [2, 8, 8], strides = [1, 1, 1]} : vector<2x8x32xf32> to vector<2x8x8xf32>
    "tpu.trace_start"() <{level = 10 : i32, message = "bqc,bkc->bqk"}> : () -> ()
    %cst_59 = arith.constant dense<0.000000e+00> : vector<2x8x8xf32>
    %230 = tpu.matmul %228, %229, %cst_59 {dimension_numbers = #tpu.dot_dimension_numbers<[2], [2], [1], [1], [0, 0, 0, 1, 1, 1], [0], [0]>} : vector<2x8x8xf32>, vector<2x8x8xf32>, vector<2x8x8xf32> -> vector<2x8x8xf32>
    "tpu.trace_stop"() : () -> ()
    %cst_60 = arith.constant 0.353553385 : f32
    %231 = vector.broadcast %cst_60 : f32 to vector<2x8x8xf32>
    %232 = arith.mulf %230, %231 : vector<2x8x8xf32>
    %cst_61 = arith.constant dense<0xFF800000> : vector<2x8xf32>
    %233 = vector.multi_reduction <maximumf>, %232, %cst_61 [2] : vector<2x8x8xf32> to vector<2x8xf32>
    %234 = vector.shape_cast %233 : vector<2x8xf32> to vector<2x8x1xf32>
    %235 = vector.broadcast %234 : vector<2x8x1xf32> to vector<2x8x8xf32>
    %236 = arith.subf %232, %235 : vector<2x8x8xf32>
    %237 = math.exp %236 : vector<2x8x8xf32>
    %cst_62 = arith.constant dense<0.000000e+00> : vector<2x8xf32>
    %238 = vector.multi_reduction <add>, %237, %cst_62 [2] : vector<2x8x8xf32> to vector<2x8xf32>
    %239 = vector.shape_cast %238 : vector<2x8xf32> to vector<2x8x1xf32>
    %240 = tpu.reciprocal %239 {approx = true} : vector<2x8x1xf32> -> vector<2x8x1xf32>
    %241 = vector.broadcast %240 : vector<2x8x1xf32> to vector<2x8x8xf32>
    %242 = arith.mulf %237, %241 : vector<2x8x8xf32>
    %243 = vector.extract_strided_slice %210 {offsets = [0, 0, 8], sizes = [2, 8, 8], strides = [1, 1, 1]} : vector<2x8x32xf32> to vector<2x8x8xf32>
    "tpu.trace_start"() <{level = 10 : i32, message = "bqk,bkc->bqc"}> : () -> ()
    %cst_63 = arith.constant dense<0.000000e+00> : vector<2x8x8xf32>
    %244 = tpu.matmul %242, %243, %cst_63 {dimension_numbers = #tpu.dot_dimension_numbers<[2], [1], [1], [2], [0, 0, 0, 1, 1, 2], [0], [0]>} : vector<2x8x8xf32>, vector<2x8x8xf32>, vector<2x8x8xf32> -> vector<2x8x8xf32>
    "tpu.trace_stop"() : () -> ()
    %245 = vector.extract_strided_slice %206 {offsets = [0, 0, 16], sizes = [2, 8, 8], strides = [1, 1, 1]} : vector<2x8x32xf32> to vector<2x8x8xf32>
    %246 = vector.extract_strided_slice %208 {offsets = [0, 0, 16], sizes = [2, 8, 8], strides = [1, 1, 1]} : vector<2x8x32xf32> to vector<2x8x8xf32>
    "tpu.trace_start"() <{level = 10 : i32, message = "bqc,bkc->bqk"}> : () -> ()
    %cst_64 = arith.constant dense<0.000000e+00> : vector<2x8x8xf32>
    %247 = tpu.matmul %245, %246, %cst_64 {dimension_numbers = #tpu.dot_dimension_numbers<[2], [2], [1], [1], [0, 0, 0, 1, 1, 1], [0], [0]>} : vector<2x8x8xf32>, vector<2x8x8xf32>, vector<2x8x8xf32> -> vector<2x8x8xf32>
    "tpu.trace_stop"() : () -> ()
    %cst_65 = arith.constant 0.353553385 : f32
    %248 = vector.broadcast %cst_65 : f32 to vector<2x8x8xf32>
    %249 = arith.mulf %247, %248 : vector<2x8x8xf32>
    %cst_66 = arith.constant dense<0xFF800000> : vector<2x8xf32>
    %250 = vector.multi_reduction <maximumf>, %249, %cst_66 [2] : vector<2x8x8xf32> to vector<2x8xf32>
    %251 = vector.shape_cast %250 : vector<2x8xf32> to vector<2x8x1xf32>
    %252 = vector.broadcast %251 : vector<2x8x1xf32> to vector<2x8x8xf32>
    %253 = arith.subf %249, %252 : vector<2x8x8xf32>
    %254 = math.exp %253 : vector<2x8x8xf32>
    %cst_67 = arith.constant dense<0.000000e+00> : vector<2x8xf32>
    %255 = vector.multi_reduction <add>, %254, %cst_67 [2] : vector<2x8x8xf32> to vector<2x8xf32>
    %256 = vector.shape_cast %255 : vector<2x8xf32> to vector<2x8x1xf32>
    %257 = tpu.reciprocal %256 {approx = true} : vector<2x8x1xf32> -> vector<2x8x1xf32>
    %258 = vector.broadcast %257 : vector<2x8x1xf32> to vector<2x8x8xf32>
    %259 = arith.mulf %254, %258 : vector<2x8x8xf32>
    %260 = vector.extract_strided_slice %210 {offsets = [0, 0, 16], sizes = [2, 8, 8], strides = [1, 1, 1]} : vector<2x8x32xf32> to vector<2x8x8xf32>
    "tpu.trace_start"() <{level = 10 : i32, message = "bqk,bkc->bqc"}> : () -> ()
    %cst_68 = arith.constant dense<0.000000e+00> : vector<2x8x8xf32>
    %261 = tpu.matmul %259, %260, %cst_68 {dimension_numbers = #tpu.dot_dimension_numbers<[2], [1], [1], [2], [0, 0, 0, 1, 1, 2], [0], [0]>} : vector<2x8x8xf32>, vector<2x8x8xf32>, vector<2x8x8xf32> -> vector<2x8x8xf32>
    "tpu.trace_stop"() : () -> ()
    %262 = vector.extract_strided_slice %206 {offsets = [0, 0, 24], sizes = [2, 8, 8], strides = [1, 1, 1]} : vector<2x8x32xf32> to vector<2x8x8xf32>
    %263 = vector.extract_strided_slice %208 {offsets = [0, 0, 24], sizes = [2, 8, 8], strides = [1, 1, 1]} : vector<2x8x32xf32> to vector<2x8x8xf32>
    "tpu.trace_start"() <{level = 10 : i32, message = "bqc,bkc->bqk"}> : () -> ()
    %cst_69 = arith.constant dense<0.000000e+00> : vector<2x8x8xf32>
    %264 = tpu.matmul %262, %263, %cst_69 {dimension_numbers = #tpu.dot_dimension_numbers<[2], [2], [1], [1], [0, 0, 0, 1, 1, 1], [0], [0]>} : vector<2x8x8xf32>, vector<2x8x8xf32>, vector<2x8x8xf32> -> vector<2x8x8xf32>
    "tpu.trace_stop"() : () -> ()
    %cst_70 = arith.constant 0.353553385 : f32
    %265 = vector.broadcast %cst_70 : f32 to vector<2x8x8xf32>
    %266 = arith.mulf %264, %265 : vector<2x8x8xf32>
    %cst_71 = arith.constant dense<0xFF800000> : vector<2x8xf32>
    %267 = vector.multi_reduction <maximumf>, %266, %cst_71 [2] : vector<2x8x8xf32> to vector<2x8xf32>
    %268 = vector.shape_cast %267 : vector<2x8xf32> to vector<2x8x1xf32>
    %269 = vector.broadcast %268 : vector<2x8x1xf32> to vector<2x8x8xf32>
    %270 = arith.subf %266, %269 : vector<2x8x8xf32>
    %271 = math.exp %270 : vector<2x8x8xf32>
    %cst_72 = arith.constant dense<0.000000e+00> : vector<2x8xf32>
    %272 = vector.multi_reduction <add>, %271, %cst_72 [2] : vector<2x8x8xf32> to vector<2x8xf32>
    %273 = vector.shape_cast %272 : vector<2x8xf32> to vector<2x8x1xf32>
    %274 = tpu.reciprocal %273 {approx = true} : vector<2x8x1xf32> -> vector<2x8x1xf32>
    %275 = vector.broadcast %274 : vector<2x8x1xf32> to vector<2x8x8xf32>
    %276 = arith.mulf %271, %275 : vector<2x8x8xf32>
    %277 = vector.extract_strided_slice %210 {offsets = [0, 0, 24], sizes = [2, 8, 8], strides = [1, 1, 1]} : vector<2x8x32xf32> to vector<2x8x8xf32>
    "tpu.trace_start"() <{level = 10 : i32, message = "bqk,bkc->bqc"}> : () -> ()
    %cst_73 = arith.constant dense<0.000000e+00> : vector<2x8x8xf32>
    %278 = tpu.matmul %276, %277, %cst_73 {dimension_numbers = #tpu.dot_dimension_numbers<[2], [1], [1], [2], [0, 0, 0, 1, 1, 2], [0], [0]>} : vector<2x8x8xf32>, vector<2x8x8xf32>, vector<2x8x8xf32> -> vector<2x8x8xf32>
    "tpu.trace_stop"() : () -> ()
    %279 = tpu.concatenate %227, %244, %261, %278 in 2 : vector<2x8x8xf32>, vector<2x8x8xf32>, vector<2x8x8xf32>, vector<2x8x8xf32> -> vector<2x8x32xf32>
    %280 = vector.shape_cast %279 : vector<2x8x32xf32> to vector<16x32xf32>
    %281 = arith.truncf %280 : vector<16x32xf32> to vector<16x32xbf16>
    %cst_74 = arith.constant dense<0.000000e+00> : vector<16x32xf32>
    %282 = tpu.matmul %281, %178, %cst_74 {dimension_numbers = #tpu.dot_dimension_numbers<[1], [0], [0], [1], [0, 0, 1, 1], [], []>} : vector<16x32xbf16>, vector<32x32xbf16>, vector<16x32xf32> -> vector<16x32xf32>
    %283 = vector.shape_cast %187 : vector<32xf32> to vector<1x32xf32>
    %284 = vector.broadcast %283 : vector<1x32xf32> to vector<16x32xf32>
    %285 = arith.addf %282, %284 : vector<16x32xf32>
    %286 = arith.addf %174, %285 : vector<16x32xf32>
    %cst_75 = arith.constant dense<0.000000e+00> : vector<16xf32>
    %287 = vector.multi_reduction <add>, %286, %cst_75 [1] : vector<16x32xf32> to vector<16xf32>
    %288 = vector.shape_cast %287 : vector<16xf32> to vector<16x1xf32>
    %cst_76 = arith.constant 3.200000e+01 : f32
    %289 = vector.broadcast %cst_76 : f32 to vector<16x1xf32>
    %290 = arith.divf %288, %289 : vector<16x1xf32>
    %291 = arith.mulf %286, %286 : vector<16x32xf32>
    %cst_77 = arith.constant dense<0.000000e+00> : vector<16xf32>
    %292 = vector.multi_reduction <add>, %291, %cst_77 [1] : vector<16x32xf32> to vector<16xf32>
    %293 = vector.shape_cast %292 : vector<16xf32> to vector<16x1xf32>
    %cst_78 = arith.constant 3.200000e+01 : f32
    %294 = vector.broadcast %cst_78 : f32 to vector<16x1xf32>
    %295 = arith.divf %293, %294 : vector<16x1xf32>
    %296 = arith.mulf %290, %290 : vector<16x1xf32>
    %297 = arith.subf %295, %296 : vector<16x1xf32>
    %298 = vector.broadcast %290 : vector<16x1xf32> to vector<16x32xf32>
    %299 = arith.subf %286, %298 : vector<16x32xf32>
    %cst_79 = arith.constant 9.99999974E-6 : f32
    %300 = vector.broadcast %cst_79 : f32 to vector<16x1xf32>
    %301 = arith.addf %297, %300 : vector<16x1xf32>
    %302 = math.rsqrt %301 : vector<16x1xf32>
    %303 = vector.broadcast %302 : vector<16x1xf32> to vector<16x32xf32>
    %304 = arith.mulf %299, %303 : vector<16x32xf32>
    %305 = vector.shape_cast %189 : vector<32xf32> to vector<1x32xf32>
    %306 = vector.broadcast %305 : vector<1x32xf32> to vector<16x32xf32>
    %307 = arith.mulf %304, %306 : vector<16x32xf32>
    %308 = vector.shape_cast %191 : vector<32xf32> to vector<1x32xf32>
    %309 = vector.broadcast %308 : vector<1x32xf32> to vector<16x32xf32>
    %310 = arith.addf %307, %309 : vector<16x32xf32>
    %311 = arith.truncf %310 : vector<16x32xf32> to vector<16x32xbf16>
    %cst_80 = arith.constant dense<0.000000e+00> : vector<16x2048xf32>
    %312 = tpu.matmul %311, %179, %cst_80 {dimension_numbers = #tpu.dot_dimension_numbers<[1], [0], [0], [1], [0, 0, 1, 1], [], []>} : vector<16x32xbf16>, vector<32x2048xbf16>, vector<16x2048xf32> -> vector<16x2048xf32>
    %313 = vector.shape_cast %193 : vector<2048xf32> to vector<1x2048xf32>
    %314 = vector.broadcast %313 : vector<1x2048xf32> to vector<16x2048xf32>
    %315 = arith.addf %312, %314 : vector<16x2048xf32>
    %cst_81 = arith.constant 0.000000e+00 : f32
    %316 = vector.broadcast %cst_81 : f32 to vector<16x2048xf32>
    %317 = arith.maximumf %315, %316 : vector<16x2048xf32>
    %318 = arith.truncf %317 : vector<16x2048xf32> to vector<16x2048xbf16>
    %cst_82 = arith.constant dense<0.000000e+00> : vector<16x32xf32>
    %319 = tpu.matmul %318, %181, %cst_82 {dimension_numbers = #tpu.dot_dimension_numbers<[1], [0], [0], [1], [0, 0, 1, 1], [], []>} : vector<16x2048xbf16>, vector<2048x32xbf16>, vector<16x32xf32> -> vector<16x32xf32>
    %320 = vector.shape_cast %195 : vector<32xf32> to vector<1x32xf32>
    %321 = vector.broadcast %320 : vector<1x32xf32> to vector<16x32xf32>
    %322 = arith.addf %319, %321 : vector<16x32xf32>
    %323 = arith.addf %310, %322 : vector<16x32xf32>
    %cst_83 = arith.constant dense<0.000000e+00> : vector<16xf32>
    %324 = vector.multi_reduction <add>, %323, %cst_83 [1] : vector<16x32xf32> to vector<16xf32>
    %325 = vector.shape_cast %324 : vector<16xf32> to vector<16x1xf32>
    %cst_84 = arith.constant 3.200000e+01 : f32
    %326 = vector.broadcast %cst_84 : f32 to vector<16x1xf32>
    %327 = arith.divf %325, %326 : vector<16x1xf32>
    %328 = arith.mulf %323, %323 : vector<16x32xf32>
    %cst_85 = arith.constant dense<0.000000e+00> : vector<16xf32>
    %329 = vector.multi_reduction <add>, %328, %cst_85 [1] : vector<16x32xf32> to vector<16xf32>
    %330 = vector.shape_cast %329 : vector<16xf32> to vector<16x1xf32>
    %cst_86 = arith.constant 3.200000e+01 : f32
    %331 = vector.broadcast %cst_86 : f32 to vector<16x1xf32>
    %332 = arith.divf %330, %331 : vector<16x1xf32>
    %333 = arith.mulf %327, %327 : vector<16x1xf32>
    %334 = arith.subf %332, %333 : vector<16x1xf32>
    %335 = vector.broadcast %327 : vector<16x1xf32> to vector<16x32xf32>
    %336 = arith.subf %323, %335 : vector<16x32xf32>
    %cst_87 = arith.constant 9.99999974E-6 : f32
    %337 = vector.broadcast %cst_87 : f32 to vector<16x1xf32>
    %338 = arith.addf %334, %337 : vector<16x1xf32>
    %339 = math.rsqrt %338 : vector<16x1xf32>
    %340 = vector.broadcast %339 : vector<16x1xf32> to vector<16x32xf32>
    %341 = arith.mulf %336, %340 : vector<16x32xf32>
    %342 = vector.shape_cast %197 : vector<32xf32> to vector<1x32xf32>
    %343 = vector.broadcast %342 : vector<1x32xf32> to vector<16x32xf32>
    %344 = arith.mulf %341, %343 : vector<16x32xf32>
    %345 = vector.shape_cast %199 : vector<32xf32> to vector<1x32xf32>
    %346 = vector.broadcast %345 : vector<1x32xf32> to vector<16x32xf32>
    %347 = arith.addf %344, %346 : vector<16x32xf32>
    %348 = vector.shape_cast %347 : vector<16x32xf32> to vector<2x8x32xf32>
    %349 = vector.extract_strided_slice %348 {offsets = [0, 7, 0], sizes = [2, 1, 32], strides = [1, 1, 1]} : vector<2x8x32xf32> to vector<2x1x32xf32>
    %350 = vector.shape_cast %349 : vector<2x1x32xf32> to vector<2x32xf32>
    %c0_88 = arith.constant 0 : index
    %c0_89 = arith.constant 0 : index
    %c0_90 = arith.constant 0 : index
    %351 = vector.load %arg4[%c0_88, %c0_89, %c0_90] : memref<1x32x2080xbf16, #tpu.memory_space<vmem>>, vector<1x32x2080xbf16>
    %352 = vector.shape_cast %351 : vector<1x32x2080xbf16> to vector<32x2080xbf16>
    %c0_91 = arith.constant 0 : index
    %c0_92 = arith.constant 0 : index
    %c0_93 = arith.constant 0 : index
    %353 = vector.load %arg6[%c0_91, %c0_92, %c0_93] : memref<1x7x2048xf32, #tpu.memory_space<vmem>>, vector<1x7x2048xf32>
    %354 = vector.shape_cast %353 : vector<1x7x2048xf32> to vector<7x2048xf32>
    %355 = vector.extract_strided_slice %352 {offsets = [0, 0], sizes = [32, 32], strides = [1, 1]} : vector<32x2080xbf16> to vector<32x32xbf16>
    %356 = vector.extract_strided_slice %354 {offsets = [0, 0], sizes = [1, 32], strides = [1, 1]} : vector<7x2048xf32> to vector<1x32xf32>
    %357 = vector.shape_cast %356 : vector<1x32xf32> to vector<32xf32>
    %358 = vector.extract_strided_slice %354 {offsets = [1, 0], sizes = [1, 32], strides = [1, 1]} : vector<7x2048xf32> to vector<1x32xf32>
    %359 = vector.shape_cast %358 : vector<1x32xf32> to vector<32xf32>
    %360 = vector.extract_strided_slice %354 {offsets = [2, 0], sizes = [1, 32], strides = [1, 1]} : vector<7x2048xf32> to vector<1x32xf32>
    %361 = vector.shape_cast %360 : vector<1x32xf32> to vector<32xf32>
    %362 = vector.extract_strided_slice %352 {offsets = [0, 32], sizes = [32, 2048], strides = [1, 1]} : vector<32x2080xbf16> to vector<32x2048xbf16>
    %363 = vector.extract_strided_slice %354 {offsets = [3, 0], sizes = [1, 2048], strides = [1, 1]} : vector<7x2048xf32> to vector<1x2048xf32>
    %364 = vector.shape_cast %363 : vector<1x2048xf32> to vector<2048xf32>
    %c0_94 = arith.constant 0 : index
    %c0_95 = arith.constant 0 : index
    %c0_96 = arith.constant 0 : index
    %365 = vector.load %arg5[%c0_94, %c0_95, %c0_96] : memref<1x2048x32xbf16, #tpu.memory_space<vmem>>, vector<1x2048x32xbf16>
    %366 = vector.shape_cast %365 : vector<1x2048x32xbf16> to vector<2048x32xbf16>
    %367 = vector.extract_strided_slice %354 {offsets = [4, 0], sizes = [1, 32], strides = [1, 1]} : vector<7x2048xf32> to vector<1x32xf32>
    %368 = vector.shape_cast %367 : vector<1x32xf32> to vector<32xf32>
    %369 = vector.extract_strided_slice %354 {offsets = [5, 0], sizes = [1, 32], strides = [1, 1]} : vector<7x2048xf32> to vector<1x32xf32>
    %370 = vector.shape_cast %369 : vector<1x32xf32> to vector<32xf32>
    %371 = vector.extract_strided_slice %354 {offsets = [6, 0], sizes = [1, 32], strides = [1, 1]} : vector<7x2048xf32> to vector<1x32xf32>
    %372 = vector.shape_cast %371 : vector<1x32xf32> to vector<32xf32>
    %373 = arith.truncf %350 : vector<2x32xf32> to vector<2x32xbf16>
    %cst_97 = arith.constant dense<0.000000e+00> : vector<2x32xf32>
    %374 = tpu.matmul %373, %355, %cst_97 {dimension_numbers = #tpu.dot_dimension_numbers<[1], [0], [0], [1], [0, 0, 1, 1], [], []>} : vector<2x32xbf16>, vector<32x32xbf16>, vector<2x32xf32> -> vector<2x32xf32>
    %375 = vector.shape_cast %357 : vector<32xf32> to vector<1x32xf32>
    %376 = vector.broadcast %375 : vector<1x32xf32> to vector<2x32xf32>
    %377 = arith.addf %374, %376 : vector<2x32xf32>
    %378 = arith.addf %350, %377 : vector<2x32xf32>
    %cst_98 = arith.constant dense<0.000000e+00> : vector<2xf32>
    %379 = vector.multi_reduction <add>, %378, %cst_98 [1] : vector<2x32xf32> to vector<2xf32>
    %380 = vector.shape_cast %379 : vector<2xf32> to vector<2x1xf32>
    %cst_99 = arith.constant 3.200000e+01 : f32
    %381 = vector.broadcast %cst_99 : f32 to vector<2x1xf32>
    %382 = arith.divf %380, %381 : vector<2x1xf32>
    %383 = arith.mulf %378, %378 : vector<2x32xf32>
    %cst_100 = arith.constant dense<0.000000e+00> : vector<2xf32>
    %384 = vector.multi_reduction <add>, %383, %cst_100 [1] : vector<2x32xf32> to vector<2xf32>
    %385 = vector.shape_cast %384 : vector<2xf32> to vector<2x1xf32>
    %cst_101 = arith.constant 3.200000e+01 : f32
    %386 = vector.broadcast %cst_101 : f32 to vector<2x1xf32>
    %387 = arith.divf %385, %386 : vector<2x1xf32>
    %388 = arith.mulf %382, %382 : vector<2x1xf32>
    %389 = arith.subf %387, %388 : vector<2x1xf32>
    %390 = vector.broadcast %382 : vector<2x1xf32> to vector<2x32xf32>
    %391 = arith.subf %378, %390 : vector<2x32xf32>
    %cst_102 = arith.constant 9.99999974E-6 : f32
    %392 = vector.broadcast %cst_102 : f32 to vector<2x1xf32>
    %393 = arith.addf %389, %392 : vector<2x1xf32>
    %394 = math.rsqrt %393 : vector<2x1xf32>
    %395 = vector.broadcast %394 : vector<2x1xf32> to vector<2x32xf32>
    %396 = arith.mulf %391, %395 : vector<2x32xf32>
    %397 = vector.shape_cast %359 : vector<32xf32> to vector<1x32xf32>
    %398 = vector.broadcast %397 : vector<1x32xf32> to vector<2x32xf32>
    %399 = arith.mulf %396, %398 : vector<2x32xf32>
    %400 = vector.shape_cast %361 : vector<32xf32> to vector<1x32xf32>
    %401 = vector.broadcast %400 : vector<1x32xf32> to vector<2x32xf32>
    %402 = arith.addf %399, %401 : vector<2x32xf32>
    %403 = arith.truncf %402 : vector<2x32xf32> to vector<2x32xbf16>
    %cst_103 = arith.constant dense<0.000000e+00> : vector<2x2048xf32>
    %404 = tpu.matmul %403, %362, %cst_103 {dimension_numbers = #tpu.dot_dimension_numbers<[1], [0], [0], [1], [0, 0, 1, 1], [], []>} : vector<2x32xbf16>, vector<32x2048xbf16>, vector<2x2048xf32> -> vector<2x2048xf32>
    %405 = vector.shape_cast %364 : vector<2048xf32> to vector<1x2048xf32>
    %406 = vector.broadcast %405 : vector<1x2048xf32> to vector<2x2048xf32>
    %407 = arith.addf %404, %406 : vector<2x2048xf32>
    %cst_104 = arith.constant 0.000000e+00 : f32
    %408 = vector.broadcast %cst_104 : f32 to vector<2x2048xf32>
    %409 = arith.maximumf %407, %408 : vector<2x2048xf32>
    %410 = arith.truncf %409 : vector<2x2048xf32> to vector<2x2048xbf16>
    %cst_105 = arith.constant dense<0.000000e+00> : vector<2x32xf32>
    %411 = tpu.matmul %410, %366, %cst_105 {dimension_numbers = #tpu.dot_dimension_numbers<[1], [0], [0], [1], [0, 0, 1, 1], [], []>} : vector<2x2048xbf16>, vector<2048x32xbf16>, vector<2x32xf32> -> vector<2x32xf32>
    %412 = vector.shape_cast %368 : vector<32xf32> to vector<1x32xf32>
    %413 = vector.broadcast %412 : vector<1x32xf32> to vector<2x32xf32>
    %414 = arith.addf %411, %413 : vector<2x32xf32>
    %415 = arith.addf %402, %414 : vector<2x32xf32>
    %cst_106 = arith.constant dense<0.000000e+00> : vector<2xf32>
    %416 = vector.multi_reduction <add>, %415, %cst_106 [1] : vector<2x32xf32> to vector<2xf32>
    %417 = vector.shape_cast %416 : vector<2xf32> to vector<2x1xf32>
    %cst_107 = arith.constant 3.200000e+01 : f32
    %418 = vector.broadcast %cst_107 : f32 to vector<2x1xf32>
    %419 = arith.divf %417, %418 : vector<2x1xf32>
    %420 = arith.mulf %415, %415 : vector<2x32xf32>
    %cst_108 = arith.constant dense<0.000000e+00> : vector<2xf32>
    %421 = vector.multi_reduction <add>, %420, %cst_108 [1] : vector<2x32xf32> to vector<2xf32>
    %422 = vector.shape_cast %421 : vector<2xf32> to vector<2x1xf32>
    %cst_109 = arith.constant 3.200000e+01 : f32
    %423 = vector.broadcast %cst_109 : f32 to vector<2x1xf32>
    %424 = arith.divf %422, %423 : vector<2x1xf32>
    %425 = arith.mulf %419, %419 : vector<2x1xf32>
    %426 = arith.subf %424, %425 : vector<2x1xf32>
    %427 = vector.broadcast %419 : vector<2x1xf32> to vector<2x32xf32>
    %428 = arith.subf %415, %427 : vector<2x32xf32>
    %cst_110 = arith.constant 9.99999974E-6 : f32
    %429 = vector.broadcast %cst_110 : f32 to vector<2x1xf32>
    %430 = arith.addf %426, %429 : vector<2x1xf32>
    %431 = math.rsqrt %430 : vector<2x1xf32>
    %432 = vector.broadcast %431 : vector<2x1xf32> to vector<2x32xf32>
    %433 = arith.mulf %428, %432 : vector<2x32xf32>
    %434 = vector.shape_cast %370 : vector<32xf32> to vector<1x32xf32>
    %435 = vector.broadcast %434 : vector<1x32xf32> to vector<2x32xf32>
    %436 = arith.mulf %433, %435 : vector<2x32xf32>
    %437 = vector.shape_cast %372 : vector<32xf32> to vector<1x32xf32>
    %438 = vector.broadcast %437 : vector<1x32xf32> to vector<2x32xf32>
    %439 = arith.addf %436, %438 : vector<2x32xf32>
    %440 = arith.truncf %439 : vector<2x32xf32> to vector<2x32xbf16>
    %cst_111 = arith.constant dense<0.000000e+00> : vector<2x32xf32>
    %441 = tpu.matmul %440, %355, %cst_111 {dimension_numbers = #tpu.dot_dimension_numbers<[1], [0], [0], [1], [0, 0, 1, 1], [], []>} : vector<2x32xbf16>, vector<32x32xbf16>, vector<2x32xf32> -> vector<2x32xf32>
    %442 = vector.shape_cast %357 : vector<32xf32> to vector<1x32xf32>
    %443 = vector.broadcast %442 : vector<1x32xf32> to vector<2x32xf32>
    %444 = arith.addf %441, %443 : vector<2x32xf32>
    %445 = arith.addf %439, %444 : vector<2x32xf32>
    %cst_112 = arith.constant dense<0.000000e+00> : vector<2xf32>
    %446 = vector.multi_reduction <add>, %445, %cst_112 [1] : vector<2x32xf32> to vector<2xf32>
    %447 = vector.shape_cast %446 : vector<2xf32> to vector<2x1xf32>
    %cst_113 = arith.constant 3.200000e+01 : f32
    %448 = vector.broadcast %cst_113 : f32 to vector<2x1xf32>
    %449 = arith.divf %447, %448 : vector<2x1xf32>
    %450 = arith.mulf %445, %445 : vector<2x32xf32>
    %cst_114 = arith.constant dense<0.000000e+00> : vector<2xf32>
    %451 = vector.multi_reduction <add>, %450, %cst_114 [1] : vector<2x32xf32> to vector<2xf32>
    %452 = vector.shape_cast %451 : vector<2xf32> to vector<2x1xf32>
    %cst_115 = arith.constant 3.200000e+01 : f32
    %453 = vector.broadcast %cst_115 : f32 to vector<2x1xf32>
    %454 = arith.divf %452, %453 : vector<2x1xf32>
    %455 = arith.mulf %449, %449 : vector<2x1xf32>
    %456 = arith.subf %454, %455 : vector<2x1xf32>
    %457 = vector.broadcast %449 : vector<2x1xf32> to vector<2x32xf32>
    %458 = arith.subf %445, %457 : vector<2x32xf32>
    %cst_116 = arith.constant 9.99999974E-6 : f32
    %459 = vector.broadcast %cst_116 : f32 to vector<2x1xf32>
    %460 = arith.addf %456, %459 : vector<2x1xf32>
    %461 = math.rsqrt %460 : vector<2x1xf32>
    %462 = vector.broadcast %461 : vector<2x1xf32> to vector<2x32xf32>
    %463 = arith.mulf %458, %462 : vector<2x32xf32>
    %464 = vector.shape_cast %359 : vector<32xf32> to vector<1x32xf32>
    %465 = vector.broadcast %464 : vector<1x32xf32> to vector<2x32xf32>
    %466 = arith.mulf %463, %465 : vector<2x32xf32>
    %467 = vector.shape_cast %361 : vector<32xf32> to vector<1x32xf32>
    %468 = vector.broadcast %467 : vector<1x32xf32> to vector<2x32xf32>
    %469 = arith.addf %466, %468 : vector<2x32xf32>
    %470 = arith.truncf %469 : vector<2x32xf32> to vector<2x32xbf16>
    %cst_117 = arith.constant dense<0.000000e+00> : vector<2x2048xf32>
    %471 = tpu.matmul %470, %362, %cst_117 {dimension_numbers = #tpu.dot_dimension_numbers<[1], [0], [0], [1], [0, 0, 1, 1], [], []>} : vector<2x32xbf16>, vector<32x2048xbf16>, vector<2x2048xf32> -> vector<2x2048xf32>
    %472 = vector.shape_cast %364 : vector<2048xf32> to vector<1x2048xf32>
    %473 = vector.broadcast %472 : vector<1x2048xf32> to vector<2x2048xf32>
    %474 = arith.addf %471, %473 : vector<2x2048xf32>
    %cst_118 = arith.constant 0.000000e+00 : f32
    %475 = vector.broadcast %cst_118 : f32 to vector<2x2048xf32>
    %476 = arith.maximumf %474, %475 : vector<2x2048xf32>
    %477 = arith.truncf %476 : vector<2x2048xf32> to vector<2x2048xbf16>
    %cst_119 = arith.constant dense<0.000000e+00> : vector<2x32xf32>
    %478 = tpu.matmul %477, %366, %cst_119 {dimension_numbers = #tpu.dot_dimension_numbers<[1], [0], [0], [1], [0, 0, 1, 1], [], []>} : vector<2x2048xbf16>, vector<2048x32xbf16>, vector<2x32xf32> -> vector<2x32xf32>
    %479 = vector.shape_cast %368 : vector<32xf32> to vector<1x32xf32>
    %480 = vector.broadcast %479 : vector<1x32xf32> to vector<2x32xf32>
    %481 = arith.addf %478, %480 : vector<2x32xf32>
    %482 = arith.addf %469, %481 : vector<2x32xf32>
    %cst_120 = arith.constant dense<0.000000e+00> : vector<2xf32>
    %483 = vector.multi_reduction <add>, %482, %cst_120 [1] : vector<2x32xf32> to vector<2xf32>
    %484 = vector.shape_cast %483 : vector<2xf32> to vector<2x1xf32>
    %cst_121 = arith.constant 3.200000e+01 : f32
    %485 = vector.broadcast %cst_121 : f32 to vector<2x1xf32>
    %486 = arith.divf %484, %485 : vector<2x1xf32>
    %487 = arith.mulf %482, %482 : vector<2x32xf32>
    %cst_122 = arith.constant dense<0.000000e+00> : vector<2xf32>
    %488 = vector.multi_reduction <add>, %487, %cst_122 [1] : vector<2x32xf32> to vector<2xf32>
    %489 = vector.shape_cast %488 : vector<2xf32> to vector<2x1xf32>
    %cst_123 = arith.constant 3.200000e+01 : f32
    %490 = vector.broadcast %cst_123 : f32 to vector<2x1xf32>
    %491 = arith.divf %489, %490 : vector<2x1xf32>
    %492 = arith.mulf %486, %486 : vector<2x1xf32>
    %493 = arith.subf %491, %492 : vector<2x1xf32>
    %494 = vector.broadcast %486 : vector<2x1xf32> to vector<2x32xf32>
    %495 = arith.subf %482, %494 : vector<2x32xf32>
    %cst_124 = arith.constant 9.99999974E-6 : f32
    %496 = vector.broadcast %cst_124 : f32 to vector<2x1xf32>
    %497 = arith.addf %493, %496 : vector<2x1xf32>
    %498 = math.rsqrt %497 : vector<2x1xf32>
    %499 = vector.broadcast %498 : vector<2x1xf32> to vector<2x32xf32>
    %500 = arith.mulf %495, %499 : vector<2x32xf32>
    %501 = vector.shape_cast %370 : vector<32xf32> to vector<1x32xf32>
    %502 = vector.broadcast %501 : vector<1x32xf32> to vector<2x32xf32>
    %503 = arith.mulf %500, %502 : vector<2x32xf32>
    %504 = vector.shape_cast %372 : vector<32xf32> to vector<1x32xf32>
    %505 = vector.broadcast %504 : vector<1x32xf32> to vector<2x32xf32>
    %506 = arith.addf %503, %505 : vector<2x32xf32>
    %507 = arith.truncf %506 : vector<2x32xf32> to vector<2x32xbf16>
    %cst_125 = arith.constant dense<0.000000e+00> : vector<2x32xf32>
    %508 = tpu.matmul %507, %355, %cst_125 {dimension_numbers = #tpu.dot_dimension_numbers<[1], [0], [0], [1], [0, 0, 1, 1], [], []>} : vector<2x32xbf16>, vector<32x32xbf16>, vector<2x32xf32> -> vector<2x32xf32>
    %509 = vector.shape_cast %357 : vector<32xf32> to vector<1x32xf32>
    %510 = vector.broadcast %509 : vector<1x32xf32> to vector<2x32xf32>
    %511 = arith.addf %508, %510 : vector<2x32xf32>
    %512 = arith.addf %506, %511 : vector<2x32xf32>
    %cst_126 = arith.constant dense<0.000000e+00> : vector<2xf32>
    %513 = vector.multi_reduction <add>, %512, %cst_126 [1] : vector<2x32xf32> to vector<2xf32>
    %514 = vector.shape_cast %513 : vector<2xf32> to vector<2x1xf32>
    %cst_127 = arith.constant 3.200000e+01 : f32
    %515 = vector.broadcast %cst_127 : f32 to vector<2x1xf32>
    %516 = arith.divf %514, %515 : vector<2x1xf32>
    %517 = arith.mulf %512, %512 : vector<2x32xf32>
    %cst_128 = arith.constant dense<0.000000e+00> : vector<2xf32>
    %518 = vector.multi_reduction <add>, %517, %cst_128 [1] : vector<2x32xf32> to vector<2xf32>
    %519 = vector.shape_cast %518 : vector<2xf32> to vector<2x1xf32>
    %cst_129 = arith.constant 3.200000e+01 : f32
    %520 = vector.broadcast %cst_129 : f32 to vector<2x1xf32>
    %521 = arith.divf %519, %520 : vector<2x1xf32>
    %522 = arith.mulf %516, %516 : vector<2x1xf32>
    %523 = arith.subf %521, %522 : vector<2x1xf32>
    %524 = vector.broadcast %516 : vector<2x1xf32> to vector<2x32xf32>
    %525 = arith.subf %512, %524 : vector<2x32xf32>
    %cst_130 = arith.constant 9.99999974E-6 : f32
    %526 = vector.broadcast %cst_130 : f32 to vector<2x1xf32>
    %527 = arith.addf %523, %526 : vector<2x1xf32>
    %528 = math.rsqrt %527 : vector<2x1xf32>
    %529 = vector.broadcast %528 : vector<2x1xf32> to vector<2x32xf32>
    %530 = arith.mulf %525, %529 : vector<2x32xf32>
    %531 = vector.shape_cast %359 : vector<32xf32> to vector<1x32xf32>
    %532 = vector.broadcast %531 : vector<1x32xf32> to vector<2x32xf32>
    %533 = arith.mulf %530, %532 : vector<2x32xf32>
    %534 = vector.shape_cast %361 : vector<32xf32> to vector<1x32xf32>
    %535 = vector.broadcast %534 : vector<1x32xf32> to vector<2x32xf32>
    %536 = arith.addf %533, %535 : vector<2x32xf32>
    %537 = arith.truncf %536 : vector<2x32xf32> to vector<2x32xbf16>
    %cst_131 = arith.constant dense<0.000000e+00> : vector<2x2048xf32>
    %538 = tpu.matmul %537, %362, %cst_131 {dimension_numbers = #tpu.dot_dimension_numbers<[1], [0], [0], [1], [0, 0, 1, 1], [], []>} : vector<2x32xbf16>, vector<32x2048xbf16>, vector<2x2048xf32> -> vector<2x2048xf32>
    %539 = vector.shape_cast %364 : vector<2048xf32> to vector<1x2048xf32>
    %540 = vector.broadcast %539 : vector<1x2048xf32> to vector<2x2048xf32>
    %541 = arith.addf %538, %540 : vector<2x2048xf32>
    %cst_132 = arith.constant 0.000000e+00 : f32
    %542 = vector.broadcast %cst_132 : f32 to vector<2x2048xf32>
    %543 = arith.maximumf %541, %542 : vector<2x2048xf32>
    %544 = arith.truncf %543 : vector<2x2048xf32> to vector<2x2048xbf16>
    %cst_133 = arith.constant dense<0.000000e+00> : vector<2x32xf32>
    %545 = tpu.matmul %544, %366, %cst_133 {dimension_numbers = #tpu.dot_dimension_numbers<[1], [0], [0], [1], [0, 0, 1, 1], [], []>} : vector<2x2048xbf16>, vector<2048x32xbf16>, vector<2x32xf32> -> vector<2x32xf32>
    %546 = vector.shape_cast %368 : vector<32xf32> to vector<1x32xf32>
    %547 = vector.broadcast %546 : vector<1x32xf32> to vector<2x32xf32>
    %548 = arith.addf %545, %547 : vector<2x32xf32>
    %549 = arith.addf %536, %548 : vector<2x32xf32>
    %cst_134 = arith.constant dense<0.000000e+00> : vector<2xf32>
    %550 = vector.multi_reduction <add>, %549, %cst_134 [1] : vector<2x32xf32> to vector<2xf32>
    %551 = vector.shape_cast %550 : vector<2xf32> to vector<2x1xf32>
    %cst_135 = arith.constant 3.200000e+01 : f32
    %552 = vector.broadcast %cst_135 : f32 to vector<2x1xf32>
    %553 = arith.divf %551, %552 : vector<2x1xf32>
    %554 = arith.mulf %549, %549 : vector<2x32xf32>
    %cst_136 = arith.constant dense<0.000000e+00> : vector<2xf32>
    %555 = vector.multi_reduction <add>, %554, %cst_136 [1] : vector<2x32xf32> to vector<2xf32>
    %556 = vector.shape_cast %555 : vector<2xf32> to vector<2x1xf32>
    %cst_137 = arith.constant 3.200000e+01 : f32
    %557 = vector.broadcast %cst_137 : f32 to vector<2x1xf32>
    %558 = arith.divf %556, %557 : vector<2x1xf32>
    %559 = arith.mulf %553, %553 : vector<2x1xf32>
    %560 = arith.subf %558, %559 : vector<2x1xf32>
    %561 = vector.broadcast %553 : vector<2x1xf32> to vector<2x32xf32>
    %562 = arith.subf %549, %561 : vector<2x32xf32>
    %cst_138 = arith.constant 9.99999974E-6 : f32
    %563 = vector.broadcast %cst_138 : f32 to vector<2x1xf32>
    %564 = arith.addf %560, %563 : vector<2x1xf32>
    %565 = math.rsqrt %564 : vector<2x1xf32>
    %566 = vector.broadcast %565 : vector<2x1xf32> to vector<2x32xf32>
    %567 = arith.mulf %562, %566 : vector<2x32xf32>
    %568 = vector.shape_cast %370 : vector<32xf32> to vector<1x32xf32>
    %569 = vector.broadcast %568 : vector<1x32xf32> to vector<2x32xf32>
    %570 = arith.mulf %567, %569 : vector<2x32xf32>
    %571 = vector.shape_cast %372 : vector<32xf32> to vector<1x32xf32>
    %572 = vector.broadcast %571 : vector<1x32xf32> to vector<2x32xf32>
    %573 = arith.addf %570, %572 : vector<2x32xf32>
    %574 = arith.truncf %573 : vector<2x32xf32> to vector<2x32xbf16>
    %cst_139 = arith.constant dense<0.000000e+00> : vector<2x32xf32>
    %575 = tpu.matmul %574, %355, %cst_139 {dimension_numbers = #tpu.dot_dimension_numbers<[1], [0], [0], [1], [0, 0, 1, 1], [], []>} : vector<2x32xbf16>, vector<32x32xbf16>, vector<2x32xf32> -> vector<2x32xf32>
    %576 = vector.shape_cast %357 : vector<32xf32> to vector<1x32xf32>
    %577 = vector.broadcast %576 : vector<1x32xf32> to vector<2x32xf32>
    %578 = arith.addf %575, %577 : vector<2x32xf32>
    %579 = arith.addf %573, %578 : vector<2x32xf32>
    %cst_140 = arith.constant dense<0.000000e+00> : vector<2xf32>
    %580 = vector.multi_reduction <add>, %579, %cst_140 [1] : vector<2x32xf32> to vector<2xf32>
    %581 = vector.shape_cast %580 : vector<2xf32> to vector<2x1xf32>
    %cst_141 = arith.constant 3.200000e+01 : f32
    %582 = vector.broadcast %cst_141 : f32 to vector<2x1xf32>
    %583 = arith.divf %581, %582 : vector<2x1xf32>
    %584 = arith.mulf %579, %579 : vector<2x32xf32>
    %cst_142 = arith.constant dense<0.000000e+00> : vector<2xf32>
    %585 = vector.multi_reduction <add>, %584, %cst_142 [1] : vector<2x32xf32> to vector<2xf32>
    %586 = vector.shape_cast %585 : vector<2xf32> to vector<2x1xf32>
    %cst_143 = arith.constant 3.200000e+01 : f32
    %587 = vector.broadcast %cst_143 : f32 to vector<2x1xf32>
    %588 = arith.divf %586, %587 : vector<2x1xf32>
    %589 = arith.mulf %583, %583 : vector<2x1xf32>
    %590 = arith.subf %588, %589 : vector<2x1xf32>
    %591 = vector.broadcast %583 : vector<2x1xf32> to vector<2x32xf32>
    %592 = arith.subf %579, %591 : vector<2x32xf32>
    %cst_144 = arith.constant 9.99999974E-6 : f32
    %593 = vector.broadcast %cst_144 : f32 to vector<2x1xf32>
    %594 = arith.addf %590, %593 : vector<2x1xf32>
    %595 = math.rsqrt %594 : vector<2x1xf32>
    %596 = vector.broadcast %595 : vector<2x1xf32> to vector<2x32xf32>
    %597 = arith.mulf %592, %596 : vector<2x32xf32>
    %598 = vector.shape_cast %359 : vector<32xf32> to vector<1x32xf32>
    %599 = vector.broadcast %598 : vector<1x32xf32> to vector<2x32xf32>
    %600 = arith.mulf %597, %599 : vector<2x32xf32>
    %601 = vector.shape_cast %361 : vector<32xf32> to vector<1x32xf32>
    %602 = vector.broadcast %601 : vector<1x32xf32> to vector<2x32xf32>
    %603 = arith.addf %600, %602 : vector<2x32xf32>
    %604 = arith.truncf %603 : vector<2x32xf32> to vector<2x32xbf16>
    %cst_145 = arith.constant dense<0.000000e+00> : vector<2x2048xf32>
    %605 = tpu.matmul %604, %362, %cst_145 {dimension_numbers = #tpu.dot_dimension_numbers<[1], [0], [0], [1], [0, 0, 1, 1], [], []>} : vector<2x32xbf16>, vector<32x2048xbf16>, vector<2x2048xf32> -> vector<2x2048xf32>
    %606 = vector.shape_cast %364 : vector<2048xf32> to vector<1x2048xf32>
    %607 = vector.broadcast %606 : vector<1x2048xf32> to vector<2x2048xf32>
    %608 = arith.addf %605, %607 : vector<2x2048xf32>
    %cst_146 = arith.constant 0.000000e+00 : f32
    %609 = vector.broadcast %cst_146 : f32 to vector<2x2048xf32>
    %610 = arith.maximumf %608, %609 : vector<2x2048xf32>
    %611 = arith.truncf %610 : vector<2x2048xf32> to vector<2x2048xbf16>
    %cst_147 = arith.constant dense<0.000000e+00> : vector<2x32xf32>
    %612 = tpu.matmul %611, %366, %cst_147 {dimension_numbers = #tpu.dot_dimension_numbers<[1], [0], [0], [1], [0, 0, 1, 1], [], []>} : vector<2x2048xbf16>, vector<2048x32xbf16>, vector<2x32xf32> -> vector<2x32xf32>
    %613 = vector.shape_cast %368 : vector<32xf32> to vector<1x32xf32>
    %614 = vector.broadcast %613 : vector<1x32xf32> to vector<2x32xf32>
    %615 = arith.addf %612, %614 : vector<2x32xf32>
    %616 = arith.addf %603, %615 : vector<2x32xf32>
    %cst_148 = arith.constant dense<0.000000e+00> : vector<2xf32>
    %617 = vector.multi_reduction <add>, %616, %cst_148 [1] : vector<2x32xf32> to vector<2xf32>
    %618 = vector.shape_cast %617 : vector<2xf32> to vector<2x1xf32>
    %cst_149 = arith.constant 3.200000e+01 : f32
    %619 = vector.broadcast %cst_149 : f32 to vector<2x1xf32>
    %620 = arith.divf %618, %619 : vector<2x1xf32>
    %621 = arith.mulf %616, %616 : vector<2x32xf32>
    %cst_150 = arith.constant dense<0.000000e+00> : vector<2xf32>
    %622 = vector.multi_reduction <add>, %621, %cst_150 [1] : vector<2x32xf32> to vector<2xf32>
    %623 = vector.shape_cast %622 : vector<2xf32> to vector<2x1xf32>
    %cst_151 = arith.constant 3.200000e+01 : f32
    %624 = vector.broadcast %cst_151 : f32 to vector<2x1xf32>
    %625 = arith.divf %623, %624 : vector<2x1xf32>
    %626 = arith.mulf %620, %620 : vector<2x1xf32>
    %627 = arith.subf %625, %626 : vector<2x1xf32>
    %628 = vector.broadcast %620 : vector<2x1xf32> to vector<2x32xf32>
    %629 = arith.subf %616, %628 : vector<2x32xf32>
    %cst_152 = arith.constant 9.99999974E-6 : f32
    %630 = vector.broadcast %cst_152 : f32 to vector<2x1xf32>
    %631 = arith.addf %627, %630 : vector<2x1xf32>
    %632 = math.rsqrt %631 : vector<2x1xf32>
    %633 = vector.broadcast %632 : vector<2x1xf32> to vector<2x32xf32>
    %634 = arith.mulf %629, %633 : vector<2x32xf32>
    %635 = vector.shape_cast %370 : vector<32xf32> to vector<1x32xf32>
    %636 = vector.broadcast %635 : vector<1x32xf32> to vector<2x32xf32>
    %637 = arith.mulf %634, %636 : vector<2x32xf32>
    %638 = vector.shape_cast %372 : vector<32xf32> to vector<1x32xf32>
    %639 = vector.broadcast %638 : vector<1x32xf32> to vector<2x32xf32>
    %640 = arith.addf %637, %639 : vector<2x32xf32>
    %641 = tpu.concatenate %439, %506, %573, %640 in 0 : vector<2x32xf32>, vector<2x32xf32>, vector<2x32xf32>, vector<2x32xf32> -> vector<8x32xf32>
    %c0_153 = arith.constant 0 : index
    %c0_154 = arith.constant 0 : index
    %642 = vector.load %arg7[%c0_153, %c0_154] : memref<33x4xf32, #tpu.memory_space<vmem>>, vector<33x4xf32>
    %643 = arith.truncf %641 : vector<8x32xf32> to vector<8x32xbf16>
    %644 = vector.extract_strided_slice %642 {offsets = [0, 0], sizes = [32, 4], strides = [1, 1]} : vector<33x4xf32> to vector<32x4xf32>
    %645 = arith.truncf %644 : vector<32x4xf32> to vector<32x4xbf16>
    %cst_155 = arith.constant dense<0.000000e+00> : vector<8x4xf32>
    %646 = tpu.matmul %643, %645, %cst_155 {dimension_numbers = #tpu.dot_dimension_numbers<[1], [0], [0], [1], [0, 0, 1, 1], [], []>} : vector<8x32xbf16>, vector<32x4xbf16>, vector<8x4xf32> -> vector<8x4xf32>
    %647 = vector.extract_strided_slice %642 {offsets = [32, 0], sizes = [1, 4], strides = [1, 1]} : vector<33x4xf32> to vector<1x4xf32>
    %648 = vector.shape_cast %647 : vector<1x4xf32> to vector<4xf32>
    %649 = vector.shape_cast %648 : vector<4xf32> to vector<1x4xf32>
    %650 = vector.broadcast %649 : vector<1x4xf32> to vector<8x4xf32>
    %651 = arith.addf %646, %650 : vector<8x4xf32>
    %652 = vector.extract_strided_slice %651 {offsets = [0, 0], sizes = [2, 4], strides = [1, 1]} : vector<8x4xf32> to vector<2x4xf32>
    %653 = vector.extract_strided_slice %651 {offsets = [2, 0], sizes = [2, 4], strides = [1, 1]} : vector<8x4xf32> to vector<2x4xf32>
    %654 = vector.extract_strided_slice %651 {offsets = [4, 0], sizes = [2, 4], strides = [1, 1]} : vector<8x4xf32> to vector<2x4xf32>
    %655 = vector.extract_strided_slice %651 {offsets = [6, 0], sizes = [2, 4], strides = [1, 1]} : vector<8x4xf32> to vector<2x4xf32>
    %656 = tpu.concatenate %652, %653, %654, %655 in 1 : vector<2x4xf32>, vector<2x4xf32>, vector<2x4xf32>, vector<2x4xf32> -> vector<2x16xf32>
    %c0_156 = arith.constant 0 : index
    %c0_157 = arith.constant 0 : index
    %657 = vector.load %arg8[%c0_156, %c0_157] : memref<2x16xf32, #tpu.memory_space<vmem>>, vector<2x16xf32>
    tpu.vector_store %arg8[%c0_156, %c0_157], %656 {strides = array<i32>} : memref<2x16xf32, #tpu.memory_space<vmem>>, vector<2x16xf32>,
    return
  }
}

</mosaic_0001>

<llo_original>
// kernel: trajectory_predictor_forward.1
$region0: #{trajectory_predictor_forward.1}
  #allocation0 [shape = 'u32[]', space=smem, size = 0x4, offset = 0x4, fixed_abs, tag = 'smem constant byte address 0x4 - core index']
  #allocation1 [shape = 'u32[144,128]{1,0:T(1,128)}', space=vmem, size = 0x12000, scoped, tag = 'internal scratch']
  %s0 = inlined_call_operand.vmem [shape: f32[2,8,32], index: 0, kind: input, shape index: {}]
  %s1 = inlined_call_operand.vmem [shape: bf16[2,32,2176], index: 1, kind: input, shape index: {}]
  %s2 = inlined_call_operand.vmem [shape: bf16[2,2048,32], index: 2, kind: input, shape index: {}]
  %s3 = inlined_call_operand.vmem [shape: f32[2,8,2048], index: 3, kind: input, shape index: {}]
  %s4 = inlined_call_operand.vmem [shape: bf16[1,32,2080], index: 4, kind: input, shape index: {}]
  %s5 = inlined_call_operand.vmem [shape: bf16[1,2048,32], index: 5, kind: input, shape index: {}]
  %s6 = inlined_call_operand.vmem [shape: f32[1,7,2048], index: 6, kind: input, shape index: {}]
  %s7 = inlined_call_operand.vmem [shape: f32[33,4], index: 7, kind: input, shape index: {}]
  %s8 = inlined_call_operand.vmem [shape: f32[2,16], index: 8, kind: output, shape index: {}]
  %s9 = sld [smem:[#allocation0]]
  $region42: #{trajectory_predictor_forward.1} parent=0
    _
  %s11 = ssub.s32 1, %s9
  %s12 = scalar_select 0, %s11, %s9
  // Predicated region
  $region2: #{trajectory_predictor_forward.1} parent=0 // pred_check
    _
  $region3: #{trajectory_predictor_forward.1} parent=0 // pred_check_branch
    %14 = sbr.rel (0) target = $region5
  $region4: #{trajectory_predictor_forward.1} parent=0 // pred_region
    _
  $region5: #{trajectory_predictor_forward.1} parent=0 // pred_fallthru
    _
  // Predicated region
  $region6: #{trajectory_predictor_forward.1} parent=0 // pred_check
    _
  $region7: #{trajectory_predictor_forward.1} parent=0 // pred_check_branch
    %16 = sbr.rel (0) target = $region9
  $region8: #{trajectory_predictor_forward.1} parent=0 // pred_region
    _
  $region9: #{trajectory_predictor_forward.1} parent=0 // pred_fallthru
    _
  // Predicated region
  $region10: #{trajectory_predictor_forward.1} parent=0 // pred_check
    _
  $region11: #{trajectory_predictor_forward.1} parent=0 // pred_check_branch
    %18 = sbr.rel (0) target = $region13
  $region12: #{trajectory_predictor_forward.1} parent=0 // pred_region
    _
  $region13: #{trajectory_predictor_forward.1} parent=0 // pred_fallthru
    _
  // Predicated region
  $region14: #{trajectory_predictor_forward.1} parent=0 // pred_check
    _
  $region15: #{trajectory_predictor_forward.1} parent=0 // pred_check_branch
    %20 = sbr.rel (0) target = $region17
  $region16: #{trajectory_predictor_forward.1} parent=0 // pred_region
    _
  $region17: #{trajectory_predictor_forward.1} parent=0 // pred_fallthru
    _
  // Predicated region
  $region18: #{trajectory_predictor_forward.1} parent=0 // pred_check
    _
  $region19: #{trajectory_predictor_forward.1} parent=0 // pred_check_branch
    %22 = sbr.rel (0) target = $region21
  $region20: #{trajectory_predictor_forward.1} parent=0 // pred_region
    _
  $region21: #{trajectory_predictor_forward.1} parent=0 // pred_fallthru
    _
  // Predicated region
  $region22: #{trajectory_predictor_forward.1} parent=0 // pred_check
    _
  $region23: #{trajectory_predictor_forward.1} parent=0 // pred_check_branch
    %24 = sbr.rel (0) target = $region25
  $region24: #{trajectory_predictor_forward.1} parent=0 // pred_region
    _
  $region25: #{trajectory_predictor_forward.1} parent=0 // pred_fallthru
    _
  // Predicated region
  $region26: #{trajectory_predictor_forward.1} parent=0 // pred_check
    _
  $region27: #{trajectory_predictor_forward.1} parent=0 // pred_check_branch
    %26 = sbr.rel (0) target = $region29
  $region28: #{trajectory_predictor_forward.1} parent=0 // pred_region
    _
  $region29: #{trajectory_predictor_forward.1} parent=0 // pred_fallthru
    _
  // Predicated region
  $region30: #{trajectory_predictor_forward.1} parent=0 // pred_check
    _
  $region31: #{trajectory_predictor_forward.1} parent=0 // pred_check_branch
    %28 = sbr.rel (0) target = $region33
  $region32: #{trajectory_predictor_forward.1} parent=0 // pred_region
    _
  $region33: #{trajectory_predictor_forward.1} parent=0 // pred_fallthru
    _
  %v30 = vld [vmem:[%s0] sm:$0xff]
  %v31 = vld [vmem:[%s0 + $0x8] sm:$0xff]
  %v32 = vld [vmem:[%s1] sm:$0xff]
  %v33 = vld [vmem:[%s1 + $0x8] sm:$0xff]
  %v34 = vld [vmem:[%s1 + $0x10] sm:$0xff]
  %v35 = vld [vmem:[%s1 + $0x18] sm:$0xff]
  %v36 = vld [vmem:[%s1 + $0x20] sm:$0xff]
  %v37 = vld [vmem:[%s1 + $0x28] sm:$0xff]
  %v38 = vld [vmem:[%s1 + $0x30] sm:$0xff]
  %v39 = vld [vmem:[%s1 + $0x38] sm:$0xff]
  %v40 = vld [vmem:[%s1 + $0x40] sm:$0xf]
  %v41 = vld [vmem:[%s1 + $0x44] sm:$0xff]
  %v42 = vld [vmem:[%s1 + $0x4c] sm:$0xff]
  %v43 = vld [vmem:[%s1 + $0x54] sm:$0xff]
  %v44 = vld [vmem:[%s1 + $0x5c] sm:$0xff]
  %v45 = vld [vmem:[%s1 + $0x64] sm:$0xff]
  %v46 = vld [vmem:[%s1 + $0x6c] sm:$0xff]
  %v47 = vld [vmem:[%s1 + $0x74] sm:$0xff]
  %v48 = vld [vmem:[%s1 + $0x7c] sm:$0xff]
  %v49 = vld [vmem:[%s1 + $0x84] sm:$0xf]
  %v50 = vld [vmem:[%s1 + $0x88] sm:$0xff]
  %v51 = vld [vmem:[%s1 + $0x90] sm:$0xff]
  %v52 = vld [vmem:[%s1 + $0x98] sm:$0xff]
  %v53 = vld [vmem:[%s1 + $0xa0] sm:$0xff]
  %v54 = vld [vmem:[%s1 + $0xa8] sm:$0xff]
  %v55 = vld [vmem:[%s1 + $0xb0] sm:$0xff]
  %v56 = vld [vmem:[%s1 + $0xb8] sm:$0xff]
  %v57 = vld [vmem:[%s1 + $0xc0] sm:$0xff]
  %v58 = vld [vmem:[%s1 + $0xc8] sm:$0xf]
  %v59 = vld [vmem:[%s1 + $0xcc] sm:$0xff]
  %v60 = vld [vmem:[%s1 + $0xd4] sm:$0xff]
  %v61 = vld [vmem:[%s1 + $0xdc] sm:$0xff]
  %v62 = vld [vmem:[%s1 + $0xe4] sm:$0xff]
  %v63 = vld [vmem:[%s1 + $0xec] sm:$0xff]
  %v64 = vld [vmem:[%s1 + $0xf4] sm:$0xff]
  %v65 = vld [vmem:[%s1 + $0xfc] sm:$0xff]
  %v66 = vld [vmem:[%s1 + $0x104] sm:$0xff]
  %v67 = vld [vmem:[%s1 + $0x10c] sm:$0xf]
  %v68 = vld [vmem:[%s2] sm:$0xf]
  %v69 = vld [vmem:[%s2 + $0x4] sm:$0xf]
  %v70 = vld [vmem:[%s2 + $0x8] sm:$0xf]
  %v71 = vld [vmem:[%s2 + $0xc] sm:$0xf]
  %v72 = vld [vmem:[%s2 + $0x10] sm:$0xf]
  %v73 = vld [vmem:[%s2 + $0x14] sm:$0xf]
  %v74 = vld [vmem:[%s2 + $0x18] sm:$0xf]
  %v75 = vld [vmem:[%s2 + $0x1c] sm:$0xf]
  %v76 = vld [vmem:[%s2 + $0x20] sm:$0xf]
  %v77 = vld [vmem:[%s2 + $0x24] sm:$0xf]
  %v78 = vld [vmem:[%s2 + $0x28] sm:$0xf]
  %v79 = vld [vmem:[%s2 + $0x2c] sm:$0xf]
  %v80 = vld [vmem:[%s2 + $0x30] sm:$0xf]
  %v81 = vld [vmem:[%s2 + $0x34] sm:$0xf]
  %v82 = vld [vmem:[%s2 + $0x38] sm:$0xf]
  %v83 = vld [vmem:[%s2 + $0x3c] sm:$0xf]
  %v84 = vld [vmem:[%s2 + $0x40] sm:$0xf]
  %v85 = vld [vmem:[%s2 + $0x44] sm:$0xf]
  %v86 = vld [vmem:[%s2 + $0x48] sm:$0xf]
  %v87 = vld [vmem:[%s2 + $0x4c] sm:$0xf]
  %v88 = vld [vmem:[%s2 + $0x50] sm:$0xf]
  %v89 = vld [vmem:[%s2 + $0x54] sm:$0xf]
  %v90 = vld [vmem:[%s2 + $0x58] sm:$0xf]
  %v91 = vld [vmem:[%s2 + $0x5c] sm:$0xf]
  %v92 = vld [vmem:[%s2 + $0x60] sm:$0xf]
  %v93 = vld [vmem:[%s2 + $0x64] sm:$0xf]
  %v94 = vld [vmem:[%s2 + $0x68] sm:$0xf]
  %v95 = vld [vmem:[%s2 + $0x6c] sm:$0xf]
  %v96 = vld [vmem:[%s2 + $0x70] sm:$0xf]
  %v97 = vld [vmem:[%s2 + $0x74] sm:$0xf]
  %v98 = vld [vmem:[%s2 + $0x78] sm:$0xf]
  %v99 = vld [vmem:[%s2 + $0x7c] sm:$0xf]
  %v100 = vld [vmem:[%s2 + $0x80] sm:$0xf]
  %v101 = vld [vmem:[%s2 + $0x84] sm:$0xf]
  %v102 = vld [vmem:[%s2 + $0x88] sm:$0xf]
  %v103 = vld [vmem:[%s2 + $0x8c] sm:$0xf]
  %v104 = vld [vmem:[%s2 + $0x90] sm:$0xf]
  %v105 = vld [vmem:[%s2 + $0x94] sm:$0xf]
  %v106 = vld [vmem:[%s2 + $0x98] sm:$0xf]
  %v107 = vld [vmem:[%s2 + $0x9c] sm:$0xf]
  %v108 = vld [vmem:[%s2 + $0xa0] sm:$0xf]
  %v109 = vld [vmem:[%s2 + $0xa4] sm:$0xf]
  %v110 = vld [vmem:[%s2 + $0xa8] sm:$0xf]
  %v111 = vld [vmem:[%s2 + $0xac] sm:$0xf]
  %v112 = vld [vmem:[%s2 + $0xb0] sm:$0xf]
  %v113 = vld [vmem:[%s2 + $0xb4] sm:$0xf]
  %v114 = vld [vmem:[%s2 + $0xb8] sm:$0xf]
  %v115 = vld [vmem:[%s2 + $0xbc] sm:$0xf]
  %v116 = vld [vmem:[%s2 + $0xc0] sm:$0xf]
  %v117 = vld [vmem:[%s2 + $0xc4] sm:$0xf]
  %v118 = vld [vmem:[%s2 + $0xc8] sm:$0xf]
  %v119 = vld [vmem:[%s2 + $0xcc] sm:$0xf]
  %v120 = vld [vmem:[%s2 + $0xd0] sm:$0xf]
  %v121 = vld [vmem:[%s2 + $0xd4] sm:$0xf]
  %v122 = vld [vmem:[%s2 + $0xd8] sm:$0xf]
  %v123 = vld [vmem:[%s2 + $0xdc] sm:$0xf]
  %v124 = vld [vmem:[%s2 + $0xe0] sm:$0xf]
  %v125 = vld [vmem:[%s2 + $0xe4] sm:$0xf]
  %v126 = vld [vmem:[%s2 + $0xe8] sm:$0xf]
  %v127 = vld [vmem:[%s2 + $0xec] sm:$0xf]
  %v128 = vld [vmem:[%s2 + $0xf0] sm:$0xf]
  %v129 = vld [vmem:[%s2 + $0xf4] sm:$0xf]
  %v130 = vld [vmem:[%s2 + $0xf8] sm:$0xf]
  %v131 = vld [vmem:[%s2 + $0xfc] sm:$0xf]
  %v132 = vld [vmem:[%s2 + $0x100] sm:$0xf]
  %v133 = vld [vmem:[%s2 + $0x104] sm:$0xf]
  %v134 = vld [vmem:[%s2 + $0x108] sm:$0xf]
  %v135 = vld [vmem:[%s2 + $0x10c] sm:$0xf]
  %v136 = vld [vmem:[%s2 + $0x110] sm:$0xf]
  %v137 = vld [vmem:[%s2 + $0x114] sm:$0xf]
  %v138 = vld [vmem:[%s2 + $0x118] sm:$0xf]
  %v139 = vld [vmem:[%s2 + $0x11c] sm:$0xf]
  %v140 = vld [vmem:[%s2 + $0x120] sm:$0xf]
  %v141 = vld [vmem:[%s2 + $0x124] sm:$0xf]
  %v142 = vld [vmem:[%s2 + $0x128] sm:$0xf]
  %v143 = vld [vmem:[%s2 + $0x12c] sm:$0xf]
  %v144 = vld [vmem:[%s2 + $0x130] sm:$0xf]
  %v145 = vld [vmem:[%s2 + $0x134] sm:$0xf]
  %v146 = vld [vmem:[%s2 + $0x138] sm:$0xf]
  %v147 = vld [vmem:[%s2 + $0x13c] sm:$0xf]
  %v148 = vld [vmem:[%s2 + $0x140] sm:$0xf]
  %v149 = vld [vmem:[%s2 + $0x144] sm:$0xf]
  %v150 = vld [vmem:[%s2 + $0x148] sm:$0xf]
  %v151 = vld [vmem:[%s2 + $0x14c] sm:$0xf]
  %v152 = vld [vmem:[%s2 + $0x150] sm:$0xf]
  %v153 = vld [vmem:[%s2 + $0x154] sm:$0xf]
  %v154 = vld [vmem:[%s2 + $0x158] sm:$0xf]
  %v155 = vld [vmem:[%s2 + $0x15c] sm:$0xf]
  %v156 = vld [vmem:[%s2 + $0x160] sm:$0xf]
  %v157 = vld [vmem:[%s2 + $0x164] sm:$0xf]
  %v158 = vld [vmem:[%s2 + $0x168] sm:$0xf]
  %v159 = vld [vmem:[%s2 + $0x16c] sm:$0xf]
  %v160 = vld [vmem:[%s2 + $0x170] sm:$0xf]
  %v161 = vld [vmem:[%s2 + $0x174] sm:$0xf]
  %v162 = vld [vmem:[%s2 + $0x178] sm:$0xf]
  %v163 = vld [vmem:[%s2 + $0x17c] sm:$0xf]
  %v164 = vld [vmem:[%s2 + $0x180] sm:$0xf]
  %v165 = vld [vmem:[%s2 + $0x184] sm:$0xf]
  %v166 = vld [vmem:[%s2 + $0x188] sm:$0xf]
  %v167 = vld [vmem:[%s2 + $0x18c] sm:$0xf]
  %v168 = vld [vmem:[%s2 + $0x190] sm:$0xf]
  %v169 = vld [vmem:[%s2 + $0x194] sm:$0xf]
  %v170 = vld [vmem:[%s2 + $0x198] sm:$0xf]
  %v171 = vld [vmem:[%s2 + $0x19c] sm:$0xf]
  %v172 = vld [vmem:[%s2 + $0x1a0] sm:$0xf]
  %v173 = vld [vmem:[%s2 + $0x1a4] sm:$0xf]
  %v174 = vld [vmem:[%s2 + $0x1a8] sm:$0xf]
  %v175 = vld [vmem:[%s2 + $0x1ac] sm:$0xf]
  %v176 = vld [vmem:[%s2 + $0x1b0] sm:$0xf]
  %v177 = vld [vmem:[%s2 + $0x1b4] sm:$0xf]
  %v178 = vld [vmem:[%s2 + $0x1b8] sm:$0xf]
  %v179 = vld [vmem:[%s2 + $0x1bc] sm:$0xf]
  %v180 = vld [vmem:[%s2 + $0x1c0] sm:$0xf]
  %v181 = vld [vmem:[%s2 + $0x1c4] sm:$0xf]
  %v182 = vld [vmem:[%s2 + $0x1c8] sm:$0xf]
  %v183 = vld [vmem:[%s2 + $0x1cc] sm:$0xf]
  %v184 = vld [vmem:[%s2 + $0x1d0] sm:$0xf]
  %v185 = vld [vmem:[%s2 + $0x1d4] sm:$0xf]
  %v186 = vld [vmem:[%s2 + $0x1d8] sm:$0xf]
  %v187 = vld [vmem:[%s2 + $0x1dc] sm:$0xf]
  %v188 = vld [vmem:[%s2 + $0x1e0] sm:$0xf]
  %v189 = vld [vmem:[%s2 + $0x1e4] sm:$0xf]
  %v190 = vld [vmem:[%s2 + $0x1e8] sm:$0xf]
  %v191 = vld [vmem:[%s2 + $0x1ec] sm:$0xf]
  %v192 = vld [vmem:[%s2 + $0x1f0] sm:$0xf]
  %v193 = vld [vmem:[%s2 + $0x1f4] sm:$0xf]
  %v194 = vld [vmem:[%s2 + $0x1f8] sm:$0xf]
  %v195 = vld [vmem:[%s2 + $0x1fc] sm:$0xf]
  %v196 = vld [vmem:[%s2 + $0x200] sm:$0xf]
  %v197 = vld [vmem:[%s2 + $0x204] sm:$0xf]
  %v198 = vld [vmem:[%s2 + $0x208] sm:$0xf]
  %v199 = vld [vmem:[%s2 + $0x20c] sm:$0xf]
  %v200 = vld [vmem:[%s2 + $0x210] sm:$0xf]
  %v201 = vld [vmem:[%s2 + $0x214] sm:$0xf]
  %v202 = vld [vmem:[%s2 + $0x218] sm:$0xf]
  %v203 = vld [vmem:[%s2 + $0x21c] sm:$0xf]
  %v204 = vld [vmem:[%s2 + $0x220] sm:$0xf]
  %v205 = vld [vmem:[%s2 + $0x224] sm:$0xf]
  %v206 = vld [vmem:[%s2 + $0x228] sm:$0xf]
  %v207 = vld [vmem:[%s2 + $0x22c] sm:$0xf]
  %v208 = vld [vmem:[%s2 + $0x230] sm:$0xf]
  %v209 = vld [vmem:[%s2 + $0x234] sm:$0xf]
  %v210 = vld [vmem:[%s2 + $0x238] sm:$0xf]
  %v211 = vld [vmem:[%s2 + $0x23c] sm:$0xf]
  %v212 = vld [vmem:[%s2 + $0x240] sm:$0xf]
  %v213 = vld [vmem:[%s2 + $0x244] sm:$0xf]
  %v214 = vld [vmem:[%s2 + $0x248] sm:$0xf]
  %v215 = vld [vmem:[%s2 + $0x24c] sm:$0xf]
  %v216 = vld [vmem:[%s2 + $0x250] sm:$0xf]
  %v217 = vld [vmem:[%s2 + $0x254] sm:$0xf]
  %v218 = vld [vmem:[%s2 + $0x258] sm:$0xf]
  %v219 = vld [vmem:[%s2 + $0x25c] sm:$0xf]
  %v220 = vld [vmem:[%s2 + $0x260] sm:$0xf]
  %v221 = vld [vmem:[%s2 + $0x264] sm:$0xf]
  %v222 = vld [vmem:[%s2 + $0x268] sm:$0xf]
  %v223 = vld [vmem:[%s2 + $0x26c] sm:$0xf]
  %v224 = vld [vmem:[%s2 + $0x270] sm:$0xf]
  %v225 = vld [vmem:[%s2 + $0x274] sm:$0xf]
  %v226 = vld [vmem:[%s2 + $0x278] sm:$0xf]
  %v227 = vld [vmem:[%s2 + $0x27c] sm:$0xf]
  %v228 = vld [vmem:[%s2 + $0x280] sm:$0xf]
  %v229 = vld [vmem:[%s2 + $0x284] sm:$0xf]
  %v230 = vld [vmem:[%s2 + $0x288] sm:$0xf]
  %v231 = vld [vmem:[%s2 + $0x28c] sm:$0xf]
  %v232 = vld [vmem:[%s2 + $0x290] sm:$0xf]
  %v233 = vld [vmem:[%s2 + $0x294] sm:$0xf]
  %v234 = vld [vmem:[%s2 + $0x298] sm:$0xf]
  %v235 = vld [vmem:[%s2 + $0x29c] sm:$0xf]
  %v236 = vld [vmem:[%s2 + $0x2a0] sm:$0xf]
  %v237 = vld [vmem:[%s2 + $0x2a4] sm:$0xf]
  %v238 = vld [vmem:[%s2 + $0x2a8] sm:$0xf]
  %v239 = vld [vmem:[%s2 + $0x2ac] sm:$0xf]
  %v240 = vld [vmem:[%s2 + $0x2b0] sm:$0xf]
  %v241 = vld [vmem:[%s2 + $0x2b4] sm:$0xf]
  %v242 = vld [vmem:[%s2 + $0x2b8] sm:$0xf]
  %v243 = vld [vmem:[%s2 + $0x2bc] sm:$0xf]
  %v244 = vld [vmem:[%s2 + $0x2c0] sm:$0xf]
  %v245 = vld [vmem:[%s2 + $0x2c4] sm:$0xf]
  %v246 = vld [vmem:[%s2 + $0x2c8] sm:$0xf]
  %v247 = vld [vmem:[%s2 + $0x2cc] sm:$0xf]
  %v248 = vld [vmem:[%s2 + $0x2d0] sm:$0xf]
  %v249 = vld [vmem:[%s2 + $0x2d4] sm:$0xf]
  %v250 = vld [vmem:[%s2 + $0x2d8] sm:$0xf]
  %v251 = vld [vmem:[%s2 + $0x2dc] sm:$0xf]
  %v252 = vld [vmem:[%s2 + $0x2e0] sm:$0xf]
  %v253 = vld [vmem:[%s2 + $0x2e4] sm:$0xf]
  %v254 = vld [vmem:[%s2 + $0x2e8] sm:$0xf]
  %v255 = vld [vmem:[%s2 + $0x2ec] sm:$0xf]
  %v256 = vld [vmem:[%s2 + $0x2f0] sm:$0xf]
  %v257 = vld [vmem:[%s2 + $0x2f4] sm:$0xf]
  %v258 = vld [vmem:[%s2 + $0x2f8] sm:$0xf]
  %v259 = vld [vmem:[%s2 + $0x2fc] sm:$0xf]
  %v260 = vld [vmem:[%s2 + $0x300] sm:$0xf]
  %v261 = vld [vmem:[%s2 + $0x304] sm:$0xf]
  %v262 = vld [vmem:[%s2 + $0x308] sm:$0xf]
  %v263 = vld [vmem:[%s2 + $0x30c] sm:$0xf]
  %v264 = vld [vmem:[%s2 + $0x310] sm:$0xf]
  %v265 = vld [vmem:[%s2 + $0x314] sm:$0xf]
  %v266 = vld [vmem:[%s2 + $0x318] sm:$0xf]
  %v267 = vld [vmem:[%s2 + $0x31c] sm:$0xf]
  %v268 = vld [vmem:[%s2 + $0x320] sm:$0xf]
  %v269 = vld [vmem:[%s2 + $0x324] sm:$0xf]
  %v270 = vld [vmem:[%s2 + $0x328] sm:$0xf]
  %v271 = vld [vmem:[%s2 + $0x32c] sm:$0xf]
  %v272 = vld [vmem:[%s2 + $0x330] sm:$0xf]
  %v273 = vld [vmem:[%s2 + $0x334] sm:$0xf]
  %v274 = vld [vmem:[%s2 + $0x338] sm:$0xf]
  %v275 = vld [vmem:[%s2 + $0x33c] sm:$0xf]
  %v276 = vld [vmem:[%s2 + $0x340] sm:$0xf]
  %v277 = vld [vmem:[%s2 + $0x344] sm:$0xf]
  %v278 = vld [vmem:[%s2 + $0x348] sm:$0xf]
  %v279 = vld [vmem:[%s2 + $0x34c] sm:$0xf]
  %v280 = vld [vmem:[%s2 + $0x350] sm:$0xf]
  %v281 = vld [vmem:[%s2 + $0x354] sm:$0xf]
  %v282 = vld [vmem:[%s2 + $0x358] sm:$0xf]
  %v283 = vld [vmem:[%s2 + $0x35c] sm:$0xf]
  %v284 = vld [vmem:[%s2 + $0x360] sm:$0xf]
  %v285 = vld [vmem:[%s2 + $0x364] sm:$0xf]
  %v286 = vld [vmem:[%s2 + $0x368] sm:$0xf]
  %v287 = vld [vmem:[%s2 + $0x36c] sm:$0xf]
  %v288 = vld [vmem:[%s2 + $0x370] sm:$0xf]
  %v289 = vld [vmem:[%s2 + $0x374] sm:$0xf]
  %v290 = vld [vmem:[%s2 + $0x378] sm:$0xf]
  %v291 = vld [vmem:[%s2 + $0x37c] sm:$0xf]
  %v292 = vld [vmem:[%s2 + $0x380] sm:$0xf]
  %v293 = vld [vmem:[%s2 + $0x384] sm:$0xf]
  %v294 = vld [vmem:[%s2 + $0x388] sm:$0xf]
  %v295 = vld [vmem:[%s2 + $0x38c] sm:$0xf]
  %v296 = vld [vmem:[%s2 + $0x390] sm:$0xf]
  %v297 = vld [vmem:[%s2 + $0x394] sm:$0xf]
  %v298 = vld [vmem:[%s2 + $0x398] sm:$0xf]
  %v299 = vld [vmem:[%s2 + $0x39c] sm:$0xf]
  %v300 = vld [vmem:[%s2 + $0x3a0] sm:$0xf]
  %v301 = vld [vmem:[%s2 + $0x3a4] sm:$0xf]
  %v302 = vld [vmem:[%s2 + $0x3a8] sm:$0xf]
  %v303 = vld [vmem:[%s2 + $0x3ac] sm:$0xf]
  %v304 = vld [vmem:[%s2 + $0x3b0] sm:$0xf]
  %v305 = vld [vmem:[%s2 + $0x3b4] sm:$0xf]
  %v306 = vld [vmem:[%s2 + $0x3b8] sm:$0xf]
  %v307 = vld [vmem:[%s2 + $0x3bc] sm:$0xf]
  %v308 = vld [vmem:[%s2 + $0x3c0] sm:$0xf]
  %v309 = vld [vmem:[%s2 + $0x3c4] sm:$0xf]
  %v310 = vld [vmem:[%s2 + $0x3c8] sm:$0xf]
  %v311 = vld [vmem:[%s2 + $0x3cc] sm:$0xf]
  %v312 = vld [vmem:[%s2 + $0x3d0] sm:$0xf]
  %v313 = vld [vmem:[%s2 + $0x3d4] sm:$0xf]
  %v314 = vld [vmem:[%s2 + $0x3d8] sm:$0xf]
  %v315 = vld [vmem:[%s2 + $0x3dc] sm:$0xf]
  %v316 = vld [vmem:[%s2 + $0x3e0] sm:$0xf]
  %v317 = vld [vmem:[%s2 + $0x3e4] sm:$0xf]
  %v318 = vld [vmem:[%s2 + $0x3e8] sm:$0xf]
  %v319 = vld [vmem:[%s2 + $0x3ec] sm:$0xf]
  %v320 = vld [vmem:[%s2 + $0x3f0] sm:$0xf]
  %v321 = vld [vmem:[%s2 + $0x3f4] sm:$0xf]
  %v322 = vld [vmem:[%s2 + $0x3f8] sm:$0xf]
  %v323 = vld [vmem:[%s2 + $0x3fc] sm:$0xf]
  %v324 = vld [vmem:[%s3] sm:$0xff]
  %v325 = vld [vmem:[%s3 + $0x8] sm:$0xff]
  %v326 = vld [vmem:[%s3 + $0x10] sm:$0xff]
  %v327 = vld [vmem:[%s3 + $0x18] sm:$0xff]
  %v328 = vld [vmem:[%s3 + $0x20] sm:$0xff]
  %v329 = vld [vmem:[%s3 + $0x28] sm:$0xff]
  %v330 = vld [vmem:[%s3 + $0x30] sm:$0xff]
  %v331 = vld [vmem:[%s3 + $0x38] sm:$0xff]
  %v332 = vld [vmem:[%s3 + $0x40] sm:$0xff]
  %v333 = vld [vmem:[%s3 + $0x48] sm:$0xff]
  %v334 = vld [vmem:[%s3 + $0x50] sm:$0xff]
  %v335 = vld [vmem:[%s3 + $0x58] sm:$0xff]
  %v336 = vld [vmem:[%s3 + $0x60] sm:$0xff]
  %v337 = vld [vmem:[%s3 + $0x68] sm:$0xff]
  %v338 = vld [vmem:[%s3 + $0x70] sm:$0xff]
  %v339 = vld [vmem:[%s3 + $0x78] sm:$0xff]
  %v340 = vpack.c.bf16 %v31, %v30
  %v341 = vlaneseq
  %v342 = vshrl.u32 %v341, 7
  %v343 = vsub.s32 0, %v342
  %v344 = vrot.slane %v324, %v343
  %v349 = vunpack.c.l.b16 %v32
  %v350 = vunpack.c.l.b16 %v41
  %v351 = vunpack.c.l.b16 %v50
  %v352 = vunpack.c.l.b16 %v59
  %v353 = vpack.c.b16 %v350, %v349
  %v354 = vpack.c.b16 %v352, %v351
  %vm357 = vcmask 261120
  %v359 = vsel %vm357, %v340, 0
  %361 = vmatprep.subr.bf16.mxu0 0
  %362 = vmatpush1.bf16.msra.mxu0 %v353
  %363 = vmatprep.subr.bf16.mxu0 0
  %364 = vmatpush1.bf16.msra.mxu0 %v354
  %365 = vmatprep.subr.bf16.mxu0 0
  %366 = vmatpush1.bf16.msra.mxu0 0
  %367 = vmatprep.subr.bf16.mxu0 0
  %368 = vmatpush1.bf16.msra.mxu0 0
  %369 = vmatprep.subr.bf16.mxu0 0
  %370 = vmatpush1.bf16.msra.mxu0 0
  %371 = vmatprep.subr.bf16.mxu0 0
  %372 = vmatpush1.bf16.msra.mxu0 0
  %373 = vmatprep.subr.bf16.mxu0 0
  %374 = vmatpush1.bf16.msra.mxu0 0
  %375 = vmatprep.subr.bf16.mxu0 0
  %376 = vmatpush1.bf16.msra.mxu0 0
  %377 = vmatprep.subr.bf16.mxu0 0
  %378 = vmatpush1.bf16.msra.mxu0 0
  %379 = vmatprep.subr.bf16.mxu0 0
  %380 = vmatpush1.bf16.msra.mxu0 0
  %381 = vmatprep.subr.bf16.mxu0 0
  %382 = vmatpush1.bf16.msra.mxu0 0
  %383 = vmatprep.subr.bf16.mxu0 0
  %384 = vmatpush1.bf16.msra.mxu0 0
  %385 = vmatprep.subr.bf16.mxu0 0
  %386 = vmatpush1.bf16.msra.mxu0 0
  %387 = vmatprep.subr.bf16.mxu0 0
  %388 = vmatpush1.bf16.msra.mxu0 0
  %389 = vmatprep.subr.bf16.mxu0 0
  %390 = vmatpush1.bf16.msra.mxu0 0
  %391 = vmatprep.subr.bf16.mxu0 0
  %392 = vmatpush1.bf16.msra.mxu0 0
  %393 = vmatprep.mubr.bf16.mxu0 0
  %394 = vmatmul.mubr.bf16.gmra.mrb[0].mxu0 %v359
  %v395 = vpop.f32.mrb[0].mxu0
  %v396 = vadd.f32 %v344, %v395
  %v397 = vpop.f32.mrb[0].mxu0
  %v398 = vpop.f32.mrb[0].mxu0
  %v399 = vadd.f32 %v344, %v398
  %v400 = vpop.f32.mrb[0].mxu0
  %401 = vdwg.mxu0
  %403 = vrot.lane.b32.xlu0 %v396, 96
  %v404 = vpop.permute.xlu0 %403
  %vm405 = vcmask 64512
  %v406 = vsel %vm405, %v396, 0
  %v408 = vsel %vm405, %v404, 0
  %410 = vmatprep.subr.mxu0 0.0
  %411 = vmatpush1.xpose.msra.mxu0 %v408
  %412 = vmatprep.subr.mxu0 0.0
  %413 = vmatpush1.xpose.msra.mxu0 0.0
  %414 = vmatprep.subr.mxu0 0.0
  %415 = vmatpush1.xpose.msra.mxu0 0.0
  %416 = vmatprep.subr.mxu0 0.0
  %417 = vmatpush1.xpose.msra.mxu0 0.0
  %418 = vmatprep.subr.mxu0 0.0
  %419 = vmatpush1.xpose.msra.mxu0 0.0
  %420 = vmatprep.subr.mxu0 0.0
  %421 = vmatpush1.xpose.msra.mxu0 0.0
  %422 = vmatprep.subr.mxu0 0.0
  %423 = vmatpush1.xpose.msra.mxu0 0.0
  %424 = vmatprep.subr.mxu0 0.0
  %425 = vmatpush1.xpose.msra.mxu0 0.0
  %426 = vmatprep.subr.mxu0 0.0
  %427 = vmatpush1.xpose.msra.mxu0 0.0
  %428 = vmatprep.subr.mxu0 0.0
  %429 = vmatpush1.xpose.msra.mxu0 0.0
  %430 = vmatprep.subr.mxu0 0.0
  %431 = vmatpush1.xpose.msra.mxu0 0.0
  %432 = vmatprep.subr.mxu0 0.0
  %433 = vmatpush1.xpose.msra.mxu0 0.0
  %434 = vmatprep.subr.mxu0 0.0
  %435 = vmatpush1.xpose.msra.mxu0 0.0
  %436 = vmatprep.subr.mxu0 0.0
  %437 = vmatpush1.xpose.msra.mxu0 0.0
  %438 = vmatprep.subr.mxu0 0.0
  %439 = vmatpush1.xpose.msra.mxu0 0.0
  %440 = vmatprep.subr.mxu0 0.0
  %441 = vmatpush1.xpose.msra.mxu0 0.0
  %442 = vmatprep.subr.mxu0 0.0
  %443 = vmatpush1.xpose.msra.mxu0 0.0
  %444 = vmatprep.subr.mxu0 0.0
  %445 = vmatpush1.xpose.msra.mxu0 0.0
  %446 = vmatprep.subr.mxu0 0.0
  %447 = vmatpush1.xpose.msra.mxu0 0.0
  %448 = vmatprep.subr.mxu0 0.0
  %449 = vmatpush1.xpose.msra.mxu0 0.0
  %450 = vmatprep.subr.mxu0 0.0
  %451 = vmatpush1.xpose.msra.mxu0 0.0
  %452 = vmatprep.subr.mxu0 0.0
  %453 = vmatpush1.xpose.msra.mxu0 0.0
  %454 = vmatprep.subr.mxu0 0.0
  %455 = vmatpush1.xpose.msra.mxu0 0.0
  %456 = vmatprep.subr.mxu0 0.0
  %457 = vmatpush1.xpose.msra.mxu0 0.0
  %458 = vmatprep.subr.mxu0 0.0
  %459 = vmatpush1.xpose.msra.mxu0 0.0
  %460 = vmatprep.subr.mxu0 0.0
  %461 = vmatpush1.xpose.msra.mxu0 0.0
  %462 = vmatprep.subr.mxu0 0.0
  %463 = vmatpush1.xpose.msra.mxu0 0.0
  %464 = vmatprep.subr.mxu0 0.0
  %465 = vmatpush1.xpose.msra.mxu0 0.0
  %466 = vmatprep.subr.mxu0 0.0
  %467 = vmatpush1.xpose.msra.mxu0 0.0
  %468 = vmatprep.subr.mxu0 0.0
  %469 = vmatpush1.xpose.msra.mxu0 0.0
  %470 = vmatprep.subr.mxu0 0.0
  %471 = vmatpush1.xpose.msra.mxu0 0.0
  %472 = vmatprep.subr.mxu0 0.0
  %473 = vmatpush1.xpose.msra.mxu0 0.0
  %474 = vmatprep.mubr.f32.mxu0 0.0
  %475 = vmatmul.mubr.f32.gmra.mrb[0].mxu0 %v406
  %v476 = vpop.f32.mrb[0].mxu0
  %v477 = vadd.f32 0.0, %v476
  %v478 = vpop.f32.mrb[0].mxu0
  %479 = vdwg.mxu0
  %481 = vrot.lane.b32.xlu0 %v399, 96
  %v482 = vpop.permute.xlu0 %481
  %v483 = vsel %vm405, %v399, 0
  %v485 = vsel %vm405, %v482, 0
  %487 = vmatprep.subr.mxu0 0.0
  %488 = vmatpush1.xpose.msra.mxu0 %v485
  %489 = vmatprep.subr.mxu0 0.0
  %490 = vmatpush1.xpose.msra.mxu0 0.0
  %491 = vmatprep.subr.mxu0 0.0
  %492 = vmatpush1.xpose.msra.mxu0 0.0
  %493 = vmatprep.subr.mxu0 0.0
  %494 = vmatpush1.xpose.msra.mxu0 0.0
  %495 = vmatprep.subr.mxu0 0.0
  %496 = vmatpush1.xpose.msra.mxu0 0.0
  %497 = vmatprep.subr.mxu0 0.0
  %498 = vmatpush1.xpose.msra.mxu0 0.0
  %499 = vmatprep.subr.mxu0 0.0
  %500 = vmatpush1.xpose.msra.mxu0 0.0
  %501 = vmatprep.subr.mxu0 0.0
  %502 = vmatpush1.xpose.msra.mxu0 0.0
  %503 = vmatprep.subr.mxu0 0.0
  %504 = vmatpush1.xpose.msra.mxu0 0.0
  %505 = vmatprep.subr.mxu0 0.0
  %506 = vmatpush1.xpose.msra.mxu0 0.0
  %507 = vmatprep.subr.mxu0 0.0
  %508 = vmatpush1.xpose.msra.mxu0 0.0
  %509 = vmatprep.subr.mxu0 0.0
  %510 = vmatpush1.xpose.msra.mxu0 0.0
  %511 = vmatprep.subr.mxu0 0.0
  %512 = vmatpush1.xpose.msra.mxu0 0.0
  %513 = vmatprep.subr.mxu0 0.0
  %514 = vmatpush1.xpose.msra.mxu0 0.0
  %515 = vmatprep.subr.mxu0 0.0
  %516 = vmatpush1.xpose.msra.mxu0 0.0
  %517 = vmatprep.subr.mxu0 0.0
  %518 = vmatpush1.xpose.msra.mxu0 0.0
  %519 = vmatprep.subr.mxu0 0.0
  %520 = vmatpush1.xpose.msra.mxu0 0.0
  %521 = vmatprep.subr.mxu0 0.0
  %522 = vmatpush1.xpose.msra.mxu0 0.0
  %523 = vmatprep.subr.mxu0 0.0
  %524 = vmatpush1.xpose.msra.mxu0 0.0
  %525 = vmatprep.subr.mxu0 0.0
  %526 = vmatpush1.xpose.msra.mxu0 0.0
  %527 = vmatprep.subr.mxu0 0.0
  %528 = vmatpush1.xpose.msra.mxu0 0.0
  %529 = vmatprep.subr.mxu0 0.0
  %530 = vmatpush1.xpose.msra.mxu0 0.0
  %531 = vmatprep.subr.mxu0 0.0
  %532 = vmatpush1.xpose.msra.mxu0 0.0
  %533 = vmatprep.subr.mxu0 0.0
  %534 = vmatpush1.xpose.msra.mxu0 0.0
  %535 = vmatprep.subr.mxu0 0.0
  %536 = vmatpush1.xpose.msra.mxu0 0.0
  %537 = vmatprep.subr.mxu0 0.0
  %538 = vmatpush1.xpose.msra.mxu0 0.0
  %539 = vmatprep.subr.mxu0 0.0
  %540 = vmatpush1.xpose.msra.mxu0 0.0
  %541 = vmatprep.subr.mxu0 0.0
  %542 = vmatpush1.xpose.msra.mxu0 0.0
  %543 = vmatprep.subr.mxu0 0.0
  %544 = vmatpush1.xpose.msra.mxu0 0.0
  %545 = vmatprep.subr.mxu0 0.0
  %546 = vmatpush1.xpose.msra.mxu0 0.0
  %547 = vmatprep.subr.mxu0 0.0
  %548 = vmatpush1.xpose.msra.mxu0 0.0
  %549 = vmatprep.subr.mxu0 0.0
  %550 = vmatpush1.xpose.msra.mxu0 0.0
  %551 = vmatprep.mubr.f32.mxu0 0.0
  %552 = vmatmul.mubr.f32.gmra.mrb[0].mxu0 %v483
  %v553 = vpop.f32.mrb[0].mxu0
  %v554 = vadd.f32 0.0, %v553
  %v555 = vpop.f32.mrb[0].mxu0
  %556 = vdwg.mxu0
  %v557 = vmul.f32 %v477, 0.35355338
  %v558 = vmul.f32 %v554, 0.35355338
  %v559 = vsel %vm405, %v557, -inf
  %560 = vmax.xlane.f32.xlu0 %v559
  %v561 = vpop.xlane.xlu0 %560
  %v562 = vsel %vm405, %v558, -inf
  %563 = vmax.xlane.f32.xlu0 %v562
  %v564 = vpop.xlane.xlu0 %563
  %v565 = vsub.f32 %v557, %v561
  %v566 = vsub.f32 %v558, %v564
  %v567 = vmul.f32 %v565, 1.442695
  %v568 = vpow.pop %v567
  %v569 = vmul.f32 %v566, 1.442695
  %v570 = vpow.pop %v569
  %v571 = vsel %vm405, %v568, 0.0
  %572 = vadd.xlane.f32.xlu0 %v571
  %v573 = vpop.xlane.xlu0 %572
  %v574 = vsel %vm405, %v570, 0.0
  %575 = vadd.xlane.f32.xlu0 %v574
  %v576 = vpop.xlane.xlu0 %575
  %v577 = vrcp.pop %v573
  %v578 = vrcp.pop %v576
  %v579 = vmul.f32 %v568, %v577
  %v580 = vmul.f32 %v570, %v578
  %581 = vrot.lane.b32.xlu0 %v396, 64
  %v582 = vpop.permute.xlu0 %581
  %v585 = vsel %vm405, %v579, 0
  %587 = vmatprep.subr.mxu0 0.0
  %588 = vmatpush1.msra.mxu0 %v582
  %589 = vmatprep.subr.mxu0 0.0
  %590 = vmatpush1.msra.mxu0 0.0
  %591 = vmatprep.subr.mxu0 0.0
  %592 = vmatpush1.msra.mxu0 0.0
  %593 = vmatprep.subr.mxu0 0.0
  %594 = vmatpush1.msra.mxu0 0.0
  %595 = vmatprep.subr.mxu0 0.0
  %596 = vmatpush1.msra.mxu0 0.0
  %597 = vmatprep.subr.mxu0 0.0
  %598 = vmatpush1.msra.mxu0 0.0
  %599 = vmatprep.subr.mxu0 0.0
  %600 = vmatpush1.msra.mxu0 0.0
  %601 = vmatprep.subr.mxu0 0.0
  %602 = vmatpush1.msra.mxu0 0.0
  %603 = vmatprep.subr.mxu0 0.0
  %604 = vmatpush1.msra.mxu0 0.0
  %605 = vmatprep.subr.mxu0 0.0
  %606 = vmatpush1.msra.mxu0 0.0
  %607 = vmatprep.subr.mxu0 0.0
  %608 = vmatpush1.msra.mxu0 0.0
  %609 = vmatprep.subr.mxu0 0.0
  %610 = vmatpush1.msra.mxu0 0.0
  %611 = vmatprep.subr.mxu0 0.0
  %612 = vmatpush1.msra.mxu0 0.0
  %613 = vmatprep.subr.mxu0 0.0
  %614 = vmatpush1.msra.mxu0 0.0
  %615 = vmatprep.subr.mxu0 0.0
  %616 = vmatpush1.msra.mxu0 0.0
  %617 = vmatprep.subr.mxu0 0.0
  %618 = vmatpush1.msra.mxu0 0.0
  %619 = vmatprep.subr.mxu0 0.0
  %620 = vmatpush1.msra.mxu0 0.0
  %621 = vmatprep.subr.mxu0 0.0
  %622 = vmatpush1.msra.mxu0 0.0
  %623 = vmatprep.subr.mxu0 0.0
  %624 = vmatpush1.msra.mxu0 0.0
  %625 = vmatprep.subr.mxu0 0.0
  %626 = vmatpush1.msra.mxu0 0.0
  %627 = vmatprep.subr.mxu0 0.0
  %628 = vmatpush1.msra.mxu0 0.0
  %629 = vmatprep.subr.mxu0 0.0
  %630 = vmatpush1.msra.mxu0 0.0
  %631 = vmatprep.subr.mxu0 0.0
  %632 = vmatpush1.msra.mxu0 0.0
  %633 = vmatprep.subr.mxu0 0.0
  %634 = vmatpush1.msra.mxu0 0.0
  %635 = vmatprep.subr.mxu0 0.0
  %636 = vmatpush1.msra.mxu0 0.0
  %637 = vmatprep.subr.mxu0 0.0
  %638 = vmatpush1.msra.mxu0 0.0
  %639 = vmatprep.subr.mxu0 0.0
  %640 = vmatpush1.msra.mxu0 0.0
  %641 = vmatprep.subr.mxu0 0.0
  %642 = vmatpush1.msra.mxu0 0.0
  %643 = vmatprep.subr.mxu0 0.0
  %644 = vmatpush1.msra.mxu0 0.0
  %645 = vmatprep.subr.mxu0 0.0
  %646 = vmatpush1.msra.mxu0 0.0
  %647 = vmatprep.subr.mxu0 0.0
  %648 = vmatpush1.msra.mxu0 0.0
  %649 = vmatprep.subr.mxu0 0.0
  %650 = vmatpush1.msra.mxu0 0.0
  %651 = vmatprep.mubr.f32.mxu0 0.0
  %652 = vmatmul.mubr.f32.gmra.mrb[0].mxu0 %v585
  %v653 = vpop.f32.mrb[0].mxu0
  %v654 = vadd.f32 0.0, %v653
  %v655 = vpop.f32.mrb[0].mxu0
  %656 = vdwg.mxu0
  %657 = vrot.lane.b32.xlu0 %v399, 64
  %v658 = vpop.permute.xlu0 %657
  %v661 = vsel %vm405, %v580, 0
  %663 = vmatprep.subr.mxu0 0.0
  %664 = vmatpush1.msra.mxu0 %v658
  %665 = vmatprep.subr.mxu0 0.0
  %666 = vmatpush1.msra.mxu0 0.0
  %667 = vmatprep.subr.mxu0 0.0
  %668 = vmatpush1.msra.mxu0 0.0
  %669 = vmatprep.subr.mxu0 0.0
  %670 = vmatpush1.msra.mxu0 0.0
  %671 = vmatprep.subr.mxu0 0.0
  %672 = vmatpush1.msra.mxu0 0.0
  %673 = vmatprep.subr.mxu0 0.0
  %674 = vmatpush1.msra.mxu0 0.0
  %675 = vmatprep.subr.mxu0 0.0
  %676 = vmatpush1.msra.mxu0 0.0
  %677 = vmatprep.subr.mxu0 0.0
  %678 = vmatpush1.msra.mxu0 0.0
  %679 = vmatprep.subr.mxu0 0.0
  %680 = vmatpush1.msra.mxu0 0.0
  %681 = vmatprep.subr.mxu0 0.0
  %682 = vmatpush1.msra.mxu0 0.0
  %683 = vmatprep.subr.mxu0 0.0
  %684 = vmatpush1.msra.mxu0 0.0
  %685 = vmatprep.subr.mxu0 0.0
  %686 = vmatpush1.msra.mxu0 0.0
  %687 = vmatprep.subr.mxu0 0.0
  %688 = vmatpush1.msra.mxu0 0.0
  %689 = vmatprep.subr.mxu0 0.0
  %690 = vmatpush1.msra.mxu0 0.0
  %691 = vmatprep.subr.mxu0 0.0
  %692 = vmatpush1.msra.mxu0 0.0
  %693 = vmatprep.subr.mxu0 0.0
  %694 = vmatpush1.msra.mxu0 0.0
  %695 = vmatprep.subr.mxu0 0.0
  %696 = vmatpush1.msra.mxu0 0.0
  %697 = vmatprep.subr.mxu0 0.0
  %698 = vmatpush1.msra.mxu0 0.0
  %699 = vmatprep.subr.mxu0 0.0
  %700 = vmatpush1.msra.mxu0 0.0
  %701 = vmatprep.subr.mxu0 0.0
  %702 = vmatpush1.msra.mxu0 0.0
  %703 = vmatprep.subr.mxu0 0.0
  %704 = vmatpush1.msra.mxu0 0.0
  %705 = vmatprep.subr.mxu0 0.0
  %706 = vmatpush1.msra.mxu0 0.0
  %707 = vmatprep.subr.mxu0 0.0
  %708 = vmatpush1.msra.mxu0 0.0
  %709 = vmatprep.subr.mxu0 0.0
  %710 = vmatpush1.msra.mxu0 0.0
  %711 = vmatprep.subr.mxu0 0.0
  %712 = vmatpush1.msra.mxu0 0.0
  %713 = vmatprep.subr.mxu0 0.0
  %714 = vmatpush1.msra.mxu0 0.0
  %715 = vmatprep.subr.mxu0 0.0
  %716 = vmatpush1.msra.mxu0 0.0
  %717 = vmatprep.subr.mxu0 0.0
  %718 = vmatpush1.msra.mxu0 0.0
  %719 = vmatprep.subr.mxu0 0.0
  %720 = vmatpush1.msra.mxu0 0.0
  %721 = vmatprep.subr.mxu0 0.0
  %722 = vmatpush1.msra.mxu0 0.0
  %723 = vmatprep.subr.mxu0 0.0
  %724 = vmatpush1.msra.mxu0 0.0
  %725 = vmatprep.subr.mxu0 0.0
  %726 = vmatpush1.msra.mxu0 0.0
  %727 = vmatprep.mubr.f32.mxu0 0.0
  %728 = vmatmul.mubr.f32.gmra.mrb[0].mxu0 %v661
  %v729 = vpop.f32.mrb[0].mxu0
  %v730 = vadd.f32 0.0, %v729
  %v731 = vpop.f32.mrb[0].mxu0
  %732 = vdwg.mxu0
  %733 = vrot.lane.b32.xlu0 %v396, 120
  %v734 = vpop.permute.xlu0 %733
  %735 = vrot.lane.b32.xlu0 %v396, 88
  %v736 = vpop.permute.xlu0 %735
  %v737 = vsel %vm405, %v734, 0
  %v739 = vsel %vm405, %v736, 0
  %741 = vmatprep.subr.mxu0 0.0
  %742 = vmatpush1.xpose.msra.mxu0 %v739
  %743 = vmatprep.subr.mxu0 0.0
  %744 = vmatpush1.xpose.msra.mxu0 0.0
  %745 = vmatprep.subr.mxu0 0.0
  %746 = vmatpush1.xpose.msra.mxu0 0.0
  %747 = vmatprep.subr.mxu0 0.0
  %748 = vmatpush1.xpose.msra.mxu0 0.0
  %749 = vmatprep.subr.mxu0 0.0
  %750 = vmatpush1.xpose.msra.mxu0 0.0
  %751 = vmatprep.subr.mxu0 0.0
  %752 = vmatpush1.xpose.msra.mxu0 0.0
  %753 = vmatprep.subr.mxu0 0.0
  %754 = vmatpush1.xpose.msra.mxu0 0.0
  %755 = vmatprep.subr.mxu0 0.0
  %756 = vmatpush1.xpose.msra.mxu0 0.0
  %757 = vmatprep.subr.mxu0 0.0
  %758 = vmatpush1.xpose.msra.mxu0 0.0
  %759 = vmatprep.subr.mxu0 0.0
  %760 = vmatpush1.xpose.msra.mxu0 0.0
  %761 = vmatprep.subr.mxu0 0.0
  %762 = vmatpush1.xpose.msra.mxu0 0.0
  %763 = vmatprep.subr.mxu0 0.0
  %764 = vmatpush1.xpose.msra.mxu0 0.0
  %765 = vmatprep.subr.mxu0 0.0
  %766 = vmatpush1.xpose.msra.mxu0 0.0
  %767 = vmatprep.subr.mxu0 0.0
  %768 = vmatpush1.xpose.msra.mxu0 0.0
  %769 = vmatprep.subr.mxu0 0.0
  %770 = vmatpush1.xpose.msra.mxu0 0.0
  %771 = vmatprep.subr.mxu0 0.0
  %772 = vmatpush1.xpose.msra.mxu0 0.0
  %773 = vmatprep.subr.mxu0 0.0
  %774 = vmatpush1.xpose.msra.mxu0 0.0
  %775 = vmatprep.subr.mxu0 0.0
  %776 = vmatpush1.xpose.msra.mxu0 0.0
  %777 = vmatprep.subr.mxu0 0.0
  %778 = vmatpush1.xpose.msra.mxu0 0.0
  %779 = vmatprep.subr.mxu0 0.0
  %780 = vmatpush1.xpose.msra.mxu0 0.0
  %781 = vmatprep.subr.mxu0 0.0
  %782 = vmatpush1.xpose.msra.mxu0 0.0
  %783 = vmatprep.subr.mxu0 0.0
  %784 = vmatpush1.xpose.msra.mxu0 0.0
  %785 = vmatprep.subr.mxu0 0.0
  %786 = vmatpush1.xpose.msra.mxu0 0.0
  %787 = vmatprep.subr.mxu0 0.0
  %788 = vmatpush1.xpose.msra.mxu0 0.0
  %789 = vmatprep.subr.mxu0 0.0
  %790 = vmatpush1.xpose.msra.mxu0 0.0
  %791 = vmatprep.subr.mxu0 0.0
  %792 = vmatpush1.xpose.msra.mxu0 0.0
  %793 = vmatprep.subr.mxu0 0.0
  %794 = vmatpush1.xpose.msra.mxu0 0.0
  %795 = vmatprep.subr.mxu0 0.0
  %796 = vmatpush1.xpose.msra.mxu0 0.0
  %797 = vmatprep.subr.mxu0 0.0
  %798 = vmatpush1.xpose.msra.mxu0 0.0
  %799 = vmatprep.subr.mxu0 0.0
  %800 = vmatpush1.xpose.msra.mxu0 0.0
  %801 = vmatprep.subr.mxu0 0.0
  %802 = vmatpush1.xpose.msra.mxu0 0.0
  %803 = vmatprep.subr.mxu0 0.0
  %804 = vmatpush1.xpose.msra.mxu0 0.0
  %805 = vmatprep.mubr.f32.mxu0 0.0
  %806 = vmatmul.mubr.f32.gmra.mrb[0].mxu0 %v737
  %v807 = vpop.f32.mrb[0].mxu0
  %v808 = vadd.f32 0.0, %v807
  %v809 = vpop.f32.mrb[0].mxu0
  %810 = vdwg.mxu0
  %811 = vrot.lane.b32.xlu0 %v399, 120
  %v812 = vpop.permute.xlu0 %811
  %813 = vrot.lane.b32.xlu0 %v399, 88
  %v814 = vpop.permute.xlu0 %813
  %v815 = vsel %vm405, %v812, 0
  %v817 = vsel %vm405, %v814, 0
  %819 = vmatprep.subr.mxu0 0.0
  %820 = vmatpush1.xpose.msra.mxu0 %v817
  %821 = vmatprep.subr.mxu0 0.0
  %822 = vmatpush1.xpose.msra.mxu0 0.0
  %823 = vmatprep.subr.mxu0 0.0
  %824 = vmatpush1.xpose.msra.mxu0 0.0
  %825 = vmatprep.subr.mxu0 0.0
  %826 = vmatpush1.xpose.msra.mxu0 0.0
  %827 = vmatprep.subr.mxu0 0.0
  %828 = vmatpush1.xpose.msra.mxu0 0.0
  %829 = vmatprep.subr.mxu0 0.0
  %830 = vmatpush1.xpose.msra.mxu0 0.0
  %831 = vmatprep.subr.mxu0 0.0
  %832 = vmatpush1.xpose.msra.mxu0 0.0
  %833 = vmatprep.subr.mxu0 0.0
  %834 = vmatpush1.xpose.msra.mxu0 0.0
  %835 = vmatprep.subr.mxu0 0.0
  %836 = vmatpush1.xpose.msra.mxu0 0.0
  %837 = vmatprep.subr.mxu0 0.0
  %838 = vmatpush1.xpose.msra.mxu0 0.0
  %839 = vmatprep.subr.mxu0 0.0
  %840 = vmatpush1.xpose.msra.mxu0 0.0
  %841 = vmatprep.subr.mxu0 0.0
  %842 = vmatpush1.xpose.msra.mxu0 0.0
  %843 = vmatprep.subr.mxu0 0.0
  %844 = vmatpush1.xpose.msra.mxu0 0.0
  %845 = vmatprep.subr.mxu0 0.0
  %846 = vmatpush1.xpose.msra.mxu0 0.0
  %847 = vmatprep.subr.mxu0 0.0
  %848 = vmatpush1.xpose.msra.mxu0 0.0
  %849 = vmatprep.subr.mxu0 0.0
  %850 = vmatpush1.xpose.msra.mxu0 0.0
  %851 = vmatprep.subr.mxu0 0.0
  %852 = vmatpush1.xpose.msra.mxu0 0.0
  %853 = vmatprep.subr.mxu0 0.0
  %854 = vmatpush1.xpose.msra.mxu0 0.0
  %855 = vmatprep.subr.mxu0 0.0
  %856 = vmatpush1.xpose.msra.mxu0 0.0
  %857 = vmatprep.subr.mxu0 0.0
  %858 = vmatpush1.xpose.msra.mxu0 0.0
  %859 = vmatprep.subr.mxu0 0.0
  %860 = vmatpush1.xpose.msra.mxu0 0.0
  %861 = vmatprep.subr.mxu0 0.0
  %862 = vmatpush1.xpose.msra.mxu0 0.0
  %863 = vmatprep.subr.mxu0 0.0
  %864 = vmatpush1.xpose.msra.mxu0 0.0
  %865 = vmatprep.subr.mxu0 0.0
  %866 = vmatpush1.xpose.msra.mxu0 0.0
  %867 = vmatprep.subr.mxu0 0.0
  %868 = vmatpush1.xpose.msra.mxu0 0.0
  %869 = vmatprep.subr.mxu0 0.0
  %870 = vmatpush1.xpose.msra.mxu0 0.0
  %871 = vmatprep.subr.mxu0 0.0
  %872 = vmatpush1.xpose.msra.mxu0 0.0
  %873 = vmatprep.subr.mxu0 0.0
  %874 = vmatpush1.xpose.msra.mxu0 0.0
  %875 = vmatprep.subr.mxu0 0.0
  %876 = vmatpush1.xpose.msra.mxu0 0.0
  %877 = vmatprep.subr.mxu0 0.0
  %878 = vmatpush1.xpose.msra.mxu0 0.0
  %879 = vmatprep.subr.mxu0 0.0
  %880 = vmatpush1.xpose.msra.mxu0 0.0
  %881 = vmatprep.subr.mxu0 0.0
  %882 = vmatpush1.xpose.msra.mxu0 0.0
  %883 = vmatprep.mubr.f32.mxu0 0.0
  %884 = vmatmul.mubr.f32.gmra.mrb[0].mxu0 %v815
  %v885 = vpop.f32.mrb[0].mxu0
  %v886 = vadd.f32 0.0, %v885
  %v887 = vpop.f32.mrb[0].mxu0
  %888 = vdwg.mxu0
  %v889 = vmul.f32 %v808, 0.35355338
  %v890 = vmul.f32 %v886, 0.35355338
  %v891 = vsel %vm405, %v889, -inf
  %892 = vmax.xlane.f32.xlu0 %v891
  %v893 = vpop.xlane.xlu0 %892
  %v894 = vsel %vm405, %v890, -inf
  %895 = vmax.xlane.f32.xlu0 %v894
  %v896 = vpop.xlane.xlu0 %895
  %v897 = vsub.f32 %v889, %v893
  %v898 = vsub.f32 %v890, %v896
  %v899 = vmul.f32 %v897, 1.442695
  %v900 = vpow.pop %v899
  %v901 = vmul.f32 %v898, 1.442695
  %v902 = vpow.pop %v901
  %v903 = vsel %vm405, %v900, 0.0
  %904 = vadd.xlane.f32.xlu0 %v903
  %v905 = vpop.xlane.xlu0 %904
  %v906 = vsel %vm405, %v902, 0.0
  %907 = vadd.xlane.f32.xlu0 %v906
  %v908 = vpop.xlane.xlu0 %907
  %v909 = vrcp.pop %v905
  %v910 = vrcp.pop %v908
  %v911 = vmul.f32 %v900, %v909
  %v912 = vmul.f32 %v902, %v910
  %913 = vrot.lane.b32.xlu0 %v396, 56
  %v914 = vpop.permute.xlu0 %913
  %v917 = vsel %vm405, %v911, 0
  %919 = vmatprep.subr.mxu0 0.0
  %920 = vmatpush1.msra.mxu0 %v914
  %921 = vmatprep.subr.mxu0 0.0
  %922 = vmatpush1.msra.mxu0 0.0
  %923 = vmatprep.subr.mxu0 0.0
  %924 = vmatpush1.msra.mxu0 0.0
  %925 = vmatprep.subr.mxu0 0.0
  %926 = vmatpush1.msra.mxu0 0.0
  %927 = vmatprep.subr.mxu0 0.0
  %928 = vmatpush1.msra.mxu0 0.0
  %929 = vmatprep.subr.mxu0 0.0
  %930 = vmatpush1.msra.mxu0 0.0
  %931 = vmatprep.subr.mxu0 0.0
  %932 = vmatpush1.msra.mxu0 0.0
  %933 = vmatprep.subr.mxu0 0.0
  %934 = vmatpush1.msra.mxu0 0.0
  %935 = vmatprep.subr.mxu0 0.0
  %936 = vmatpush1.msra.mxu0 0.0
  %937 = vmatprep.subr.mxu0 0.0
  %938 = vmatpush1.msra.mxu0 0.0
  %939 = vmatprep.subr.mxu0 0.0
  %940 = vmatpush1.msra.mxu0 0.0
  %941 = vmatprep.subr.mxu0 0.0
  %942 = vmatpush1.msra.mxu0 0.0
  %943 = vmatprep.subr.mxu0 0.0
  %944 = vmatpush1.msra.mxu0 0.0
  %945 = vmatprep.subr.mxu0 0.0
  %946 = vmatpush1.msra.mxu0 0.0
  %947 = vmatprep.subr.mxu0 0.0
  %948 = vmatpush1.msra.mxu0 0.0
  %949 = vmatprep.subr.mxu0 0.0
  %950 = vmatpush1.msra.mxu0 0.0
  %951 = vmatprep.subr.mxu0 0.0
  %952 = vmatpush1.msra.mxu0 0.0
  %953 = vmatprep.subr.mxu0 0.0
  %954 = vmatpush1.msra.mxu0 0.0
  %955 = vmatprep.subr.mxu0 0.0
  %956 = vmatpush1.msra.mxu0 0.0
  %957 = vmatprep.subr.mxu0 0.0
  %958 = vmatpush1.msra.mxu0 0.0
  %959 = vmatprep.subr.mxu0 0.0
  %960 = vmatpush1.msra.mxu0 0.0
  %961 = vmatprep.subr.mxu0 0.0
  %962 = vmatpush1.msra.mxu0 0.0
  %963 = vmatprep.subr.mxu0 0.0
  %964 = vmatpush1.msra.mxu0 0.0
  %965 = vmatprep.subr.mxu0 0.0
  %966 = vmatpush1.msra.mxu0 0.0
  %967 = vmatprep.subr.mxu0 0.0
  %968 = vmatpush1.msra.mxu0 0.0
  %969 = vmatprep.subr.mxu0 0.0
  %970 = vmatpush1.msra.mxu0 0.0
  %971 = vmatprep.subr.mxu0 0.0
  %972 = vmatpush1.msra.mxu0 0.0
  %973 = vmatprep.subr.mxu0 0.0
  %974 = vmatpush1.msra.mxu0 0.0
  %975 = vmatprep.subr.mxu0 0.0
  %976 = vmatpush1.msra.mxu0 0.0
  %977 = vmatprep.subr.mxu0 0.0
  %978 = vmatpush1.msra.mxu0 0.0
  %979 = vmatprep.subr.mxu0 0.0
  %980 = vmatpush1.msra.mxu0 0.0
  %981 = vmatprep.subr.mxu0 0.0
  %982 = vmatpush1.msra.mxu0 0.0
  %983 = vmatprep.mubr.f32.mxu0 0.0
  %984 = vmatmul.mubr.f32.gmra.mrb[0].mxu0 %v917
  %v985 = vpop.f32.mrb[0].mxu0
  %v986 = vadd.f32 0.0, %v985
  %v987 = vpop.f32.mrb[0].mxu0
  %988 = vdwg.mxu0
  %989 = vrot.lane.b32.xlu0 %v399, 56
  %v990 = vpop.permute.xlu0 %989
  %v993 = vsel %vm405, %v912, 0
  %995 = vmatprep.subr.mxu0 0.0
  %996 = vmatpush1.msra.mxu0 %v990
  %997 = vmatprep.subr.mxu0 0.0
  %998 = vmatpush1.msra.mxu0 0.0
  %999 = vmatprep.subr.mxu0 0.0
  %1000 = vmatpush1.msra.mxu0 0.0
  %1001 = vmatprep.subr.mxu0 0.0
  %1002 = vmatpush1.msra.mxu0 0.0
  %1003 = vmatprep.subr.mxu0 0.0
  %1004 = vmatpush1.msra.mxu0 0.0
  %1005 = vmatprep.subr.mxu0 0.0
  %1006 = vmatpush1.msra.mxu0 0.0
  %1007 = vmatprep.subr.mxu0 0.0
  %1008 = vmatpush1.msra.mxu0 0.0
  %1009 = vmatprep.subr.mxu0 0.0
  %1010 = vmatpush1.msra.mxu0 0.0
  %1011 = vmatprep.subr.mxu0 0.0
  %1012 = vmatpush1.msra.mxu0 0.0
  %1013 = vmatprep.subr.mxu0 0.0
  %1014 = vmatpush1.msra.mxu0 0.0
  %1015 = vmatprep.subr.mxu0 0.0
  %1016 = vmatpush1.msra.mxu0 0.0
  %1017 = vmatprep.subr.mxu0 0.0
  %1018 = vmatpush1.msra.mxu0 0.0
  %1019 = vmatprep.subr.mxu0 0.0
  %1020 = vmatpush1.msra.mxu0 0.0
  %1021 = vmatprep.subr.mxu0 0.0
  %1022 = vmatpush1.msra.mxu0 0.0
  %1023 = vmatprep.subr.mxu0 0.0
  %1024 = vmatpush1.msra.mxu0 0.0
  %1025 = vmatprep.subr.mxu0 0.0
  %1026 = vmatpush1.msra.mxu0 0.0
  %1027 = vmatprep.subr.mxu0 0.0
  %1028 = vmatpush1.msra.mxu0 0.0
  %1029 = vmatprep.subr.mxu0 0.0
  %1030 = vmatpush1.msra.mxu0 0.0
  %1031 = vmatprep.subr.mxu0 0.0
  %1032 = vmatpush1.msra.mxu0 0.0
  %1033 = vmatprep.subr.mxu0 0.0
  %1034 = vmatpush1.msra.mxu0 0.0
  %1035 = vmatprep.subr.mxu0 0.0
  %1036 = vmatpush1.msra.mxu0 0.0
  %1037 = vmatprep.subr.mxu0 0.0
  %1038 = vmatpush1.msra.mxu0 0.0
  %1039 = vmatprep.subr.mxu0 0.0
  %1040 = vmatpush1.msra.mxu0 0.0
  %1041 = vmatprep.subr.mxu0 0.0
  %1042 = vmatpush1.msra.mxu0 0.0
  %1043 = vmatprep.subr.mxu0 0.0
  %1044 = vmatpush1.msra.mxu0 0.0
  %1045 = vmatprep.subr.mxu0 0.0
  %1046 = vmatpush1.msra.mxu0 0.0
  %1047 = vmatprep.subr.mxu0 0.0
  %1048 = vmatpush1.msra.mxu0 0.0
  %1049 = vmatprep.subr.mxu0 0.0
  %1050 = vmatpush1.msra.mxu0 0.0
  %1051 = vmatprep.subr.mxu0 0.0
  %1052 = vmatpush1.msra.mxu0 0.0
  %1053 = vmatprep.subr.mxu0 0.0
  %1054 = vmatpush1.msra.mxu0 0.0
  %1055 = vmatprep.subr.mxu0 0.0
  %1056 = vmatpush1.msra.mxu0 0.0
  %1057 = vmatprep.subr.mxu0 0.0
  %1058 = vmatpush1.msra.mxu0 0.0
  %1059 = vmatprep.mubr.f32.mxu0 0.0
  %1060 = vmatmul.mubr.f32.gmra.mrb[0].mxu0 %v993
  %v1061 = vpop.f32.mrb[0].mxu0
  %v1062 = vadd.f32 0.0, %v1061
  %v1063 = vpop.f32.mrb[0].mxu0
  %1064 = vdwg.mxu0
  %1065 = vrot.lane.b32.xlu0 %v396, 112
  %v1066 = vpop.permute.xlu0 %1065
  %1067 = vrot.lane.b32.xlu0 %v396, 80
  %v1068 = vpop.permute.xlu0 %1067
  %v1069 = vsel %vm405, %v1066, 0
  %v1071 = vsel %vm405, %v1068, 0
  %1073 = vmatprep.subr.mxu0 0.0
  %1074 = vmatpush1.xpose.msra.mxu0 %v1071
  %1075 = vmatprep.subr.mxu0 0.0
  %1076 = vmatpush1.xpose.msra.mxu0 0.0
  %1077 = vmatprep.subr.mxu0 0.0
  %1078 = vmatpush1.xpose.msra.mxu0 0.0
  %1079 = vmatprep.subr.mxu0 0.0
  %1080 = vmatpush1.xpose.msra.mxu0 0.0
  %1081 = vmatprep.subr.mxu0 0.0
  %1082 = vmatpush1.xpose.msra.mxu0 0.0
  %1083 = vmatprep.subr.mxu0 0.0
  %1084 = vmatpush1.xpose.msra.mxu0 0.0
  %1085 = vmatprep.subr.mxu0 0.0
  %1086 = vmatpush1.xpose.msra.mxu0 0.0
  %1087 = vmatprep.subr.mxu0 0.0
  %1088 = vmatpush1.xpose.msra.mxu0 0.0
  %1089 = vmatprep.subr.mxu0 0.0
  %1090 = vmatpush1.xpose.msra.mxu0 0.0
  %1091 = vmatprep.subr.mxu0 0.0
  %1092 = vmatpush1.xpose.msra.mxu0 0.0
  %1093 = vmatprep.subr.mxu0 0.0
  %1094 = vmatpush1.xpose.msra.mxu0 0.0
  %1095 = vmatprep.subr.mxu0 0.0
  %1096 = vmatpush1.xpose.msra.mxu0 0.0
  %1097 = vmatprep.subr.mxu0 0.0
  %1098 = vmatpush1.xpose.msra.mxu0 0.0
  %1099 = vmatprep.subr.mxu0 0.0
  %1100 = vmatpush1.xpose.msra.mxu0 0.0
  %1101 = vmatprep.subr.mxu0 0.0
  %1102 = vmatpush1.xpose.msra.mxu0 0.0
  %1103 = vmatprep.subr.mxu0 0.0
  %1104 = vmatpush1.xpose.msra.mxu0 0.0
  %1105 = vmatprep.subr.mxu0 0.0
  %1106 = vmatpush1.xpose.msra.mxu0 0.0
  %1107 = vmatprep.subr.mxu0 0.0
  %1108 = vmatpush1.xpose.msra.mxu0 0.0
  %1109 = vmatprep.subr.mxu0 0.0
  %1110 = vmatpush1.xpose.msra.mxu0 0.0
  %1111 = vmatprep.subr.mxu0 0.0
  %1112 = vmatpush1.xpose.msra.mxu0 0.0
  %1113 = vmatprep.subr.mxu0 0.0
  %1114 = vmatpush1.xpose.msra.mxu0 0.0
  %1115 = vmatprep.subr.mxu0 0.0
  %1116 = vmatpush1.xpose.msra.mxu0 0.0
  %1117 = vmatprep.subr.mxu0 0.0
  %1118 = vmatpush1.xpose.msra.mxu0 0.0
  %1119 = vmatprep.subr.mxu0 0.0
  %1120 = vmatpush1.xpose.msra.mxu0 0.0
  %1121 = vmatprep.subr.mxu0 0.0
  %1122 = vmatpush1.xpose.msra.mxu0 0.0
  %1123 = vmatprep.subr.mxu0 0.0
  %1124 = vmatpush1.xpose.msra.mxu0 0.0
  %1125 = vmatprep.subr.mxu0 0.0
  %1126 = vmatpush1.xpose.msra.mxu0 0.0
  %1127 = vmatprep.subr.mxu0 0.0
  %1128 = vmatpush1.xpose.msra.mxu0 0.0
  %1129 = vmatprep.subr.mxu0 0.0
  %1130 = vmatpush1.xpose.msra.mxu0 0.0
  %1131 = vmatprep.subr.mxu0 0.0
  %1132 = vmatpush1.xpose.msra.mxu0 0.0
  %1133 = vmatprep.subr.mxu0 0.0
  %1134 = vmatpush1.xpose.msra.mxu0 0.0
  %1135 = vmatprep.subr.mxu0 0.0
  %1136 = vmatpush1.xpose.msra.mxu0 0.0
  %1137 = vmatprep.mubr.f32.mxu0 0.0
  %1138 = vmatmul.mubr.f32.gmra.mrb[0].mxu0 %v1069
  %v1139 = vpop.f32.mrb[0].mxu0
  %v1140 = vadd.f32 0.0, %v1139
  %v1141 = vpop.f32.mrb[0].mxu0
  %1142 = vdwg.mxu0
  %1143 = vrot.lane.b32.xlu0 %v399, 112
  %v1144 = vpop.permute.xlu0 %1143
  %1145 = vrot.lane.b32.xlu0 %v399, 80
  %v1146 = vpop.permute.xlu0 %1145
  %v1147 = vsel %vm405, %v1144, 0
  %v1149 = vsel %vm405, %v1146, 0
  %1151 = vmatprep.subr.mxu0 0.0
  %1152 = vmatpush1.xpose.msra.mxu0 %v1149
  %1153 = vmatprep.subr.mxu0 0.0
  %1154 = vmatpush1.xpose.msra.mxu0 0.0
  %1155 = vmatprep.subr.mxu0 0.0
  %1156 = vmatpush1.xpose.msra.mxu0 0.0
  %1157 = vmatprep.subr.mxu0 0.0
  %1158 = vmatpush1.xpose.msra.mxu0 0.0
  %1159 = vmatprep.subr.mxu0 0.0
  %1160 = vmatpush1.xpose.msra.mxu0 0.0
  %1161 = vmatprep.subr.mxu0 0.0
  %1162 = vmatpush1.xpose.msra.mxu0 0.0
  %1163 = vmatprep.subr.mxu0 0.0
  %1164 = vmatpush1.xpose.msra.mxu0 0.0
  %1165 = vmatprep.subr.mxu0 0.0
  %1166 = vmatpush1.xpose.msra.mxu0 0.0
  %1167 = vmatprep.subr.mxu0 0.0
  %1168 = vmatpush1.xpose.msra.mxu0 0.0
  %1169 = vmatprep.subr.mxu0 0.0
  %1170 = vmatpush1.xpose.msra.mxu0 0.0
  %1171 = vmatprep.subr.mxu0 0.0
  %1172 = vmatpush1.xpose.msra.mxu0 0.0
  %1173 = vmatprep.subr.mxu0 0.0
  %1174 = vmatpush1.xpose.msra.mxu0 0.0
  %1175 = vmatprep.subr.mxu0 0.0
  %1176 = vmatpush1.xpose.msra.mxu0 0.0
  %1177 = vmatprep.subr.mxu0 0.0
  %1178 = vmatpush1.xpose.msra.mxu0 0.0
  %1179 = vmatprep.subr.mxu0 0.0
  %1180 = vmatpush1.xpose.msra.mxu0 0.0
  %1181 = vmatprep.subr.mxu0 0.0
  %1182 = vmatpush1.xpose.msra.mxu0 0.0
  %1183 = vmatprep.subr.mxu0 0.0
  %1184 = vmatpush1.xpose.msra.mxu0 0.0
  %1185 = vmatprep.subr.mxu0 0.0
  %1186 = vmatpush1.xpose.msra.mxu0 0.0
  %1187 = vmatprep.subr.mxu0 0.0
  %1188 = vmatpush1.xpose.msra.mxu0 0.0
  %1189 = vmatprep.subr.mxu0 0.0
  %1190 = vmatpush1.xpose.msra.mxu0 0.0
  %1191 = vmatprep.subr.mxu0 0.0
  %1192 = vmatpush1.xpose.msra.mxu0 0.0
  %1193 = vmatprep.subr.mxu0 0.0
  %1194 = vmatpush1.xpose.msra.mxu0 0.0
  %1195 = vmatprep.subr.mxu0 0.0
  %1196 = vmatpush1.xpose.msra.mxu0 0.0
  %1197 = vmatprep.subr.mxu0 0.0
  %1198 = vmatpush1.xpose.msra.mxu0 0.0
  %1199 = vmatprep.subr.mxu0 0.0
  %1200 = vmatpush1.xpose.msra.mxu0 0.0
  %1201 = vmatprep.subr.mxu0 0.0
  %1202 = vmatpush1.xpose.msra.mxu0 0.0
  %1203 = vmatprep.subr.mxu0 0.0
  %1204 = vmatpush1.xpose.msra.mxu0 0.0
  %1205 = vmatprep.subr.mxu0 0.0
  %1206 = vmatpush1.xpose.msra.mxu0 0.0
  %1207 = vmatprep.subr.mxu0 0.0
  %1208 = vmatpush1.xpose.msra.mxu0 0.0
  %1209 = vmatprep.subr.mxu0 0.0
  %1210 = vmatpush1.xpose.msra.mxu0 0.0
  %1211 = vmatprep.subr.mxu0 0.0
  %1212 = vmatpush1.xpose.msra.mxu0 0.0
  %1213 = vmatprep.subr.mxu0 0.0
  %1214 = vmatpush1.xpose.msra.mxu0 0.0
  %1215 = vmatprep.mubr.f32.mxu0 0.0
  %1216 = vmatmul.mubr.f32.gmra.mrb[0].mxu0 %v1147
  %v1217 = vpop.f32.mrb[0].mxu0
  %v1218 = vadd.f32 0.0, %v1217
  %v1219 = vpop.f32.mrb[0].mxu0
  %1220 = vdwg.mxu0
  %v1221 = vmul.f32 %v1140, 0.35355338
  %v1222 = vmul.f32 %v1218, 0.35355338
  %v1223 = vsel %vm405, %v1221, -inf
  %1224 = vmax.xlane.f32.xlu0 %v1223
  %v1225 = vpop.xlane.xlu0 %1224
  %v1226 = vsel %vm405, %v1222, -inf
  %1227 = vmax.xlane.f32.xlu0 %v1226
  %v1228 = vpop.xlane.xlu0 %1227
  %v1229 = vsub.f32 %v1221, %v1225
  %v1230 = vsub.f32 %v1222, %v1228
  %v1231 = vmul.f32 %v1229, 1.442695
  %v1232 = vpow.pop %v1231
  %v1233 = vmul.f32 %v1230, 1.442695
  %v1234 = vpow.pop %v1233
  %v1235 = vsel %vm405, %v1232, 0.0
  %1236 = vadd.xlane.f32.xlu0 %v1235
  %v1237 = vpop.xlane.xlu0 %1236
  %v1238 = vsel %vm405, %v1234, 0.0
  %1239 = vadd.xlane.f32.xlu0 %v1238
  %v1240 = vpop.xlane.xlu0 %1239
  %v1241 = vrcp.pop %v1237
  %v1242 = vrcp.pop %v1240
  %v1243 = vmul.f32 %v1232, %v1241
  %v1244 = vmul.f32 %v1234, %v1242
  %1245 = vrot.lane.b32.xlu0 %v396, 48
  %v1246 = vpop.permute.xlu0 %1245
  %v1249 = vsel %vm405, %v1243, 0
  %1251 = vmatprep.subr.mxu0 0.0
  %1252 = vmatpush1.msra.mxu0 %v1246
  %1253 = vmatprep.subr.mxu0 0.0
  %1254 = vmatpush1.msra.mxu0 0.0
  %1255 = vmatprep.subr.mxu0 0.0
  %1256 = vmatpush1.msra.mxu0 0.0
  %1257 = vmatprep.subr.mxu0 0.0
  %1258 = vmatpush1.msra.mxu0 0.0
  %1259 = vmatprep.subr.mxu0 0.0
  %1260 = vmatpush1.msra.mxu0 0.0
  %1261 = vmatprep.subr.mxu0 0.0
  %1262 = vmatpush1.msra.mxu0 0.0
  %1263 = vmatprep.subr.mxu0 0.0
  %1264 = vmatpush1.msra.mxu0 0.0
  %1265 = vmatprep.subr.mxu0 0.0
  %1266 = vmatpush1.msra.mxu0 0.0
  %1267 = vmatprep.subr.mxu0 0.0
  %1268 = vmatpush1.msra.mxu0 0.0
  %1269 = vmatprep.subr.mxu0 0.0
  %1270 = vmatpush1.msra.mxu0 0.0
  %1271 = vmatprep.subr.mxu0 0.0
  %1272 = vmatpush1.msra.mxu0 0.0
  %1273 = vmatprep.subr.mxu0 0.0
  %1274 = vmatpush1.msra.mxu0 0.0
  %1275 = vmatprep.subr.mxu0 0.0
  %1276 = vmatpush1.msra.mxu0 0.0
  %1277 = vmatprep.subr.mxu0 0.0
  %1278 = vmatpush1.msra.mxu0 0.0
  %1279 = vmatprep.subr.mxu0 0.0
  %1280 = vmatpush1.msra.mxu0 0.0
  %1281 = vmatprep.subr.mxu0 0.0
  %1282 = vmatpush1.msra.mxu0 0.0
  %1283 = vmatprep.subr.mxu0 0.0
  %1284 = vmatpush1.msra.mxu0 0.0
  %1285 = vmatprep.subr.mxu0 0.0
  %1286 = vmatpush1.msra.mxu0 0.0
  %1287 = vmatprep.subr.mxu0 0.0
  %1288 = vmatpush1.msra.mxu0 0.0
  %1289 = vmatprep.subr.mxu0 0.0
  %1290 = vmatpush1.msra.mxu0 0.0
  %1291 = vmatprep.subr.mxu0 0.0
  %1292 = vmatpush1.msra.mxu0 0.0
  %1293 = vmatprep.subr.mxu0 0.0
  %1294 = vmatpush1.msra.mxu0 0.0
  %1295 = vmatprep.subr.mxu0 0.0
  %1296 = vmatpush1.msra.mxu0 0.0
  %1297 = vmatprep.subr.mxu0 0.0
  %1298 = vmatpush1.msra.mxu0 0.0
  %1299 = vmatprep.subr.mxu0 0.0
  %1300 = vmatpush1.msra.mxu0 0.0
  %1301 = vmatprep.subr.mxu0 0.0
  %1302 = vmatpush1.msra.mxu0 0.0
  %1303 = vmatprep.subr.mxu0 0.0
  %1304 = vmatpush1.msra.mxu0 0.0
  %1305 = vmatprep.subr.mxu0 0.0
  %1306 = vmatpush1.msra.mxu0 0.0
  %1307 = vmatprep.subr.mxu0 0.0
  %1308 = vmatpush1.msra.mxu0 0.0
  %1309 = vmatprep.subr.mxu0 0.0
  %1310 = vmatpush1.msra.mxu0 0.0
  %1311 = vmatprep.subr.mxu0 0.0
  %1312 = vmatpush1.msra.mxu0 0.0
  %1313 = vmatprep.subr.mxu0 0.0
  %1314 = vmatpush1.msra.mxu0 0.0
  %1315 = vmatprep.mubr.f32.mxu0 0.0
  %1316 = vmatmul.mubr.f32.gmra.mrb[0].mxu0 %v1249
  %v1317 = vpop.f32.mrb[0].mxu0
  %v1318 = vadd.f32 0.0, %v1317
  %v1319 = vpop.f32.mrb[0].mxu0
  %1320 = vdwg.mxu0
  %1321 = vrot.lane.b32.xlu0 %v399, 48
  %v1322 = vpop.permute.xlu0 %1321
  %v1325 = vsel %vm405, %v1244, 0
  %1327 = vmatprep.subr.mxu0 0.0
  %1328 = vmatpush1.msra.mxu0 %v1322
  %1329 = vmatprep.subr.mxu0 0.0
  %1330 = vmatpush1.msra.mxu0 0.0
  %1331 = vmatprep.subr.mxu0 0.0
  %1332 = vmatpush1.msra.mxu0 0.0
  %1333 = vmatprep.subr.mxu0 0.0
  %1334 = vmatpush1.msra.mxu0 0.0
  %1335 = vmatprep.subr.mxu0 0.0
  %1336 = vmatpush1.msra.mxu0 0.0
  %1337 = vmatprep.subr.mxu0 0.0
  %1338 = vmatpush1.msra.mxu0 0.0
  %1339 = vmatprep.subr.mxu0 0.0
  %1340 = vmatpush1.msra.mxu0 0.0
  %1341 = vmatprep.subr.mxu0 0.0
  %1342 = vmatpush1.msra.mxu0 0.0
  %1343 = vmatprep.subr.mxu0 0.0
  %1344 = vmatpush1.msra.mxu0 0.0
  %1345 = vmatprep.subr.mxu0 0.0
  %1346 = vmatpush1.msra.mxu0 0.0
  %1347 = vmatprep.subr.mxu0 0.0
  %1348 = vmatpush1.msra.mxu0 0.0
  %1349 = vmatprep.subr.mxu0 0.0
  %1350 = vmatpush1.msra.mxu0 0.0
  %1351 = vmatprep.subr.mxu0 0.0
  %1352 = vmatpush1.msra.mxu0 0.0
  %1353 = vmatprep.subr.mxu0 0.0
  %1354 = vmatpush1.msra.mxu0 0.0
  %1355 = vmatprep.subr.mxu0 0.0
  %1356 = vmatpush1.msra.mxu0 0.0
  %1357 = vmatprep.subr.mxu0 0.0
  %1358 = vmatpush1.msra.mxu0 0.0
  %1359 = vmatprep.subr.mxu0 0.0
  %1360 = vmatpush1.msra.mxu0 0.0
  %1361 = vmatprep.subr.mxu0 0.0
  %1362 = vmatpush1.msra.mxu0 0.0
  %1363 = vmatprep.subr.mxu0 0.0
  %1364 = vmatpush1.msra.mxu0 0.0
  %1365 = vmatprep.subr.mxu0 0.0
  %1366 = vmatpush1.msra.mxu0 0.0
  %1367 = vmatprep.subr.mxu0 0.0
  %1368 = vmatpush1.msra.mxu0 0.0
  %1369 = vmatprep.subr.mxu0 0.0
  %1370 = vmatpush1.msra.mxu0 0.0
  %1371 = vmatprep.subr.mxu0 0.0
  %1372 = vmatpush1.msra.mxu0 0.0
  %1373 = vmatprep.subr.mxu0 0.0
  %1374 = vmatpush1.msra.mxu0 0.0
  %1375 = vmatprep.subr.mxu0 0.0
  %1376 = vmatpush1.msra.mxu0 0.0
  %1377 = vmatprep.subr.mxu0 0.0
  %1378 = vmatpush1.msra.mxu0 0.0
  %1379 = vmatprep.subr.mxu0 0.0
  %1380 = vmatpush1.msra.mxu0 0.0
  %1381 = vmatprep.subr.mxu0 0.0
  %1382 = vmatpush1.msra.mxu0 0.0
  %1383 = vmatprep.subr.mxu0 0.0
  %1384 = vmatpush1.msra.mxu0 0.0
  %1385 = vmatprep.subr.mxu0 0.0
  %1386 = vmatpush1.msra.mxu0 0.0
  %1387 = vmatprep.subr.mxu0 0.0
  %1388 = vmatpush1.msra.mxu0 0.0
  %1389 = vmatprep.subr.mxu0 0.0
  %1390 = vmatpush1.msra.mxu0 0.0
  %1391 = vmatprep.mubr.f32.mxu0 0.0
  %1392 = vmatmul.mubr.f32.gmra.mrb[0].mxu0 %v1325
  %v1393 = vpop.f32.mrb[0].mxu0
  %v1394 = vadd.f32 0.0, %v1393
  %v1395 = vpop.f32.mrb[0].mxu0
  %1396 = vdwg.mxu0
  %1397 = vrot.lane.b32.xlu0 %v396, 104
  %v1398 = vpop.permute.xlu0 %1397
  %1399 = vrot.lane.b32.xlu0 %v396, 72
  %v1400 = vpop.permute.xlu0 %1399
  %v1401 = vsel %vm405, %v1398, 0
  %v1403 = vsel %vm405, %v1400, 0
  %1405 = vmatprep.subr.mxu0 0.0
  %1406 = vmatpush1.xpose.msra.mxu0 %v1403
  %1407 = vmatprep.subr.mxu0 0.0
  %1408 = vmatpush1.xpose.msra.mxu0 0.0
  %1409 = vmatprep.subr.mxu0 0.0
  %1410 = vmatpush1.xpose.msra.mxu0 0.0
  %1411 = vmatprep.subr.mxu0 0.0
  %1412 = vmatpush1.xpose.msra.mxu0 0.0
  %1413 = vmatprep.subr.mxu0 0.0
  %1414 = vmatpush1.xpose.msra.mxu0 0.0
  %1415 = vmatprep.subr.mxu0 0.0
  %1416 = vmatpush1.xpose.msra.mxu0 0.0
  %1417 = vmatprep.subr.mxu0 0.0
  %1418 = vmatpush1.xpose.msra.mxu0 0.0
  %1419 = vmatprep.subr.mxu0 0.0
  %1420 = vmatpush1.xpose.msra.mxu0 0.0
  %1421 = vmatprep.subr.mxu0 0.0
  %1422 = vmatpush1.xpose.msra.mxu0 0.0
  %1423 = vmatprep.subr.mxu0 0.0
  %1424 = vmatpush1.xpose.msra.mxu0 0.0
  %1425 = vmatprep.subr.mxu0 0.0
  %1426 = vmatpush1.xpose.msra.mxu0 0.0
  %1427 = vmatprep.subr.mxu0 0.0
  %1428 = vmatpush1.xpose.msra.mxu0 0.0
  %1429 = vmatprep.subr.mxu0 0.0
  %1430 = vmatpush1.xpose.msra.mxu0 0.0
  %1431 = vmatprep.subr.mxu0 0.0
  %1432 = vmatpush1.xpose.msra.mxu0 0.0
  %1433 = vmatprep.subr.mxu0 0.0
  %1434 = vmatpush1.xpose.msra.mxu0 0.0
  %1435 = vmatprep.subr.mxu0 0.0
  %1436 = vmatpush1.xpose.msra.mxu0 0.0
  %1437 = vmatprep.subr.mxu0 0.0
  %1438 = vmatpush1.xpose.msra.mxu0 0.0
  %1439 = vmatprep.subr.mxu0 0.0
  %1440 = vmatpush1.xpose.msra.mxu0 0.0
  %1441 = vmatprep.subr.mxu0 0.0
  %1442 = vmatpush1.xpose.msra.mxu0 0.0
  %1443 = vmatprep.subr.mxu0 0.0
  %1444 = vmatpush1.xpose.msra.mxu0 0.0
  %1445 = vmatprep.subr.mxu0 0.0
  %1446 = vmatpush1.xpose.msra.mxu0 0.0
  %1447 = vmatprep.subr.mxu0 0.0
  %1448 = vmatpush1.xpose.msra.mxu0 0.0
  %1449 = vmatprep.subr.mxu0 0.0
  %1450 = vmatpush1.xpose.msra.mxu0 0.0
  %1451 = vmatprep.subr.mxu0 0.0
  %1452 = vmatpush1.xpose.msra.mxu0 0.0
  %1453 = vmatprep.subr.mxu0 0.0
  %1454 = vmatpush1.xpose.msra.mxu0 0.0
  %1455 = vmatprep.subr.mxu0 0.0
  %1456 = vmatpush1.xpose.msra.mxu0 0.0
  %1457 = vmatprep.subr.mxu0 0.0
  %1458 = vmatpush1.xpose.msra.mxu0 0.0
  %1459 = vmatprep.subr.mxu0 0.0
  %1460 = vmatpush1.xpose.msra.mxu0 0.0
  %1461 = vmatprep.subr.mxu0 0.0
  %1462 = vmatpush1.xpose.msra.mxu0 0.0
  %1463 = vmatprep.subr.mxu0 0.0
  %1464 = vmatpush1.xpose.msra.mxu0 0.0
  %1465 = vmatprep.subr.mxu0 0.0
  %1466 = vmatpush1.xpose.msra.mxu0 0.0
  %1467 = vmatprep.subr.mxu0 0.0
  %1468 = vmatpush1.xpose.msra.mxu0 0.0
  %1469 = vmatprep.mubr.f32.mxu0 0.0
  %1470 = vmatmul.mubr.f32.gmra.mrb[0].mxu0 %v1401
  %v1471 = vpop.f32.mrb[0].mxu0
  %v1472 = vadd.f32 0.0, %v1471
  %v1473 = vpop.f32.mrb[0].mxu0
  %1474 = vdwg.mxu0
  %1475 = vrot.lane.b32.xlu0 %v399, 104
  %v1476 = vpop.permute.xlu0 %1475
  %1477 = vrot.lane.b32.xlu0 %v399, 72
  %v1478 = vpop.permute.xlu0 %1477
  %v1479 = vsel %vm405, %v1476, 0
  %v1481 = vsel %vm405, %v1478, 0
  %1483 = vmatprep.subr.mxu0 0.0
  %1484 = vmatpush1.xpose.msra.mxu0 %v1481
  %1485 = vmatprep.subr.mxu0 0.0
  %1486 = vmatpush1.xpose.msra.mxu0 0.0
  %1487 = vmatprep.subr.mxu0 0.0
  %1488 = vmatpush1.xpose.msra.mxu0 0.0
  %1489 = vmatprep.subr.mxu0 0.0
  %1490 = vmatpush1.xpose.msra.mxu0 0.0
  %1491 = vmatprep.subr.mxu0 0.0
  %1492 = vmatpush1.xpose.msra.mxu0 0.0
  %1493 = vmatprep.subr.mxu0 0.0
  %1494 = vmatpush1.xpose.msra.mxu0 0.0
  %1495 = vmatprep.subr.mxu0 0.0
  %1496 = vmatpush1.xpose.msra.mxu0 0.0
  %1497 = vmatprep.subr.mxu0 0.0
  %1498 = vmatpush1.xpose.msra.mxu0 0.0
  %1499 = vmatprep.subr.mxu0 0.0
  %1500 = vmatpush1.xpose.msra.mxu0 0.0
  %1501 = vmatprep.subr.mxu0 0.0
  %1502 = vmatpush1.xpose.msra.mxu0 0.0
  %1503 = vmatprep.subr.mxu0 0.0
  %1504 = vmatpush1.xpose.msra.mxu0 0.0
  %1505 = vmatprep.subr.mxu0 0.0
  %1506 = vmatpush1.xpose.msra.mxu0 0.0
  %1507 = vmatprep.subr.mxu0 0.0
  %1508 = vmatpush1.xpose.msra.mxu0 0.0
  %1509 = vmatprep.subr.mxu0 0.0
  %1510 = vmatpush1.xpose.msra.mxu0 0.0
  %1511 = vmatprep.subr.mxu0 0.0
  %1512 = vmatpush1.xpose.msra.mxu0 0.0
  %1513 = vmatprep.subr.mxu0 0.0
  %1514 = vmatpush1.xpose.msra.mxu0 0.0
  %1515 = vmatprep.subr.mxu0 0.0
  %1516 = vmatpush1.xpose.msra.mxu0 0.0
  %1517 = vmatprep.subr.mxu0 0.0
  %1518 = vmatpush1.xpose.msra.mxu0 0.0
  %1519 = vmatprep.subr.mxu0 0.0
  %1520 = vmatpush1.xpose.msra.mxu0 0.0
  %1521 = vmatprep.subr.mxu0 0.0
  %1522 = vmatpush1.xpose.msra.mxu0 0.0
  %1523 = vmatprep.subr.mxu0 0.0
  %1524 = vmatpush1.xpose.msra.mxu0 0.0
  %1525 = vmatprep.subr.mxu0 0.0
  %1526 = vmatpush1.xpose.msra.mxu0 0.0
  %1527 = vmatprep.subr.mxu0 0.0
  %1528 = vmatpush1.xpose.msra.mxu0 0.0
  %1529 = vmatprep.subr.mxu0 0.0
  %1530 = vmatpush1.xpose.msra.mxu0 0.0
  %1531 = vmatprep.subr.mxu0 0.0
  %1532 = vmatpush1.xpose.msra.mxu0 0.0
  %1533 = vmatprep.subr.mxu0 0.0
  %1534 = vmatpush1.xpose.msra.mxu0 0.0
  %1535 = vmatprep.subr.mxu0 0.0
  %1536 = vmatpush1.xpose.msra.mxu0 0.0
  %1537 = vmatprep.subr.mxu0 0.0
  %1538 = vmatpush1.xpose.msra.mxu0 0.0
  %1539 = vmatprep.subr.mxu0 0.0
  %1540 = vmatpush1.xpose.msra.mxu0 0.0
  %1541 = vmatprep.subr.mxu0 0.0
  %1542 = vmatpush1.xpose.msra.mxu0 0.0
  %1543 = vmatprep.subr.mxu0 0.0
  %1544 = vmatpush1.xpose.msra.mxu0 0.0
  %1545 = vmatprep.subr.mxu0 0.0
  %1546 = vmatpush1.xpose.msra.mxu0 0.0
  %1547 = vmatprep.mubr.f32.mxu0 0.0
  %1548 = vmatmul.mubr.f32.gmra.mrb[0].mxu0 %v1479
  %v1549 = vpop.f32.mrb[0].mxu0
  %v1550 = vadd.f32 0.0, %v1549
  %v1551 = vpop.f32.mrb[0].mxu0
  %1552 = vdwg.mxu0
  %v1553 = vmul.f32 %v1472, 0.35355338
  %v1554 = vmul.f32 %v1550, 0.35355338
  %v1555 = vsel %vm405, %v1553, -inf
  %1556 = vmax.xlane.f32.xlu0 %v1555
  %v1557 = vpop.xlane.xlu0 %1556
  %v1558 = vsel %vm405, %v1554, -inf
  %1559 = vmax.xlane.f32.xlu0 %v1558
  %v1560 = vpop.xlane.xlu0 %1559
  %v1561 = vsub.f32 %v1553, %v1557
  %v1562 = vsub.f32 %v1554, %v1560
  %v1563 = vmul.f32 %v1561, 1.442695
  %v1564 = vpow.pop %v1563
  %v1565 = vmul.f32 %v1562, 1.442695
  %v1566 = vpow.pop %v1565
  %v1567 = vsel %vm405, %v1564, 0.0
  %1568 = vadd.xlane.f32.xlu0 %v1567
  %v1569 = vpop.xlane.xlu0 %1568
  %v1570 = vsel %vm405, %v1566, 0.0
  %1571 = vadd.xlane.f32.xlu0 %v1570
  %v1572 = vpop.xlane.xlu0 %1571
  %v1573 = vrcp.pop %v1569
  %v1574 = vrcp.pop %v1572
  %v1575 = vmul.f32 %v1564, %v1573
  %v1576 = vmul.f32 %v1566, %v1574
  %1577 = vrot.lane.b32.xlu0 %v396, 40
  %v1578 = vpop.permute.xlu0 %1577
  %v1581 = vsel %vm405, %v1575, 0
  %1583 = vmatprep.subr.mxu0 0.0
  %1584 = vmatpush1.msra.mxu0 %v1578
  %1585 = vmatprep.subr.mxu0 0.0
  %1586 = vmatpush1.msra.mxu0 0.0
  %1587 = vmatprep.subr.mxu0 0.0
  %1588 = vmatpush1.msra.mxu0 0.0
  %1589 = vmatprep.subr.mxu0 0.0
  %1590 = vmatpush1.msra.mxu0 0.0
  %1591 = vmatprep.subr.mxu0 0.0
  %1592 = vmatpush1.msra.mxu0 0.0
  %1593 = vmatprep.subr.mxu0 0.0
  %1594 = vmatpush1.msra.mxu0 0.0
  %1595 = vmatprep.subr.mxu0 0.0
  %1596 = vmatpush1.msra.mxu0 0.0
  %1597 = vmatprep.subr.mxu0 0.0
  %1598 = vmatpush1.msra.mxu0 0.0
  %1599 = vmatprep.subr.mxu0 0.0
  %1600 = vmatpush1.msra.mxu0 0.0
  %1601 = vmatprep.subr.mxu0 0.0
  %1602 = vmatpush1.msra.mxu0 0.0
  %1603 = vmatprep.subr.mxu0 0.0
  %1604 = vmatpush1.msra.mxu0 0.0
  %1605 = vmatprep.subr.mxu0 0.0
  %1606 = vmatpush1.msra.mxu0 0.0
  %1607 = vmatprep.subr.mxu0 0.0
  %1608 = vmatpush1.msra.mxu0 0.0
  %1609 = vmatprep.subr.mxu0 0.0
  %1610 = vmatpush1.msra.mxu0 0.0
  %1611 = vmatprep.subr.mxu0 0.0
  %1612 = vmatpush1.msra.mxu0 0.0
  %1613 = vmatprep.subr.mxu0 0.0
  %1614 = vmatpush1.msra.mxu0 0.0
  %1615 = vmatprep.subr.mxu0 0.0
  %1616 = vmatpush1.msra.mxu0 0.0
  %1617 = vmatprep.subr.mxu0 0.0
  %1618 = vmatpush1.msra.mxu0 0.0
  %1619 = vmatprep.subr.mxu0 0.0
  %1620 = vmatpush1.msra.mxu0 0.0
  %1621 = vmatprep.subr.mxu0 0.0
  %1622 = vmatpush1.msra.mxu0 0.0
  %1623 = vmatprep.subr.mxu0 0.0
  %1624 = vmatpush1.msra.mxu0 0.0
  %1625 = vmatprep.subr.mxu0 0.0
  %1626 = vmatpush1.msra.mxu0 0.0
  %1627 = vmatprep.subr.mxu0 0.0
  %1628 = vmatpush1.msra.mxu0 0.0
  %1629 = vmatprep.subr.mxu0 0.0
  %1630 = vmatpush1.msra.mxu0 0.0
  %1631 = vmatprep.subr.mxu0 0.0
  %1632 = vmatpush1.msra.mxu0 0.0
  %1633 = vmatprep.subr.mxu0 0.0
  %1634 = vmatpush1.msra.mxu0 0.0
  %1635 = vmatprep.subr.mxu0 0.0
  %1636 = vmatpush1.msra.mxu0 0.0
  %1637 = vmatprep.subr.mxu0 0.0
  %1638 = vmatpush1.msra.mxu0 0.0
  %1639 = vmatprep.subr.mxu0 0.0
  %1640 = vmatpush1.msra.mxu0 0.0
  %1641 = vmatprep.subr.mxu0 0.0
  %1642 = vmatpush1.msra.mxu0 0.0
  %1643 = vmatprep.subr.mxu0 0.0
  %1644 = vmatpush1.msra.mxu0 0.0
  %1645 = vmatprep.subr.mxu0 0.0
  %1646 = vmatpush1.msra.mxu0 0.0
  %1647 = vmatprep.mubr.f32.mxu0 0.0
  %1648 = vmatmul.mubr.f32.gmra.mrb[0].mxu0 %v1581
  %v1649 = vpop.f32.mrb[0].mxu0
  %v1650 = vadd.f32 0.0, %v1649
  %v1651 = vpop.f32.mrb[0].mxu0
  %1652 = vdwg.mxu0
  %1653 = vrot.lane.b32.xlu0 %v399, 40
  %v1654 = vpop.permute.xlu0 %1653
  %v1657 = vsel %vm405, %v1576, 0
  %1659 = vmatprep.subr.mxu0 0.0
  %1660 = vmatpush1.msra.mxu0 %v1654
  %1661 = vmatprep.subr.mxu0 0.0
  %1662 = vmatpush1.msra.mxu0 0.0
  %1663 = vmatprep.subr.mxu0 0.0
  %1664 = vmatpush1.msra.mxu0 0.0
  %1665 = vmatprep.subr.mxu0 0.0
  %1666 = vmatpush1.msra.mxu0 0.0
  %1667 = vmatprep.subr.mxu0 0.0
  %1668 = vmatpush1.msra.mxu0 0.0
  %1669 = vmatprep.subr.mxu0 0.0
  %1670 = vmatpush1.msra.mxu0 0.0
  %1671 = vmatprep.subr.mxu0 0.0
  %1672 = vmatpush1.msra.mxu0 0.0
  %1673 = vmatprep.subr.mxu0 0.0
  %1674 = vmatpush1.msra.mxu0 0.0
  %1675 = vmatprep.subr.mxu0 0.0
  %1676 = vmatpush1.msra.mxu0 0.0
  %1677 = vmatprep.subr.mxu0 0.0
  %1678 = vmatpush1.msra.mxu0 0.0
  %1679 = vmatprep.subr.mxu0 0.0
  %1680 = vmatpush1.msra.mxu0 0.0
  %1681 = vmatprep.subr.mxu0 0.0
  %1682 = vmatpush1.msra.mxu0 0.0
  %1683 = vmatprep.subr.mxu0 0.0
  %1684 = vmatpush1.msra.mxu0 0.0
  %1685 = vmatprep.subr.mxu0 0.0
  %1686 = vmatpush1.msra.mxu0 0.0
  %1687 = vmatprep.subr.mxu0 0.0
  %1688 = vmatpush1.msra.mxu0 0.0
  %1689 = vmatprep.subr.mxu0 0.0
  %1690 = vmatpush1.msra.mxu0 0.0
  %1691 = vmatprep.subr.mxu0 0.0
  %1692 = vmatpush1.msra.mxu0 0.0
  %1693 = vmatprep.subr.mxu0 0.0
  %1694 = vmatpush1.msra.mxu0 0.0
  %1695 = vmatprep.subr.mxu0 0.0
  %1696 = vmatpush1.msra.mxu0 0.0
  %1697 = vmatprep.subr.mxu0 0.0
  %1698 = vmatpush1.msra.mxu0 0.0
  %1699 = vmatprep.subr.mxu0 0.0
  %1700 = vmatpush1.msra.mxu0 0.0
  %1701 = vmatprep.subr.mxu0 0.0
  %1702 = vmatpush1.msra.mxu0 0.0
  %1703 = vmatprep.subr.mxu0 0.0
  %1704 = vmatpush1.msra.mxu0 0.0
  %1705 = vmatprep.subr.mxu0 0.0
  %1706 = vmatpush1.msra.mxu0 0.0
  %1707 = vmatprep.subr.mxu0 0.0
  %1708 = vmatpush1.msra.mxu0 0.0
  %1709 = vmatprep.subr.mxu0 0.0
  %1710 = vmatpush1.msra.mxu0 0.0
  %1711 = vmatprep.subr.mxu0 0.0
  %1712 = vmatpush1.msra.mxu0 0.0
  %1713 = vmatprep.subr.mxu0 0.0
  %1714 = vmatpush1.msra.mxu0 0.0
  %1715 = vmatprep.subr.mxu0 0.0
  %1716 = vmatpush1.msra.mxu0 0.0
  %1717 = vmatprep.subr.mxu0 0.0
  %1718 = vmatpush1.msra.mxu0 0.0
  %1719 = vmatprep.subr.mxu0 0.0
  %1720 = vmatpush1.msra.mxu0 0.0
  %1721 = vmatprep.subr.mxu0 0.0
  %1722 = vmatpush1.msra.mxu0 0.0
  %1723 = vmatprep.mubr.f32.mxu0 0.0
  %1724 = vmatmul.mubr.f32.gmra.mrb[0].mxu0 %v1657
  %v1725 = vpop.f32.mrb[0].mxu0
  %v1726 = vadd.f32 0.0, %v1725
  %v1727 = vpop.f32.mrb[0].mxu0
  %1728 = vdwg.mxu0
  %1731 = vrot.lane.b32.xlu0 %v986, 8
  %v1732 = vpop.permute.xlu0 %1731
  %1733 = vrot.lane.b32.xlu0 %v1062, 8
  %v1734 = vpop.permute.xlu0 %1733
  %1739 = vrot.lane.b32.xlu0 %v1318, 16
  %v1740 = vpop.permute.xlu0 %1739
  %1741 = vrot.lane.b32.xlu0 %v1394, 16
  %v1742 = vpop.permute.xlu0 %1741
  %1747 = vrot.lane.b32.xlu0 %v1650, 24
  %v1748 = vpop.permute.xlu0 %1747
  %1749 = vrot.lane.b32.xlu0 %v1726, 24
  %v1750 = vpop.permute.xlu0 %1749
  %v1753 = vsel %vm405, %v654, %v1732
  %v1754 = vsel %vm405, %v730, %v1734
  %vm1755 = vcmask 130048
  %v1756 = vsel %vm1755, %v1753, %v1740
  %v1757 = vsel %vm1755, %v1754, %v1742
  %vm1758 = vcmask 195584
  %v1759 = vsel %vm1758, %v1756, %v1748
  %v1760 = vsel %vm1758, %v1757, %v1750
  %v1761 = vpack.c.bf16 %v1760, %v1759
  %v1762 = vlaneseq
  %v1763 = vshrl.u32 %v1762, 7
  %v1764 = vsub.s32 1, %v1763
  %v1765 = vrot.slane %v324, %v1764
  %1766 = vrot.lane.b32.xlu0 %v353, 32
  %v1767 = vpop.permute.xlu0 %1766
  %1768 = vrot.lane.b32.xlu0 %v354, 32
  %v1769 = vpop.permute.xlu0 %1768
  %v1773 = vsel %vm357, %v1761, 0
  %1775 = vmatprep.subr.bf16.mxu0 0
  %1776 = vmatpush1.bf16.msra.mxu0 %v1767
  %1777 = vmatprep.subr.bf16.mxu0 0
  %1778 = vmatpush1.bf16.msra.mxu0 %v1769
  %1779 = vmatprep.subr.bf16.mxu0 0
  %1780 = vmatpush1.bf16.msra.mxu0 0
  %1781 = vmatprep.subr.bf16.mxu0 0
  %1782 = vmatpush1.bf16.msra.mxu0 0
  %1783 = vmatprep.subr.bf16.mxu0 0
  %1784 = vmatpush1.bf16.msra.mxu0 0
  %1785 = vmatprep.subr.bf16.mxu0 0
  %1786 = vmatpush1.bf16.msra.mxu0 0
  %1787 = vmatprep.subr.bf16.mxu0 0
  %1788 = vmatpush1.bf16.msra.mxu0 0
  %1789 = vmatprep.subr.bf16.mxu0 0
  %1790 = vmatpush1.bf16.msra.mxu0 0
  %1791 = vmatprep.subr.bf16.mxu0 0
  %1792 = vmatpush1.bf16.msra.mxu0 0
  %1793 = vmatprep.subr.bf16.mxu0 0
  %1794 = vmatpush1.bf16.msra.mxu0 0
  %1795 = vmatprep.subr.bf16.mxu0 0
  %1796 = vmatpush1.bf16.msra.mxu0 0
  %1797 = vmatprep.subr.bf16.mxu0 0
  %1798 = vmatpush1.bf16.msra.mxu0 0
  %1799 = vmatprep.subr.bf16.mxu0 0
  %1800 = vmatpush1.bf16.msra.mxu0 0
  %1801 = vmatprep.subr.bf16.mxu0 0
  %1802 = vmatpush1.bf16.msra.mxu0 0
  %1803 = vmatprep.subr.bf16.mxu0 0
  %1804 = vmatpush1.bf16.msra.mxu0 0
  %1805 = vmatprep.subr.bf16.mxu0 0
  %1806 = vmatpush1.bf16.msra.mxu0 0
  %1807 = vmatprep.mubr.bf16.mxu0 0
  %1808 = vmatmul.mubr.bf16.gmra.mrb[0].mxu0 %v1773
  %v1809 = vpop.f32.mrb[0].mxu0
  %v1810 = vadd.f32 %v1765, %v1809
  %v1811 = vpop.f32.mrb[0].mxu0
  %v1812 = vpop.f32.mrb[0].mxu0
  %v1813 = vadd.f32 %v1765, %v1812
  %v1814 = vpop.f32.mrb[0].mxu0
  %1815 = vdwg.mxu0
  %v1816 = vadd.f32 %v30, %v1810
  %v1817 = vadd.f32 %v31, %v1813
  %v1818 = vsel %vm357, %v1816, 0.0
  %1819 = vadd.xlane.f32.xlu0 %v1818
  %v1820 = vpop.xlane.xlu0 %1819
  %v1821 = vsel %vm357, %v1817, 0.0
  %1822 = vadd.xlane.f32.xlu0 %v1821
  %v1823 = vpop.xlane.xlu0 %1822
  %v1824 = vrcp.pop 32.0
  %v1825 = vmul.f32 %v1820, %v1824
  %v1826 = vmul.f32 %v1823, %v1824
  %v1827 = vmul.f32 %v1816, %v1816
  %v1828 = vmul.f32 %v1817, %v1817
  %v1829 = vsel %vm357, %v1827, 0.0
  %1830 = vadd.xlane.f32.xlu0 %v1829
  %v1831 = vpop.xlane.xlu0 %1830
  %v1832 = vsel %vm357, %v1828, 0.0
  %1833 = vadd.xlane.f32.xlu0 %v1832
  %v1834 = vpop.xlane.xlu0 %1833
  %v1835 = vmul.f32 %v1831, %v1824
  %v1836 = vmul.f32 %v1834, %v1824
  %v1837 = vmul.f32 %v1825, %v1825
  %v1838 = vmul.f32 %v1826, %v1826
  %v1839 = vsub.f32 %v1835, %v1837
  %v1840 = vsub.f32 %v1836, %v1838
  %v1841 = vsub.f32 %v1816, %v1825
  %v1842 = vsub.f32 %v1817, %v1826
  %v1843 = vadd.f32 %v1839, 1e-05
  %v1844 = vadd.f32 %v1840, 1e-05
  %v1845 = vrsqrt.pop %v1843
  %v1846 = vrsqrt.pop %v1844
  %v1847 = vmul.f32 %v1841, %v1845
  %v1848 = vmul.f32 %v1842, %v1846
  %v1849 = vlaneseq
  %v1850 = vshrl.u32 %v1849, 7
  %v1851 = vsub.s32 2, %v1850
  %v1852 = vrot.slane %v324, %v1851
  %v1853 = vmul.f32 %v1847, %v1852
  %v1854 = vmul.f32 %v1848, %v1852
  %v1855 = vlaneseq
  %v1856 = vshrl.u32 %v1855, 7
  %v1857 = vsub.s32 3, %v1856
  %v1858 = vrot.slane %v324, %v1857
  %v1859 = vadd.f32 %v1853, %v1858
  %v1860 = vadd.f32 %v1854, %v1858
  %v1861 = vpack.c.bf16 %v1860, %v1859
  %v1862 = vlaneseq
  %v1863 = vshrl.u32 %v1862, 7
  %v1864 = vsub.s32 4, %v1863
  %v1865 = vrot.slane %v324, %v1864
  %v1866 = vlaneseq
  %v1867 = vshrl.u32 %v1866, 7
  %v1868 = vsub.s32 4, %v1867
  %v1869 = vrot.slane %v325, %v1868
  %v1870 = vlaneseq
  %v1871 = vshrl.u32 %v1870, 7
  %v1872 = vsub.s32 4, %v1871
  %v1873 = vrot.slane %v326, %v1872
  %v1874 = vlaneseq
  %v1875 = vshrl.u32 %v1874, 7
  %v1876 = vsub.s32 4, %v1875
  %v1877 = vrot.slane %v327, %v1876
  %v1878 = vlaneseq
  %v1879 = vshrl.u32 %v1878, 7
  %v1880 = vsub.s32 4, %v1879
  %v1881 = vrot.slane %v328, %v1880
  %v1882 = vlaneseq
  %v1883 = vshrl.u32 %v1882, 7
  %v1884 = vsub.s32 4, %v1883
  %v1885 = vrot.slane %v329, %v1884
  %v1886 = vlaneseq
  %v1887 = vshrl.u32 %v1886, 7
  %v1888 = vsub.s32 4, %v1887
  %v1889 = vrot.slane %v330, %v1888
  %v1890 = vlaneseq
  %v1891 = vshrl.u32 %v1890, 7
  %v1892 = vsub.s32 4, %v1891
  %v1893 = vrot.slane %v331, %v1892
  %v1894 = vlaneseq
  %v1895 = vshrl.u32 %v1894, 7
  %v1896 = vsub.s32 4, %v1895
  %v1897 = vrot.slane %v332, %v1896
  %v1898 = vlaneseq
  %v1899 = vshrl.u32 %v1898, 7
  %v1900 = vsub.s32 4, %v1899
  %v1901 = vrot.slane %v333, %v1900
  %v1902 = vlaneseq
  %v1903 = vshrl.u32 %v1902, 7
  %v1904 = vsub.s32 4, %v1903
  %v1905 = vrot.slane %v334, %v1904
  %v1906 = vlaneseq
  %v1907 = vshrl.u32 %v1906, 7
  %v1908 = vsub.s32 4, %v1907
  %v1909 = vrot.slane %v335, %v1908
  %v1910 = vlaneseq
  %v1911 = vshrl.u32 %v1910, 7
  %v1912 = vsub.s32 4, %v1911
  %v1913 = vrot.slane %v336, %v1912
  %v1914 = vlaneseq
  %v1915 = vshrl.u32 %v1914, 7
  %v1916 = vsub.s32 4, %v1915
  %v1917 = vrot.slane %v337, %v1916
  %v1918 = vlaneseq
  %v1919 = vshrl.u32 %v1918, 7
  %v1920 = vsub.s32 4, %v1919
  %v1921 = vrot.slane %v338, %v1920
  %v1922 = vlaneseq
  %v1923 = vshrl.u32 %v1922, 7
  %v1924 = vsub.s32 4, %v1923
  %v1925 = vrot.slane %v339, %v1924
  %v1958 = vunpack.c.h.b16 %v32
  %v1959 = vunpack.c.l.b16 %v33
  %v1960 = vunpack.c.h.b16 %v33
  %v1961 = vunpack.c.l.b16 %v34
  %v1962 = vunpack.c.h.b16 %v34
  %v1963 = vunpack.c.l.b16 %v35
  %v1964 = vunpack.c.h.b16 %v35
  %v1965 = vunpack.c.l.b16 %v36
  %v1966 = vunpack.c.h.b16 %v36
  %v1967 = vunpack.c.l.b16 %v37
  %v1968 = vunpack.c.h.b16 %v37
  %v1969 = vunpack.c.l.b16 %v38
  %v1970 = vunpack.c.h.b16 %v38
  %v1971 = vunpack.c.l.b16 %v39
  %v1972 = vunpack.c.h.b16 %v39
  %v1973 = vunpack.c.l.b16 %v40
  %v1974 = vunpack.c.h.b16 %v41
  %v1975 = vunpack.c.l.b16 %v42
  %v1976 = vunpack.c.h.b16 %v42
  %v1977 = vunpack.c.l.b16 %v43
  %v1978 = vunpack.c.h.b16 %v43
  %v1979 = vunpack.c.l.b16 %v44
  %v1980 = vunpack.c.h.b16 %v44
  %v1981 = vunpack.c.l.b16 %v45
  %v1982 = vunpack.c.h.b16 %v45
  %v1983 = vunpack.c.l.b16 %v46
  %v1984 = vunpack.c.h.b16 %v46
  %v1985 = vunpack.c.l.b16 %v47
  %v1986 = vunpack.c.h.b16 %v47
  %v1987 = vunpack.c.l.b16 %v48
  %v1988 = vunpack.c.h.b16 %v48
  %v1989 = vunpack.c.l.b16 %v49
  %v1990 = vunpack.c.h.b16 %v50
  %v1991 = vunpack.c.l.b16 %v51
  %v1992 = vunpack.c.h.b16 %v51
  %v1993 = vunpack.c.l.b16 %v52
  %v1994 = vunpack.c.h.b16 %v52
  %v1995 = vunpack.c.l.b16 %v53
  %v1996 = vunpack.c.h.b16 %v53
  %v1997 = vunpack.c.l.b16 %v54
  %v1998 = vunpack.c.h.b16 %v54
  %v1999 = vunpack.c.l.b16 %v55
  %v2000 = vunpack.c.h.b16 %v55
  %v2001 = vunpack.c.l.b16 %v56
  %v2002 = vunpack.c.h.b16 %v56
  %v2003 = vunpack.c.l.b16 %v57
  %v2004 = vunpack.c.h.b16 %v57
  %v2005 = vunpack.c.l.b16 %v58
  %v2006 = vunpack.c.h.b16 %v59
  %v2007 = vunpack.c.l.b16 %v60
  %v2008 = vunpack.c.h.b16 %v60
  %v2009 = vunpack.c.l.b16 %v61
  %v2010 = vunpack.c.h.b16 %v61
  %v2011 = vunpack.c.l.b16 %v62
  %v2012 = vunpack.c.h.b16 %v62
  %v2013 = vunpack.c.l.b16 %v63
  %v2014 = vunpack.c.h.b16 %v63
  %v2015 = vunpack.c.l.b16 %v64
  %v2016 = vunpack.c.h.b16 %v64
  %v2017 = vunpack.c.l.b16 %v65
  %v2018 = vunpack.c.h.b16 %v65
  %v2019 = vunpack.c.l.b16 %v66
  %v2020 = vunpack.c.h.b16 %v66
  %v2021 = vunpack.c.l.b16 %v67
  %v2022 = vpack.c.b16 %v1974, %v1958
  %v2023 = vpack.c.b16 %v1975, %v1959
  %v2024 = vpack.c.b16 %v1976, %v1960
  %v2025 = vpack.c.b16 %v1977, %v1961
  %v2026 = vpack.c.b16 %v1978, %v1962
  %v2027 = vpack.c.b16 %v1979, %v1963
  %v2028 = vpack.c.b16 %v1980, %v1964
  %v2029 = vpack.c.b16 %v1981, %v1965
  %v2030 = vpack.c.b16 %v1982, %v1966
  %v2031 = vpack.c.b16 %v1983, %v1967
  %v2032 = vpack.c.b16 %v1984, %v1968
  %v2033 = vpack.c.b16 %v1985, %v1969
  %v2034 = vpack.c.b16 %v1986, %v1970
  %v2035 = vpack.c.b16 %v1987, %v1971
  %v2036 = vpack.c.b16 %v1988, %v1972
  %v2037 = vpack.c.b16 %v1989, %v1973
  %v2038 = vpack.c.b16 %v2006, %v1990
  %v2039 = vpack.c.b16 %v2007, %v1991
  %v2040 = vpack.c.b16 %v2008, %v1992
  %v2041 = vpack.c.b16 %v2009, %v1993
  %v2042 = vpack.c.b16 %v2010, %v1994
  %v2043 = vpack.c.b16 %v2011, %v1995
  %v2044 = vpack.c.b16 %v2012, %v1996
  %v2045 = vpack.c.b16 %v2013, %v1997
  %v2046 = vpack.c.b16 %v2014, %v1998
  %v2047 = vpack.c.b16 %v2015, %v1999
  %v2048 = vpack.c.b16 %v2016, %v2000
  %v2049 = vpack.c.b16 %v2017, %v2001
  %v2050 = vpack.c.b16 %v2018, %v2002
  %v2051 = vpack.c.b16 %v2019, %v2003
  %v2052 = vpack.c.b16 %v2020, %v2004
  %v2053 = vpack.c.b16 %v2021, %v2005
  %v2087 = vsel %vm357, %v1861, 0
  %2089 = vmatprep.subr.bf16.mxu0 %v2023
  %2090 = vmatpush1.bf16.msra.mxu0 %v2022
  %2091 = vmatprep.subr.bf16.mxu0 %v2039
  %2092 = vmatpush1.bf16.msra.mxu0 %v2038
  %2093 = vmatprep.subr.bf16.mxu0 0
  %2094 = vmatpush1.bf16.msra.mxu0 0
  %2095 = vmatprep.subr.bf16.mxu0 0
  %2096 = vmatpush1.bf16.msra.mxu0 0
  %2097 = vmatprep.subr.bf16.mxu0 0
  %2098 = vmatpush1.bf16.msra.mxu0 0
  %2099 = vmatprep.subr.bf16.mxu0 0
  %2100 = vmatpush1.bf16.msra.mxu0 0
  %2101 = vmatprep.subr.bf16.mxu0 0
  %2102 = vmatpush1.bf16.msra.mxu0 0
  %2103 = vmatprep.subr.bf16.mxu0 0
  %2104 = vmatpush1.bf16.msra.mxu0 0
  %2105 = vmatprep.subr.bf16.mxu0 0
  %2106 = vmatpush1.bf16.msra.mxu0 0
  %2107 = vmatprep.subr.bf16.mxu0 0
  %2108 = vmatpush1.bf16.msra.mxu0 0
  %2109 = vmatprep.subr.bf16.mxu0 0
  %2110 = vmatpush1.bf16.msra.mxu0 0
  %2111 = vmatprep.subr.bf16.mxu0 0
  %2112 = vmatpush1.bf16.msra.mxu0 0
  %2113 = vmatprep.subr.bf16.mxu0 0
  %2114 = vmatpush1.bf16.msra.mxu0 0
  %2115 = vmatprep.subr.bf16.mxu0 0
  %2116 = vmatpush1.bf16.msra.mxu0 0
  %2117 = vmatprep.subr.bf16.mxu0 0
  %2118 = vmatpush1.bf16.msra.mxu0 0
  %2119 = vmatprep.subr.bf16.mxu0 0
  %2120 = vmatpush1.bf16.msra.mxu0 0
  %2121 = vmatprep.mubr.bf16.mxu0 0
  %2122 = vmatmul.mubr.bf16.gmra.mrb[0].mxu0 %v2087
  %v2123 = vpop.f32.mrb[0].mxu0
  %v2124 = vadd.f32 %v1865, %v2123
  %v2125 = vpop.f32.mrb[0].mxu0
  %v2126 = vadd.f32 %v1869, %v2125
  %v2127 = vpop.f32.mrb[0].mxu0
  %v2128 = vadd.f32 %v1865, %v2127
  %v2129 = vpop.f32.mrb[0].mxu0
  %v2130 = vadd.f32 %v1869, %v2129
  %2131 = vdwg.mxu0
  %2132 = vmatprep.subr.bf16.mxu0 %v2025
  %2133 = vmatpush1.bf16.msra.mxu0 %v2024
  %2134 = vmatprep.subr.bf16.mxu0 %v2041
  %2135 = vmatpush1.bf16.msra.mxu0 %v2040
  %2136 = vmatprep.subr.bf16.mxu0 0
  %2137 = vmatpush1.bf16.msra.mxu0 0
  %2138 = vmatprep.subr.bf16.mxu0 0
  %2139 = vmatpush1.bf16.msra.mxu0 0
  %2140 = vmatprep.subr.bf16.mxu0 0
  %2141 = vmatpush1.bf16.msra.mxu0 0
  %2142 = vmatprep.subr.bf16.mxu0 0
  %2143 = vmatpush1.bf16.msra.mxu0 0
  %2144 = vmatprep.subr.bf16.mxu0 0
  %2145 = vmatpush1.bf16.msra.mxu0 0
  %2146 = vmatprep.subr.bf16.mxu0 0
  %2147 = vmatpush1.bf16.msra.mxu0 0
  %2148 = vmatprep.subr.bf16.mxu0 0
  %2149 = vmatpush1.bf16.msra.mxu0 0
  %2150 = vmatprep.subr.bf16.mxu0 0
  %2151 = vmatpush1.bf16.msra.mxu0 0
  %2152 = vmatprep.subr.bf16.mxu0 0
  %2153 = vmatpush1.bf16.msra.mxu0 0
  %2154 = vmatprep.subr.bf16.mxu0 0
  %2155 = vmatpush1.bf16.msra.mxu0 0
  %2156 = vmatprep.subr.bf16.mxu0 0
  %2157 = vmatpush1.bf16.msra.mxu0 0
  %2158 = vmatprep.subr.bf16.mxu0 0
  %2159 = vmatpush1.bf16.msra.mxu0 0
  %2160 = vmatprep.subr.bf16.mxu0 0
  %2161 = vmatpush1.bf16.msra.mxu0 0
  %2162 = vmatprep.subr.bf16.mxu0 0
  %2163 = vmatpush1.bf16.msra.mxu0 0
  %2164 = vmatprep.mubr.bf16.mxu0 0
  %2165 = vmatmul.mubr.bf16.gmra.mrb[0].mxu0 %v2087
  %v2166 = vpop.f32.mrb[0].mxu0
  %v2167 = vadd.f32 %v1873, %v2166
  %v2168 = vpop.f32.mrb[0].mxu0
  %v2169 = vadd.f32 %v1877, %v2168
  %v2170 = vpop.f32.mrb[0].mxu0
  %v2171 = vadd.f32 %v1873, %v2170
  %v2172 = vpop.f32.mrb[0].mxu0
  %v2173 = vadd.f32 %v1877, %v2172
  %2174 = vdwg.mxu0
  %2175 = vmatprep.subr.bf16.mxu0 %v2027
  %2176 = vmatpush1.bf16.msra.mxu0 %v2026
  %2177 = vmatprep.subr.bf16.mxu0 %v2043
  %2178 = vmatpush1.bf16.msra.mxu0 %v2042
  %2179 = vmatprep.subr.bf16.mxu0 0
  %2180 = vmatpush1.bf16.msra.mxu0 0
  %2181 = vmatprep.subr.bf16.mxu0 0
  %2182 = vmatpush1.bf16.msra.mxu0 0
  %2183 = vmatprep.subr.bf16.mxu0 0
  %2184 = vmatpush1.bf16.msra.mxu0 0
  %2185 = vmatprep.subr.bf16.mxu0 0
  %2186 = vmatpush1.bf16.msra.mxu0 0
  %2187 = vmatprep.subr.bf16.mxu0 0
  %2188 = vmatpush1.bf16.msra.mxu0 0
  %2189 = vmatprep.subr.bf16.mxu0 0
  %2190 = vmatpush1.bf16.msra.mxu0 0
  %2191 = vmatprep.subr.bf16.mxu0 0
  %2192 = vmatpush1.bf16.msra.mxu0 0
  %2193 = vmatprep.subr.bf16.mxu0 0
  %2194 = vmatpush1.bf16.msra.mxu0 0
  %2195 = vmatprep.subr.bf16.mxu0 0
  %2196 = vmatpush1.bf16.msra.mxu0 0
  %2197 = vmatprep.subr.bf16.mxu0 0
  %2198 = vmatpush1.bf16.msra.mxu0 0
  %2199 = vmatprep.subr.bf16.mxu0 0
  %2200 = vmatpush1.bf16.msra.mxu0 0
  %2201 = vmatprep.subr.bf16.mxu0 0
  %2202 = vmatpush1.bf16.msra.mxu0 0
  %2203 = vmatprep.subr.bf16.mxu0 0
  %2204 = vmatpush1.bf16.msra.mxu0 0
  %2205 = vmatprep.subr.bf16.mxu0 0
  %2206 = vmatpush1.bf16.msra.mxu0 0
  %2207 = vmatprep.mubr.bf16.mxu0 0
  %2208 = vmatmul.mubr.bf16.gmra.mrb[0].mxu0 %v2087
  %v2209 = vpop.f32.mrb[0].mxu0
  %v2210 = vadd.f32 %v1881, %v2209
  %v2211 = vpop.f32.mrb[0].mxu0
  %v2212 = vadd.f32 %v1885, %v2211
  %v2213 = vpop.f32.mrb[0].mxu0
  %v2214 = vadd.f32 %v1881, %v2213
  %v2215 = vpop.f32.mrb[0].mxu0
  %v2216 = vadd.f32 %v1885, %v2215
  %2217 = vdwg.mxu0
  %2218 = vmatprep.subr.bf16.mxu0 %v2029
  %2219 = vmatpush1.bf16.msra.mxu0 %v2028
  %2220 = vmatprep.subr.bf16.mxu0 %v2045
  %2221 = vmatpush1.bf16.msra.mxu0 %v2044
  %2222 = vmatprep.subr.bf16.mxu0 0
  %2223 = vmatpush1.bf16.msra.mxu0 0
  %2224 = vmatprep.subr.bf16.mxu0 0
  %2225 = vmatpush1.bf16.msra.mxu0 0
  %2226 = vmatprep.subr.bf16.mxu0 0
  %2227 = vmatpush1.bf16.msra.mxu0 0
  %2228 = vmatprep.subr.bf16.mxu0 0
  %2229 = vmatpush1.bf16.msra.mxu0 0
  %2230 = vmatprep.subr.bf16.mxu0 0
  %2231 = vmatpush1.bf16.msra.mxu0 0
  %2232 = vmatprep.subr.bf16.mxu0 0
  %2233 = vmatpush1.bf16.msra.mxu0 0
  %2234 = vmatprep.subr.bf16.mxu0 0
  %2235 = vmatpush1.bf16.msra.mxu0 0
  %2236 = vmatprep.subr.bf16.mxu0 0
  %2237 = vmatpush1.bf16.msra.mxu0 0
  %2238 = vmatprep.subr.bf16.mxu0 0
  %2239 = vmatpush1.bf16.msra.mxu0 0
  %2240 = vmatprep.subr.bf16.mxu0 0
  %2241 = vmatpush1.bf16.msra.mxu0 0
  %2242 = vmatprep.subr.bf16.mxu0 0
  %2243 = vmatpush1.bf16.msra.mxu0 0
  %2244 = vmatprep.subr.bf16.mxu0 0
  %2245 = vmatpush1.bf16.msra.mxu0 0
  %2246 = vmatprep.subr.bf16.mxu0 0
  %2247 = vmatpush1.bf16.msra.mxu0 0
  %2248 = vmatprep.subr.bf16.mxu0 0
  %2249 = vmatpush1.bf16.msra.mxu0 0
  %2250 = vmatprep.mubr.bf16.mxu0 0
  %2251 = vmatmul.mubr.bf16.gmra.mrb[0].mxu0 %v2087
  %v2252 = vpop.f32.mrb[0].mxu0
  %v2253 = vadd.f32 %v1889, %v2252
  %v2254 = vpop.f32.mrb[0].mxu0
  %v2255 = vadd.f32 %v1893, %v2254
  %v2256 = vpop.f32.mrb[0].mxu0
  %v2257 = vadd.f32 %v1889, %v2256
  %v2258 = vpop.f32.mrb[0].mxu0
  %v2259 = vadd.f32 %v1893, %v2258
  %2260 = vdwg.mxu0
  %2261 = vmatprep.subr.bf16.mxu0 %v2031
  %2262 = vmatpush1.bf16.msra.mxu0 %v2030
  %2263 = vmatprep.subr.bf16.mxu0 %v2047
  %2264 = vmatpush1.bf16.msra.mxu0 %v2046
  %2265 = vmatprep.subr.bf16.mxu0 0
  %2266 = vmatpush1.bf16.msra.mxu0 0
  %2267 = vmatprep.subr.bf16.mxu0 0
  %2268 = vmatpush1.bf16.msra.mxu0 0
  %2269 = vmatprep.subr.bf16.mxu0 0
  %2270 = vmatpush1.bf16.msra.mxu0 0
  %2271 = vmatprep.subr.bf16.mxu0 0
  %2272 = vmatpush1.bf16.msra.mxu0 0
  %2273 = vmatprep.subr.bf16.mxu0 0
  %2274 = vmatpush1.bf16.msra.mxu0 0
  %2275 = vmatprep.subr.bf16.mxu0 0
  %2276 = vmatpush1.bf16.msra.mxu0 0
  %2277 = vmatprep.subr.bf16.mxu0 0
  %2278 = vmatpush1.bf16.msra.mxu0 0
  %2279 = vmatprep.subr.bf16.mxu0 0
  %2280 = vmatpush1.bf16.msra.mxu0 0
  %2281 = vmatprep.subr.bf16.mxu0 0
  %2282 = vmatpush1.bf16.msra.mxu0 0
  %2283 = vmatprep.subr.bf16.mxu0 0
  %2284 = vmatpush1.bf16.msra.mxu0 0
  %2285 = vmatprep.subr.bf16.mxu0 0
  %2286 = vmatpush1.bf16.msra.mxu0 0
  %2287 = vmatprep.subr.bf16.mxu0 0
  %2288 = vmatpush1.bf16.msra.mxu0 0
  %2289 = vmatprep.subr.bf16.mxu0 0
  %2290 = vmatpush1.bf16.msra.mxu0 0
  %2291 = vmatprep.subr.bf16.mxu0 0
  %2292 = vmatpush1.bf16.msra.mxu0 0
  %2293 = vmatprep.mubr.bf16.mxu0 0
  %2294 = vmatmul.mubr.bf16.gmra.mrb[0].mxu0 %v2087
  %v2295 = vpop.f32.mrb[0].mxu0
  %v2296 = vadd.f32 %v1897, %v2295
  %v2297 = vpop.f32.mrb[0].mxu0
  %v2298 = vadd.f32 %v1901, %v2297
  %v2299 = vpop.f32.mrb[0].mxu0
  %v2300 = vadd.f32 %v1897, %v2299
  %v2301 = vpop.f32.mrb[0].mxu0
  %v2302 = vadd.f32 %v1901, %v2301
  %2303 = vdwg.mxu0
  %2304 = vmatprep.subr.bf16.mxu0 %v2033
  %2305 = vmatpush1.bf16.msra.mxu0 %v2032
  %2306 = vmatprep.subr.bf16.mxu0 %v2049
  %2307 = vmatpush1.bf16.msra.mxu0 %v2048
  %2308 = vmatprep.subr.bf16.mxu0 0
  %2309 = vmatpush1.bf16.msra.mxu0 0
  %2310 = vmatprep.subr.bf16.mxu0 0
  %2311 = vmatpush1.bf16.msra.mxu0 0
  %2312 = vmatprep.subr.bf16.mxu0 0
  %2313 = vmatpush1.bf16.msra.mxu0 0
  %2314 = vmatprep.subr.bf16.mxu0 0
  %2315 = vmatpush1.bf16.msra.mxu0 0
  %2316 = vmatprep.subr.bf16.mxu0 0
  %2317 = vmatpush1.bf16.msra.mxu0 0
  %2318 = vmatprep.subr.bf16.mxu0 0
  %2319 = vmatpush1.bf16.msra.mxu0 0
  %2320 = vmatprep.subr.bf16.mxu0 0
  %2321 = vmatpush1.bf16.msra.mxu0 0
  %2322 = vmatprep.subr.bf16.mxu0 0
  %2323 = vmatpush1.bf16.msra.mxu0 0
  %2324 = vmatprep.subr.bf16.mxu0 0
  %2325 = vmatpush1.bf16.msra.mxu0 0
  %2326 = vmatprep.subr.bf16.mxu0 0
  %2327 = vmatpush1.bf16.msra.mxu0 0
  %2328 = vmatprep.subr.bf16.mxu0 0
  %2329 = vmatpush1.bf16.msra.mxu0 0
  %2330 = vmatprep.subr.bf16.mxu0 0
  %2331 = vmatpush1.bf16.msra.mxu0 0
  %2332 = vmatprep.subr.bf16.mxu0 0
  %2333 = vmatpush1.bf16.msra.mxu0 0
  %2334 = vmatprep.subr.bf16.mxu0 0
  %2335 = vmatpush1.bf16.msra.mxu0 0
  %2336 = vmatprep.mubr.bf16.mxu0 0
  %2337 = vmatmul.mubr.bf16.gmra.mrb[0].mxu0 %v2087
  %v2338 = vpop.f32.mrb[0].mxu0
  %v2339 = vadd.f32 %v1905, %v2338
  %v2340 = vpop.f32.mrb[0].mxu0
  %v2341 = vadd.f32 %v1909, %v2340
  %v2342 = vpop.f32.mrb[0].mxu0
  %v2343 = vadd.f32 %v1905, %v2342
  %v2344 = vpop.f32.mrb[0].mxu0
  %v2345 = vadd.f32 %v1909, %v2344
  %2346 = vdwg.mxu0
  %2347 = vmatprep.subr.bf16.mxu0 %v2035
  %2348 = vmatpush1.bf16.msra.mxu0 %v2034
  %2349 = vmatprep.subr.bf16.mxu0 %v2051
  %2350 = vmatpush1.bf16.msra.mxu0 %v2050
  %2351 = vmatprep.subr.bf16.mxu0 0
  %2352 = vmatpush1.bf16.msra.mxu0 0
  %2353 = vmatprep.subr.bf16.mxu0 0
  %2354 = vmatpush1.bf16.msra.mxu0 0
  %2355 = vmatprep.subr.bf16.mxu0 0
  %2356 = vmatpush1.bf16.msra.mxu0 0
  %2357 = vmatprep.subr.bf16.mxu0 0
  %2358 = vmatpush1.bf16.msra.mxu0 0
  %2359 = vmatprep.subr.bf16.mxu0 0
  %2360 = vmatpush1.bf16.msra.mxu0 0
  %2361 = vmatprep.subr.bf16.mxu0 0
  %2362 = vmatpush1.bf16.msra.mxu0 0
  %2363 = vmatprep.subr.bf16.mxu0 0
  %2364 = vmatpush1.bf16.msra.mxu0 0
  %2365 = vmatprep.subr.bf16.mxu0 0
  %2366 = vmatpush1.bf16.msra.mxu0 0
  %2367 = vmatprep.subr.bf16.mxu0 0
  %2368 = vmatpush1.bf16.msra.mxu0 0
  %2369 = vmatprep.subr.bf16.mxu0 0
  %2370 = vmatpush1.bf16.msra.mxu0 0
  %2371 = vmatprep.subr.bf16.mxu0 0
  %2372 = vmatpush1.bf16.msra.mxu0 0
  %2373 = vmatprep.subr.bf16.mxu0 0
  %2374 = vmatpush1.bf16.msra.mxu0 0
  %2375 = vmatprep.subr.bf16.mxu0 0
  %2376 = vmatpush1.bf16.msra.mxu0 0
  %2377 = vmatprep.subr.bf16.mxu0 0
  %2378 = vmatpush1.bf16.msra.mxu0 0
  %2379 = vmatprep.mubr.bf16.mxu0 0
  %2380 = vmatmul.mubr.bf16.gmra.mrb[0].mxu0 %v2087
  %v2381 = vpop.f32.mrb[0].mxu0
  %v2382 = vadd.f32 %v1913, %v2381
  %v2383 = vpop.f32.mrb[0].mxu0
  %v2384 = vadd.f32 %v1917, %v2383
  %v2385 = vpop.f32.mrb[0].mxu0
  %v2386 = vadd.f32 %v1913, %v2385
  %v2387 = vpop.f32.mrb[0].mxu0
  %v2388 = vadd.f32 %v1917, %v2387
  %2389 = vdwg.mxu0
  %2390 = vmatprep.subr.bf16.mxu0 %v2037
  %2391 = vmatpush1.bf16.msra.mxu0 %v2036
  %2392 = vmatprep.subr.bf16.mxu0 %v2053
  %2393 = vmatpush1.bf16.msra.mxu0 %v2052
  %2394 = vmatprep.subr.bf16.mxu0 0
  %2395 = vmatpush1.bf16.msra.mxu0 0
  %2396 = vmatprep.subr.bf16.mxu0 0
  %2397 = vmatpush1.bf16.msra.mxu0 0
  %2398 = vmatprep.subr.bf16.mxu0 0
  %2399 = vmatpush1.bf16.msra.mxu0 0
  %2400 = vmatprep.subr.bf16.mxu0 0
  %2401 = vmatpush1.bf16.msra.mxu0 0
  %2402 = vmatprep.subr.bf16.mxu0 0
  %2403 = vmatpush1.bf16.msra.mxu0 0
  %2404 = vmatprep.subr.bf16.mxu0 0
  %2405 = vmatpush1.bf16.msra.mxu0 0
  %2406 = vmatprep.subr.bf16.mxu0 0
  %2407 = vmatpush1.bf16.msra.mxu0 0
  %2408 = vmatprep.subr.bf16.mxu0 0
  %2409 = vmatpush1.bf16.msra.mxu0 0
  %2410 = vmatprep.subr.bf16.mxu0 0
  %2411 = vmatpush1.bf16.msra.mxu0 0
  %2412 = vmatprep.subr.bf16.mxu0 0
  %2413 = vmatpush1.bf16.msra.mxu0 0
  %2414 = vmatprep.subr.bf16.mxu0 0
  %2415 = vmatpush1.bf16.msra.mxu0 0
  %2416 = vmatprep.subr.bf16.mxu0 0
  %2417 = vmatpush1.bf16.msra.mxu0 0
  %2418 = vmatprep.subr.bf16.mxu0 0
  %2419 = vmatpush1.bf16.msra.mxu0 0
  %2420 = vmatprep.subr.bf16.mxu0 0
  %2421 = vmatpush1.bf16.msra.mxu0 0
  %2422 = vmatprep.mubr.bf16.mxu0 0
  %2423 = vmatmul.mubr.bf16.gmra.mrb[0].mxu0 %v2087
  %v2424 = vpop.f32.mrb[0].mxu0
  %v2425 = vadd.f32 %v1921, %v2424
  %v2426 = vpop.f32.mrb[0].mxu0
  %v2427 = vadd.f32 %v1925, %v2426
  %v2428 = vpop.f32.mrb[0].mxu0
  %v2429 = vadd.f32 %v1921, %v2428
  %v2430 = vpop.f32.mrb[0].mxu0
  %v2431 = vadd.f32 %v1925, %v2430
  %2432 = vdwg.mxu0
  %v2433 = vmax.f32 %v2124, 0.0
  %v2434 = vmax.f32 %v2126, 0.0
  %v2435 = vmax.f32 %v2167, 0.0
  %v2436 = vmax.f32 %v2169, 0.0
  %v2437 = vmax.f32 %v2210, 0.0
  %v2438 = vmax.f32 %v2212, 0.0
  %v2439 = vmax.f32 %v2253, 0.0
  %v2440 = vmax.f32 %v2255, 0.0
  %v2441 = vmax.f32 %v2296, 0.0
  %v2442 = vmax.f32 %v2298, 0.0
  %v2443 = vmax.f32 %v2339, 0.0
  %v2444 = vmax.f32 %v2341, 0.0
  %v2445 = vmax.f32 %v2382, 0.0
  %v2446 = vmax.f32 %v2384, 0.0
  %v2447 = vmax.f32 %v2425, 0.0
  %v2448 = vmax.f32 %v2427, 0.0
  %v2449 = vmax.f32 %v2128, 0.0
  %v2450 = vmax.f32 %v2130, 0.0
  %v2451 = vmax.f32 %v2171, 0.0
  %v2452 = vmax.f32 %v2173, 0.0
  %v2453 = vmax.f32 %v2214, 0.0
  %v2454 = vmax.f32 %v2216, 0.0
  %v2455 = vmax.f32 %v2257, 0.0
  %v2456 = vmax.f32 %v2259, 0.0
  %v2457 = vmax.f32 %v2300, 0.0
  %v2458 = vmax.f32 %v2302, 0.0
  %v2459 = vmax.f32 %v2343, 0.0
  %v2460 = vmax.f32 %v2345, 0.0
  %v2461 = vmax.f32 %v2386, 0.0
  %v2462 = vmax.f32 %v2388, 0.0
  %v2463 = vmax.f32 %v2429, 0.0
  %v2464 = vmax.f32 %v2431, 0.0
  %v2465 = vpack.c.bf16 %v2449, %v2433
  %v2466 = vpack.c.bf16 %v2450, %v2434
  %v2467 = vpack.c.bf16 %v2451, %v2435
  %v2468 = vpack.c.bf16 %v2452, %v2436
  %v2469 = vpack.c.bf16 %v2453, %v2437
  %v2470 = vpack.c.bf16 %v2454, %v2438
  %v2471 = vpack.c.bf16 %v2455, %v2439
  %v2472 = vpack.c.bf16 %v2456, %v2440
  %v2473 = vpack.c.bf16 %v2457, %v2441
  %v2474 = vpack.c.bf16 %v2458, %v2442
  %v2475 = vpack.c.bf16 %v2459, %v2443
  %v2476 = vpack.c.bf16 %v2460, %v2444
  %v2477 = vpack.c.bf16 %v2461, %v2445
  %v2478 = vpack.c.bf16 %v2462, %v2446
  %v2479 = vpack.c.bf16 %v2463, %v2447
  %v2480 = vpack.c.bf16 %v2464, %v2448
  %v2481 = vlaneseq
  %v2482 = vshrl.u32 %v2481, 7
  %v2483 = vsub.s32 5, %v2482
  %v2484 = vrot.slane %v324, %v2483
  %v2741 = vunpack.c.l.b16 %v68
  %v2742 = vunpack.c.l.b16 %v69
  %v2743 = vunpack.c.l.b16 %v70
  %v2744 = vunpack.c.l.b16 %v71
  %v2745 = vunpack.c.l.b16 %v72
  %v2746 = vunpack.c.l.b16 %v73
  %v2747 = vunpack.c.l.b16 %v74
  %v2748 = vunpack.c.l.b16 %v75
  %v2749 = vunpack.c.l.b16 %v76
  %v2750 = vunpack.c.l.b16 %v77
  %v2751 = vunpack.c.l.b16 %v78
  %v2752 = vunpack.c.l.b16 %v79
  %v2753 = vunpack.c.l.b16 %v80
  %v2754 = vunpack.c.l.b16 %v81
  %v2755 = vunpack.c.l.b16 %v82
  %v2756 = vunpack.c.l.b16 %v83
  %v2757 = vunpack.c.l.b16 %v84
  %v2758 = vunpack.c.l.b16 %v85
  %v2759 = vunpack.c.l.b16 %v86
  %v2760 = vunpack.c.l.b16 %v87
  %v2761 = vunpack.c.l.b16 %v88
  %v2762 = vunpack.c.l.b16 %v89
  %v2763 = vunpack.c.l.b16 %v90
  %v2764 = vunpack.c.l.b16 %v91
  %v2765 = vunpack.c.l.b16 %v92
  %v2766 = vunpack.c.l.b16 %v93
  %v2767 = vunpack.c.l.b16 %v94
  %v2768 = vunpack.c.l.b16 %v95
  %v2769 = vunpack.c.l.b16 %v96
  %v2770 = vunpack.c.l.b16 %v97
  %v2771 = vunpack.c.l.b16 %v98
  %v2772 = vunpack.c.l.b16 %v99
  %v2773 = vunpack.c.l.b16 %v100
  %v2774 = vunpack.c.l.b16 %v101
  %v2775 = vunpack.c.l.b16 %v102
  %v2776 = vunpack.c.l.b16 %v103
  %v2777 = vunpack.c.l.b16 %v104
  %v2778 = vunpack.c.l.b16 %v105
  %v2779 = vunpack.c.l.b16 %v106
  %v2780 = vunpack.c.l.b16 %v107
  %v2781 = vunpack.c.l.b16 %v108
  %v2782 = vunpack.c.l.b16 %v109
  %v2783 = vunpack.c.l.b16 %v110
  %v2784 = vunpack.c.l.b16 %v111
  %v2785 = vunpack.c.l.b16 %v112
  %v2786 = vunpack.c.l.b16 %v113
  %v2787 = vunpack.c.l.b16 %v114
  %v2788 = vunpack.c.l.b16 %v115
  %v2789 = vunpack.c.l.b16 %v116
  %v2790 = vunpack.c.l.b16 %v117
  %v2791 = vunpack.c.l.b16 %v118
  %v2792 = vunpack.c.l.b16 %v119
  %v2793 = vunpack.c.l.b16 %v120
  %v2794 = vunpack.c.l.b16 %v121
  %v2795 = vunpack.c.l.b16 %v122
  %v2796 = vunpack.c.l.b16 %v123
  %v2797 = vunpack.c.l.b16 %v124
  %v2798 = vunpack.c.l.b16 %v125
  %v2799 = vunpack.c.l.b16 %v126
  %v2800 = vunpack.c.l.b16 %v127
  %v2801 = vunpack.c.l.b16 %v128
  %v2802 = vunpack.c.l.b16 %v129
  %v2803 = vunpack.c.l.b16 %v130
  %v2804 = vunpack.c.l.b16 %v131
  %v2805 = vunpack.c.l.b16 %v132
  %v2806 = vunpack.c.l.b16 %v133
  %v2807 = vunpack.c.l.b16 %v134
  %v2808 = vunpack.c.l.b16 %v135
  %v2809 = vunpack.c.l.b16 %v136
  %v2810 = vunpack.c.l.b16 %v137
  %v2811 = vunpack.c.l.b16 %v138
  %v2812 = vunpack.c.l.b16 %v139
  %v2813 = vunpack.c.l.b16 %v140
  %v2814 = vunpack.c.l.b16 %v141
  %v2815 = vunpack.c.l.b16 %v142
  %v2816 = vunpack.c.l.b16 %v143
  %v2817 = vunpack.c.l.b16 %v144
  %v2818 = vunpack.c.l.b16 %v145
  %v2819 = vunpack.c.l.b16 %v146
  %v2820 = vunpack.c.l.b16 %v147
  %v2821 = vunpack.c.l.b16 %v148
  %v2822 = vunpack.c.l.b16 %v149
  %v2823 = vunpack.c.l.b16 %v150
  %v2824 = vunpack.c.l.b16 %v151
  %v2825 = vunpack.c.l.b16 %v152
  %v2826 = vunpack.c.l.b16 %v153
  %v2827 = vunpack.c.l.b16 %v154
  %v2828 = vunpack.c.l.b16 %v155
  %v2829 = vunpack.c.l.b16 %v156
  %v2830 = vunpack.c.l.b16 %v157
  %v2831 = vunpack.c.l.b16 %v158
  %v2832 = vunpack.c.l.b16 %v159
  %v2833 = vunpack.c.l.b16 %v160
  %v2834 = vunpack.c.l.b16 %v161
  %v2835 = vunpack.c.l.b16 %v162
  %v2836 = vunpack.c.l.b16 %v163
  %v2837 = vunpack.c.l.b16 %v164
  %v2838 = vunpack.c.l.b16 %v165
  %v2839 = vunpack.c.l.b16 %v166
  %v2840 = vunpack.c.l.b16 %v167
  %v2841 = vunpack.c.l.b16 %v168
  %v2842 = vunpack.c.l.b16 %v169
  %v2843 = vunpack.c.l.b16 %v170
  %v2844 = vunpack.c.l.b16 %v171
  %v2845 = vunpack.c.l.b16 %v172
  %v2846 = vunpack.c.l.b16 %v173
  %v2847 = vunpack.c.l.b16 %v174
  %v2848 = vunpack.c.l.b16 %v175
  %v2849 = vunpack.c.l.b16 %v176
  %v2850 = vunpack.c.l.b16 %v177
  %v2851 = vunpack.c.l.b16 %v178
  %v2852 = vunpack.c.l.b16 %v179
  %v2853 = vunpack.c.l.b16 %v180
  %v2854 = vunpack.c.l.b16 %v181
  %v2855 = vunpack.c.l.b16 %v182
  %v2856 = vunpack.c.l.b16 %v183
  %v2857 = vunpack.c.l.b16 %v184
  %v2858 = vunpack.c.l.b16 %v185
  %v2859 = vunpack.c.l.b16 %v186
  %v2860 = vunpack.c.l.b16 %v187
  %v2861 = vunpack.c.l.b16 %v188
  %v2862 = vunpack.c.l.b16 %v189
  %v2863 = vunpack.c.l.b16 %v190
  %v2864 = vunpack.c.l.b16 %v191
  %v2865 = vunpack.c.l.b16 %v192
  %v2866 = vunpack.c.l.b16 %v193
  %v2867 = vunpack.c.l.b16 %v194
  %v2868 = vunpack.c.l.b16 %v195
  %v2869 = vunpack.c.l.b16 %v196
  %v2870 = vunpack.c.l.b16 %v197
  %v2871 = vunpack.c.l.b16 %v198
  %v2872 = vunpack.c.l.b16 %v199
  %v2873 = vunpack.c.l.b16 %v200
  %v2874 = vunpack.c.l.b16 %v201
  %v2875 = vunpack.c.l.b16 %v202
  %v2876 = vunpack.c.l.b16 %v203
  %v2877 = vunpack.c.l.b16 %v204
  %v2878 = vunpack.c.l.b16 %v205
  %v2879 = vunpack.c.l.b16 %v206
  %v2880 = vunpack.c.l.b16 %v207
  %v2881 = vunpack.c.l.b16 %v208
  %v2882 = vunpack.c.l.b16 %v209
  %v2883 = vunpack.c.l.b16 %v210
  %v2884 = vunpack.c.l.b16 %v211
  %v2885 = vunpack.c.l.b16 %v212
  %v2886 = vunpack.c.l.b16 %v213
  %v2887 = vunpack.c.l.b16 %v214
  %v2888 = vunpack.c.l.b16 %v215
  %v2889 = vunpack.c.l.b16 %v216
  %v2890 = vunpack.c.l.b16 %v217
  %v2891 = vunpack.c.l.b16 %v218
  %v2892 = vunpack.c.l.b16 %v219
  %v2893 = vunpack.c.l.b16 %v220
  %v2894 = vunpack.c.l.b16 %v221
  %v2895 = vunpack.c.l.b16 %v222
  %v2896 = vunpack.c.l.b16 %v223
  %v2897 = vunpack.c.l.b16 %v224
  %v2898 = vunpack.c.l.b16 %v225
  %v2899 = vunpack.c.l.b16 %v226
  %v2900 = vunpack.c.l.b16 %v227
  %v2901 = vunpack.c.l.b16 %v228
  %v2902 = vunpack.c.l.b16 %v229
  %v2903 = vunpack.c.l.b16 %v230
  %v2904 = vunpack.c.l.b16 %v231
  %v2905 = vunpack.c.l.b16 %v232
  %v2906 = vunpack.c.l.b16 %v233
  %v2907 = vunpack.c.l.b16 %v234
  %v2908 = vunpack.c.l.b16 %v235
  %v2909 = vunpack.c.l.b16 %v236
  %v2910 = vunpack.c.l.b16 %v237
  %v2911 = vunpack.c.l.b16 %v238
  %v2912 = vunpack.c.l.b16 %v239
  %v2913 = vunpack.c.l.b16 %v240
  %v2914 = vunpack.c.l.b16 %v241
  %v2915 = vunpack.c.l.b16 %v242
  %v2916 = vunpack.c.l.b16 %v243
  %v2917 = vunpack.c.l.b16 %v244
  %v2918 = vunpack.c.l.b16 %v245
  %v2919 = vunpack.c.l.b16 %v246
  %v2920 = vunpack.c.l.b16 %v247
  %v2921 = vunpack.c.l.b16 %v248
  %v2922 = vunpack.c.l.b16 %v249
  %v2923 = vunpack.c.l.b16 %v250
  %v2924 = vunpack.c.l.b16 %v251
  %v2925 = vunpack.c.l.b16 %v252
  %v2926 = vunpack.c.l.b16 %v253
  %v2927 = vunpack.c.l.b16 %v254
  %v2928 = vunpack.c.l.b16 %v255
  %v2929 = vunpack.c.l.b16 %v256
  %v2930 = vunpack.c.l.b16 %v257
  %v2931 = vunpack.c.l.b16 %v258
  %v2932 = vunpack.c.l.b16 %v259
  %v2933 = vunpack.c.l.b16 %v260
  %v2934 = vunpack.c.l.b16 %v261
  %v2935 = vunpack.c.l.b16 %v262
  %v2936 = vunpack.c.l.b16 %v263
  %v2937 = vunpack.c.l.b16 %v264
  %v2938 = vunpack.c.l.b16 %v265
  %v2939 = vunpack.c.l.b16 %v266
  %v2940 = vunpack.c.l.b16 %v267
  %v2941 = vunpack.c.l.b16 %v268
  %v2942 = vunpack.c.l.b16 %v269
  %v2943 = vunpack.c.l.b16 %v270
  %v2944 = vunpack.c.l.b16 %v271
  %v2945 = vunpack.c.l.b16 %v272
  %v2946 = vunpack.c.l.b16 %v273
  %v2947 = vunpack.c.l.b16 %v274
  %v2948 = vunpack.c.l.b16 %v275
  %v2949 = vunpack.c.l.b16 %v276
  %v2950 = vunpack.c.l.b16 %v277
  %v2951 = vunpack.c.l.b16 %v278
  %v2952 = vunpack.c.l.b16 %v279
  %v2953 = vunpack.c.l.b16 %v280
  %v2954 = vunpack.c.l.b16 %v281
  %v2955 = vunpack.c.l.b16 %v282
  %v2956 = vunpack.c.l.b16 %v283
  %v2957 = vunpack.c.l.b16 %v284
  %v2958 = vunpack.c.l.b16 %v285
  %v2959 = vunpack.c.l.b16 %v286
  %v2960 = vunpack.c.l.b16 %v287
  %v2961 = vunpack.c.l.b16 %v288
  %v2962 = vunpack.c.l.b16 %v289
  %v2963 = vunpack.c.l.b16 %v290
  %v2964 = vunpack.c.l.b16 %v291
  %v2965 = vunpack.c.l.b16 %v292
  %v2966 = vunpack.c.l.b16 %v293
  %v2967 = vunpack.c.l.b16 %v294
  %v2968 = vunpack.c.l.b16 %v295
  %v2969 = vunpack.c.l.b16 %v296
  %v2970 = vunpack.c.l.b16 %v297
  %v2971 = vunpack.c.l.b16 %v298
  %v2972 = vunpack.c.l.b16 %v299
  %v2973 = vunpack.c.l.b16 %v300
  %v2974 = vunpack.c.l.b16 %v301
  %v2975 = vunpack.c.l.b16 %v302
  %v2976 = vunpack.c.l.b16 %v303
  %v2977 = vunpack.c.l.b16 %v304
  %v2978 = vunpack.c.l.b16 %v305
  %v2979 = vunpack.c.l.b16 %v306
  %v2980 = vunpack.c.l.b16 %v307
  %v2981 = vunpack.c.l.b16 %v308
  %v2982 = vunpack.c.l.b16 %v309
  %v2983 = vunpack.c.l.b16 %v310
  %v2984 = vunpack.c.l.b16 %v311
  %v2985 = vunpack.c.l.b16 %v312
  %v2986 = vunpack.c.l.b16 %v313
  %v2987 = vunpack.c.l.b16 %v314
  %v2988 = vunpack.c.l.b16 %v315
  %v2989 = vunpack.c.l.b16 %v316
  %v2990 = vunpack.c.l.b16 %v317
  %v2991 = vunpack.c.l.b16 %v318
  %v2992 = vunpack.c.l.b16 %v319
  %v2993 = vunpack.c.l.b16 %v320
  %v2994 = vunpack.c.l.b16 %v321
  %v2995 = vunpack.c.l.b16 %v322
  %v2996 = vunpack.c.l.b16 %v323
  %v2997 = vpack.c.b16 %v2742, %v2741
  %v2998 = vpack.c.b16 %v2744, %v2743
  %v2999 = vpack.c.b16 %v2746, %v2745
  %v3000 = vpack.c.b16 %v2748, %v2747
  %v3001 = vpack.c.b16 %v2750, %v2749
  %v3002 = vpack.c.b16 %v2752, %v2751
  %v3003 = vpack.c.b16 %v2754, %v2753
  %v3004 = vpack.c.b16 %v2756, %v2755
  %v3005 = vpack.c.b16 %v2758, %v2757
  %v3006 = vpack.c.b16 %v2760, %v2759
  %v3007 = vpack.c.b16 %v2762, %v2761
  %v3008 = vpack.c.b16 %v2764, %v2763
  %v3009 = vpack.c.b16 %v2766, %v2765
  %v3010 = vpack.c.b16 %v2768, %v2767
  %v3011 = vpack.c.b16 %v2770, %v2769
  %v3012 = vpack.c.b16 %v2772, %v2771
  %v3013 = vpack.c.b16 %v2774, %v2773
  %v3014 = vpack.c.b16 %v2776, %v2775
  %v3015 = vpack.c.b16 %v2778, %v2777
  %v3016 = vpack.c.b16 %v2780, %v2779
  %v3017 = vpack.c.b16 %v2782, %v2781
  %v3018 = vpack.c.b16 %v2784, %v2783
  %v3019 = vpack.c.b16 %v2786, %v2785
  %v3020 = vpack.c.b16 %v2788, %v2787
  %v3021 = vpack.c.b16 %v2790, %v2789
  %v3022 = vpack.c.b16 %v2792, %v2791
  %v3023 = vpack.c.b16 %v2794, %v2793
  %v3024 = vpack.c.b16 %v2796, %v2795
  %v3025 = vpack.c.b16 %v2798, %v2797
  %v3026 = vpack.c.b16 %v2800, %v2799
  %v3027 = vpack.c.b16 %v2802, %v2801
  %v3028 = vpack.c.b16 %v2804, %v2803
  %v3029 = vpack.c.b16 %v2806, %v2805
  %v3030 = vpack.c.b16 %v2808, %v2807
  %v3031 = vpack.c.b16 %v2810, %v2809
  %v3032 = vpack.c.b16 %v2812, %v2811
  %v3033 = vpack.c.b16 %v2814, %v2813
  %v3034 = vpack.c.b16 %v2816, %v2815
  %v3035 = vpack.c.b16 %v2818, %v2817
  %v3036 = vpack.c.b16 %v2820, %v2819
  %v3037 = vpack.c.b16 %v2822, %v2821
  %v3038 = vpack.c.b16 %v2824, %v2823
  %v3039 = vpack.c.b16 %v2826, %v2825
  %v3040 = vpack.c.b16 %v2828, %v2827
  %v3041 = vpack.c.b16 %v2830, %v2829
  %v3042 = vpack.c.b16 %v2832, %v2831
  %v3043 = vpack.c.b16 %v2834, %v2833
  %v3044 = vpack.c.b16 %v2836, %v2835
  %v3045 = vpack.c.b16 %v2838, %v2837
  %v3046 = vpack.c.b16 %v2840, %v2839
  %v3047 = vpack.c.b16 %v2842, %v2841
  %v3048 = vpack.c.b16 %v2844, %v2843
  %v3049 = vpack.c.b16 %v2846, %v2845
  %v3050 = vpack.c.b16 %v2848, %v2847
  %v3051 = vpack.c.b16 %v2850, %v2849
  %v3052 = vpack.c.b16 %v2852, %v2851
  %v3053 = vpack.c.b16 %v2854, %v2853
  %v3054 = vpack.c.b16 %v2856, %v2855
  %v3055 = vpack.c.b16 %v2858, %v2857
  %v3056 = vpack.c.b16 %v2860, %v2859
  %v3057 = vpack.c.b16 %v2862, %v2861
  %v3058 = vpack.c.b16 %v2864, %v2863
  %v3059 = vpack.c.b16 %v2866, %v2865
  %v3060 = vpack.c.b16 %v2868, %v2867
  %v3061 = vpack.c.b16 %v2870, %v2869
  %v3062 = vpack.c.b16 %v2872, %v2871
  %v3063 = vpack.c.b16 %v2874, %v2873
  %v3064 = vpack.c.b16 %v2876, %v2875
  %v3065 = vpack.c.b16 %v2878, %v2877
  %v3066 = vpack.c.b16 %v2880, %v2879
  %v3067 = vpack.c.b16 %v2882, %v2881
  %v3068 = vpack.c.b16 %v2884, %v2883
  %v3069 = vpack.c.b16 %v2886, %v2885
  %v3070 = vpack.c.b16 %v2888, %v2887
  %v3071 = vpack.c.b16 %v2890, %v2889
  %v3072 = vpack.c.b16 %v2892, %v2891
  %v3073 = vpack.c.b16 %v2894, %v2893
  %v3074 = vpack.c.b16 %v2896, %v2895
  %v3075 = vpack.c.b16 %v2898, %v2897
  %v3076 = vpack.c.b16 %v2900, %v2899
  %v3077 = vpack.c.b16 %v2902, %v2901
  %v3078 = vpack.c.b16 %v2904, %v2903
  %v3079 = vpack.c.b16 %v2906, %v2905
  %v3080 = vpack.c.b16 %v2908, %v2907
  %v3081 = vpack.c.b16 %v2910, %v2909
  %v3082 = vpack.c.b16 %v2912, %v2911
  %v3083 = vpack.c.b16 %v2914, %v2913
  %v3084 = vpack.c.b16 %v2916, %v2915
  %v3085 = vpack.c.b16 %v2918, %v2917
  %v3086 = vpack.c.b16 %v2920, %v2919
  %v3087 = vpack.c.b16 %v2922, %v2921
  %v3088 = vpack.c.b16 %v2924, %v2923
  %v3089 = vpack.c.b16 %v2926, %v2925
  %v3090 = vpack.c.b16 %v2928, %v2927
  %v3091 = vpack.c.b16 %v2930, %v2929
  %v3092 = vpack.c.b16 %v2932, %v2931
  %v3093 = vpack.c.b16 %v2934, %v2933
  %v3094 = vpack.c.b16 %v2936, %v2935
  %v3095 = vpack.c.b16 %v2938, %v2937
  %v3096 = vpack.c.b16 %v2940, %v2939
  %v3097 = vpack.c.b16 %v2942, %v2941
  %v3098 = vpack.c.b16 %v2944, %v2943
  %v3099 = vpack.c.b16 %v2946, %v2945
  %v3100 = vpack.c.b16 %v2948, %v2947
  %v3101 = vpack.c.b16 %v2950, %v2949
  %v3102 = vpack.c.b16 %v2952, %v2951
  %v3103 = vpack.c.b16 %v2954, %v2953
  %v3104 = vpack.c.b16 %v2956, %v2955
  %v3105 = vpack.c.b16 %v2958, %v2957
  %v3106 = vpack.c.b16 %v2960, %v2959
  %v3107 = vpack.c.b16 %v2962, %v2961
  %v3108 = vpack.c.b16 %v2964, %v2963
  %v3109 = vpack.c.b16 %v2966, %v2965
  %v3110 = vpack.c.b16 %v2968, %v2967
  %v3111 = vpack.c.b16 %v2970, %v2969
  %v3112 = vpack.c.b16 %v2972, %v2971
  %v3113 = vpack.c.b16 %v2974, %v2973
  %v3114 = vpack.c.b16 %v2976, %v2975
  %v3115 = vpack.c.b16 %v2978, %v2977
  %v3116 = vpack.c.b16 %v2980, %v2979
  %v3117 = vpack.c.b16 %v2982, %v2981
  %v3118 = vpack.c.b16 %v2984, %v2983
  %v3119 = vpack.c.b16 %v2986, %v2985
  %v3120 = vpack.c.b16 %v2988, %v2987
  %v3121 = vpack.c.b16 %v2990, %v2989
  %v3122 = vpack.c.b16 %v2992, %v2991
  %v3123 = vpack.c.b16 %v2994, %v2993
  %v3124 = vpack.c.b16 %v2996, %v2995
  %3253 = vmatprep.subr.bf16.mxu0 0
  %3254 = vmatpush1.bf16.msra.mxu0 %v2997
  %3255 = vmatprep.subr.bf16.mxu0 0
  %3256 = vmatpush1.bf16.msra.mxu0 %v2998
  %3257 = vmatprep.subr.bf16.mxu0 0
  %3258 = vmatpush1.bf16.msra.mxu0 %v2999
  %3259 = vmatprep.subr.bf16.mxu0 0
  %3260 = vmatpush1.bf16.msra.mxu0 %v3000
  %3261 = vmatprep.subr.bf16.mxu0 0
  %3262 = vmatpush1.bf16.msra.mxu0 %v3001
  %3263 = vmatprep.subr.bf16.mxu0 0
  %3264 = vmatpush1.bf16.msra.mxu0 %v3002
  %3265 = vmatprep.subr.bf16.mxu0 0
  %3266 = vmatpush1.bf16.msra.mxu0 %v3003
  %3267 = vmatprep.subr.bf16.mxu0 0
  %3268 = vmatpush1.bf16.msra.mxu0 %v3004
  %3269 = vmatprep.subr.bf16.mxu0 0
  %3270 = vmatpush1.bf16.msra.mxu0 %v3005
  %3271 = vmatprep.subr.bf16.mxu0 0
  %3272 = vmatpush1.bf16.msra.mxu0 %v3006
  %3273 = vmatprep.subr.bf16.mxu0 0
  %3274 = vmatpush1.bf16.msra.mxu0 %v3007
  %3275 = vmatprep.subr.bf16.mxu0 0
  %3276 = vmatpush1.bf16.msra.mxu0 %v3008
  %3277 = vmatprep.subr.bf16.mxu0 0
  %3278 = vmatpush1.bf16.msra.mxu0 %v3009
  %3279 = vmatprep.subr.bf16.mxu0 0
  %3280 = vmatpush1.bf16.msra.mxu0 %v3010
  %3281 = vmatprep.subr.bf16.mxu0 0
  %3282 = vmatpush1.bf16.msra.mxu0 %v3011
  %3283 = vmatprep.subr.bf16.mxu0 0
  %3284 = vmatpush1.bf16.msra.mxu0 %v3012
  %3285 = vmatprep.mubr.bf16.mxu0 %v2466
  %3286 = vmatmul.mubr.bf16.gmra.mrb[0].mxu0 %v2465
  %v3287 = vpop.f32.mrb[0].mxu0
  %v3288 = vadd.f32 %v2484, %v3287
  %v3289 = vpop.f32.mrb[0].mxu0
  %v3290 = vpop.f32.mrb[0].mxu0
  %v3291 = vadd.f32 %v2484, %v3290
  %v3292 = vpop.f32.mrb[0].mxu0
  %3293 = vdwg.mxu0
  %3294 = vmatprep.subr.bf16.mxu0 0
  %3295 = vmatpush1.bf16.msra.mxu0 %v3013
  %3296 = vmatprep.subr.bf16.mxu0 0
  %3297 = vmatpush1.bf16.msra.mxu0 %v3014
  %3298 = vmatprep.subr.bf16.mxu0 0
  %3299 = vmatpush1.bf16.msra.mxu0 %v3015
  %3300 = vmatprep.subr.bf16.mxu0 0
  %3301 = vmatpush1.bf16.msra.mxu0 %v3016
  %3302 = vmatprep.subr.bf16.mxu0 0
  %3303 = vmatpush1.bf16.msra.mxu0 %v3017
  %3304 = vmatprep.subr.bf16.mxu0 0
  %3305 = vmatpush1.bf16.msra.mxu0 %v3018
  %3306 = vmatprep.subr.bf16.mxu0 0
  %3307 = vmatpush1.bf16.msra.mxu0 %v3019
  %3308 = vmatprep.subr.bf16.mxu0 0
  %3309 = vmatpush1.bf16.msra.mxu0 %v3020
  %3310 = vmatprep.subr.bf16.mxu0 0
  %3311 = vmatpush1.bf16.msra.mxu0 %v3021
  %3312 = vmatprep.subr.bf16.mxu0 0
  %3313 = vmatpush1.bf16.msra.mxu0 %v3022
  %3314 = vmatprep.subr.bf16.mxu0 0
  %3315 = vmatpush1.bf16.msra.mxu0 %v3023
  %3316 = vmatprep.subr.bf16.mxu0 0
  %3317 = vmatpush1.bf16.msra.mxu0 %v3024
  %3318 = vmatprep.subr.bf16.mxu0 0
  %3319 = vmatpush1.bf16.msra.mxu0 %v3025
  %3320 = vmatprep.subr.bf16.mxu0 0
  %3321 = vmatpush1.bf16.msra.mxu0 %v3026
  %3322 = vmatprep.subr.bf16.mxu0 0
  %3323 = vmatpush1.bf16.msra.mxu0 %v3027
  %3324 = vmatprep.subr.bf16.mxu0 0
  %3325 = vmatpush1.bf16.msra.mxu0 %v3028
  %3326 = vmatprep.mubr.bf16.mxu0 %v2468
  %3327 = vmatmul.mubr.bf16.gmra.mrb[0].mxu0 %v2467
  %v3328 = vpop.f32.mrb[0].mxu0
  %v3329 = vadd.f32 %v3288, %v3328
  %v3330 = vpop.f32.mrb[0].mxu0
  %v3331 = vpop.f32.mrb[0].mxu0
  %v3332 = vadd.f32 %v3291, %v3331
  %v3333 = vpop.f32.mrb[0].mxu0
  %3334 = vdwg.mxu0
  %3335 = vmatprep.subr.bf16.mxu0 0
  %3336 = vmatpush1.bf16.msra.mxu0 %v3029
  %3337 = vmatprep.subr.bf16.mxu0 0
  %3338 = vmatpush1.bf16.msra.mxu0 %v3030
  %3339 = vmatprep.subr.bf16.mxu0 0
  %3340 = vmatpush1.bf16.msra.mxu0 %v3031
  %3341 = vmatprep.subr.bf16.mxu0 0
  %3342 = vmatpush1.bf16.msra.mxu0 %v3032
  %3343 = vmatprep.subr.bf16.mxu0 0
  %3344 = vmatpush1.bf16.msra.mxu0 %v3033
  %3345 = vmatprep.subr.bf16.mxu0 0
  %3346 = vmatpush1.bf16.msra.mxu0 %v3034
  %3347 = vmatprep.subr.bf16.mxu0 0
  %3348 = vmatpush1.bf16.msra.mxu0 %v3035
  %3349 = vmatprep.subr.bf16.mxu0 0
  %3350 = vmatpush1.bf16.msra.mxu0 %v3036
  %3351 = vmatprep.subr.bf16.mxu0 0
  %3352 = vmatpush1.bf16.msra.mxu0 %v3037
  %3353 = vmatprep.subr.bf16.mxu0 0
  %3354 = vmatpush1.bf16.msra.mxu0 %v3038
  %3355 = vmatprep.subr.bf16.mxu0 0
  %3356 = vmatpush1.bf16.msra.mxu0 %v3039
  %3357 = vmatprep.subr.bf16.mxu0 0
  %3358 = vmatpush1.bf16.msra.mxu0 %v3040
  %3359 = vmatprep.subr.bf16.mxu0 0
  %3360 = vmatpush1.bf16.msra.mxu0 %v3041
  %3361 = vmatprep.subr.bf16.mxu0 0
  %3362 = vmatpush1.bf16.msra.mxu0 %v3042
  %3363 = vmatprep.subr.bf16.mxu0 0
  %3364 = vmatpush1.bf16.msra.mxu0 %v3043
  %3365 = vmatprep.subr.bf16.mxu0 0
  %3366 = vmatpush1.bf16.msra.mxu0 %v3044
  %3367 = vmatprep.mubr.bf16.mxu0 %v2470
  %3368 = vmatmul.mubr.bf16.gmra.mrb[0].mxu0 %v2469
  %v3369 = vpop.f32.mrb[0].mxu0
  %v3370 = vadd.f32 %v3329, %v3369
  %v3371 = vpop.f32.mrb[0].mxu0
  %v3372 = vpop.f32.mrb[0].mxu0
  %v3373 = vadd.f32 %v3332, %v3372
  %v3374 = vpop.f32.mrb[0].mxu0
  %3375 = vdwg.mxu0
  %3376 = vmatprep.subr.bf16.mxu0 0
  %3377 = vmatpush1.bf16.msra.mxu0 %v3045
  %3378 = vmatprep.subr.bf16.mxu0 0
  %3379 = vmatpush1.bf16.msra.mxu0 %v3046
  %3380 = vmatprep.subr.bf16.mxu0 0
  %3381 = vmatpush1.bf16.msra.mxu0 %v3047
  %3382 = vmatprep.subr.bf16.mxu0 0
  %3383 = vmatpush1.bf16.msra.mxu0 %v3048
  %3384 = vmatprep.subr.bf16.mxu0 0
  %3385 = vmatpush1.bf16.msra.mxu0 %v3049
  %3386 = vmatprep.subr.bf16.mxu0 0
  %3387 = vmatpush1.bf16.msra.mxu0 %v3050
  %3388 = vmatprep.subr.bf16.mxu0 0
  %3389 = vmatpush1.bf16.msra.mxu0 %v3051
  %3390 = vmatprep.subr.bf16.mxu0 0
  %3391 = vmatpush1.bf16.msra.mxu0 %v3052
  %3392 = vmatprep.subr.bf16.mxu0 0
  %3393 = vmatpush1.bf16.msra.mxu0 %v3053
  %3394 = vmatprep.subr.bf16.mxu0 0
  %3395 = vmatpush1.bf16.msra.mxu0 %v3054
  %3396 = vmatprep.subr.bf16.mxu0 0
  %3397 = vmatpush1.bf16.msra.mxu0 %v3055
  %3398 = vmatprep.subr.bf16.mxu0 0
  %3399 = vmatpush1.bf16.msra.mxu0 %v3056
  %3400 = vmatprep.subr.bf16.mxu0 0
  %3401 = vmatpush1.bf16.msra.mxu0 %v3057
  %3402 = vmatprep.subr.bf16.mxu0 0
  %3403 = vmatpush1.bf16.msra.mxu0 %v3058
  %3404 = vmatprep.subr.bf16.mxu0 0
  %3405 = vmatpush1.bf16.msra.mxu0 %v3059
  %3406 = vmatprep.subr.bf16.mxu0 0
  %3407 = vmatpush1.bf16.msra.mxu0 %v3060
  %3408 = vmatprep.mubr.bf16.mxu0 %v2472
  %3409 = vmatmul.mubr.bf16.gmra.mrb[0].mxu0 %v2471
  %v3410 = vpop.f32.mrb[0].mxu0
  %v3411 = vadd.f32 %v3370, %v3410
  %v3412 = vpop.f32.mrb[0].mxu0
  %v3413 = vpop.f32.mrb[0].mxu0
  %v3414 = vadd.f32 %v3373, %v3413
  %v3415 = vpop.f32.mrb[0].mxu0
  %3416 = vdwg.mxu0
  %3417 = vmatprep.subr.bf16.mxu0 0
  %3418 = vmatpush1.bf16.msra.mxu0 %v3061
  %3419 = vmatprep.subr.bf16.mxu0 0
  %3420 = vmatpush1.bf16.msra.mxu0 %v3062
  %3421 = vmatprep.subr.bf16.mxu0 0
  %3422 = vmatpush1.bf16.msra.mxu0 %v3063
  %3423 = vmatprep.subr.bf16.mxu0 0
  %3424 = vmatpush1.bf16.msra.mxu0 %v3064
  %3425 = vmatprep.subr.bf16.mxu0 0
  %3426 = vmatpush1.bf16.msra.mxu0 %v3065
  %3427 = vmatprep.subr.bf16.mxu0 0
  %3428 = vmatpush1.bf16.msra.mxu0 %v3066
  %3429 = vmatprep.subr.bf16.mxu0 0
  %3430 = vmatpush1.bf16.msra.mxu0 %v3067
  %3431 = vmatprep.subr.bf16.mxu0 0
  %3432 = vmatpush1.bf16.msra.mxu0 %v3068
  %3433 = vmatprep.subr.bf16.mxu0 0
  %3434 = vmatpush1.bf16.msra.mxu0 %v3069
  %3435 = vmatprep.subr.bf16.mxu0 0
  %3436 = vmatpush1.bf16.msra.mxu0 %v3070
  %3437 = vmatprep.subr.bf16.mxu0 0
  %3438 = vmatpush1.bf16.msra.mxu0 %v3071
  %3439 = vmatprep.subr.bf16.mxu0 0
  %3440 = vmatpush1.bf16.msra.mxu0 %v3072
  %3441 = vmatprep.subr.bf16.mxu0 0
  %3442 = vmatpush1.bf16.msra.mxu0 %v3073
  %3443 = vmatprep.subr.bf16.mxu0 0
  %3444 = vmatpush1.bf16.msra.mxu0 %v3074
  %3445 = vmatprep.subr.bf16.mxu0 0
  %3446 = vmatpush1.bf16.msra.mxu0 %v3075
  %3447 = vmatprep.subr.bf16.mxu0 0
  %3448 = vmatpush1.bf16.msra.mxu0 %v3076
  %3449 = vmatprep.mubr.bf16.mxu0 %v2474
  %3450 = vmatmul.mubr.bf16.gmra.mrb[0].mxu0 %v2473
  %v3451 = vpop.f32.mrb[0].mxu0
  %v3452 = vadd.f32 %v3411, %v3451
  %v3453 = vpop.f32.mrb[0].mxu0
  %v3454 = vpop.f32.mrb[0].mxu0
  %v3455 = vadd.f32 %v3414, %v3454
  %v3456 = vpop.f32.mrb[0].mxu0
  %3457 = vdwg.mxu0
  %3458 = vmatprep.subr.bf16.mxu0 0
  %3459 = vmatpush1.bf16.msra.mxu0 %v3077
  %3460 = vmatprep.subr.bf16.mxu0 0
  %3461 = vmatpush1.bf16.msra.mxu0 %v3078
  %3462 = vmatprep.subr.bf16.mxu0 0
  %3463 = vmatpush1.bf16.msra.mxu0 %v3079
  %3464 = vmatprep.subr.bf16.mxu0 0
  %3465 = vmatpush1.bf16.msra.mxu0 %v3080
  %3466 = vmatprep.subr.bf16.mxu0 0
  %3467 = vmatpush1.bf16.msra.mxu0 %v3081
  %3468 = vmatprep.subr.bf16.mxu0 0
  %3469 = vmatpush1.bf16.msra.mxu0 %v3082
  %3470 = vmatprep.subr.bf16.mxu0 0
  %3471 = vmatpush1.bf16.msra.mxu0 %v3083
  %3472 = vmatprep.subr.bf16.mxu0 0
  %3473 = vmatpush1.bf16.msra.mxu0 %v3084
  %3474 = vmatprep.subr.bf16.mxu0 0
  %3475 = vmatpush1.bf16.msra.mxu0 %v3085
  %3476 = vmatprep.subr.bf16.mxu0 0
  %3477 = vmatpush1.bf16.msra.mxu0 %v3086
  %3478 = vmatprep.subr.bf16.mxu0 0
  %3479 = vmatpush1.bf16.msra.mxu0 %v3087
  %3480 = vmatprep.subr.bf16.mxu0 0
  %3481 = vmatpush1.bf16.msra.mxu0 %v3088
  %3482 = vmatprep.subr.bf16.mxu0 0
  %3483 = vmatpush1.bf16.msra.mxu0 %v3089
  %3484 = vmatprep.subr.bf16.mxu0 0
  %3485 = vmatpush1.bf16.msra.mxu0 %v3090
  %3486 = vmatprep.subr.bf16.mxu0 0
  %3487 = vmatpush1.bf16.msra.mxu0 %v3091
  %3488 = vmatprep.subr.bf16.mxu0 0
  %3489 = vmatpush1.bf16.msra.mxu0 %v3092
  %3490 = vmatprep.mubr.bf16.mxu0 %v2476
  %3491 = vmatmul.mubr.bf16.gmra.mrb[0].mxu0 %v2475
  %v3492 = vpop.f32.mrb[0].mxu0
  %v3493 = vadd.f32 %v3452, %v3492
  %v3494 = vpop.f32.mrb[0].mxu0
  %v3495 = vpop.f32.mrb[0].mxu0
  %v3496 = vadd.f32 %v3455, %v3495
  %v3497 = vpop.f32.mrb[0].mxu0
  %3498 = vdwg.mxu0
  %3499 = vmatprep.subr.bf16.mxu0 0
  %3500 = vmatpush1.bf16.msra.mxu0 %v3093
  %3501 = vmatprep.subr.bf16.mxu0 0
  %3502 = vmatpush1.bf16.msra.mxu0 %v3094
  %3503 = vmatprep.subr.bf16.mxu0 0
  %3504 = vmatpush1.bf16.msra.mxu0 %v3095
  %3505 = vmatprep.subr.bf16.mxu0 0
  %3506 = vmatpush1.bf16.msra.mxu0 %v3096
  %3507 = vmatprep.subr.bf16.mxu0 0
  %3508 = vmatpush1.bf16.msra.mxu0 %v3097
  %3509 = vmatprep.subr.bf16.mxu0 0
  %3510 = vmatpush1.bf16.msra.mxu0 %v3098
  %3511 = vmatprep.subr.bf16.mxu0 0
  %3512 = vmatpush1.bf16.msra.mxu0 %v3099
  %3513 = vmatprep.subr.bf16.mxu0 0
  %3514 = vmatpush1.bf16.msra.mxu0 %v3100
  %3515 = vmatprep.subr.bf16.mxu0 0
  %3516 = vmatpush1.bf16.msra.mxu0 %v3101
  %3517 = vmatprep.subr.bf16.mxu0 0
  %3518 = vmatpush1.bf16.msra.mxu0 %v3102
  %3519 = vmatprep.subr.bf16.mxu0 0
  %3520 = vmatpush1.bf16.msra.mxu0 %v3103
  %3521 = vmatprep.subr.bf16.mxu0 0
  %3522 = vmatpush1.bf16.msra.mxu0 %v3104
  %3523 = vmatprep.subr.bf16.mxu0 0
  %3524 = vmatpush1.bf16.msra.mxu0 %v3105
  %3525 = vmatprep.subr.bf16.mxu0 0
  %3526 = vmatpush1.bf16.msra.mxu0 %v3106
  %3527 = vmatprep.subr.bf16.mxu0 0
  %3528 = vmatpush1.bf16.msra.mxu0 %v3107
  %3529 = vmatprep.subr.bf16.mxu0 0
  %3530 = vmatpush1.bf16.msra.mxu0 %v3108
  %3531 = vmatprep.mubr.bf16.mxu0 %v2478
  %3532 = vmatmul.mubr.bf16.gmra.mrb[0].mxu0 %v2477
  %v3533 = vpop.f32.mrb[0].mxu0
  %v3534 = vadd.f32 %v3493, %v3533
  %v3535 = vpop.f32.mrb[0].mxu0
  %v3536 = vpop.f32.mrb[0].mxu0
  %v3537 = vadd.f32 %v3496, %v3536
  %v3538 = vpop.f32.mrb[0].mxu0
  %3539 = vdwg.mxu0
  %3540 = vmatprep.subr.bf16.mxu0 0
  %3541 = vmatpush1.bf16.msra.mxu0 %v3109
  %3542 = vmatprep.subr.bf16.mxu0 0
  %3543 = vmatpush1.bf16.msra.mxu0 %v3110
  %3544 = vmatprep.subr.bf16.mxu0 0
  %3545 = vmatpush1.bf16.msra.mxu0 %v3111
  %3546 = vmatprep.subr.bf16.mxu0 0
  %3547 = vmatpush1.bf16.msra.mxu0 %v3112
  %3548 = vmatprep.subr.bf16.mxu0 0
  %3549 = vmatpush1.bf16.msra.mxu0 %v3113
  %3550 = vmatprep.subr.bf16.mxu0 0
  %3551 = vmatpush1.bf16.msra.mxu0 %v3114
  %3552 = vmatprep.subr.bf16.mxu0 0
  %3553 = vmatpush1.bf16.msra.mxu0 %v3115
  %3554 = vmatprep.subr.bf16.mxu0 0
  %3555 = vmatpush1.bf16.msra.mxu0 %v3116
  %3556 = vmatprep.subr.bf16.mxu0 0
  %3557 = vmatpush1.bf16.msra.mxu0 %v3117
  %3558 = vmatprep.subr.bf16.mxu0 0
  %3559 = vmatpush1.bf16.msra.mxu0 %v3118
  %3560 = vmatprep.subr.bf16.mxu0 0
  %3561 = vmatpush1.bf16.msra.mxu0 %v3119
  %3562 = vmatprep.subr.bf16.mxu0 0
  %3563 = vmatpush1.bf16.msra.mxu0 %v3120
  %3564 = vmatprep.subr.bf16.mxu0 0
  %3565 = vmatpush1.bf16.msra.mxu0 %v3121
  %3566 = vmatprep.subr.bf16.mxu0 0
  %3567 = vmatpush1.bf16.msra.mxu0 %v3122
  %3568 = vmatprep.subr.bf16.mxu0 0
  %3569 = vmatpush1.bf16.msra.mxu0 %v3123
  %3570 = vmatprep.subr.bf16.mxu0 0
  %3571 = vmatpush1.bf16.msra.mxu0 %v3124
  %3572 = vmatprep.mubr.bf16.mxu0 %v2480
  %3573 = vmatmul.mubr.bf16.gmra.mrb[0].mxu0 %v2479
  %v3574 = vpop.f32.mrb[0].mxu0
  %v3575 = vadd.f32 %v3534, %v3574
  %v3576 = vpop.f32.mrb[0].mxu0
  %v3577 = vpop.f32.mrb[0].mxu0
  %v3578 = vadd.f32 %v3537, %v3577
  %v3579 = vpop.f32.mrb[0].mxu0
  %3580 = vdwg.mxu0
  %v3581 = vadd.f32 %v1859, %v3575
  %v3582 = vadd.f32 %v1860, %v3578
  %v3583 = vsel %vm357, %v3581, 0.0
  %3584 = vadd.xlane.f32.xlu0 %v3583
  %v3585 = vpop.xlane.xlu0 %3584
  %v3586 = vsel %vm357, %v3582, 0.0
  %3587 = vadd.xlane.f32.xlu0 %v3586
  %v3588 = vpop.xlane.xlu0 %3587
  %v3589 = vmul.f32 %v3585, %v1824
  %v3590 = vmul.f32 %v3588, %v1824
  %v3591 = vmul.f32 %v3581, %v3581
  %v3592 = vmul.f32 %v3582, %v3582
  %v3593 = vsel %vm357, %v3591, 0.0
  %3594 = vadd.xlane.f32.xlu0 %v3593
  %v3595 = vpop.xlane.xlu0 %3594
  %v3596 = vsel %vm357, %v3592, 0.0
  %3597 = vadd.xlane.f32.xlu0 %v3596
  %v3598 = vpop.xlane.xlu0 %3597
  %v3599 = vmul.f32 %v3595, %v1824
  %v3600 = vmul.f32 %v3598, %v1824
  %v3601 = vmul.f32 %v3589, %v3589
  %v3602 = vmul.f32 %v3590, %v3590
  %v3603 = vsub.f32 %v3599, %v3601
  %v3604 = vsub.f32 %v3600, %v3602
  %v3605 = vsub.f32 %v3581, %v3589
  %v3606 = vsub.f32 %v3582, %v3590
  %v3607 = vadd.f32 %v3603, 1e-05
  %v3608 = vadd.f32 %v3604, 1e-05
  %v3609 = vrsqrt.pop %v3607
  %v3610 = vrsqrt.pop %v3608
  %v3611 = vmul.f32 %v3605, %v3609
  %v3612 = vmul.f32 %v3606, %v3610
  %v3613 = vlaneseq
  %v3614 = vshrl.u32 %v3613, 7
  %v3615 = vsub.s32 6, %v3614
  %v3616 = vrot.slane %v324, %v3615
  %v3617 = vmul.f32 %v3611, %v3616
  %v3618 = vmul.f32 %v3612, %v3616
  %v3619 = vlaneseq
  %v3620 = vshrl.u32 %v3619, 7
  %v3621 = vsub.s32 7, %v3620
  %v3622 = vrot.slane %v324, %v3621
  %v3623 = vadd.f32 %v3617, %v3622
  %v3624 = vadd.f32 %v3618, %v3622
  %s3625 = scalar_lea.vmem %s1, 272
  %v3626 = vld [vmem:[%s3625] sm:$0xff]
  %v3627 = vld [vmem:[%s3625 + $0x8] sm:$0xff]
  %v3628 = vld [vmem:[%s3625 + $0x10] sm:$0xff]
  %v3629 = vld [vmem:[%s3625 + $0x18] sm:$0xff]
  %v3630 = vld [vmem:[%s3625 + $0x20] sm:$0xff]
  %v3631 = vld [vmem:[%s3625 + $0x28] sm:$0xff]
  %v3632 = vld [vmem:[%s3625 + $0x30] sm:$0xff]
  %v3633 = vld [vmem:[%s3625 + $0x38] sm:$0xff]
  %v3634 = vld [vmem:[%s3625 + $0x40] sm:$0xf]
  %v3635 = vld [vmem:[%s3625 + $0x44] sm:$0xff]
  %v3636 = vld [vmem:[%s3625 + $0x4c] sm:$0xff]
  %v3637 = vld [vmem:[%s3625 + $0x54] sm:$0xff]
  %v3638 = vld [vmem:[%s3625 + $0x5c] sm:$0xff]
  %v3639 = vld [vmem:[%s3625 + $0x64] sm:$0xff]
  %v3640 = vld [vmem:[%s3625 + $0x6c] sm:$0xff]
  %v3641 = vld [vmem:[%s3625 + $0x74] sm:$0xff]
  %v3642 = vld [vmem:[%s3625 + $0x7c] sm:$0xff]
  %v3643 = vld [vmem:[%s3625 + $0x84] sm:$0xf]
  %v3644 = vld [vmem:[%s3625 + $0x88] sm:$0xff]
  %v3645 = vld [vmem:[%s3625 + $0x90] sm:$0xff]
  %v3646 = vld [vmem:[%s3625 + $0x98] sm:$0xff]
  %v3647 = vld [vmem:[%s3625 + $0xa0] sm:$0xff]
  %v3648 = vld [vmem:[%s3625 + $0xa8] sm:$0xff]
  %v3649 = vld [vmem:[%s3625 + $0xb0] sm:$0xff]
  %v3650 = vld [vmem:[%s3625 + $0xb8] sm:$0xff]
  %v3651 = vld [vmem:[%s3625 + $0xc0] sm:$0xff]
  %v3652 = vld [vmem:[%s3625 + $0xc8] sm:$0xf]
  %v3653 = vld [vmem:[%s3625 + $0xcc] sm:$0xff]
  %v3654 = vld [vmem:[%s3625 + $0xd4] sm:$0xff]
  %v3655 = vld [vmem:[%s3625 + $0xdc] sm:$0xff]
  %v3656 = vld [vmem:[%s3625 + $0xe4] sm:$0xff]
  %v3657 = vld [vmem:[%s3625 + $0xec] sm:$0xff]
  %v3658 = vld [vmem:[%s3625 + $0xf4] sm:$0xff]
  %v3659 = vld [vmem:[%s3625 + $0xfc] sm:$0xff]
  %v3660 = vld [vmem:[%s3625 + $0x104] sm:$0xff]
  %v3661 = vld [vmem:[%s3625 + $0x10c] sm:$0xf]
  %s3662 = scalar_lea.vmem %s2, 1024
  %v3663 = vld [vmem:[%s3662] sm:$0xf]
  %v3664 = vld [vmem:[%s3662 + $0x4] sm:$0xf]
  %v3665 = vld [vmem:[%s3662 + $0x8] sm:$0xf]
  %v3666 = vld [vmem:[%s3662 + $0xc] sm:$0xf]
  %v3667 = vld [vmem:[%s3662 + $0x10] sm:$0xf]
  %v3668 = vld [vmem:[%s3662 + $0x14] sm:$0xf]
  %v3669 = vld [vmem:[%s3662 + $0x18] sm:$0xf]
  %v3670 = vld [vmem:[%s3662 + $0x1c] sm:$0xf]
  %v3671 = vld [vmem:[%s3662 + $0x20] sm:$0xf]
  %v3672 = vld [vmem:[%s3662 + $0x24] sm:$0xf]
  %v3673 = vld [vmem:[%s3662 + $0x28] sm:$0xf]
  %v3674 = vld [vmem:[%s3662 + $0x2c] sm:$0xf]
  %v3675 = vld [vmem:[%s3662 + $0x30] sm:$0xf]
  %v3676 = vld [vmem:[%s3662 + $0x34] sm:$0xf]
  %v3677 = vld [vmem:[%s3662 + $0x38] sm:$0xf]
  %v3678 = vld [vmem:[%s3662 + $0x3c] sm:$0xf]
  %v3679 = vld [vmem:[%s3662 + $0x40] sm:$0xf]
  %v3680 = vld [vmem:[%s3662 + $0x44] sm:$0xf]
  %v3681 = vld [vmem:[%s3662 + $0x48] sm:$0xf]
  %v3682 = vld [vmem:[%s3662 + $0x4c] sm:$0xf]
  %v3683 = vld [vmem:[%s3662 + $0x50] sm:$0xf]
  %v3684 = vld [vmem:[%s3662 + $0x54] sm:$0xf]
  %v3685 = vld [vmem:[%s3662 + $0x58] sm:$0xf]
  %v3686 = vld [vmem:[%s3662 + $0x5c] sm:$0xf]
  %v3687 = vld [vmem:[%s3662 + $0x60] sm:$0xf]
  %v3688 = vld [vmem:[%s3662 + $0x64] sm:$0xf]
  %v3689 = vld [vmem:[%s3662 + $0x68] sm:$0xf]
  %v3690 = vld [vmem:[%s3662 + $0x6c] sm:$0xf]
  %v3691 = vld [vmem:[%s3662 + $0x70] sm:$0xf]
  %v3692 = vld [vmem:[%s3662 + $0x74] sm:$0xf]
  %v3693 = vld [vmem:[%s3662 + $0x78] sm:$0xf]
  %v3694 = vld [vmem:[%s3662 + $0x7c] sm:$0xf]
  %v3695 = vld [vmem:[%s3662 + $0x80] sm:$0xf]
  %v3696 = vld [vmem:[%s3662 + $0x84] sm:$0xf]
  %v3697 = vld [vmem:[%s3662 + $0x88] sm:$0xf]
  %v3698 = vld [vmem:[%s3662 + $0x8c] sm:$0xf]
  %v3699 = vld [vmem:[%s3662 + $0x90] sm:$0xf]
  %v3700 = vld [vmem:[%s3662 + $0x94] sm:$0xf]
  %v3701 = vld [vmem:[%s3662 + $0x98] sm:$0xf]
  %v3702 = vld [vmem:[%s3662 + $0x9c] sm:$0xf]
  %v3703 = vld [vmem:[%s3662 + $0xa0] sm:$0xf]
  %v3704 = vld [vmem:[%s3662 + $0xa4] sm:$0xf]
  %v3705 = vld [vmem:[%s3662 + $0xa8] sm:$0xf]
  %v3706 = vld [vmem:[%s3662 + $0xac] sm:$0xf]
  %v3707 = vld [vmem:[%s3662 + $0xb0] sm:$0xf]
  %v3708 = vld [vmem:[%s3662 + $0xb4] sm:$0xf]
  %v3709 = vld [vmem:[%s3662 + $0xb8] sm:$0xf]
  %v3710 = vld [vmem:[%s3662 + $0xbc] sm:$0xf]
  %v3711 = vld [vmem:[%s3662 + $0xc0] sm:$0xf]
  %v3712 = vld [vmem:[%s3662 + $0xc4] sm:$0xf]
  %v3713 = vld [vmem:[%s3662 + $0xc8] sm:$0xf]
  %v3714 = vld [vmem:[%s3662 + $0xcc] sm:$0xf]
  %v3715 = vld [vmem:[%s3662 + $0xd0] sm:$0xf]
  %v3716 = vld [vmem:[%s3662 + $0xd4] sm:$0xf]
  %v3717 = vld [vmem:[%s3662 + $0xd8] sm:$0xf]
  %v3718 = vld [vmem:[%s3662 + $0xdc] sm:$0xf]
  %v3719 = vld [vmem:[%s3662 + $0xe0] sm:$0xf]
  %v3720 = vld [vmem:[%s3662 + $0xe4] sm:$0xf]
  %v3721 = vld [vmem:[%s3662 + $0xe8] sm:$0xf]
  %v3722 = vld [vmem:[%s3662 + $0xec] sm:$0xf]
  %v3723 = vld [vmem:[%s3662 + $0xf0] sm:$0xf]
  %v3724 = vld [vmem:[%s3662 + $0xf4] sm:$0xf]
  %v3725 = vld [vmem:[%s3662 + $0xf8] sm:$0xf]
  %v3726 = vld [vmem:[%s3662 + $0xfc] sm:$0xf]
  %v3727 = vld [vmem:[%s3662 + $0x100] sm:$0xf]
  %v3728 = vld [vmem:[%s3662 + $0x104] sm:$0xf]
  %v3729 = vld [vmem:[%s3662 + $0x108] sm:$0xf]
  %v3730 = vld [vmem:[%s3662 + $0x10c] sm:$0xf]
  %v3731 = vld [vmem:[%s3662 + $0x110] sm:$0xf]
  %v3732 = vld [vmem:[%s3662 + $0x114] sm:$0xf]
  %v3733 = vld [vmem:[%s3662 + $0x118] sm:$0xf]
  %v3734 = vld [vmem:[%s3662 + $0x11c] sm:$0xf]
  %v3735 = vld [vmem:[%s3662 + $0x120] sm:$0xf]
  %v3736 = vld [vmem:[%s3662 + $0x124] sm:$0xf]
  %v3737 = vld [vmem:[%s3662 + $0x128] sm:$0xf]
  %v3738 = vld [vmem:[%s3662 + $0x12c] sm:$0xf]
  %v3739 = vld [vmem:[%s3662 + $0x130] sm:$0xf]
  %v3740 = vld [vmem:[%s3662 + $0x134] sm:$0xf]
  %v3741 = vld [vmem:[%s3662 + $0x138] sm:$0xf]
  %v3742 = vld [vmem:[%s3662 + $0x13c] sm:$0xf]
  %v3743 = vld [vmem:[%s3662 + $0x140] sm:$0xf]
  %v3744 = vld [vmem:[%s3662 + $0x144] sm:$0xf]
  %v3745 = vld [vmem:[%s3662 + $0x148] sm:$0xf]
  %v3746 = vld [vmem:[%s3662 + $0x14c] sm:$0xf]
  %v3747 = vld [vmem:[%s3662 + $0x150] sm:$0xf]
  %v3748 = vld [vmem:[%s3662 + $0x154] sm:$0xf]
  %v3749 = vld [vmem:[%s3662 + $0x158] sm:$0xf]
  %v3750 = vld [vmem:[%s3662 + $0x15c] sm:$0xf]
  %v3751 = vld [vmem:[%s3662 + $0x160] sm:$0xf]
  %v3752 = vld [vmem:[%s3662 + $0x164] sm:$0xf]
  %v3753 = vld [vmem:[%s3662 + $0x168] sm:$0xf]
  %v3754 = vld [vmem:[%s3662 + $0x16c] sm:$0xf]
  %v3755 = vld [vmem:[%s3662 + $0x170] sm:$0xf]
  %v3756 = vld [vmem:[%s3662 + $0x174] sm:$0xf]
  %v3757 = vld [vmem:[%s3662 + $0x178] sm:$0xf]
  %v3758 = vld [vmem:[%s3662 + $0x17c] sm:$0xf]
  %v3759 = vld [vmem:[%s3662 + $0x180] sm:$0xf]
  %v3760 = vld [vmem:[%s3662 + $0x184] sm:$0xf]
  %v3761 = vld [vmem:[%s3662 + $0x188] sm:$0xf]
  %v3762 = vld [vmem:[%s3662 + $0x18c] sm:$0xf]
  %v3763 = vld [vmem:[%s3662 + $0x190] sm:$0xf]
  %v3764 = vld [vmem:[%s3662 + $0x194] sm:$0xf]
  %v3765 = vld [vmem:[%s3662 + $0x198] sm:$0xf]
  %v3766 = vld [vmem:[%s3662 + $0x19c] sm:$0xf]
  %v3767 = vld [vmem:[%s3662 + $0x1a0] sm:$0xf]
  %v3768 = vld [vmem:[%s3662 + $0x1a4] sm:$0xf]
  %v3769 = vld [vmem:[%s3662 + $0x1a8] sm:$0xf]
  %v3770 = vld [vmem:[%s3662 + $0x1ac] sm:$0xf]
  %v3771 = vld [vmem:[%s3662 + $0x1b0] sm:$0xf]
  %v3772 = vld [vmem:[%s3662 + $0x1b4] sm:$0xf]
  %v3773 = vld [vmem:[%s3662 + $0x1b8] sm:$0xf]
  %v3774 = vld [vmem:[%s3662 + $0x1bc] sm:$0xf]
  %v3775 = vld [vmem:[%s3662 + $0x1c0] sm:$0xf]
  %v3776 = vld [vmem:[%s3662 + $0x1c4] sm:$0xf]
  %v3777 = vld [vmem:[%s3662 + $0x1c8] sm:$0xf]
  %v3778 = vld [vmem:[%s3662 + $0x1cc] sm:$0xf]
  %v3779 = vld [vmem:[%s3662 + $0x1d0] sm:$0xf]
  %v3780 = vld [vmem:[%s3662 + $0x1d4] sm:$0xf]
  %v3781 = vld [vmem:[%s3662 + $0x1d8] sm:$0xf]
  %v3782 = vld [vmem:[%s3662 + $0x1dc] sm:$0xf]
  %v3783 = vld [vmem:[%s3662 + $0x1e0] sm:$0xf]
  %v3784 = vld [vmem:[%s3662 + $0x1e4] sm:$0xf]
  %v3785 = vld [vmem:[%s3662 + $0x1e8] sm:$0xf]
  %v3786 = vld [vmem:[%s3662 + $0x1ec] sm:$0xf]
  %v3787 = vld [vmem:[%s3662 + $0x1f0] sm:$0xf]
  %v3788 = vld [vmem:[%s3662 + $0x1f4] sm:$0xf]
  %v3789 = vld [vmem:[%s3662 + $0x1f8] sm:$0xf]
  %v3790 = vld [vmem:[%s3662 + $0x1fc] sm:$0xf]
  %v3791 = vld [vmem:[%s3662 + $0x200] sm:$0xf]
  %v3792 = vld [vmem:[%s3662 + $0x204] sm:$0xf]
  %v3793 = vld [vmem:[%s3662 + $0x208] sm:$0xf]
  %v3794 = vld [vmem:[%s3662 + $0x20c] sm:$0xf]
  %v3795 = vld [vmem:[%s3662 + $0x210] sm:$0xf]
  %v3796 = vld [vmem:[%s3662 + $0x214] sm:$0xf]
  %v3797 = vld [vmem:[%s3662 + $0x218] sm:$0xf]
  %v3798 = vld [vmem:[%s3662 + $0x21c] sm:$0xf]
  %v3799 = vld [vmem:[%s3662 + $0x220] sm:$0xf]
  %v3800 = vld [vmem:[%s3662 + $0x224] sm:$0xf]
  %v3801 = vld [vmem:[%s3662 + $0x228] sm:$0xf]
  %v3802 = vld [vmem:[%s3662 + $0x22c] sm:$0xf]
  %v3803 = vld [vmem:[%s3662 + $0x230] sm:$0xf]
  %v3804 = vld [vmem:[%s3662 + $0x234] sm:$0xf]
  %v3805 = vld [vmem:[%s3662 + $0x238] sm:$0xf]
  %v3806 = vld [vmem:[%s3662 + $0x23c] sm:$0xf]
  %v3807 = vld [vmem:[%s3662 + $0x240] sm:$0xf]
  %v3808 = vld [vmem:[%s3662 + $0x244] sm:$0xf]
  %v3809 = vld [vmem:[%s3662 + $0x248] sm:$0xf]
  %v3810 = vld [vmem:[%s3662 + $0x24c] sm:$0xf]
  %v3811 = vld [vmem:[%s3662 + $0x250] sm:$0xf]
  %v3812 = vld [vmem:[%s3662 + $0x254] sm:$0xf]
  %v3813 = vld [vmem:[%s3662 + $0x258] sm:$0xf]
  %v3814 = vld [vmem:[%s3662 + $0x25c] sm:$0xf]
  %v3815 = vld [vmem:[%s3662 + $0x260] sm:$0xf]
  %v3816 = vld [vmem:[%s3662 + $0x264] sm:$0xf]
  %v3817 = vld [vmem:[%s3662 + $0x268] sm:$0xf]
  %v3818 = vld [vmem:[%s3662 + $0x26c] sm:$0xf]
  %v3819 = vld [vmem:[%s3662 + $0x270] sm:$0xf]
  %v3820 = vld [vmem:[%s3662 + $0x274] sm:$0xf]
  %v3821 = vld [vmem:[%s3662 + $0x278] sm:$0xf]
  %v3822 = vld [vmem:[%s3662 + $0x27c] sm:$0xf]
  %v3823 = vld [vmem:[%s3662 + $0x280] sm:$0xf]
  %v3824 = vld [vmem:[%s3662 + $0x284] sm:$0xf]
  %v3825 = vld [vmem:[%s3662 + $0x288] sm:$0xf]
  %v3826 = vld [vmem:[%s3662 + $0x28c] sm:$0xf]
  %v3827 = vld [vmem:[%s3662 + $0x290] sm:$0xf]
  %v3828 = vld [vmem:[%s3662 + $0x294] sm:$0xf]
  %v3829 = vld [vmem:[%s3662 + $0x298] sm:$0xf]
  %v3830 = vld [vmem:[%s3662 + $0x29c] sm:$0xf]
  %v3831 = vld [vmem:[%s3662 + $0x2a0] sm:$0xf]
  %v3832 = vld [vmem:[%s3662 + $0x2a4] sm:$0xf]
  %v3833 = vld [vmem:[%s3662 + $0x2a8] sm:$0xf]
  %v3834 = vld [vmem:[%s3662 + $0x2ac] sm:$0xf]
  %v3835 = vld [vmem:[%s3662 + $0x2b0] sm:$0xf]
  %v3836 = vld [vmem:[%s3662 + $0x2b4] sm:$0xf]
  %v3837 = vld [vmem:[%s3662 + $0x2b8] sm:$0xf]
  %v3838 = vld [vmem:[%s3662 + $0x2bc] sm:$0xf]
  %v3839 = vld [vmem:[%s3662 + $0x2c0] sm:$0xf]
  %v3840 = vld [vmem:[%s3662 + $0x2c4] sm:$0xf]
  %v3841 = vld [vmem:[%s3662 + $0x2c8] sm:$0xf]
  %v3842 = vld [vmem:[%s3662 + $0x2cc] sm:$0xf]
  %v3843 = vld [vmem:[%s3662 + $0x2d0] sm:$0xf]
  %v3844 = vld [vmem:[%s3662 + $0x2d4] sm:$0xf]
  %v3845 = vld [vmem:[%s3662 + $0x2d8] sm:$0xf]
  %v3846 = vld [vmem:[%s3662 + $0x2dc] sm:$0xf]
  %v3847 = vld [vmem:[%s3662 + $0x2e0] sm:$0xf]
  %v3848 = vld [vmem:[%s3662 + $0x2e4] sm:$0xf]
  %v3849 = vld [vmem:[%s3662 + $0x2e8] sm:$0xf]
  %v3850 = vld [vmem:[%s3662 + $0x2ec] sm:$0xf]
  %v3851 = vld [vmem:[%s3662 + $0x2f0] sm:$0xf]
  %v3852 = vld [vmem:[%s3662 + $0x2f4] sm:$0xf]
  %v3853 = vld [vmem:[%s3662 + $0x2f8] sm:$0xf]
  %v3854 = vld [vmem:[%s3662 + $0x2fc] sm:$0xf]
  %v3855 = vld [vmem:[%s3662 + $0x300] sm:$0xf]
  %v3856 = vld [vmem:[%s3662 + $0x304] sm:$0xf]
  %v3857 = vld [vmem:[%s3662 + $0x308] sm:$0xf]
  %v3858 = vld [vmem:[%s3662 + $0x30c] sm:$0xf]
  %v3859 = vld [vmem:[%s3662 + $0x310] sm:$0xf]
  %v3860 = vld [vmem:[%s3662 + $0x314] sm:$0xf]
  %v3861 = vld [vmem:[%s3662 + $0x318] sm:$0xf]
  %v3862 = vld [vmem:[%s3662 + $0x31c] sm:$0xf]
  %v3863 = vld [vmem:[%s3662 + $0x320] sm:$0xf]
  %v3864 = vld [vmem:[%s3662 + $0x324] sm:$0xf]
  %v3865 = vld [vmem:[%s3662 + $0x328] sm:$0xf]
  %v3866 = vld [vmem:[%s3662 + $0x32c] sm:$0xf]
  %v3867 = vld [vmem:[%s3662 + $0x330] sm:$0xf]
  %v3868 = vld [vmem:[%s3662 + $0x334] sm:$0xf]
  %v3869 = vld [vmem:[%s3662 + $0x338] sm:$0xf]
  %v3870 = vld [vmem:[%s3662 + $0x33c] sm:$0xf]
  %v3871 = vld [vmem:[%s3662 + $0x340] sm:$0xf]
  %v3872 = vld [vmem:[%s3662 + $0x344] sm:$0xf]
  %v3873 = vld [vmem:[%s3662 + $0x348] sm:$0xf]
  %v3874 = vld [vmem:[%s3662 + $0x34c] sm:$0xf]
  %v3875 = vld [vmem:[%s3662 + $0x350] sm:$0xf]
  %v3876 = vld [vmem:[%s3662 + $0x354] sm:$0xf]
  %v3877 = vld [vmem:[%s3662 + $0x358] sm:$0xf]
  %v3878 = vld [vmem:[%s3662 + $0x35c] sm:$0xf]
  %v3879 = vld [vmem:[%s3662 + $0x360] sm:$0xf]
  %v3880 = vld [vmem:[%s3662 + $0x364] sm:$0xf]
  %v3881 = vld [vmem:[%s3662 + $0x368] sm:$0xf]
  %v3882 = vld [vmem:[%s3662 + $0x36c] sm:$0xf]
  %v3883 = vld [vmem:[%s3662 + $0x370] sm:$0xf]
  %v3884 = vld [vmem:[%s3662 + $0x374] sm:$0xf]
  %v3885 = vld [vmem:[%s3662 + $0x378] sm:$0xf]
  %v3886 = vld [vmem:[%s3662 + $0x37c] sm:$0xf]
  %v3887 = vld [vmem:[%s3662 + $0x380] sm:$0xf]
  %v3888 = vld [vmem:[%s3662 + $0x384] sm:$0xf]
  %v3889 = vld [vmem:[%s3662 + $0x388] sm:$0xf]
  %v3890 = vld [vmem:[%s3662 + $0x38c] sm:$0xf]
  %v3891 = vld [vmem:[%s3662 + $0x390] sm:$0xf]
  %v3892 = vld [vmem:[%s3662 + $0x394] sm:$0xf]
  %v3893 = vld [vmem:[%s3662 + $0x398] sm:$0xf]
  %v3894 = vld [vmem:[%s3662 + $0x39c] sm:$0xf]
  %v3895 = vld [vmem:[%s3662 + $0x3a0] sm:$0xf]
  %v3896 = vld [vmem:[%s3662 + $0x3a4] sm:$0xf]
  %v3897 = vld [vmem:[%s3662 + $0x3a8] sm:$0xf]
  %v3898 = vld [vmem:[%s3662 + $0x3ac] sm:$0xf]
  %v3899 = vld [vmem:[%s3662 + $0x3b0] sm:$0xf]
  %v3900 = vld [vmem:[%s3662 + $0x3b4] sm:$0xf]
  %v3901 = vld [vmem:[%s3662 + $0x3b8] sm:$0xf]
  %v3902 = vld [vmem:[%s3662 + $0x3bc] sm:$0xf]
  %v3903 = vld [vmem:[%s3662 + $0x3c0] sm:$0xf]
  %v3904 = vld [vmem:[%s3662 + $0x3c4] sm:$0xf]
  %v3905 = vld [vmem:[%s3662 + $0x3c8] sm:$0xf]
  %v3906 = vld [vmem:[%s3662 + $0x3cc] sm:$0xf]
  %v3907 = vld [vmem:[%s3662 + $0x3d0] sm:$0xf]
  %v3908 = vld [vmem:[%s3662 + $0x3d4] sm:$0xf]
  %v3909 = vld [vmem:[%s3662 + $0x3d8] sm:$0xf]
  %v3910 = vld [vmem:[%s3662 + $0x3dc] sm:$0xf]
  %v3911 = vld [vmem:[%s3662 + $0x3e0] sm:$0xf]
  %v3912 = vld [vmem:[%s3662 + $0x3e4] sm:$0xf]
  %v3913 = vld [vmem:[%s3662 + $0x3e8] sm:$0xf]
  %v3914 = vld [vmem:[%s3662 + $0x3ec] sm:$0xf]
  %v3915 = vld [vmem:[%s3662 + $0x3f0] sm:$0xf]
  %v3916 = vld [vmem:[%s3662 + $0x3f4] sm:$0xf]
  %v3917 = vld [vmem:[%s3662 + $0x3f8] sm:$0xf]
  %v3918 = vld [vmem:[%s3662 + $0x3fc] sm:$0xf]
  %s3919 = scalar_lea.vmem %s3, 128
  %v3920 = vld [vmem:[%s3919] sm:$0xff]
  %v3921 = vld [vmem:[%s3919 + $0x8] sm:$0xff]
  %v3922 = vld [vmem:[%s3919 + $0x10] sm:$0xff]
  %v3923 = vld [vmem:[%s3919 + $0x18] sm:$0xff]
  %v3924 = vld [vmem:[%s3919 + $0x20] sm:$0xff]
  %v3925 = vld [vmem:[%s3919 + $0x28] sm:$0xff]
  %v3926 = vld [vmem:[%s3919 + $0x30] sm:$0xff]
  %v3927 = vld [vmem:[%s3919 + $0x38] sm:$0xff]
  %v3928 = vld [vmem:[%s3919 + $0x40] sm:$0xff]
  %v3929 = vld [vmem:[%s3919 + $0x48] sm:$0xff]
  %v3930 = vld [vmem:[%s3919 + $0x50] sm:$0xff]
  %v3931 = vld [vmem:[%s3919 + $0x58] sm:$0xff]
  %v3932 = vld [vmem:[%s3919 + $0x60] sm:$0xff]
  %v3933 = vld [vmem:[%s3919 + $0x68] sm:$0xff]
  %v3934 = vld [vmem:[%s3919 + $0x70] sm:$0xff]
  %v3935 = vld [vmem:[%s3919 + $0x78] sm:$0xff]
  %v3936 = vpack.c.bf16 %v3624, %v3623
  %v3937 = vlaneseq
  %v3938 = vshrl.u32 %v3937, 7
  %v3939 = vsub.s32 0, %v3938
  %v3940 = vrot.slane %v3920, %v3939
  %v3945 = vunpack.c.l.b16 %v3626
  %v3946 = vunpack.c.l.b16 %v3635
  %v3947 = vunpack.c.l.b16 %v3644
  %v3948 = vunpack.c.l.b16 %v3653
  %v3949 = vpack.c.b16 %v3946, %v3945
  %v3950 = vpack.c.b16 %v3948, %v3947
  %v3954 = vsel %vm357, %v3936, 0
  %3956 = vmatprep.subr.bf16.mxu0 0
  %3957 = vmatpush1.bf16.msra.mxu0 %v3949
  %3958 = vmatprep.subr.bf16.mxu0 0
  %3959 = vmatpush1.bf16.msra.mxu0 %v3950
  %3960 = vmatprep.subr.bf16.mxu0 0
  %3961 = vmatpush1.bf16.msra.mxu0 0
  %3962 = vmatprep.subr.bf16.mxu0 0
  %3963 = vmatpush1.bf16.msra.mxu0 0
  %3964 = vmatprep.subr.bf16.mxu0 0
  %3965 = vmatpush1.bf16.msra.mxu0 0
  %3966 = vmatprep.subr.bf16.mxu0 0
  %3967 = vmatpush1.bf16.msra.mxu0 0
  %3968 = vmatprep.subr.bf16.mxu0 0
  %3969 = vmatpush1.bf16.msra.mxu0 0
  %3970 = vmatprep.subr.bf16.mxu0 0
  %3971 = vmatpush1.bf16.msra.mxu0 0
  %3972 = vmatprep.subr.bf16.mxu0 0
  %3973 = vmatpush1.bf16.msra.mxu0 0
  %3974 = vmatprep.subr.bf16.mxu0 0
  %3975 = vmatpush1.bf16.msra.mxu0 0
  %3976 = vmatprep.subr.bf16.mxu0 0
  %3977 = vmatpush1.bf16.msra.mxu0 0
  %3978 = vmatprep.subr.bf16.mxu0 0
  %3979 = vmatpush1.bf16.msra.mxu0 0
  %3980 = vmatprep.subr.bf16.mxu0 0
  %3981 = vmatpush1.bf16.msra.mxu0 0
  %3982 = vmatprep.subr.bf16.mxu0 0
  %3983 = vmatpush1.bf16.msra.mxu0 0
  %3984 = vmatprep.subr.bf16.mxu0 0
  %3985 = vmatpush1.bf16.msra.mxu0 0
  %3986 = vmatprep.subr.bf16.mxu0 0
  %3987 = vmatpush1.bf16.msra.mxu0 0
  %3988 = vmatprep.mubr.bf16.mxu0 0
  %3989 = vmatmul.mubr.bf16.gmra.mrb[0].mxu0 %v3954
  %v3990 = vpop.f32.mrb[0].mxu0
  %v3991 = vadd.f32 %v3940, %v3990
  %v3992 = vpop.f32.mrb[0].mxu0
  %v3993 = vpop.f32.mrb[0].mxu0
  %v3994 = vadd.f32 %v3940, %v3993
  %v3995 = vpop.f32.mrb[0].mxu0
  %3996 = vdwg.mxu0
  %3998 = vrot.lane.b32.xlu0 %v3991, 96
  %v3999 = vpop.permute.xlu0 %3998
  %v4000 = vsel %vm405, %v3991, 0
  %v4002 = vsel %vm405, %v3999, 0
  %4004 = vmatprep.subr.mxu0 0.0
  %4005 = vmatpush1.xpose.msra.mxu0 %v4002
  %4006 = vmatprep.subr.mxu0 0.0
  %4007 = vmatpush1.xpose.msra.mxu0 0.0
  %4008 = vmatprep.subr.mxu0 0.0
  %4009 = vmatpush1.xpose.msra.mxu0 0.0
  %4010 = vmatprep.subr.mxu0 0.0
  %4011 = vmatpush1.xpose.msra.mxu0 0.0
  %4012 = vmatprep.subr.mxu0 0.0
  %4013 = vmatpush1.xpose.msra.mxu0 0.0
  %4014 = vmatprep.subr.mxu0 0.0
  %4015 = vmatpush1.xpose.msra.mxu0 0.0
  %4016 = vmatprep.subr.mxu0 0.0
  %4017 = vmatpush1.xpose.msra.mxu0 0.0
  %4018 = vmatprep.subr.mxu0 0.0
  %4019 = vmatpush1.xpose.msra.mxu0 0.0
  %4020 = vmatprep.subr.mxu0 0.0
  %4021 = vmatpush1.xpose.msra.mxu0 0.0
  %4022 = vmatprep.subr.mxu0 0.0
  %4023 = vmatpush1.xpose.msra.mxu0 0.0
  %4024 = vmatprep.subr.mxu0 0.0
  %4025 = vmatpush1.xpose.msra.mxu0 0.0
  %4026 = vmatprep.subr.mxu0 0.0
  %4027 = vmatpush1.xpose.msra.mxu0 0.0
  %4028 = vmatprep.subr.mxu0 0.0
  %4029 = vmatpush1.xpose.msra.mxu0 0.0
  %4030 = vmatprep.subr.mxu0 0.0
  %4031 = vmatpush1.xpose.msra.mxu0 0.0
  %4032 = vmatprep.subr.mxu0 0.0
  %4033 = vmatpush1.xpose.msra.mxu0 0.0
  %4034 = vmatprep.subr.mxu0 0.0
  %4035 = vmatpush1.xpose.msra.mxu0 0.0
  %4036 = vmatprep.subr.mxu0 0.0
  %4037 = vmatpush1.xpose.msra.mxu0 0.0
  %4038 = vmatprep.subr.mxu0 0.0
  %4039 = vmatpush1.xpose.msra.mxu0 0.0
  %4040 = vmatprep.subr.mxu0 0.0
  %4041 = vmatpush1.xpose.msra.mxu0 0.0
  %4042 = vmatprep.subr.mxu0 0.0
  %4043 = vmatpush1.xpose.msra.mxu0 0.0
  %4044 = vmatprep.subr.mxu0 0.0
  %4045 = vmatpush1.xpose.msra.mxu0 0.0
  %4046 = vmatprep.subr.mxu0 0.0
  %4047 = vmatpush1.xpose.msra.mxu0 0.0
  %4048 = vmatprep.subr.mxu0 0.0
  %4049 = vmatpush1.xpose.msra.mxu0 0.0
  %4050 = vmatprep.subr.mxu0 0.0
  %4051 = vmatpush1.xpose.msra.mxu0 0.0
  %4052 = vmatprep.subr.mxu0 0.0
  %4053 = vmatpush1.xpose.msra.mxu0 0.0
  %4054 = vmatprep.subr.mxu0 0.0
  %4055 = vmatpush1.xpose.msra.mxu0 0.0
  %4056 = vmatprep.subr.mxu0 0.0
  %4057 = vmatpush1.xpose.msra.mxu0 0.0
  %4058 = vmatprep.subr.mxu0 0.0
  %4059 = vmatpush1.xpose.msra.mxu0 0.0
  %4060 = vmatprep.subr.mxu0 0.0
  %4061 = vmatpush1.xpose.msra.mxu0 0.0
  %4062 = vmatprep.subr.mxu0 0.0
  %4063 = vmatpush1.xpose.msra.mxu0 0.0
  %4064 = vmatprep.subr.mxu0 0.0
  %4065 = vmatpush1.xpose.msra.mxu0 0.0
  %4066 = vmatprep.subr.mxu0 0.0
  %4067 = vmatpush1.xpose.msra.mxu0 0.0
  %4068 = vmatprep.mubr.f32.mxu0 0.0
  %4069 = vmatmul.mubr.f32.gmra.mrb[0].mxu0 %v4000
  %v4070 = vpop.f32.mrb[0].mxu0
  %v4071 = vadd.f32 0.0, %v4070
  %v4072 = vpop.f32.mrb[0].mxu0
  %4073 = vdwg.mxu0
  %4075 = vrot.lane.b32.xlu0 %v3994, 96
  %v4076 = vpop.permute.xlu0 %4075
  %v4077 = vsel %vm405, %v3994, 0
  %v4079 = vsel %vm405, %v4076, 0
  %4081 = vmatprep.subr.mxu0 0.0
  %4082 = vmatpush1.xpose.msra.mxu0 %v4079
  %4083 = vmatprep.subr.mxu0 0.0
  %4084 = vmatpush1.xpose.msra.mxu0 0.0
  %4085 = vmatprep.subr.mxu0 0.0
  %4086 = vmatpush1.xpose.msra.mxu0 0.0
  %4087 = vmatprep.subr.mxu0 0.0
  %4088 = vmatpush1.xpose.msra.mxu0 0.0
  %4089 = vmatprep.subr.mxu0 0.0
  %4090 = vmatpush1.xpose.msra.mxu0 0.0
  %4091 = vmatprep.subr.mxu0 0.0
  %4092 = vmatpush1.xpose.msra.mxu0 0.0
  %4093 = vmatprep.subr.mxu0 0.0
  %4094 = vmatpush1.xpose.msra.mxu0 0.0
  %4095 = vmatprep.subr.mxu0 0.0
  %4096 = vmatpush1.xpose.msra.mxu0 0.0
  %4097 = vmatprep.subr.mxu0 0.0
  %4098 = vmatpush1.xpose.msra.mxu0 0.0
  %4099 = vmatprep.subr.mxu0 0.0
  %4100 = vmatpush1.xpose.msra.mxu0 0.0
  %4101 = vmatprep.subr.mxu0 0.0
  %4102 = vmatpush1.xpose.msra.mxu0 0.0
  %4103 = vmatprep.subr.mxu0 0.0
  %4104 = vmatpush1.xpose.msra.mxu0 0.0
  %4105 = vmatprep.subr.mxu0 0.0
  %4106 = vmatpush1.xpose.msra.mxu0 0.0
  %4107 = vmatprep.subr.mxu0 0.0
  %4108 = vmatpush1.xpose.msra.mxu0 0.0
  %4109 = vmatprep.subr.mxu0 0.0
  %4110 = vmatpush1.xpose.msra.mxu0 0.0
  %4111 = vmatprep.subr.mxu0 0.0
  %4112 = vmatpush1.xpose.msra.mxu0 0.0
  %4113 = vmatprep.subr.mxu0 0.0
  %4114 = vmatpush1.xpose.msra.mxu0 0.0
  %4115 = vmatprep.subr.mxu0 0.0
  %4116 = vmatpush1.xpose.msra.mxu0 0.0
  %4117 = vmatprep.subr.mxu0 0.0
  %4118 = vmatpush1.xpose.msra.mxu0 0.0
  %4119 = vmatprep.subr.mxu0 0.0
  %4120 = vmatpush1.xpose.msra.mxu0 0.0
  %4121 = vmatprep.subr.mxu0 0.0
  %4122 = vmatpush1.xpose.msra.mxu0 0.0
  %4123 = vmatprep.subr.mxu0 0.0
  %4124 = vmatpush1.xpose.msra.mxu0 0.0
  %4125 = vmatprep.subr.mxu0 0.0
  %4126 = vmatpush1.xpose.msra.mxu0 0.0
  %4127 = vmatprep.subr.mxu0 0.0
  %4128 = vmatpush1.xpose.msra.mxu0 0.0
  %4129 = vmatprep.subr.mxu0 0.0
  %4130 = vmatpush1.xpose.msra.mxu0 0.0
  %4131 = vmatprep.subr.mxu0 0.0
  %4132 = vmatpush1.xpose.msra.mxu0 0.0
  %4133 = vmatprep.subr.mxu0 0.0
  %4134 = vmatpush1.xpose.msra.mxu0 0.0
  %4135 = vmatprep.subr.mxu0 0.0
  %4136 = vmatpush1.xpose.msra.mxu0 0.0
  %4137 = vmatprep.subr.mxu0 0.0
  %4138 = vmatpush1.xpose.msra.mxu0 0.0
  %4139 = vmatprep.subr.mxu0 0.0
  %4140 = vmatpush1.xpose.msra.mxu0 0.0
  %4141 = vmatprep.subr.mxu0 0.0
  %4142 = vmatpush1.xpose.msra.mxu0 0.0
  %4143 = vmatprep.subr.mxu0 0.0
  %4144 = vmatpush1.xpose.msra.mxu0 0.0
  %4145 = vmatprep.mubr.f32.mxu0 0.0
  %4146 = vmatmul.mubr.f32.gmra.mrb[0].mxu0 %v4077
  %v4147 = vpop.f32.mrb[0].mxu0
  %v4148 = vadd.f32 0.0, %v4147
  %v4149 = vpop.f32.mrb[0].mxu0
  %4150 = vdwg.mxu0
  %v4151 = vmul.f32 %v4071, 0.35355338
  %v4152 = vmul.f32 %v4148, 0.35355338
  %v4153 = vsel %vm405, %v4151, -inf
  %4154 = vmax.xlane.f32.xlu0 %v4153
  %v4155 = vpop.xlane.xlu0 %4154
  %v4156 = vsel %vm405, %v4152, -inf
  %4157 = vmax.xlane.f32.xlu0 %v4156
  %v4158 = vpop.xlane.xlu0 %4157
  %v4159 = vsub.f32 %v4151, %v4155
  %v4160 = vsub.f32 %v4152, %v4158
  %v4161 = vmul.f32 %v4159, 1.442695
  %v4162 = vpow.pop %v4161
  %v4163 = vmul.f32 %v4160, 1.442695
  %v4164 = vpow.pop %v4163
  %v4165 = vsel %vm405, %v4162, 0.0
  %4166 = vadd.xlane.f32.xlu0 %v4165
  %v4167 = vpop.xlane.xlu0 %4166
  %v4168 = vsel %vm405, %v4164, 0.0
  %4169 = vadd.xlane.f32.xlu0 %v4168
  %v4170 = vpop.xlane.xlu0 %4169
  %v4171 = vrcp.pop %v4167
  %v4172 = vrcp.pop %v4170
  %v4173 = vmul.f32 %v4162, %v4171
  %v4174 = vmul.f32 %v4164, %v4172
  %4175 = vrot.lane.b32.xlu0 %v3991, 64
  %v4176 = vpop.permute.xlu0 %4175
  %v4179 = vsel %vm405, %v4173, 0
  %4181 = vmatprep.subr.mxu0 0.0
  %4182 = vmatpush1.msra.mxu0 %v4176
  %4183 = vmatprep.subr.mxu0 0.0
  %4184 = vmatpush1.msra.mxu0 0.0
  %4185 = vmatprep.subr.mxu0 0.0
  %4186 = vmatpush1.msra.mxu0 0.0
  %4187 = vmatprep.subr.mxu0 0.0
  %4188 = vmatpush1.msra.mxu0 0.0
  %4189 = vmatprep.subr.mxu0 0.0
  %4190 = vmatpush1.msra.mxu0 0.0
  %4191 = vmatprep.subr.mxu0 0.0
  %4192 = vmatpush1.msra.mxu0 0.0
  %4193 = vmatprep.subr.mxu0 0.0
  %4194 = vmatpush1.msra.mxu0 0.0
  %4195 = vmatprep.subr.mxu0 0.0
  %4196 = vmatpush1.msra.mxu0 0.0
  %4197 = vmatprep.subr.mxu0 0.0
  %4198 = vmatpush1.msra.mxu0 0.0
  %4199 = vmatprep.subr.mxu0 0.0
  %4200 = vmatpush1.msra.mxu0 0.0
  %4201 = vmatprep.subr.mxu0 0.0
  %4202 = vmatpush1.msra.mxu0 0.0
  %4203 = vmatprep.subr.mxu0 0.0
  %4204 = vmatpush1.msra.mxu0 0.0
  %4205 = vmatprep.subr.mxu0 0.0
  %4206 = vmatpush1.msra.mxu0 0.0
  %4207 = vmatprep.subr.mxu0 0.0
  %4208 = vmatpush1.msra.mxu0 0.0
  %4209 = vmatprep.subr.mxu0 0.0
  %4210 = vmatpush1.msra.mxu0 0.0
  %4211 = vmatprep.subr.mxu0 0.0
  %4212 = vmatpush1.msra.mxu0 0.0
  %4213 = vmatprep.subr.mxu0 0.0
  %4214 = vmatpush1.msra.mxu0 0.0
  %4215 = vmatprep.subr.mxu0 0.0
  %4216 = vmatpush1.msra.mxu0 0.0
  %4217 = vmatprep.subr.mxu0 0.0
  %4218 = vmatpush1.msra.mxu0 0.0
  %4219 = vmatprep.subr.mxu0 0.0
  %4220 = vmatpush1.msra.mxu0 0.0
  %4221 = vmatprep.subr.mxu0 0.0
  %4222 = vmatpush1.msra.mxu0 0.0
  %4223 = vmatprep.subr.mxu0 0.0
  %4224 = vmatpush1.msra.mxu0 0.0
  %4225 = vmatprep.subr.mxu0 0.0
  %4226 = vmatpush1.msra.mxu0 0.0
  %4227 = vmatprep.subr.mxu0 0.0
  %4228 = vmatpush1.msra.mxu0 0.0
  %4229 = vmatprep.subr.mxu0 0.0
  %4230 = vmatpush1.msra.mxu0 0.0
  %4231 = vmatprep.subr.mxu0 0.0
  %4232 = vmatpush1.msra.mxu0 0.0
  %4233 = vmatprep.subr.mxu0 0.0
  %4234 = vmatpush1.msra.mxu0 0.0
  %4235 = vmatprep.subr.mxu0 0.0
  %4236 = vmatpush1.msra.mxu0 0.0
  %4237 = vmatprep.subr.mxu0 0.0
  %4238 = vmatpush1.msra.mxu0 0.0
  %4239 = vmatprep.subr.mxu0 0.0
  %4240 = vmatpush1.msra.mxu0 0.0
  %4241 = vmatprep.subr.mxu0 0.0
  %4242 = vmatpush1.msra.mxu0 0.0
  %4243 = vmatprep.subr.mxu0 0.0
  %4244 = vmatpush1.msra.mxu0 0.0
  %4245 = vmatprep.mubr.f32.mxu0 0.0
  %4246 = vmatmul.mubr.f32.gmra.mrb[0].mxu0 %v4179
  %v4247 = vpop.f32.mrb[0].mxu0
  %v4248 = vadd.f32 0.0, %v4247
  %v4249 = vpop.f32.mrb[0].mxu0
  %4250 = vdwg.mxu0
  %4251 = vrot.lane.b32.xlu0 %v3994, 64
  %v4252 = vpop.permute.xlu0 %4251
  %v4255 = vsel %vm405, %v4174, 0
  %4257 = vmatprep.subr.mxu0 0.0
  %4258 = vmatpush1.msra.mxu0 %v4252
  %4259 = vmatprep.subr.mxu0 0.0
  %4260 = vmatpush1.msra.mxu0 0.0
  %4261 = vmatprep.subr.mxu0 0.0
  %4262 = vmatpush1.msra.mxu0 0.0
  %4263 = vmatprep.subr.mxu0 0.0
  %4264 = vmatpush1.msra.mxu0 0.0
  %4265 = vmatprep.subr.mxu0 0.0
  %4266 = vmatpush1.msra.mxu0 0.0
  %4267 = vmatprep.subr.mxu0 0.0
  %4268 = vmatpush1.msra.mxu0 0.0
  %4269 = vmatprep.subr.mxu0 0.0
  %4270 = vmatpush1.msra.mxu0 0.0
  %4271 = vmatprep.subr.mxu0 0.0
  %4272 = vmatpush1.msra.mxu0 0.0
  %4273 = vmatprep.subr.mxu0 0.0
  %4274 = vmatpush1.msra.mxu0 0.0
  %4275 = vmatprep.subr.mxu0 0.0
  %4276 = vmatpush1.msra.mxu0 0.0
  %4277 = vmatprep.subr.mxu0 0.0
  %4278 = vmatpush1.msra.mxu0 0.0
  %4279 = vmatprep.subr.mxu0 0.0
  %4280 = vmatpush1.msra.mxu0 0.0
  %4281 = vmatprep.subr.mxu0 0.0
  %4282 = vmatpush1.msra.mxu0 0.0
  %4283 = vmatprep.subr.mxu0 0.0
  %4284 = vmatpush1.msra.mxu0 0.0
  %4285 = vmatprep.subr.mxu0 0.0
  %4286 = vmatpush1.msra.mxu0 0.0
  %4287 = vmatprep.subr.mxu0 0.0
  %4288 = vmatpush1.msra.mxu0 0.0
  %4289 = vmatprep.subr.mxu0 0.0
  %4290 = vmatpush1.msra.mxu0 0.0
  %4291 = vmatprep.subr.mxu0 0.0
  %4292 = vmatpush1.msra.mxu0 0.0
  %4293 = vmatprep.subr.mxu0 0.0
  %4294 = vmatpush1.msra.mxu0 0.0
  %4295 = vmatprep.subr.mxu0 0.0
  %4296 = vmatpush1.msra.mxu0 0.0
  %4297 = vmatprep.subr.mxu0 0.0
  %4298 = vmatpush1.msra.mxu0 0.0
  %4299 = vmatprep.subr.mxu0 0.0
  %4300 = vmatpush1.msra.mxu0 0.0
  %4301 = vmatprep.subr.mxu0 0.0
  %4302 = vmatpush1.msra.mxu0 0.0
  %4303 = vmatprep.subr.mxu0 0.0
  %4304 = vmatpush1.msra.mxu0 0.0
  %4305 = vmatprep.subr.mxu0 0.0
  %4306 = vmatpush1.msra.mxu0 0.0
  %4307 = vmatprep.subr.mxu0 0.0
  %4308 = vmatpush1.msra.mxu0 0.0
  %4309 = vmatprep.subr.mxu0 0.0
  %4310 = vmatpush1.msra.mxu0 0.0
  %4311 = vmatprep.subr.mxu0 0.0
  %4312 = vmatpush1.msra.mxu0 0.0
  %4313 = vmatprep.subr.mxu0 0.0
  %4314 = vmatpush1.msra.mxu0 0.0
  %4315 = vmatprep.subr.mxu0 0.0
  %4316 = vmatpush1.msra.mxu0 0.0
  %4317 = vmatprep.subr.mxu0 0.0
  %4318 = vmatpush1.msra.mxu0 0.0
  %4319 = vmatprep.subr.mxu0 0.0
  %4320 = vmatpush1.msra.mxu0 0.0
  %4321 = vmatprep.mubr.f32.mxu0 0.0
  %4322 = vmatmul.mubr.f32.gmra.mrb[0].mxu0 %v4255
  %v4323 = vpop.f32.mrb[0].mxu0
  %v4324 = vadd.f32 0.0, %v4323
  %v4325 = vpop.f32.mrb[0].mxu0
  %4326 = vdwg.mxu0
  %4327 = vrot.lane.b32.xlu0 %v3991, 120
  %v4328 = vpop.permute.xlu0 %4327
  %4329 = vrot.lane.b32.xlu0 %v3991, 88
  %v4330 = vpop.permute.xlu0 %4329
  %v4331 = vsel %vm405, %v4328, 0
  %v4333 = vsel %vm405, %v4330, 0
  %4335 = vmatprep.subr.mxu0 0.0
  %4336 = vmatpush1.xpose.msra.mxu0 %v4333
  %4337 = vmatprep.subr.mxu0 0.0
  %4338 = vmatpush1.xpose.msra.mxu0 0.0
  %4339 = vmatprep.subr.mxu0 0.0
  %4340 = vmatpush1.xpose.msra.mxu0 0.0
  %4341 = vmatprep.subr.mxu0 0.0
  %4342 = vmatpush1.xpose.msra.mxu0 0.0
  %4343 = vmatprep.subr.mxu0 0.0
  %4344 = vmatpush1.xpose.msra.mxu0 0.0
  %4345 = vmatprep.subr.mxu0 0.0
  %4346 = vmatpush1.xpose.msra.mxu0 0.0
  %4347 = vmatprep.subr.mxu0 0.0
  %4348 = vmatpush1.xpose.msra.mxu0 0.0
  %4349 = vmatprep.subr.mxu0 0.0
  %4350 = vmatpush1.xpose.msra.mxu0 0.0
  %4351 = vmatprep.subr.mxu0 0.0
  %4352 = vmatpush1.xpose.msra.mxu0 0.0
  %4353 = vmatprep.subr.mxu0 0.0
  %4354 = vmatpush1.xpose.msra.mxu0 0.0
  %4355 = vmatprep.subr.mxu0 0.0
  %4356 = vmatpush1.xpose.msra.mxu0 0.0
  %4357 = vmatprep.subr.mxu0 0.0
  %4358 = vmatpush1.xpose.msra.mxu0 0.0
  %4359 = vmatprep.subr.mxu0 0.0
  %4360 = vmatpush1.xpose.msra.mxu0 0.0
  %4361 = vmatprep.subr.mxu0 0.0
  %4362 = vmatpush1.xpose.msra.mxu0 0.0
  %4363 = vmatprep.subr.mxu0 0.0
  %4364 = vmatpush1.xpose.msra.mxu0 0.0
  %4365 = vmatprep.subr.mxu0 0.0
  %4366 = vmatpush1.xpose.msra.mxu0 0.0
  %4367 = vmatprep.subr.mxu0 0.0
  %4368 = vmatpush1.xpose.msra.mxu0 0.0
  %4369 = vmatprep.subr.mxu0 0.0
  %4370 = vmatpush1.xpose.msra.mxu0 0.0
  %4371 = vmatprep.subr.mxu0 0.0
  %4372 = vmatpush1.xpose.msra.mxu0 0.0
  %4373 = vmatprep.subr.mxu0 0.0
  %4374 = vmatpush1.xpose.msra.mxu0 0.0
  %4375 = vmatprep.subr.mxu0 0.0
  %4376 = vmatpush1.xpose.msra.mxu0 0.0
  %4377 = vmatprep.subr.mxu0 0.0
  %4378 = vmatpush1.xpose.msra.mxu0 0.0
  %4379 = vmatprep.subr.mxu0 0.0
  %4380 = vmatpush1.xpose.msra.mxu0 0.0
  %4381 = vmatprep.subr.mxu0 0.0
  %4382 = vmatpush1.xpose.msra.mxu0 0.0
  %4383 = vmatprep.subr.mxu0 0.0
  %4384 = vmatpush1.xpose.msra.mxu0 0.0
  %4385 = vmatprep.subr.mxu0 0.0
  %4386 = vmatpush1.xpose.msra.mxu0 0.0
  %4387 = vmatprep.subr.mxu0 0.0
  %4388 = vmatpush1.xpose.msra.mxu0 0.0
  %4389 = vmatprep.subr.mxu0 0.0
  %4390 = vmatpush1.xpose.msra.mxu0 0.0
  %4391 = vmatprep.subr.mxu0 0.0
  %4392 = vmatpush1.xpose.msra.mxu0 0.0
  %4393 = vmatprep.subr.mxu0 0.0
  %4394 = vmatpush1.xpose.msra.mxu0 0.0
  %4395 = vmatprep.subr.mxu0 0.0
  %4396 = vmatpush1.xpose.msra.mxu0 0.0
  %4397 = vmatprep.subr.mxu0 0.0
  %4398 = vmatpush1.xpose.msra.mxu0 0.0
  %4399 = vmatprep.mubr.f32.mxu0 0.0
  %4400 = vmatmul.mubr.f32.gmra.mrb[0].mxu0 %v4331
  %v4401 = vpop.f32.mrb[0].mxu0
  %v4402 = vadd.f32 0.0, %v4401
  %v4403 = vpop.f32.mrb[0].mxu0
  %4404 = vdwg.mxu0
  %4405 = vrot.lane.b32.xlu0 %v3994, 120
  %v4406 = vpop.permute.xlu0 %4405
  %4407 = vrot.lane.b32.xlu0 %v3994, 88
  %v4408 = vpop.permute.xlu0 %4407
  %v4409 = vsel %vm405, %v4406, 0
  %v4411 = vsel %vm405, %v4408, 0
  %4413 = vmatprep.subr.mxu0 0.0
  %4414 = vmatpush1.xpose.msra.mxu0 %v4411
  %4415 = vmatprep.subr.mxu0 0.0
  %4416 = vmatpush1.xpose.msra.mxu0 0.0
  %4417 = vmatprep.subr.mxu0 0.0
  %4418 = vmatpush1.xpose.msra.mxu0 0.0
  %4419 = vmatprep.subr.mxu0 0.0
  %4420 = vmatpush1.xpose.msra.mxu0 0.0
  %4421 = vmatprep.subr.mxu0 0.0
  %4422 = vmatpush1.xpose.msra.mxu0 0.0
  %4423 = vmatprep.subr.mxu0 0.0
  %4424 = vmatpush1.xpose.msra.mxu0 0.0
  %4425 = vmatprep.subr.mxu0 0.0
  %4426 = vmatpush1.xpose.msra.mxu0 0.0
  %4427 = vmatprep.subr.mxu0 0.0
  %4428 = vmatpush1.xpose.msra.mxu0 0.0
  %4429 = vmatprep.subr.mxu0 0.0
  %4430 = vmatpush1.xpose.msra.mxu0 0.0
  %4431 = vmatprep.subr.mxu0 0.0
  %4432 = vmatpush1.xpose.msra.mxu0 0.0
  %4433 = vmatprep.subr.mxu0 0.0
  %4434 = vmatpush1.xpose.msra.mxu0 0.0
  %4435 = vmatprep.subr.mxu0 0.0
  %4436 = vmatpush1.xpose.msra.mxu0 0.0
  %4437 = vmatprep.subr.mxu0 0.0
  %4438 = vmatpush1.xpose.msra.mxu0 0.0
  %4439 = vmatprep.subr.mxu0 0.0
  %4440 = vmatpush1.xpose.msra.mxu0 0.0
  %4441 = vmatprep.subr.mxu0 0.0
  %4442 = vmatpush1.xpose.msra.mxu0 0.0
  %4443 = vmatprep.subr.mxu0 0.0
  %4444 = vmatpush1.xpose.msra.mxu0 0.0
  %4445 = vmatprep.subr.mxu0 0.0
  %4446 = vmatpush1.xpose.msra.mxu0 0.0
  %4447 = vmatprep.subr.mxu0 0.0
  %4448 = vmatpush1.xpose.msra.mxu0 0.0
  %4449 = vmatprep.subr.mxu0 0.0
  %4450 = vmatpush1.xpose.msra.mxu0 0.0
  %4451 = vmatprep.subr.mxu0 0.0
  %4452 = vmatpush1.xpose.msra.mxu0 0.0
  %4453 = vmatprep.subr.mxu0 0.0
  %4454 = vmatpush1.xpose.msra.mxu0 0.0
  %4455 = vmatprep.subr.mxu0 0.0
  %4456 = vmatpush1.xpose.msra.mxu0 0.0
  %4457 = vmatprep.subr.mxu0 0.0
  %4458 = vmatpush1.xpose.msra.mxu0 0.0
  %4459 = vmatprep.subr.mxu0 0.0
  %4460 = vmatpush1.xpose.msra.mxu0 0.0
  %4461 = vmatprep.subr.mxu0 0.0
  %4462 = vmatpush1.xpose.msra.mxu0 0.0
  %4463 = vmatprep.subr.mxu0 0.0
  %4464 = vmatpush1.xpose.msra.mxu0 0.0
  %4465 = vmatprep.subr.mxu0 0.0
  %4466 = vmatpush1.xpose.msra.mxu0 0.0
  %4467 = vmatprep.subr.mxu0 0.0
  %4468 = vmatpush1.xpose.msra.mxu0 0.0
  %4469 = vmatprep.subr.mxu0 0.0
  %4470 = vmatpush1.xpose.msra.mxu0 0.0
  %4471 = vmatprep.subr.mxu0 0.0
  %4472 = vmatpush1.xpose.msra.mxu0 0.0
  %4473 = vmatprep.subr.mxu0 0.0
  %4474 = vmatpush1.xpose.msra.mxu0 0.0
  %4475 = vmatprep.subr.mxu0 0.0
  %4476 = vmatpush1.xpose.msra.mxu0 0.0
  %4477 = vmatprep.mubr.f32.mxu0 0.0
  %4478 = vmatmul.mubr.f32.gmra.mrb[0].mxu0 %v4409
  %v4479 = vpop.f32.mrb[0].mxu0
  %v4480 = vadd.f32 0.0, %v4479
  %v4481 = vpop.f32.mrb[0].mxu0
  %4482 = vdwg.mxu0
  %v4483 = vmul.f32 %v4402, 0.35355338
  %v4484 = vmul.f32 %v4480, 0.35355338
  %v4485 = vsel %vm405, %v4483, -inf
  %4486 = vmax.xlane.f32.xlu0 %v4485
  %v4487 = vpop.xlane.xlu0 %4486
  %v4488 = vsel %vm405, %v4484, -inf
  %4489 = vmax.xlane.f32.xlu0 %v4488
  %v4490 = vpop.xlane.xlu0 %4489
  %v4491 = vsub.f32 %v4483, %v4487
  %v4492 = vsub.f32 %v4484, %v4490
  %v4493 = vmul.f32 %v4491, 1.442695
  %v4494 = vpow.pop %v4493
  %v4495 = vmul.f32 %v4492, 1.442695
  %v4496 = vpow.pop %v4495
  %v4497 = vsel %vm405, %v4494, 0.0
  %4498 = vadd.xlane.f32.xlu0 %v4497
  %v4499 = vpop.xlane.xlu0 %4498
  %v4500 = vsel %vm405, %v4496, 0.0
  %4501 = vadd.xlane.f32.xlu0 %v4500
  %v4502 = vpop.xlane.xlu0 %4501
  %v4503 = vrcp.pop %v4499
  %v4504 = vrcp.pop %v4502
  %v4505 = vmul.f32 %v4494, %v4503
  %v4506 = vmul.f32 %v4496, %v4504
  %4507 = vrot.lane.b32.xlu0 %v3991, 56
  %v4508 = vpop.permute.xlu0 %4507
  %v4511 = vsel %vm405, %v4505, 0
  %4513 = vmatprep.subr.mxu0 0.0
  %4514 = vmatpush1.msra.mxu0 %v4508
  %4515 = vmatprep.subr.mxu0 0.0
  %4516 = vmatpush1.msra.mxu0 0.0
  %4517 = vmatprep.subr.mxu0 0.0
  %4518 = vmatpush1.msra.mxu0 0.0
  %4519 = vmatprep.subr.mxu0 0.0
  %4520 = vmatpush1.msra.mxu0 0.0
  %4521 = vmatprep.subr.mxu0 0.0
  %4522 = vmatpush1.msra.mxu0 0.0
  %4523 = vmatprep.subr.mxu0 0.0
  %4524 = vmatpush1.msra.mxu0 0.0
  %4525 = vmatprep.subr.mxu0 0.0
  %4526 = vmatpush1.msra.mxu0 0.0
  %4527 = vmatprep.subr.mxu0 0.0
  %4528 = vmatpush1.msra.mxu0 0.0
  %4529 = vmatprep.subr.mxu0 0.0
  %4530 = vmatpush1.msra.mxu0 0.0
  %4531 = vmatprep.subr.mxu0 0.0
  %4532 = vmatpush1.msra.mxu0 0.0
  %4533 = vmatprep.subr.mxu0 0.0
  %4534 = vmatpush1.msra.mxu0 0.0
  %4535 = vmatprep.subr.mxu0 0.0
  %4536 = vmatpush1.msra.mxu0 0.0
  %4537 = vmatprep.subr.mxu0 0.0
  %4538 = vmatpush1.msra.mxu0 0.0
  %4539 = vmatprep.subr.mxu0 0.0
  %4540 = vmatpush1.msra.mxu0 0.0
  %4541 = vmatprep.subr.mxu0 0.0
  %4542 = vmatpush1.msra.mxu0 0.0
  %4543 = vmatprep.subr.mxu0 0.0
  %4544 = vmatpush1.msra.mxu0 0.0
  %4545 = vmatprep.subr.mxu0 0.0
  %4546 = vmatpush1.msra.mxu0 0.0
  %4547 = vmatprep.subr.mxu0 0.0
  %4548 = vmatpush1.msra.mxu0 0.0
  %4549 = vmatprep.subr.mxu0 0.0
  %4550 = vmatpush1.msra.mxu0 0.0
  %4551 = vmatprep.subr.mxu0 0.0
  %4552 = vmatpush1.msra.mxu0 0.0
  %4553 = vmatprep.subr.mxu0 0.0
  %4554 = vmatpush1.msra.mxu0 0.0
  %4555 = vmatprep.subr.mxu0 0.0
  %4556 = vmatpush1.msra.mxu0 0.0
  %4557 = vmatprep.subr.mxu0 0.0
  %4558 = vmatpush1.msra.mxu0 0.0
  %4559 = vmatprep.subr.mxu0 0.0
  %4560 = vmatpush1.msra.mxu0 0.0
  %4561 = vmatprep.subr.mxu0 0.0
  %4562 = vmatpush1.msra.mxu0 0.0
  %4563 = vmatprep.subr.mxu0 0.0
  %4564 = vmatpush1.msra.mxu0 0.0
  %4565 = vmatprep.subr.mxu0 0.0
  %4566 = vmatpush1.msra.mxu0 0.0
  %4567 = vmatprep.subr.mxu0 0.0
  %4568 = vmatpush1.msra.mxu0 0.0
  %4569 = vmatprep.subr.mxu0 0.0
  %4570 = vmatpush1.msra.mxu0 0.0
  %4571 = vmatprep.subr.mxu0 0.0
  %4572 = vmatpush1.msra.mxu0 0.0
  %4573 = vmatprep.subr.mxu0 0.0
  %4574 = vmatpush1.msra.mxu0 0.0
  %4575 = vmatprep.subr.mxu0 0.0
  %4576 = vmatpush1.msra.mxu0 0.0
  %4577 = vmatprep.mubr.f32.mxu0 0.0
  %4578 = vmatmul.mubr.f32.gmra.mrb[0].mxu0 %v4511
  %v4579 = vpop.f32.mrb[0].mxu0
  %v4580 = vadd.f32 0.0, %v4579
  %v4581 = vpop.f32.mrb[0].mxu0
  %4582 = vdwg.mxu0
  %4583 = vrot.lane.b32.xlu0 %v3994, 56
  %v4584 = vpop.permute.xlu0 %4583
  %v4587 = vsel %vm405, %v4506, 0
  %4589 = vmatprep.subr.mxu0 0.0
  %4590 = vmatpush1.msra.mxu0 %v4584
  %4591 = vmatprep.subr.mxu0 0.0
  %4592 = vmatpush1.msra.mxu0 0.0
  %4593 = vmatprep.subr.mxu0 0.0
  %4594 = vmatpush1.msra.mxu0 0.0
  %4595 = vmatprep.subr.mxu0 0.0
  %4596 = vmatpush1.msra.mxu0 0.0
  %4597 = vmatprep.subr.mxu0 0.0
  %4598 = vmatpush1.msra.mxu0 0.0
  %4599 = vmatprep.subr.mxu0 0.0
  %4600 = vmatpush1.msra.mxu0 0.0
  %4601 = vmatprep.subr.mxu0 0.0
  %4602 = vmatpush1.msra.mxu0 0.0
  %4603 = vmatprep.subr.mxu0 0.0
  %4604 = vmatpush1.msra.mxu0 0.0
  %4605 = vmatprep.subr.mxu0 0.0
  %4606 = vmatpush1.msra.mxu0 0.0
  %4607 = vmatprep.subr.mxu0 0.0
  %4608 = vmatpush1.msra.mxu0 0.0
  %4609 = vmatprep.subr.mxu0 0.0
  %4610 = vmatpush1.msra.mxu0 0.0
  %4611 = vmatprep.subr.mxu0 0.0
  %4612 = vmatpush1.msra.mxu0 0.0
  %4613 = vmatprep.subr.mxu0 0.0
  %4614 = vmatpush1.msra.mxu0 0.0
  %4615 = vmatprep.subr.mxu0 0.0
  %4616 = vmatpush1.msra.mxu0 0.0
  %4617 = vmatprep.subr.mxu0 0.0
  %4618 = vmatpush1.msra.mxu0 0.0
  %4619 = vmatprep.subr.mxu0 0.0
  %4620 = vmatpush1.msra.mxu0 0.0
  %4621 = vmatprep.subr.mxu0 0.0
  %4622 = vmatpush1.msra.mxu0 0.0
  %4623 = vmatprep.subr.mxu0 0.0
  %4624 = vmatpush1.msra.mxu0 0.0
  %4625 = vmatprep.subr.mxu0 0.0
  %4626 = vmatpush1.msra.mxu0 0.0
  %4627 = vmatprep.subr.mxu0 0.0
  %4628 = vmatpush1.msra.mxu0 0.0
  %4629 = vmatprep.subr.mxu0 0.0
  %4630 = vmatpush1.msra.mxu0 0.0
  %4631 = vmatprep.subr.mxu0 0.0
  %4632 = vmatpush1.msra.mxu0 0.0
  %4633 = vmatprep.subr.mxu0 0.0
  %4634 = vmatpush1.msra.mxu0 0.0
  %4635 = vmatprep.subr.mxu0 0.0
  %4636 = vmatpush1.msra.mxu0 0.0
  %4637 = vmatprep.subr.mxu0 0.0
  %4638 = vmatpush1.msra.mxu0 0.0
  %4639 = vmatprep.subr.mxu0 0.0
  %4640 = vmatpush1.msra.mxu0 0.0
  %4641 = vmatprep.subr.mxu0 0.0
  %4642 = vmatpush1.msra.mxu0 0.0
  %4643 = vmatprep.subr.mxu0 0.0
  %4644 = vmatpush1.msra.mxu0 0.0
  %4645 = vmatprep.subr.mxu0 0.0
  %4646 = vmatpush1.msra.mxu0 0.0
  %4647 = vmatprep.subr.mxu0 0.0
  %4648 = vmatpush1.msra.mxu0 0.0
  %4649 = vmatprep.subr.mxu0 0.0
  %4650 = vmatpush1.msra.mxu0 0.0
  %4651 = vmatprep.subr.mxu0 0.0
  %4652 = vmatpush1.msra.mxu0 0.0
  %4653 = vmatprep.mubr.f32.mxu0 0.0
  %4654 = vmatmul.mubr.f32.gmra.mrb[0].mxu0 %v4587
  %v4655 = vpop.f32.mrb[0].mxu0
  %v4656 = vadd.f32 0.0, %v4655
  %v4657 = vpop.f32.mrb[0].mxu0
  %4658 = vdwg.mxu0
  %4659 = vrot.lane.b32.xlu0 %v3991, 112
  %v4660 = vpop.permute.xlu0 %4659
  %4661 = vrot.lane.b32.xlu0 %v3991, 80
  %v4662 = vpop.permute.xlu0 %4661
  %v4663 = vsel %vm405, %v4660, 0
  %v4665 = vsel %vm405, %v4662, 0
  %4667 = vmatprep.subr.mxu0 0.0
  %4668 = vmatpush1.xpose.msra.mxu0 %v4665
  %4669 = vmatprep.subr.mxu0 0.0
  %4670 = vmatpush1.xpose.msra.mxu0 0.0
  %4671 = vmatprep.subr.mxu0 0.0
  %4672 = vmatpush1.xpose.msra.mxu0 0.0
  %4673 = vmatprep.subr.mxu0 0.0
  %4674 = vmatpush1.xpose.msra.mxu0 0.0
  %4675 = vmatprep.subr.mxu0 0.0
  %4676 = vmatpush1.xpose.msra.mxu0 0.0
  %4677 = vmatprep.subr.mxu0 0.0
  %4678 = vmatpush1.xpose.msra.mxu0 0.0
  %4679 = vmatprep.subr.mxu0 0.0
  %4680 = vmatpush1.xpose.msra.mxu0 0.0
  %4681 = vmatprep.subr.mxu0 0.0
  %4682 = vmatpush1.xpose.msra.mxu0 0.0
  %4683 = vmatprep.subr.mxu0 0.0
  %4684 = vmatpush1.xpose.msra.mxu0 0.0
  %4685 = vmatprep.subr.mxu0 0.0
  %4686 = vmatpush1.xpose.msra.mxu0 0.0
  %4687 = vmatprep.subr.mxu0 0.0
  %4688 = vmatpush1.xpose.msra.mxu0 0.0
  %4689 = vmatprep.subr.mxu0 0.0
  %4690 = vmatpush1.xpose.msra.mxu0 0.0
  %4691 = vmatprep.subr.mxu0 0.0
  %4692 = vmatpush1.xpose.msra.mxu0 0.0
  %4693 = vmatprep.subr.mxu0 0.0
  %4694 = vmatpush1.xpose.msra.mxu0 0.0
  %4695 = vmatprep.subr.mxu0 0.0
  %4696 = vmatpush1.xpose.msra.mxu0 0.0
  %4697 = vmatprep.subr.mxu0 0.0
  %4698 = vmatpush1.xpose.msra.mxu0 0.0
  %4699 = vmatprep.subr.mxu0 0.0
  %4700 = vmatpush1.xpose.msra.mxu0 0.0
  %4701 = vmatprep.subr.mxu0 0.0
  %4702 = vmatpush1.xpose.msra.mxu0 0.0
  %4703 = vmatprep.subr.mxu0 0.0
  %4704 = vmatpush1.xpose.msra.mxu0 0.0
  %4705 = vmatprep.subr.mxu0 0.0
  %4706 = vmatpush1.xpose.msra.mxu0 0.0
  %4707 = vmatprep.subr.mxu0 0.0
  %4708 = vmatpush1.xpose.msra.mxu0 0.0
  %4709 = vmatprep.subr.mxu0 0.0
  %4710 = vmatpush1.xpose.msra.mxu0 0.0
  %4711 = vmatprep.subr.mxu0 0.0
  %4712 = vmatpush1.xpose.msra.mxu0 0.0
  %4713 = vmatprep.subr.mxu0 0.0
  %4714 = vmatpush1.xpose.msra.mxu0 0.0
  %4715 = vmatprep.subr.mxu0 0.0
  %4716 = vmatpush1.xpose.msra.mxu0 0.0
  %4717 = vmatprep.subr.mxu0 0.0
  %4718 = vmatpush1.xpose.msra.mxu0 0.0
  %4719 = vmatprep.subr.mxu0 0.0
  %4720 = vmatpush1.xpose.msra.mxu0 0.0
  %4721 = vmatprep.subr.mxu0 0.0
  %4722 = vmatpush1.xpose.msra.mxu0 0.0
  %4723 = vmatprep.subr.mxu0 0.0
  %4724 = vmatpush1.xpose.msra.mxu0 0.0
  %4725 = vmatprep.subr.mxu0 0.0
  %4726 = vmatpush1.xpose.msra.mxu0 0.0
  %4727 = vmatprep.subr.mxu0 0.0
  %4728 = vmatpush1.xpose.msra.mxu0 0.0
  %4729 = vmatprep.subr.mxu0 0.0
  %4730 = vmatpush1.xpose.msra.mxu0 0.0
  %4731 = vmatprep.mubr.f32.mxu0 0.0
  %4732 = vmatmul.mubr.f32.gmra.mrb[0].mxu0 %v4663
  %v4733 = vpop.f32.mrb[0].mxu0
  %v4734 = vadd.f32 0.0, %v4733
  %v4735 = vpop.f32.mrb[0].mxu0
  %4736 = vdwg.mxu0
  %4737 = vrot.lane.b32.xlu0 %v3994, 112
  %v4738 = vpop.permute.xlu0 %4737
  %4739 = vrot.lane.b32.xlu0 %v3994, 80
  %v4740 = vpop.permute.xlu0 %4739
  %v4741 = vsel %vm405, %v4738, 0
  %v4743 = vsel %vm405, %v4740, 0
  %4745 = vmatprep.subr.mxu0 0.0
  %4746 = vmatpush1.xpose.msra.mxu0 %v4743
  %4747 = vmatprep.subr.mxu0 0.0
  %4748 = vmatpush1.xpose.msra.mxu0 0.0
  %4749 = vmatprep.subr.mxu0 0.0
  %4750 = vmatpush1.xpose.msra.mxu0 0.0
  %4751 = vmatprep.subr.mxu0 0.0
  %4752 = vmatpush1.xpose.msra.mxu0 0.0
  %4753 = vmatprep.subr.mxu0 0.0
  %4754 = vmatpush1.xpose.msra.mxu0 0.0
  %4755 = vmatprep.subr.mxu0 0.0
  %4756 = vmatpush1.xpose.msra.mxu0 0.0
  %4757 = vmatprep.subr.mxu0 0.0
  %4758 = vmatpush1.xpose.msra.mxu0 0.0
  %4759 = vmatprep.subr.mxu0 0.0
  %4760 = vmatpush1.xpose.msra.mxu0 0.0
  %4761 = vmatprep.subr.mxu0 0.0
  %4762 = vmatpush1.xpose.msra.mxu0 0.0
  %4763 = vmatprep.subr.mxu0 0.0
  %4764 = vmatpush1.xpose.msra.mxu0 0.0
  %4765 = vmatprep.subr.mxu0 0.0
  %4766 = vmatpush1.xpose.msra.mxu0 0.0
  %4767 = vmatprep.subr.mxu0 0.0
  %4768 = vmatpush1.xpose.msra.mxu0 0.0
  %4769 = vmatprep.subr.mxu0 0.0
  %4770 = vmatpush1.xpose.msra.mxu0 0.0
  %4771 = vmatprep.subr.mxu0 0.0
  %4772 = vmatpush1.xpose.msra.mxu0 0.0
  %4773 = vmatprep.subr.mxu0 0.0
  %4774 = vmatpush1.xpose.msra.mxu0 0.0
  %4775 = vmatprep.subr.mxu0 0.0
  %4776 = vmatpush1.xpose.msra.mxu0 0.0
  %4777 = vmatprep.subr.mxu0 0.0
  %4778 = vmatpush1.xpose.msra.mxu0 0.0
  %4779 = vmatprep.subr.mxu0 0.0
  %4780 = vmatpush1.xpose.msra.mxu0 0.0
  %4781 = vmatprep.subr.mxu0 0.0
  %4782 = vmatpush1.xpose.msra.mxu0 0.0
  %4783 = vmatprep.subr.mxu0 0.0
  %4784 = vmatpush1.xpose.msra.mxu0 0.0
  %4785 = vmatprep.subr.mxu0 0.0
  %4786 = vmatpush1.xpose.msra.mxu0 0.0
  %4787 = vmatprep.subr.mxu0 0.0
  %4788 = vmatpush1.xpose.msra.mxu0 0.0
  %4789 = vmatprep.subr.mxu0 0.0
  %4790 = vmatpush1.xpose.msra.mxu0 0.0
  %4791 = vmatprep.subr.mxu0 0.0
  %4792 = vmatpush1.xpose.msra.mxu0 0.0
  %4793 = vmatprep.subr.mxu0 0.0
  %4794 = vmatpush1.xpose.msra.mxu0 0.0
  %4795 = vmatprep.subr.mxu0 0.0
  %4796 = vmatpush1.xpose.msra.mxu0 0.0
  %4797 = vmatprep.subr.mxu0 0.0
  %4798 = vmatpush1.xpose.msra.mxu0 0.0
  %4799 = vmatprep.subr.mxu0 0.0
  %4800 = vmatpush1.xpose.msra.mxu0 0.0
  %4801 = vmatprep.subr.mxu0 0.0
  %4802 = vmatpush1.xpose.msra.mxu0 0.0
  %4803 = vmatprep.subr.mxu0 0.0
  %4804 = vmatpush1.xpose.msra.mxu0 0.0
  %4805 = vmatprep.subr.mxu0 0.0
  %4806 = vmatpush1.xpose.msra.mxu0 0.0
  %4807 = vmatprep.subr.mxu0 0.0
  %4808 = vmatpush1.xpose.msra.mxu0 0.0
  %4809 = vmatprep.mubr.f32.mxu0 0.0
  %4810 = vmatmul.mubr.f32.gmra.mrb[0].mxu0 %v4741
  %v4811 = vpop.f32.mrb[0].mxu0
  %v4812 = vadd.f32 0.0, %v4811
  %v4813 = vpop.f32.mrb[0].mxu0
  %4814 = vdwg.mxu0
  %v4815 = vmul.f32 %v4734, 0.35355338
  %v4816 = vmul.f32 %v4812, 0.35355338
  %v4817 = vsel %vm405, %v4815, -inf
  %4818 = vmax.xlane.f32.xlu0 %v4817
  %v4819 = vpop.xlane.xlu0 %4818
  %v4820 = vsel %vm405, %v4816, -inf
  %4821 = vmax.xlane.f32.xlu0 %v4820
  %v4822 = vpop.xlane.xlu0 %4821
  %v4823 = vsub.f32 %v4815, %v4819
  %v4824 = vsub.f32 %v4816, %v4822
  %v4825 = vmul.f32 %v4823, 1.442695
  %v4826 = vpow.pop %v4825
  %v4827 = vmul.f32 %v4824, 1.442695
  %v4828 = vpow.pop %v4827
  %v4829 = vsel %vm405, %v4826, 0.0
  %4830 = vadd.xlane.f32.xlu0 %v4829
  %v4831 = vpop.xlane.xlu0 %4830
  %v4832 = vsel %vm405, %v4828, 0.0
  %4833 = vadd.xlane.f32.xlu0 %v4832
  %v4834 = vpop.xlane.xlu0 %4833
  %v4835 = vrcp.pop %v4831
  %v4836 = vrcp.pop %v4834
  %v4837 = vmul.f32 %v4826, %v4835
  %v4838 = vmul.f32 %v4828, %v4836
  %4839 = vrot.lane.b32.xlu0 %v3991, 48
  %v4840 = vpop.permute.xlu0 %4839
  %v4843 = vsel %vm405, %v4837, 0
  %4845 = vmatprep.subr.mxu0 0.0
  %4846 = vmatpush1.msra.mxu0 %v4840
  %4847 = vmatprep.subr.mxu0 0.0
  %4848 = vmatpush1.msra.mxu0 0.0
  %4849 = vmatprep.subr.mxu0 0.0
  %4850 = vmatpush1.msra.mxu0 0.0
  %4851 = vmatprep.subr.mxu0 0.0
  %4852 = vmatpush1.msra.mxu0 0.0
  %4853 = vmatprep.subr.mxu0 0.0
  %4854 = vmatpush1.msra.mxu0 0.0
  %4855 = vmatprep.subr.mxu0 0.0
  %4856 = vmatpush1.msra.mxu0 0.0
  %4857 = vmatprep.subr.mxu0 0.0
  %4858 = vmatpush1.msra.mxu0 0.0
  %4859 = vmatprep.subr.mxu0 0.0
  %4860 = vmatpush1.msra.mxu0 0.0
  %4861 = vmatprep.subr.mxu0 0.0
  %4862 = vmatpush1.msra.mxu0 0.0
  %4863 = vmatprep.subr.mxu0 0.0
  %4864 = vmatpush1.msra.mxu0 0.0
  %4865 = vmatprep.subr.mxu0 0.0
  %4866 = vmatpush1.msra.mxu0 0.0
  %4867 = vmatprep.subr.mxu0 0.0
  %4868 = vmatpush1.msra.mxu0 0.0
  %4869 = vmatprep.subr.mxu0 0.0
  %4870 = vmatpush1.msra.mxu0 0.0
  %4871 = vmatprep.subr.mxu0 0.0
  %4872 = vmatpush1.msra.mxu0 0.0
  %4873 = vmatprep.subr.mxu0 0.0
  %4874 = vmatpush1.msra.mxu0 0.0
  %4875 = vmatprep.subr.mxu0 0.0
  %4876 = vmatpush1.msra.mxu0 0.0
  %4877 = vmatprep.subr.mxu0 0.0
  %4878 = vmatpush1.msra.mxu0 0.0
  %4879 = vmatprep.subr.mxu0 0.0
  %4880 = vmatpush1.msra.mxu0 0.0
  %4881 = vmatprep.subr.mxu0 0.0
  %4882 = vmatpush1.msra.mxu0 0.0
  %4883 = vmatprep.subr.mxu0 0.0
  %4884 = vmatpush1.msra.mxu0 0.0
  %4885 = vmatprep.subr.mxu0 0.0
  %4886 = vmatpush1.msra.mxu0 0.0
  %4887 = vmatprep.subr.mxu0 0.0
  %4888 = vmatpush1.msra.mxu0 0.0
  %4889 = vmatprep.subr.mxu0 0.0
  %4890 = vmatpush1.msra.mxu0 0.0
  %4891 = vmatprep.subr.mxu0 0.0
  %4892 = vmatpush1.msra.mxu0 0.0
  %4893 = vmatprep.subr.mxu0 0.0
  %4894 = vmatpush1.msra.mxu0 0.0
  %4895 = vmatprep.subr.mxu0 0.0
  %4896 = vmatpush1.msra.mxu0 0.0
  %4897 = vmatprep.subr.mxu0 0.0
  %4898 = vmatpush1.msra.mxu0 0.0
  %4899 = vmatprep.subr.mxu0 0.0
  %4900 = vmatpush1.msra.mxu0 0.0
  %4901 = vmatprep.subr.mxu0 0.0
  %4902 = vmatpush1.msra.mxu0 0.0
  %4903 = vmatprep.subr.mxu0 0.0
  %4904 = vmatpush1.msra.mxu0 0.0
  %4905 = vmatprep.subr.mxu0 0.0
  %4906 = vmatpush1.msra.mxu0 0.0
  %4907 = vmatprep.subr.mxu0 0.0
  %4908 = vmatpush1.msra.mxu0 0.0
  %4909 = vmatprep.mubr.f32.mxu0 0.0
  %4910 = vmatmul.mubr.f32.gmra.mrb[0].mxu0 %v4843
  %v4911 = vpop.f32.mrb[0].mxu0
  %v4912 = vadd.f32 0.0, %v4911
  %v4913 = vpop.f32.mrb[0].mxu0
  %4914 = vdwg.mxu0
  %4915 = vrot.lane.b32.xlu0 %v3994, 48
  %v4916 = vpop.permute.xlu0 %4915
  %v4919 = vsel %vm405, %v4838, 0
  %4921 = vmatprep.subr.mxu0 0.0
  %4922 = vmatpush1.msra.mxu0 %v4916
  %4923 = vmatprep.subr.mxu0 0.0
  %4924 = vmatpush1.msra.mxu0 0.0
  %4925 = vmatprep.subr.mxu0 0.0
  %4926 = vmatpush1.msra.mxu0 0.0
  %4927 = vmatprep.subr.mxu0 0.0
  %4928 = vmatpush1.msra.mxu0 0.0
  %4929 = vmatprep.subr.mxu0 0.0
  %4930 = vmatpush1.msra.mxu0 0.0
  %4931 = vmatprep.subr.mxu0 0.0
  %4932 = vmatpush1.msra.mxu0 0.0
  %4933 = vmatprep.subr.mxu0 0.0
  %4934 = vmatpush1.msra.mxu0 0.0
  %4935 = vmatprep.subr.mxu0 0.0
  %4936 = vmatpush1.msra.mxu0 0.0
  %4937 = vmatprep.subr.mxu0 0.0
  %4938 = vmatpush1.msra.mxu0 0.0
  %4939 = vmatprep.subr.mxu0 0.0
  %4940 = vmatpush1.msra.mxu0 0.0
  %4941 = vmatprep.subr.mxu0 0.0
  %4942 = vmatpush1.msra.mxu0 0.0
  %4943 = vmatprep.subr.mxu0 0.0
  %4944 = vmatpush1.msra.mxu0 0.0
  %4945 = vmatprep.subr.mxu0 0.0
  %4946 = vmatpush1.msra.mxu0 0.0
  %4947 = vmatprep.subr.mxu0 0.0
  %4948 = vmatpush1.msra.mxu0 0.0
  %4949 = vmatprep.subr.mxu0 0.0
  %4950 = vmatpush1.msra.mxu0 0.0
  %4951 = vmatprep.subr.mxu0 0.0
  %4952 = vmatpush1.msra.mxu0 0.0
  %4953 = vmatprep.subr.mxu0 0.0
  %4954 = vmatpush1.msra.mxu0 0.0
  %4955 = vmatprep.subr.mxu0 0.0
  %4956 = vmatpush1.msra.mxu0 0.0
  %4957 = vmatprep.subr.mxu0 0.0
  %4958 = vmatpush1.msra.mxu0 0.0
  %4959 = vmatprep.subr.mxu0 0.0
  %4960 = vmatpush1.msra.mxu0 0.0
  %4961 = vmatprep.subr.mxu0 0.0
  %4962 = vmatpush1.msra.mxu0 0.0
  %4963 = vmatprep.subr.mxu0 0.0
  %4964 = vmatpush1.msra.mxu0 0.0
  %4965 = vmatprep.subr.mxu0 0.0
  %4966 = vmatpush1.msra.mxu0 0.0
  %4967 = vmatprep.subr.mxu0 0.0
  %4968 = vmatpush1.msra.mxu0 0.0
  %4969 = vmatprep.subr.mxu0 0.0
  %4970 = vmatpush1.msra.mxu0 0.0
  %4971 = vmatprep.subr.mxu0 0.0
  %4972 = vmatpush1.msra.mxu0 0.0
  %4973 = vmatprep.subr.mxu0 0.0
  %4974 = vmatpush1.msra.mxu0 0.0
  %4975 = vmatprep.subr.mxu0 0.0
  %4976 = vmatpush1.msra.mxu0 0.0
  %4977 = vmatprep.subr.mxu0 0.0
  %4978 = vmatpush1.msra.mxu0 0.0
  %4979 = vmatprep.subr.mxu0 0.0
  %4980 = vmatpush1.msra.mxu0 0.0
  %4981 = vmatprep.subr.mxu0 0.0
  %4982 = vmatpush1.msra.mxu0 0.0
  %4983 = vmatprep.subr.mxu0 0.0
  %4984 = vmatpush1.msra.mxu0 0.0
  %4985 = vmatprep.mubr.f32.mxu0 0.0
  %4986 = vmatmul.mubr.f32.gmra.mrb[0].mxu0 %v4919
  %v4987 = vpop.f32.mrb[0].mxu0
  %v4988 = vadd.f32 0.0, %v4987
  %v4989 = vpop.f32.mrb[0].mxu0
  %4990 = vdwg.mxu0
  %4991 = vrot.lane.b32.xlu0 %v3991, 104
  %v4992 = vpop.permute.xlu0 %4991
  %4993 = vrot.lane.b32.xlu0 %v3991, 72
  %v4994 = vpop.permute.xlu0 %4993
  %v4995 = vsel %vm405, %v4992, 0
  %v4997 = vsel %vm405, %v4994, 0
  %4999 = vmatprep.subr.mxu0 0.0
  %5000 = vmatpush1.xpose.msra.mxu0 %v4997
  %5001 = vmatprep.subr.mxu0 0.0
  %5002 = vmatpush1.xpose.msra.mxu0 0.0
  %5003 = vmatprep.subr.mxu0 0.0
  %5004 = vmatpush1.xpose.msra.mxu0 0.0
  %5005 = vmatprep.subr.mxu0 0.0
  %5006 = vmatpush1.xpose.msra.mxu0 0.0
  %5007 = vmatprep.subr.mxu0 0.0
  %5008 = vmatpush1.xpose.msra.mxu0 0.0
  %5009 = vmatprep.subr.mxu0 0.0
  %5010 = vmatpush1.xpose.msra.mxu0 0.0
  %5011 = vmatprep.subr.mxu0 0.0
  %5012 = vmatpush1.xpose.msra.mxu0 0.0
  %5013 = vmatprep.subr.mxu0 0.0
  %5014 = vmatpush1.xpose.msra.mxu0 0.0
  %5015 = vmatprep.subr.mxu0 0.0
  %5016 = vmatpush1.xpose.msra.mxu0 0.0
  %5017 = vmatprep.subr.mxu0 0.0
  %5018 = vmatpush1.xpose.msra.mxu0 0.0
  %5019 = vmatprep.subr.mxu0 0.0
  %5020 = vmatpush1.xpose.msra.mxu0 0.0
  %5021 = vmatprep.subr.mxu0 0.0
  %5022 = vmatpush1.xpose.msra.mxu0 0.0
  %5023 = vmatprep.subr.mxu0 0.0
  %5024 = vmatpush1.xpose.msra.mxu0 0.0
  %5025 = vmatprep.subr.mxu0 0.0
  %5026 = vmatpush1.xpose.msra.mxu0 0.0
  %5027 = vmatprep.subr.mxu0 0.0
  %5028 = vmatpush1.xpose.msra.mxu0 0.0
  %5029 = vmatprep.subr.mxu0 0.0
  %5030 = vmatpush1.xpose.msra.mxu0 0.0
  %5031 = vmatprep.subr.mxu0 0.0
  %5032 = vmatpush1.xpose.msra.mxu0 0.0
  %5033 = vmatprep.subr.mxu0 0.0
  %5034 = vmatpush1.xpose.msra.mxu0 0.0
  %5035 = vmatprep.subr.mxu0 0.0
  %5036 = vmatpush1.xpose.msra.mxu0 0.0
  %5037 = vmatprep.subr.mxu0 0.0
  %5038 = vmatpush1.xpose.msra.mxu0 0.0
  %5039 = vmatprep.subr.mxu0 0.0
  %5040 = vmatpush1.xpose.msra.mxu0 0.0
  %5041 = vmatprep.subr.mxu0 0.0
  %5042 = vmatpush1.xpose.msra.mxu0 0.0
  %5043 = vmatprep.subr.mxu0 0.0
  %5044 = vmatpush1.xpose.msra.mxu0 0.0
  %5045 = vmatprep.subr.mxu0 0.0
  %5046 = vmatpush1.xpose.msra.mxu0 0.0
  %5047 = vmatprep.subr.mxu0 0.0
  %5048 = vmatpush1.xpose.msra.mxu0 0.0
  %5049 = vmatprep.subr.mxu0 0.0
  %5050 = vmatpush1.xpose.msra.mxu0 0.0
  %5051 = vmatprep.subr.mxu0 0.0
  %5052 = vmatpush1.xpose.msra.mxu0 0.0
  %5053 = vmatprep.subr.mxu0 0.0
  %5054 = vmatpush1.xpose.msra.mxu0 0.0
  %5055 = vmatprep.subr.mxu0 0.0
  %5056 = vmatpush1.xpose.msra.mxu0 0.0
  %5057 = vmatprep.subr.mxu0 0.0
  %5058 = vmatpush1.xpose.msra.mxu0 0.0
  %5059 = vmatprep.subr.mxu0 0.0
  %5060 = vmatpush1.xpose.msra.mxu0 0.0
  %5061 = vmatprep.subr.mxu0 0.0
  %5062 = vmatpush1.xpose.msra.mxu0 0.0
  %5063 = vmatprep.mubr.f32.mxu0 0.0
  %5064 = vmatmul.mubr.f32.gmra.mrb[0].mxu0 %v4995
  %v5065 = vpop.f32.mrb[0].mxu0
  %v5066 = vadd.f32 0.0, %v5065
  %v5067 = vpop.f32.mrb[0].mxu0
  %5068 = vdwg.mxu0
  %5069 = vrot.lane.b32.xlu0 %v3994, 104
  %v5070 = vpop.permute.xlu0 %5069
  %5071 = vrot.lane.b32.xlu0 %v3994, 72
  %v5072 = vpop.permute.xlu0 %5071
  %v5073 = vsel %vm405, %v5070, 0
  %v5075 = vsel %vm405, %v5072, 0
  %5077 = vmatprep.subr.mxu0 0.0
  %5078 = vmatpush1.xpose.msra.mxu0 %v5075
  %5079 = vmatprep.subr.mxu0 0.0
  %5080 = vmatpush1.xpose.msra.mxu0 0.0
  %5081 = vmatprep.subr.mxu0 0.0
  %5082 = vmatpush1.xpose.msra.mxu0 0.0
  %5083 = vmatprep.subr.mxu0 0.0
  %5084 = vmatpush1.xpose.msra.mxu0 0.0
  %5085 = vmatprep.subr.mxu0 0.0
  %5086 = vmatpush1.xpose.msra.mxu0 0.0
  %5087 = vmatprep.subr.mxu0 0.0
  %5088 = vmatpush1.xpose.msra.mxu0 0.0
  %5089 = vmatprep.subr.mxu0 0.0
  %5090 = vmatpush1.xpose.msra.mxu0 0.0
  %5091 = vmatprep.subr.mxu0 0.0
  %5092 = vmatpush1.xpose.msra.mxu0 0.0
  %5093 = vmatprep.subr.mxu0 0.0
  %5094 = vmatpush1.xpose.msra.mxu0 0.0
  %5095 = vmatprep.subr.mxu0 0.0
  %5096 = vmatpush1.xpose.msra.mxu0 0.0
  %5097 = vmatprep.subr.mxu0 0.0
  %5098 = vmatpush1.xpose.msra.mxu0 0.0
  %5099 = vmatprep.subr.mxu0 0.0
  %5100 = vmatpush1.xpose.msra.mxu0 0.0
  %5101 = vmatprep.subr.mxu0 0.0
  %5102 = vmatpush1.xpose.msra.mxu0 0.0
  %5103 = vmatprep.subr.mxu0 0.0
  %5104 = vmatpush1.xpose.msra.mxu0 0.0
  %5105 = vmatprep.subr.mxu0 0.0
  %5106 = vmatpush1.xpose.msra.mxu0 0.0
  %5107 = vmatprep.subr.mxu0 0.0
  %5108 = vmatpush1.xpose.msra.mxu0 0.0
  %5109 = vmatprep.subr.mxu0 0.0
  %5110 = vmatpush1.xpose.msra.mxu0 0.0
  %5111 = vmatprep.subr.mxu0 0.0
  %5112 = vmatpush1.xpose.msra.mxu0 0.0
  %5113 = vmatprep.subr.mxu0 0.0
  %5114 = vmatpush1.xpose.msra.mxu0 0.0
  %5115 = vmatprep.subr.mxu0 0.0
  %5116 = vmatpush1.xpose.msra.mxu0 0.0
  %5117 = vmatprep.subr.mxu0 0.0
  %5118 = vmatpush1.xpose.msra.mxu0 0.0
  %5119 = vmatprep.subr.mxu0 0.0
  %5120 = vmatpush1.xpose.msra.mxu0 0.0
  %5121 = vmatprep.subr.mxu0 0.0
  %5122 = vmatpush1.xpose.msra.mxu0 0.0
  %5123 = vmatprep.subr.mxu0 0.0
  %5124 = vmatpush1.xpose.msra.mxu0 0.0
  %5125 = vmatprep.subr.mxu0 0.0
  %5126 = vmatpush1.xpose.msra.mxu0 0.0
  %5127 = vmatprep.subr.mxu0 0.0
  %5128 = vmatpush1.xpose.msra.mxu0 0.0
  %5129 = vmatprep.subr.mxu0 0.0
  %5130 = vmatpush1.xpose.msra.mxu0 0.0
  %5131 = vmatprep.subr.mxu0 0.0
  %5132 = vmatpush1.xpose.msra.mxu0 0.0
  %5133 = vmatprep.subr.mxu0 0.0
  %5134 = vmatpush1.xpose.msra.mxu0 0.0
  %5135 = vmatprep.subr.mxu0 0.0
  %5136 = vmatpush1.xpose.msra.mxu0 0.0
  %5137 = vmatprep.subr.mxu0 0.0
  %5138 = vmatpush1.xpose.msra.mxu0 0.0
  %5139 = vmatprep.subr.mxu0 0.0
  %5140 = vmatpush1.xpose.msra.mxu0 0.0
  %5141 = vmatprep.mubr.f32.mxu0 0.0
  %5142 = vmatmul.mubr.f32.gmra.mrb[0].mxu0 %v5073
  %v5143 = vpop.f32.mrb[0].mxu0
  %v5144 = vadd.f32 0.0, %v5143
  %v5145 = vpop.f32.mrb[0].mxu0
  %5146 = vdwg.mxu0
  %v5147 = vmul.f32 %v5066, 0.35355338
  %v5148 = vmul.f32 %v5144, 0.35355338
  %v5149 = vsel %vm405, %v5147, -inf
  %5150 = vmax.xlane.f32.xlu0 %v5149
  %v5151 = vpop.xlane.xlu0 %5150
  %v5152 = vsel %vm405, %v5148, -inf
  %5153 = vmax.xlane.f32.xlu0 %v5152
  %v5154 = vpop.xlane.xlu0 %5153
  %v5155 = vsub.f32 %v5147, %v5151
  %v5156 = vsub.f32 %v5148, %v5154
  %v5157 = vmul.f32 %v5155, 1.442695
  %v5158 = vpow.pop %v5157
  %v5159 = vmul.f32 %v5156, 1.442695
  %v5160 = vpow.pop %v5159
  %v5161 = vsel %vm405, %v5158, 0.0
  %5162 = vadd.xlane.f32.xlu0 %v5161
  %v5163 = vpop.xlane.xlu0 %5162
  %v5164 = vsel %vm405, %v5160, 0.0
  %5165 = vadd.xlane.f32.xlu0 %v5164
  %v5166 = vpop.xlane.xlu0 %5165
  %v5167 = vrcp.pop %v5163
  %v5168 = vrcp.pop %v5166
  %v5169 = vmul.f32 %v5158, %v5167
  %v5170 = vmul.f32 %v5160, %v5168
  %5171 = vrot.lane.b32.xlu0 %v3991, 40
  %v5172 = vpop.permute.xlu0 %5171
  %v5175 = vsel %vm405, %v5169, 0
  %5177 = vmatprep.subr.mxu0 0.0
  %5178 = vmatpush1.msra.mxu0 %v5172
  %5179 = vmatprep.subr.mxu0 0.0
  %5180 = vmatpush1.msra.mxu0 0.0
  %5181 = vmatprep.subr.mxu0 0.0
  %5182 = vmatpush1.msra.mxu0 0.0
  %5183 = vmatprep.subr.mxu0 0.0
  %5184 = vmatpush1.msra.mxu0 0.0
  %5185 = vmatprep.subr.mxu0 0.0
  %5186 = vmatpush1.msra.mxu0 0.0
  %5187 = vmatprep.subr.mxu0 0.0
  %5188 = vmatpush1.msra.mxu0 0.0
  %5189 = vmatprep.subr.mxu0 0.0
  %5190 = vmatpush1.msra.mxu0 0.0
  %5191 = vmatprep.subr.mxu0 0.0
  %5192 = vmatpush1.msra.mxu0 0.0
  %5193 = vmatprep.subr.mxu0 0.0
  %5194 = vmatpush1.msra.mxu0 0.0
  %5195 = vmatprep.subr.mxu0 0.0
  %5196 = vmatpush1.msra.mxu0 0.0
  %5197 = vmatprep.subr.mxu0 0.0
  %5198 = vmatpush1.msra.mxu0 0.0
  %5199 = vmatprep.subr.mxu0 0.0
  %5200 = vmatpush1.msra.mxu0 0.0
  %5201 = vmatprep.subr.mxu0 0.0
  %5202 = vmatpush1.msra.mxu0 0.0
  %5203 = vmatprep.subr.mxu0 0.0
  %5204 = vmatpush1.msra.mxu0 0.0
  %5205 = vmatprep.subr.mxu0 0.0
  %5206 = vmatpush1.msra.mxu0 0.0
  %5207 = vmatprep.subr.mxu0 0.0
  %5208 = vmatpush1.msra.mxu0 0.0
  %5209 = vmatprep.subr.mxu0 0.0
  %5210 = vmatpush1.msra.mxu0 0.0
  %5211 = vmatprep.subr.mxu0 0.0
  %5212 = vmatpush1.msra.mxu0 0.0
  %5213 = vmatprep.subr.mxu0 0.0
  %5214 = vmatpush1.msra.mxu0 0.0
  %5215 = vmatprep.subr.mxu0 0.0
  %5216 = vmatpush1.msra.mxu0 0.0
  %5217 = vmatprep.subr.mxu0 0.0
  %5218 = vmatpush1.msra.mxu0 0.0
  %5219 = vmatprep.subr.mxu0 0.0
  %5220 = vmatpush1.msra.mxu0 0.0
  %5221 = vmatprep.subr.mxu0 0.0
  %5222 = vmatpush1.msra.mxu0 0.0
  %5223 = vmatprep.subr.mxu0 0.0
  %5224 = vmatpush1.msra.mxu0 0.0
  %5225 = vmatprep.subr.mxu0 0.0
  %5226 = vmatpush1.msra.mxu0 0.0
  %5227 = vmatprep.subr.mxu0 0.0
  %5228 = vmatpush1.msra.mxu0 0.0
  %5229 = vmatprep.subr.mxu0 0.0
  %5230 = vmatpush1.msra.mxu0 0.0
  %5231 = vmatprep.subr.mxu0 0.0
  %5232 = vmatpush1.msra.mxu0 0.0
  %5233 = vmatprep.subr.mxu0 0.0
  %5234 = vmatpush1.msra.mxu0 0.0
  %5235 = vmatprep.subr.mxu0 0.0
  %5236 = vmatpush1.msra.mxu0 0.0
  %5237 = vmatprep.subr.mxu0 0.0
  %5238 = vmatpush1.msra.mxu0 0.0
  %5239 = vmatprep.subr.mxu0 0.0
  %5240 = vmatpush1.msra.mxu0 0.0
  %5241 = vmatprep.mubr.f32.mxu0 0.0
  %5242 = vmatmul.mubr.f32.gmra.mrb[0].mxu0 %v5175
  %v5243 = vpop.f32.mrb[0].mxu0
  %v5244 = vadd.f32 0.0, %v5243
  %v5245 = vpop.f32.mrb[0].mxu0
  %5246 = vdwg.mxu0
  %5247 = vrot.lane.b32.xlu0 %v3994, 40
  %v5248 = vpop.permute.xlu0 %5247
  %v5251 = vsel %vm405, %v5170, 0
  %5253 = vmatprep.subr.mxu0 0.0
  %5254 = vmatpush1.msra.mxu0 %v5248
  %5255 = vmatprep.subr.mxu0 0.0
  %5256 = vmatpush1.msra.mxu0 0.0
  %5257 = vmatprep.subr.mxu0 0.0
  %5258 = vmatpush1.msra.mxu0 0.0
  %5259 = vmatprep.subr.mxu0 0.0
  %5260 = vmatpush1.msra.mxu0 0.0
  %5261 = vmatprep.subr.mxu0 0.0
  %5262 = vmatpush1.msra.mxu0 0.0
  %5263 = vmatprep.subr.mxu0 0.0
  %5264 = vmatpush1.msra.mxu0 0.0
  %5265 = vmatprep.subr.mxu0 0.0
  %5266 = vmatpush1.msra.mxu0 0.0
  %5267 = vmatprep.subr.mxu0 0.0
  %5268 = vmatpush1.msra.mxu0 0.0
  %5269 = vmatprep.subr.mxu0 0.0
  %5270 = vmatpush1.msra.mxu0 0.0
  %5271 = vmatprep.subr.mxu0 0.0
  %5272 = vmatpush1.msra.mxu0 0.0
  %5273 = vmatprep.subr.mxu0 0.0
  %5274 = vmatpush1.msra.mxu0 0.0
  %5275 = vmatprep.subr.mxu0 0.0
  %5276 = vmatpush1.msra.mxu0 0.0
  %5277 = vmatprep.subr.mxu0 0.0
  %5278 = vmatpush1.msra.mxu0 0.0
  %5279 = vmatprep.subr.mxu0 0.0
  %5280 = vmatpush1.msra.mxu0 0.0
  %5281 = vmatprep.subr.mxu0 0.0
  %5282 = vmatpush1.msra.mxu0 0.0
  %5283 = vmatprep.subr.mxu0 0.0
  %5284 = vmatpush1.msra.mxu0 0.0
  %5285 = vmatprep.subr.mxu0 0.0
  %5286 = vmatpush1.msra.mxu0 0.0
  %5287 = vmatprep.subr.mxu0 0.0
  %5288 = vmatpush1.msra.mxu0 0.0
  %5289 = vmatprep.subr.mxu0 0.0
  %5290 = vmatpush1.msra.mxu0 0.0
  %5291 = vmatprep.subr.mxu0 0.0
  %5292 = vmatpush1.msra.mxu0 0.0
  %5293 = vmatprep.subr.mxu0 0.0
  %5294 = vmatpush1.msra.mxu0 0.0
  %5295 = vmatprep.subr.mxu0 0.0
  %5296 = vmatpush1.msra.mxu0 0.0
  %5297 = vmatprep.subr.mxu0 0.0
  %5298 = vmatpush1.msra.mxu0 0.0
  %5299 = vmatprep.subr.mxu0 0.0
  %5300 = vmatpush1.msra.mxu0 0.0
  %5301 = vmatprep.subr.mxu0 0.0
  %5302 = vmatpush1.msra.mxu0 0.0
  %5303 = vmatprep.subr.mxu0 0.0
  %5304 = vmatpush1.msra.mxu0 0.0
  %5305 = vmatprep.subr.mxu0 0.0
  %5306 = vmatpush1.msra.mxu0 0.0
  %5307 = vmatprep.subr.mxu0 0.0
  %5308 = vmatpush1.msra.mxu0 0.0
  %5309 = vmatprep.subr.mxu0 0.0
  %5310 = vmatpush1.msra.mxu0 0.0
  %5311 = vmatprep.subr.mxu0 0.0
  %5312 = vmatpush1.msra.mxu0 0.0
  %5313 = vmatprep.subr.mxu0 0.0
  %5314 = vmatpush1.msra.mxu0 0.0
  %5315 = vmatprep.subr.mxu0 0.0
  %5316 = vmatpush1.msra.mxu0 0.0
  %5317 = vmatprep.mubr.f32.mxu0 0.0
  %5318 = vmatmul.mubr.f32.gmra.mrb[0].mxu0 %v5251
  %v5319 = vpop.f32.mrb[0].mxu0
  %v5320 = vadd.f32 0.0, %v5319
  %v5321 = vpop.f32.mrb[0].mxu0
  %5322 = vdwg.mxu0
  %5325 = vrot.lane.b32.xlu0 %v4580, 8
  %v5326 = vpop.permute.xlu0 %5325
  %5327 = vrot.lane.b32.xlu0 %v4656, 8
  %v5328 = vpop.permute.xlu0 %5327
  %5333 = vrot.lane.b32.xlu0 %v4912, 16
  %v5334 = vpop.permute.xlu0 %5333
  %5335 = vrot.lane.b32.xlu0 %v4988, 16
  %v5336 = vpop.permute.xlu0 %5335
  %5341 = vrot.lane.b32.xlu0 %v5244, 24
  %v5342 = vpop.permute.xlu0 %5341
  %5343 = vrot.lane.b32.xlu0 %v5320, 24
  %v5344 = vpop.permute.xlu0 %5343
  %v5347 = vsel %vm405, %v4248, %v5326
  %v5348 = vsel %vm405, %v4324, %v5328
  %v5349 = vsel %vm1755, %v5347, %v5334
  %v5350 = vsel %vm1755, %v5348, %v5336
  %v5351 = vsel %vm1758, %v5349, %v5342
  %v5352 = vsel %vm1758, %v5350, %v5344
  %v5353 = vpack.c.bf16 %v5352, %v5351
  %v5354 = vlaneseq
  %v5355 = vshrl.u32 %v5354, 7
  %v5356 = vsub.s32 1, %v5355
  %v5357 = vrot.slane %v3920, %v5356
  %5358 = vrot.lane.b32.xlu0 %v3949, 32
  %v5359 = vpop.permute.xlu0 %5358
  %5360 = vrot.lane.b32.xlu0 %v3950, 32
  %v5361 = vpop.permute.xlu0 %5360
  %v5365 = vsel %vm357, %v5353, 0
  %5367 = vmatprep.subr.bf16.mxu0 0
  %5368 = vmatpush1.bf16.msra.mxu0 %v5359
  %5369 = vmatprep.subr.bf16.mxu0 0
  %5370 = vmatpush1.bf16.msra.mxu0 %v5361
  %5371 = vmatprep.subr.bf16.mxu0 0
  %5372 = vmatpush1.bf16.msra.mxu0 0
  %5373 = vmatprep.subr.bf16.mxu0 0
  %5374 = vmatpush1.bf16.msra.mxu0 0
  %5375 = vmatprep.subr.bf16.mxu0 0
  %5376 = vmatpush1.bf16.msra.mxu0 0
  %5377 = vmatprep.subr.bf16.mxu0 0
  %5378 = vmatpush1.bf16.msra.mxu0 0
  %5379 = vmatprep.subr.bf16.mxu0 0
  %5380 = vmatpush1.bf16.msra.mxu0 0
  %5381 = vmatprep.subr.bf16.mxu0 0
  %5382 = vmatpush1.bf16.msra.mxu0 0
  %5383 = vmatprep.subr.bf16.mxu0 0
  %5384 = vmatpush1.bf16.msra.mxu0 0
  %5385 = vmatprep.subr.bf16.mxu0 0
  %5386 = vmatpush1.bf16.msra.mxu0 0
  %5387 = vmatprep.subr.bf16.mxu0 0
  %5388 = vmatpush1.bf16.msra.mxu0 0
  %5389 = vmatprep.subr.bf16.mxu0 0
  %5390 = vmatpush1.bf16.msra.mxu0 0
  %5391 = vmatprep.subr.bf16.mxu0 0
  %5392 = vmatpush1.bf16.msra.mxu0 0
  %5393 = vmatprep.subr.bf16.mxu0 0
  %5394 = vmatpush1.bf16.msra.mxu0 0
  %5395 = vmatprep.subr.bf16.mxu0 0
  %5396 = vmatpush1.bf16.msra.mxu0 0
  %5397 = vmatprep.subr.bf16.mxu0 0
  %5398 = vmatpush1.bf16.msra.mxu0 0
  %5399 = vmatprep.mubr.bf16.mxu0 0
  %5400 = vmatmul.mubr.bf16.gmra.mrb[0].mxu0 %v5365
  %v5401 = vpop.f32.mrb[0].mxu0
  %v5402 = vadd.f32 %v5357, %v5401
  %v5403 = vpop.f32.mrb[0].mxu0
  %v5404 = vpop.f32.mrb[0].mxu0
  %v5405 = vadd.f32 %v5357, %v5404
  %v5406 = vpop.f32.mrb[0].mxu0
  %5407 = vdwg.mxu0
  %v5408 = vadd.f32 %v3623, %v5402
  %v5409 = vadd.f32 %v3624, %v5405
  %v5410 = vsel %vm357, %v5408, 0.0
  %5411 = vadd.xlane.f32.xlu0 %v5410
  %v5412 = vpop.xlane.xlu0 %5411
  %v5413 = vsel %vm357, %v5409, 0.0
  %5414 = vadd.xlane.f32.xlu0 %v5413
  %v5415 = vpop.xlane.xlu0 %5414
  %v5416 = vmul.f32 %v5412, %v1824
  %v5417 = vmul.f32 %v5415, %v1824
  %v5418 = vmul.f32 %v5408, %v5408
  %v5419 = vmul.f32 %v5409, %v5409
  %v5420 = vsel %vm357, %v5418, 0.0
  %5421 = vadd.xlane.f32.xlu0 %v5420
  %v5422 = vpop.xlane.xlu0 %5421
  %v5423 = vsel %vm357, %v5419, 0.0
  %5424 = vadd.xlane.f32.xlu0 %v5423
  %v5425 = vpop.xlane.xlu0 %5424
  %v5426 = vmul.f32 %v5422, %v1824
  %v5427 = vmul.f32 %v5425, %v1824
  %v5428 = vmul.f32 %v5416, %v5416
  %v5429 = vmul.f32 %v5417, %v5417
  %v5430 = vsub.f32 %v5426, %v5428
  %v5431 = vsub.f32 %v5427, %v5429
  %v5432 = vsub.f32 %v5408, %v5416
  %v5433 = vsub.f32 %v5409, %v5417
  %v5434 = vadd.f32 %v5430, 1e-05
  %v5435 = vadd.f32 %v5431, 1e-05
  %v5436 = vrsqrt.pop %v5434
  %v5437 = vrsqrt.pop %v5435
  %v5438 = vmul.f32 %v5432, %v5436
  %v5439 = vmul.f32 %v5433, %v5437
  %v5440 = vlaneseq
  %v5441 = vshrl.u32 %v5440, 7
  %v5442 = vsub.s32 2, %v5441
  %v5443 = vrot.slane %v3920, %v5442
  %v5444 = vmul.f32 %v5438, %v5443
  %v5445 = vmul.f32 %v5439, %v5443
  %v5446 = vlaneseq
  %v5447 = vshrl.u32 %v5446, 7
  %v5448 = vsub.s32 3, %v5447
  %v5449 = vrot.slane %v3920, %v5448
  %v5450 = vadd.f32 %v5444, %v5449
  %v5451 = vadd.f32 %v5445, %v5449
  %v5452 = vpack.c.bf16 %v5451, %v5450
  %v5453 = vlaneseq
  %v5454 = vshrl.u32 %v5453, 7
  %v5455 = vsub.s32 4, %v5454
  %v5456 = vrot.slane %v3920, %v5455
  %v5457 = vlaneseq
  %v5458 = vshrl.u32 %v5457, 7
  %v5459 = vsub.s32 4, %v5458
  %v5460 = vrot.slane %v3921, %v5459
  %v5461 = vlaneseq
  %v5462 = vshrl.u32 %v5461, 7
  %v5463 = vsub.s32 4, %v5462
  %v5464 = vrot.slane %v3922, %v5463
  %v5465 = vlaneseq
  %v5466 = vshrl.u32 %v5465, 7
  %v5467 = vsub.s32 4, %v5466
  %v5468 = vrot.slane %v3923, %v5467
  %v5469 = vlaneseq
  %v5470 = vshrl.u32 %v5469, 7
  %v5471 = vsub.s32 4, %v5470
  %v5472 = vrot.slane %v3924, %v5471
  %v5473 = vlaneseq
  %v5474 = vshrl.u32 %v5473, 7
  %v5475 = vsub.s32 4, %v5474
  %v5476 = vrot.slane %v3925, %v5475
  %v5477 = vlaneseq
  %v5478 = vshrl.u32 %v5477, 7
  %v5479 = vsub.s32 4, %v5478
  %v5480 = vrot.slane %v3926, %v5479
  %v5481 = vlaneseq
  %v5482 = vshrl.u32 %v5481, 7
  %v5483 = vsub.s32 4, %v5482
  %v5484 = vrot.slane %v3927, %v5483
  %v5485 = vlaneseq
  %v5486 = vshrl.u32 %v5485, 7
  %v5487 = vsub.s32 4, %v5486
  %v5488 = vrot.slane %v3928, %v5487
  %v5489 = vlaneseq
  %v5490 = vshrl.u32 %v5489, 7
  %v5491 = vsub.s32 4, %v5490
  %v5492 = vrot.slane %v3929, %v5491
  %v5493 = vlaneseq
  %v5494 = vshrl.u32 %v5493, 7
  %v5495 = vsub.s32 4, %v5494
  %v5496 = vrot.slane %v3930, %v5495
  %v5497 = vlaneseq
  %v5498 = vshrl.u32 %v5497, 7
  %v5499 = vsub.s32 4, %v5498
  %v5500 = vrot.slane %v3931, %v5499
  %v5501 = vlaneseq
  %v5502 = vshrl.u32 %v5501, 7
  %v5503 = vsub.s32 4, %v5502
  %v5504 = vrot.slane %v3932, %v5503
  %v5505 = vlaneseq
  %v5506 = vshrl.u32 %v5505, 7
  %v5507 = vsub.s32 4, %v5506
  %v5508 = vrot.slane %v3933, %v5507
  %v5509 = vlaneseq
  %v5510 = vshrl.u32 %v5509, 7
  %v5511 = vsub.s32 4, %v5510
  %v5512 = vrot.slane %v3934, %v5511
  %v5513 = vlaneseq
  %v5514 = vshrl.u32 %v5513, 7
  %v5515 = vsub.s32 4, %v5514
  %v5516 = vrot.slane %v3935, %v5515
  %v5549 = vunpack.c.h.b16 %v3626
  %v5550 = vunpack.c.l.b16 %v3627
  %v5551 = vunpack.c.h.b16 %v3627
  %v5552 = vunpack.c.l.b16 %v3628
  %v5553 = vunpack.c.h.b16 %v3628
  %v5554 = vunpack.c.l.b16 %v3629
  %v5555 = vunpack.c.h.b16 %v3629
  %v5556 = vunpack.c.l.b16 %v3630
  %v5557 = vunpack.c.h.b16 %v3630
  %v5558 = vunpack.c.l.b16 %v3631
  %v5559 = vunpack.c.h.b16 %v3631
  %v5560 = vunpack.c.l.b16 %v3632
  %v5561 = vunpack.c.h.b16 %v3632
  %v5562 = vunpack.c.l.b16 %v3633
  %v5563 = vunpack.c.h.b16 %v3633
  %v5564 = vunpack.c.l.b16 %v3634
  %v5565 = vunpack.c.h.b16 %v3635
  %v5566 = vunpack.c.l.b16 %v3636
  %v5567 = vunpack.c.h.b16 %v3636
  %v5568 = vunpack.c.l.b16 %v3637
  %v5569 = vunpack.c.h.b16 %v3637
  %v5570 = vunpack.c.l.b16 %v3638
  %v5571 = vunpack.c.h.b16 %v3638
  %v5572 = vunpack.c.l.b16 %v3639
  %v5573 = vunpack.c.h.b16 %v3639
  %v5574 = vunpack.c.l.b16 %v3640
  %v5575 = vunpack.c.h.b16 %v3640
  %v5576 = vunpack.c.l.b16 %v3641
  %v5577 = vunpack.c.h.b16 %v3641
  %v5578 = vunpack.c.l.b16 %v3642
  %v5579 = vunpack.c.h.b16 %v3642
  %v5580 = vunpack.c.l.b16 %v3643
  %v5581 = vunpack.c.h.b16 %v3644
  %v5582 = vunpack.c.l.b16 %v3645
  %v5583 = vunpack.c.h.b16 %v3645
  %v5584 = vunpack.c.l.b16 %v3646
  %v5585 = vunpack.c.h.b16 %v3646
  %v5586 = vunpack.c.l.b16 %v3647
  %v5587 = vunpack.c.h.b16 %v3647
  %v5588 = vunpack.c.l.b16 %v3648
  %v5589 = vunpack.c.h.b16 %v3648
  %v5590 = vunpack.c.l.b16 %v3649
  %v5591 = vunpack.c.h.b16 %v3649
  %v5592 = vunpack.c.l.b16 %v3650
  %v5593 = vunpack.c.h.b16 %v3650
  %v5594 = vunpack.c.l.b16 %v3651
  %v5595 = vunpack.c.h.b16 %v3651
  %v5596 = vunpack.c.l.b16 %v3652
  %v5597 = vunpack.c.h.b16 %v3653
  %v5598 = vunpack.c.l.b16 %v3654
  %v5599 = vunpack.c.h.b16 %v3654
  %v5600 = vunpack.c.l.b16 %v3655
  %v5601 = vunpack.c.h.b16 %v3655
  %v5602 = vunpack.c.l.b16 %v3656
  %v5603 = vunpack.c.h.b16 %v3656
  %v5604 = vunpack.c.l.b16 %v3657
  %v5605 = vunpack.c.h.b16 %v3657
  %v5606 = vunpack.c.l.b16 %v3658
  %v5607 = vunpack.c.h.b16 %v3658
  %v5608 = vunpack.c.l.b16 %v3659
  %v5609 = vunpack.c.h.b16 %v3659
  %v5610 = vunpack.c.l.b16 %v3660
  %v5611 = vunpack.c.h.b16 %v3660
  %v5612 = vunpack.c.l.b16 %v3661
  %v5613 = vpack.c.b16 %v5565, %v5549
  %v5614 = vpack.c.b16 %v5566, %v5550
  %v5615 = vpack.c.b16 %v5567, %v5551
  %v5616 = vpack.c.b16 %v5568, %v5552
  %v5617 = vpack.c.b16 %v5569, %v5553
  %v5618 = vpack.c.b16 %v5570, %v5554
  %v5619 = vpack.c.b16 %v5571, %v5555
  %v5620 = vpack.c.b16 %v5572, %v5556
  %v5621 = vpack.c.b16 %v5573, %v5557
  %v5622 = vpack.c.b16 %v5574, %v5558
  %v5623 = vpack.c.b16 %v5575, %v5559
  %v5624 = vpack.c.b16 %v5576, %v5560
  %v5625 = vpack.c.b16 %v5577, %v5561
  %v5626 = vpack.c.b16 %v5578, %v5562
  %v5627 = vpack.c.b16 %v5579, %v5563
  %v5628 = vpack.c.b16 %v5580, %v5564
  %v5629 = vpack.c.b16 %v5597, %v5581
  %v5630 = vpack.c.b16 %v5598, %v5582
  %v5631 = vpack.c.b16 %v5599, %v5583
  %v5632 = vpack.c.b16 %v5600, %v5584
  %v5633 = vpack.c.b16 %v5601, %v5585
  %v5634 = vpack.c.b16 %v5602, %v5586
  %v5635 = vpack.c.b16 %v5603, %v5587
  %v5636 = vpack.c.b16 %v5604, %v5588
  %v5637 = vpack.c.b16 %v5605, %v5589
  %v5638 = vpack.c.b16 %v5606, %v5590
  %v5639 = vpack.c.b16 %v5607, %v5591
  %v5640 = vpack.c.b16 %v5608, %v5592
  %v5641 = vpack.c.b16 %v5609, %v5593
  %v5642 = vpack.c.b16 %v5610, %v5594
  %v5643 = vpack.c.b16 %v5611, %v5595
  %v5644 = vpack.c.b16 %v5612, %v5596
  %v5678 = vsel %vm357, %v5452, 0
  %5680 = vmatprep.subr.bf16.mxu0 %v5614
  %5681 = vmatpush1.bf16.msra.mxu0 %v5613
  %5682 = vmatprep.subr.bf16.mxu0 %v5630
  %5683 = vmatpush1.bf16.msra.mxu0 %v5629
  %5684 = vmatprep.subr.bf16.mxu0 0
  %5685 = vmatpush1.bf16.msra.mxu0 0
  %5686 = vmatprep.subr.bf16.mxu0 0
  %5687 = vmatpush1.bf16.msra.mxu0 0
  %5688 = vmatprep.subr.bf16.mxu0 0
  %5689 = vmatpush1.bf16.msra.mxu0 0
  %5690 = vmatprep.subr.bf16.mxu0 0
  %5691 = vmatpush1.bf16.msra.mxu0 0
  %5692 = vmatprep.subr.bf16.mxu0 0
  %5693 = vmatpush1.bf16.msra.mxu0 0
  %5694 = vmatprep.subr.bf16.mxu0 0
  %5695 = vmatpush1.bf16.msra.mxu0 0
  %5696 = vmatprep.subr.bf16.mxu0 0
  %5697 = vmatpush1.bf16.msra.mxu0 0
  %5698 = vmatprep.subr.bf16.mxu0 0
  %5699 = vmatpush1.bf16.msra.mxu0 0
  %5700 = vmatprep.subr.bf16.mxu0 0
  %5701 = vmatpush1.bf16.msra.mxu0 0
  %5702 = vmatprep.subr.bf16.mxu0 0
  %5703 = vmatpush1.bf16.msra.mxu0 0
  %5704 = vmatprep.subr.bf16.mxu0 0
  %5705 = vmatpush1.bf16.msra.mxu0 0
  %5706 = vmatprep.subr.bf16.mxu0 0
  %5707 = vmatpush1.bf16.msra.mxu0 0
  %5708 = vmatprep.subr.bf16.mxu0 0
  %5709 = vmatpush1.bf16.msra.mxu0 0
  %5710 = vmatprep.subr.bf16.mxu0 0
  %5711 = vmatpush1.bf16.msra.mxu0 0
  %5712 = vmatprep.mubr.bf16.mxu0 0
  %5713 = vmatmul.mubr.bf16.gmra.mrb[0].mxu0 %v5678
  %v5714 = vpop.f32.mrb[0].mxu0
  %v5715 = vadd.f32 %v5456, %v5714
  %v5716 = vpop.f32.mrb[0].mxu0
  %v5717 = vadd.f32 %v5460, %v5716
  %v5718 = vpop.f32.mrb[0].mxu0
  %v5719 = vadd.f32 %v5456, %v5718
  %v5720 = vpop.f32.mrb[0].mxu0
  %v5721 = vadd.f32 %v5460, %v5720
  %5722 = vdwg.mxu0
  %5723 = vmatprep.subr.bf16.mxu0 %v5616
  %5724 = vmatpush1.bf16.msra.mxu0 %v5615
  %5725 = vmatprep.subr.bf16.mxu0 %v5632
  %5726 = vmatpush1.bf16.msra.mxu0 %v5631
  %5727 = vmatprep.subr.bf16.mxu0 0
  %5728 = vmatpush1.bf16.msra.mxu0 0
  %5729 = vmatprep.subr.bf16.mxu0 0
  %5730 = vmatpush1.bf16.msra.mxu0 0
  %5731 = vmatprep.subr.bf16.mxu0 0
  %5732 = vmatpush1.bf16.msra.mxu0 0
  %5733 = vmatprep.subr.bf16.mxu0 0
  %5734 = vmatpush1.bf16.msra.mxu0 0
  %5735 = vmatprep.subr.bf16.mxu0 0
  %5736 = vmatpush1.bf16.msra.mxu0 0
  %5737 = vmatprep.subr.bf16.mxu0 0
  %5738 = vmatpush1.bf16.msra.mxu0 0
  %5739 = vmatprep.subr.bf16.mxu0 0
  %5740 = vmatpush1.bf16.msra.mxu0 0
  %5741 = vmatprep.subr.bf16.mxu0 0
  %5742 = vmatpush1.bf16.msra.mxu0 0
  %5743 = vmatprep.subr.bf16.mxu0 0
  %5744 = vmatpush1.bf16.msra.mxu0 0
  %5745 = vmatprep.subr.bf16.mxu0 0
  %5746 = vmatpush1.bf16.msra.mxu0 0
  %5747 = vmatprep.subr.bf16.mxu0 0
  %5748 = vmatpush1.bf16.msra.mxu0 0
  %5749 = vmatprep.subr.bf16.mxu0 0
  %5750 = vmatpush1.bf16.msra.mxu0 0
  %5751 = vmatprep.subr.bf16.mxu0 0
  %5752 = vmatpush1.bf16.msra.mxu0 0
  %5753 = vmatprep.subr.bf16.mxu0 0
  %5754 = vmatpush1.bf16.msra.mxu0 0
  %5755 = vmatprep.mubr.bf16.mxu0 0
  %5756 = vmatmul.mubr.bf16.gmra.mrb[0].mxu0 %v5678
  %v5757 = vpop.f32.mrb[0].mxu0
  %v5758 = vadd.f32 %v5464, %v5757
  %v5759 = vpop.f32.mrb[0].mxu0
  %v5760 = vadd.f32 %v5468, %v5759
  %v5761 = vpop.f32.mrb[0].mxu0
  %v5762 = vadd.f32 %v5464, %v5761
  %v5763 = vpop.f32.mrb[0].mxu0
  %v5764 = vadd.f32 %v5468, %v5763
  %5765 = vdwg.mxu0
  %5766 = vmatprep.subr.bf16.mxu0 %v5618
  %5767 = vmatpush1.bf16.msra.mxu0 %v5617
  %5768 = vmatprep.subr.bf16.mxu0 %v5634
  %5769 = vmatpush1.bf16.msra.mxu0 %v5633
  %5770 = vmatprep.subr.bf16.mxu0 0
  %5771 = vmatpush1.bf16.msra.mxu0 0
  %5772 = vmatprep.subr.bf16.mxu0 0
  %5773 = vmatpush1.bf16.msra.mxu0 0
  %5774 = vmatprep.subr.bf16.mxu0 0
  %5775 = vmatpush1.bf16.msra.mxu0 0
  %5776 = vmatprep.subr.bf16.mxu0 0
  %5777 = vmatpush1.bf16.msra.mxu0 0
  %5778 = vmatprep.subr.bf16.mxu0 0
  %5779 = vmatpush1.bf16.msra.mxu0 0
  %5780 = vmatprep.subr.bf16.mxu0 0
  %5781 = vmatpush1.bf16.msra.mxu0 0
  %5782 = vmatprep.subr.bf16.mxu0 0
  %5783 = vmatpush1.bf16.msra.mxu0 0
  %5784 = vmatprep.subr.bf16.mxu0 0
  %5785 = vmatpush1.bf16.msra.mxu0 0
  %5786 = vmatprep.subr.bf16.mxu0 0
  %5787 = vmatpush1.bf16.msra.mxu0 0
  %5788 = vmatprep.subr.bf16.mxu0 0
  %5789 = vmatpush1.bf16.msra.mxu0 0
  %5790 = vmatprep.subr.bf16.mxu0 0
  %5791 = vmatpush1.bf16.msra.mxu0 0
  %5792 = vmatprep.subr.bf16.mxu0 0
  %5793 = vmatpush1.bf16.msra.mxu0 0
  %5794 = vmatprep.subr.bf16.mxu0 0
  %5795 = vmatpush1.bf16.msra.mxu0 0
  %5796 = vmatprep.subr.bf16.mxu0 0
  %5797 = vmatpush1.bf16.msra.mxu0 0
  %5798 = vmatprep.mubr.bf16.mxu0 0
  %5799 = vmatmul.mubr.bf16.gmra.mrb[0].mxu0 %v5678
  %v5800 = vpop.f32.mrb[0].mxu0
  %v5801 = vadd.f32 %v5472, %v5800
  %v5802 = vpop.f32.mrb[0].mxu0
  %v5803 = vadd.f32 %v5476, %v5802
  %v5804 = vpop.f32.mrb[0].mxu0
  %v5805 = vadd.f32 %v5472, %v5804
  %v5806 = vpop.f32.mrb[0].mxu0
  %v5807 = vadd.f32 %v5476, %v5806
  %5808 = vdwg.mxu0
  %5809 = vmatprep.subr.bf16.mxu0 %v5620
  %5810 = vmatpush1.bf16.msra.mxu0 %v5619
  %5811 = vmatprep.subr.bf16.mxu0 %v5636
  %5812 = vmatpush1.bf16.msra.mxu0 %v5635
  %5813 = vmatprep.subr.bf16.mxu0 0
  %5814 = vmatpush1.bf16.msra.mxu0 0
  %5815 = vmatprep.subr.bf16.mxu0 0
  %5816 = vmatpush1.bf16.msra.mxu0 0
  %5817 = vmatprep.subr.bf16.mxu0 0
  %5818 = vmatpush1.bf16.msra.mxu0 0
  %5819 = vmatprep.subr.bf16.mxu0 0
  %5820 = vmatpush1.bf16.msra.mxu0 0
  %5821 = vmatprep.subr.bf16.mxu0 0
  %5822 = vmatpush1.bf16.msra.mxu0 0
  %5823 = vmatprep.subr.bf16.mxu0 0
  %5824 = vmatpush1.bf16.msra.mxu0 0
  %5825 = vmatprep.subr.bf16.mxu0 0
  %5826 = vmatpush1.bf16.msra.mxu0 0
  %5827 = vmatprep.subr.bf16.mxu0 0
  %5828 = vmatpush1.bf16.msra.mxu0 0
  %5829 = vmatprep.subr.bf16.mxu0 0
  %5830 = vmatpush1.bf16.msra.mxu0 0
  %5831 = vmatprep.subr.bf16.mxu0 0
  %5832 = vmatpush1.bf16.msra.mxu0 0
  %5833 = vmatprep.subr.bf16.mxu0 0
  %5834 = vmatpush1.bf16.msra.mxu0 0
  %5835 = vmatprep.subr.bf16.mxu0 0
  %5836 = vmatpush1.bf16.msra.mxu0 0
  %5837 = vmatprep.subr.bf16.mxu0 0
  %5838 = vmatpush1.bf16.msra.mxu0 0
  %5839 = vmatprep.subr.bf16.mxu0 0
  %5840 = vmatpush1.bf16.msra.mxu0 0
  %5841 = vmatprep.mubr.bf16.mxu0 0
  %5842 = vmatmul.mubr.bf16.gmra.mrb[0].mxu0 %v5678
  %v5843 = vpop.f32.mrb[0].mxu0
  %v5844 = vadd.f32 %v5480, %v5843
  %v5845 = vpop.f32.mrb[0].mxu0
  %v5846 = vadd.f32 %v5484, %v5845
  %v5847 = vpop.f32.mrb[0].mxu0
  %v5848 = vadd.f32 %v5480, %v5847
  %v5849 = vpop.f32.mrb[0].mxu0
  %v5850 = vadd.f32 %v5484, %v5849
  %5851 = vdwg.mxu0
  %5852 = vmatprep.subr.bf16.mxu0 %v5622
  %5853 = vmatpush1.bf16.msra.mxu0 %v5621
  %5854 = vmatprep.subr.bf16.mxu0 %v5638
  %5855 = vmatpush1.bf16.msra.mxu0 %v5637
  %5856 = vmatprep.subr.bf16.mxu0 0
  %5857 = vmatpush1.bf16.msra.mxu0 0
  %5858 = vmatprep.subr.bf16.mxu0 0
  %5859 = vmatpush1.bf16.msra.mxu0 0
  %5860 = vmatprep.subr.bf16.mxu0 0
  %5861 = vmatpush1.bf16.msra.mxu0 0
  %5862 = vmatprep.subr.bf16.mxu0 0
  %5863 = vmatpush1.bf16.msra.mxu0 0
  %5864 = vmatprep.subr.bf16.mxu0 0
  %5865 = vmatpush1.bf16.msra.mxu0 0
  %5866 = vmatprep.subr.bf16.mxu0 0
  %5867 = vmatpush1.bf16.msra.mxu0 0
  %5868 = vmatprep.subr.bf16.mxu0 0
  %5869 = vmatpush1.bf16.msra.mxu0 0
  %5870 = vmatprep.subr.bf16.mxu0 0
  %5871 = vmatpush1.bf16.msra.mxu0 0
  %5872 = vmatprep.subr.bf16.mxu0 0
  %5873 = vmatpush1.bf16.msra.mxu0 0
  %5874 = vmatprep.subr.bf16.mxu0 0
  %5875 = vmatpush1.bf16.msra.mxu0 0
  %5876 = vmatprep.subr.bf16.mxu0 0
  %5877 = vmatpush1.bf16.msra.mxu0 0
  %5878 = vmatprep.subr.bf16.mxu0 0
  %5879 = vmatpush1.bf16.msra.mxu0 0
  %5880 = vmatprep.subr.bf16.mxu0 0
  %5881 = vmatpush1.bf16.msra.mxu0 0
  %5882 = vmatprep.subr.bf16.mxu0 0
  %5883 = vmatpush1.bf16.msra.mxu0 0
  %5884 = vmatprep.mubr.bf16.mxu0 0
  %5885 = vmatmul.mubr.bf16.gmra.mrb[0].mxu0 %v5678
  %v5886 = vpop.f32.mrb[0].mxu0
  %v5887 = vadd.f32 %v5488, %v5886
  %v5888 = vpop.f32.mrb[0].mxu0
  %v5889 = vadd.f32 %v5492, %v5888
  %v5890 = vpop.f32.mrb[0].mxu0
  %v5891 = vadd.f32 %v5488, %v5890
  %v5892 = vpop.f32.mrb[0].mxu0
  %v5893 = vadd.f32 %v5492, %v5892
  %5894 = vdwg.mxu0
  %5895 = vmatprep.subr.bf16.mxu0 %v5624
  %5896 = vmatpush1.bf16.msra.mxu0 %v5623
  %5897 = vmatprep.subr.bf16.mxu0 %v5640
  %5898 = vmatpush1.bf16.msra.mxu0 %v5639
  %5899 = vmatprep.subr.bf16.mxu0 0
  %5900 = vmatpush1.bf16.msra.mxu0 0
  %5901 = vmatprep.subr.bf16.mxu0 0
  %5902 = vmatpush1.bf16.msra.mxu0 0
  %5903 = vmatprep.subr.bf16.mxu0 0
  %5904 = vmatpush1.bf16.msra.mxu0 0
  %5905 = vmatprep.subr.bf16.mxu0 0
  %5906 = vmatpush1.bf16.msra.mxu0 0
  %5907 = vmatprep.subr.bf16.mxu0 0
  %5908 = vmatpush1.bf16.msra.mxu0 0
  %5909 = vmatprep.subr.bf16.mxu0 0
  %5910 = vmatpush1.bf16.msra.mxu0 0
  %5911 = vmatprep.subr.bf16.mxu0 0
  %5912 = vmatpush1.bf16.msra.mxu0 0
  %5913 = vmatprep.subr.bf16.mxu0 0
  %5914 = vmatpush1.bf16.msra.mxu0 0
  %5915 = vmatprep.subr.bf16.mxu0 0
  %5916 = vmatpush1.bf16.msra.mxu0 0
  %5917 = vmatprep.subr.bf16.mxu0 0
  %5918 = vmatpush1.bf16.msra.mxu0 0
  %5919 = vmatprep.subr.bf16.mxu0 0
  %5920 = vmatpush1.bf16.msra.mxu0 0
  %5921 = vmatprep.subr.bf16.mxu0 0
  %5922 = vmatpush1.bf16.msra.mxu0 0
  %5923 = vmatprep.subr.bf16.mxu0 0
  %5924 = vmatpush1.bf16.msra.mxu0 0
  %5925 = vmatprep.subr.bf16.mxu0 0
  %5926 = vmatpush1.bf16.msra.mxu0 0
  %5927 = vmatprep.mubr.bf16.mxu0 0
  %5928 = vmatmul.mubr.bf16.gmra.mrb[0].mxu0 %v5678
  %v5929 = vpop.f32.mrb[0].mxu0
  %v5930 = vadd.f32 %v5496, %v5929
  %v5931 = vpop.f32.mrb[0].mxu0
  %v5932 = vadd.f32 %v5500, %v5931
  %v5933 = vpop.f32.mrb[0].mxu0
  %v5934 = vadd.f32 %v5496, %v5933
  %v5935 = vpop.f32.mrb[0].mxu0
  %v5936 = vadd.f32 %v5500, %v5935
  %5937 = vdwg.mxu0
  %5938 = vmatprep.subr.bf16.mxu0 %v5626
  %5939 = vmatpush1.bf16.msra.mxu0 %v5625
  %5940 = vmatprep.subr.bf16.mxu0 %v5642
  %5941 = vmatpush1.bf16.msra.mxu0 %v5641
  %5942 = vmatprep.subr.bf16.mxu0 0
  %5943 = vmatpush1.bf16.msra.mxu0 0
  %5944 = vmatprep.subr.bf16.mxu0 0
  %5945 = vmatpush1.bf16.msra.mxu0 0
  %5946 = vmatprep.subr.bf16.mxu0 0
  %5947 = vmatpush1.bf16.msra.mxu0 0
  %5948 = vmatprep.subr.bf16.mxu0 0
  %5949 = vmatpush1.bf16.msra.mxu0 0
  %5950 = vmatprep.subr.bf16.mxu0 0
  %5951 = vmatpush1.bf16.msra.mxu0 0
  %5952 = vmatprep.subr.bf16.mxu0 0
  %5953 = vmatpush1.bf16.msra.mxu0 0
  %5954 = vmatprep.subr.bf16.mxu0 0
  %5955 = vmatpush1.bf16.msra.mxu0 0
  %5956 = vmatprep.subr.bf16.mxu0 0
  %5957 = vmatpush1.bf16.msra.mxu0 0
  %5958 = vmatprep.subr.bf16.mxu0 0
  %5959 = vmatpush1.bf16.msra.mxu0 0
  %5960 = vmatprep.subr.bf16.mxu0 0
  %5961 = vmatpush1.bf16.msra.mxu0 0
  %5962 = vmatprep.subr.bf16.mxu0 0
  %5963 = vmatpush1.bf16.msra.mxu0 0
  %5964 = vmatprep.subr.bf16.mxu0 0
  %5965 = vmatpush1.bf16.msra.mxu0 0
  %5966 = vmatprep.subr.bf16.mxu0 0
  %5967 = vmatpush1.bf16.msra.mxu0 0
  %5968 = vmatprep.subr.bf16.mxu0 0
  %5969 = vmatpush1.bf16.msra.mxu0 0
  %5970 = vmatprep.mubr.bf16.mxu0 0
  %5971 = vmatmul.mubr.bf16.gmra.mrb[0].mxu0 %v5678
  %v5972 = vpop.f32.mrb[0].mxu0
  %v5973 = vadd.f32 %v5504, %v5972
  %v5974 = vpop.f32.mrb[0].mxu0
  %v5975 = vadd.f32 %v5508, %v5974
  %v5976 = vpop.f32.mrb[0].mxu0
  %v5977 = vadd.f32 %v5504, %v5976
  %v5978 = vpop.f32.mrb[0].mxu0
  %v5979 = vadd.f32 %v5508, %v5978
  %5980 = vdwg.mxu0
  %5981 = vmatprep.subr.bf16.mxu0 %v5628
  %5982 = vmatpush1.bf16.msra.mxu0 %v5627
  %5983 = vmatprep.subr.bf16.mxu0 %v5644
  %5984 = vmatpush1.bf16.msra.mxu0 %v5643
  %5985 = vmatprep.subr.bf16.mxu0 0
  %5986 = vmatpush1.bf16.msra.mxu0 0
  %5987 = vmatprep.subr.bf16.mxu0 0
  %5988 = vmatpush1.bf16.msra.mxu0 0
  %5989 = vmatprep.subr.bf16.mxu0 0
  %5990 = vmatpush1.bf16.msra.mxu0 0
  %5991 = vmatprep.subr.bf16.mxu0 0
  %5992 = vmatpush1.bf16.msra.mxu0 0
  %5993 = vmatprep.subr.bf16.mxu0 0
  %5994 = vmatpush1.bf16.msra.mxu0 0
  %5995 = vmatprep.subr.bf16.mxu0 0
  %5996 = vmatpush1.bf16.msra.mxu0 0
  %5997 = vmatprep.subr.bf16.mxu0 0
  %5998 = vmatpush1.bf16.msra.mxu0 0
  %5999 = vmatprep.subr.bf16.mxu0 0
  %6000 = vmatpush1.bf16.msra.mxu0 0
  %6001 = vmatprep.subr.bf16.mxu0 0
  %6002 = vmatpush1.bf16.msra.mxu0 0
  %6003 = vmatprep.subr.bf16.mxu0 0
  %6004 = vmatpush1.bf16.msra.mxu0 0
  %6005 = vmatprep.subr.bf16.mxu0 0
  %6006 = vmatpush1.bf16.msra.mxu0 0
  %6007 = vmatprep.subr.bf16.mxu0 0
  %6008 = vmatpush1.bf16.msra.mxu0 0
  %6009 = vmatprep.subr.bf16.mxu0 0
  %6010 = vmatpush1.bf16.msra.mxu0 0
  %6011 = vmatprep.subr.bf16.mxu0 0
  %6012 = vmatpush1.bf16.msra.mxu0 0
  %6013 = vmatprep.mubr.bf16.mxu0 0
  %6014 = vmatmul.mubr.bf16.gmra.mrb[0].mxu0 %v5678
  %v6015 = vpop.f32.mrb[0].mxu0
  %v6016 = vadd.f32 %v5512, %v6015
  %v6017 = vpop.f32.mrb[0].mxu0
  %v6018 = vadd.f32 %v5516, %v6017
  %v6019 = vpop.f32.mrb[0].mxu0
  %v6020 = vadd.f32 %v5512, %v6019
  %v6021 = vpop.f32.mrb[0].mxu0
  %v6022 = vadd.f32 %v5516, %v6021
  %6023 = vdwg.mxu0
  %v6024 = vmax.f32 %v5715, 0.0
  %v6025 = vmax.f32 %v5717, 0.0
  %v6026 = vmax.f32 %v5758, 0.0
  %v6027 = vmax.f32 %v5760, 0.0
  %v6028 = vmax.f32 %v5801, 0.0
  %v6029 = vmax.f32 %v5803, 0.0
  %v6030 = vmax.f32 %v5844, 0.0
  %v6031 = vmax.f32 %v5846, 0.0
  %v6032 = vmax.f32 %v5887, 0.0
  %v6033 = vmax.f32 %v5889, 0.0
  %v6034 = vmax.f32 %v5930, 0.0
  %v6035 = vmax.f32 %v5932, 0.0
  %v6036 = vmax.f32 %v5973, 0.0
  %v6037 = vmax.f32 %v5975, 0.0
  %v6038 = vmax.f32 %v6016, 0.0
  %v6039 = vmax.f32 %v6018, 0.0
  %v6040 = vmax.f32 %v5719, 0.0
  %v6041 = vmax.f32 %v5721, 0.0
  %v6042 = vmax.f32 %v5762, 0.0
  %v6043 = vmax.f32 %v5764, 0.0
  %v6044 = vmax.f32 %v5805, 0.0
  %v6045 = vmax.f32 %v5807, 0.0
  %v6046 = vmax.f32 %v5848, 0.0
  %v6047 = vmax.f32 %v5850, 0.0
  %v6048 = vmax.f32 %v5891, 0.0
  %v6049 = vmax.f32 %v5893, 0.0
  %v6050 = vmax.f32 %v5934, 0.0
  %v6051 = vmax.f32 %v5936, 0.0
  %v6052 = vmax.f32 %v5977, 0.0
  %v6053 = vmax.f32 %v5979, 0.0
  %v6054 = vmax.f32 %v6020, 0.0
  %v6055 = vmax.f32 %v6022, 0.0
  %v6056 = vpack.c.bf16 %v6040, %v6024
  %v6057 = vpack.c.bf16 %v6041, %v6025
  %v6058 = vpack.c.bf16 %v6042, %v6026
  %v6059 = vpack.c.bf16 %v6043, %v6027
  %v6060 = vpack.c.bf16 %v6044, %v6028
  %v6061 = vpack.c.bf16 %v6045, %v6029
  %v6062 = vpack.c.bf16 %v6046, %v6030
  %v6063 = vpack.c.bf16 %v6047, %v6031
  %v6064 = vpack.c.bf16 %v6048, %v6032
  %v6065 = vpack.c.bf16 %v6049, %v6033
  %v6066 = vpack.c.bf16 %v6050, %v6034
  %v6067 = vpack.c.bf16 %v6051, %v6035
  %v6068 = vpack.c.bf16 %v6052, %v6036
  %v6069 = vpack.c.bf16 %v6053, %v6037
  %v6070 = vpack.c.bf16 %v6054, %v6038
  %v6071 = vpack.c.bf16 %v6055, %v6039
  %v6072 = vlaneseq
  %v6073 = vshrl.u32 %v6072, 7
  %v6074 = vsub.s32 5, %v6073
  %v6075 = vrot.slane %v3920, %v6074
  %v6332 = vunpack.c.l.b16 %v3663
  %v6333 = vunpack.c.l.b16 %v3664
  %v6334 = vunpack.c.l.b16 %v3665
  %v6335 = vunpack.c.l.b16 %v3666
  %v6336 = vunpack.c.l.b16 %v3667
  %v6337 = vunpack.c.l.b16 %v3668
  %v6338 = vunpack.c.l.b16 %v3669
  %v6339 = vunpack.c.l.b16 %v3670
  %v6340 = vunpack.c.l.b16 %v3671
  %v6341 = vunpack.c.l.b16 %v3672
  %v6342 = vunpack.c.l.b16 %v3673
  %v6343 = vunpack.c.l.b16 %v3674
  %v6344 = vunpack.c.l.b16 %v3675
  %v6345 = vunpack.c.l.b16 %v3676
  %v6346 = vunpack.c.l.b16 %v3677
  %v6347 = vunpack.c.l.b16 %v3678
  %v6348 = vunpack.c.l.b16 %v3679
  %v6349 = vunpack.c.l.b16 %v3680
  %v6350 = vunpack.c.l.b16 %v3681
  %v6351 = vunpack.c.l.b16 %v3682
  %v6352 = vunpack.c.l.b16 %v3683
  %v6353 = vunpack.c.l.b16 %v3684
  %v6354 = vunpack.c.l.b16 %v3685
  %v6355 = vunpack.c.l.b16 %v3686
  %v6356 = vunpack.c.l.b16 %v3687
  %v6357 = vunpack.c.l.b16 %v3688
  %v6358 = vunpack.c.l.b16 %v3689
  %v6359 = vunpack.c.l.b16 %v3690
  %v6360 = vunpack.c.l.b16 %v3691
  %v6361 = vunpack.c.l.b16 %v3692
  %v6362 = vunpack.c.l.b16 %v3693
  %v6363 = vunpack.c.l.b16 %v3694
  %v6364 = vunpack.c.l.b16 %v3695
  %v6365 = vunpack.c.l.b16 %v3696
  %v6366 = vunpack.c.l.b16 %v3697
  %v6367 = vunpack.c.l.b16 %v3698
  %v6368 = vunpack.c.l.b16 %v3699
  %v6369 = vunpack.c.l.b16 %v3700
  %v6370 = vunpack.c.l.b16 %v3701
  %v6371 = vunpack.c.l.b16 %v3702
  %v6372 = vunpack.c.l.b16 %v3703
  %v6373 = vunpack.c.l.b16 %v3704
  %v6374 = vunpack.c.l.b16 %v3705
  %v6375 = vunpack.c.l.b16 %v3706
  %v6376 = vunpack.c.l.b16 %v3707
  %v6377 = vunpack.c.l.b16 %v3708
  %v6378 = vunpack.c.l.b16 %v3709
  %v6379 = vunpack.c.l.b16 %v3710
  %v6380 = vunpack.c.l.b16 %v3711
  %v6381 = vunpack.c.l.b16 %v3712
  %v6382 = vunpack.c.l.b16 %v3713
  %v6383 = vunpack.c.l.b16 %v3714
  %v6384 = vunpack.c.l.b16 %v3715
  %v6385 = vunpack.c.l.b16 %v3716
  %v6386 = vunpack.c.l.b16 %v3717
  %v6387 = vunpack.c.l.b16 %v3718
  %v6388 = vunpack.c.l.b16 %v3719
  %v6389 = vunpack.c.l.b16 %v3720
  %v6390 = vunpack.c.l.b16 %v3721
  %v6391 = vunpack.c.l.b16 %v3722
  %v6392 = vunpack.c.l.b16 %v3723
  %v6393 = vunpack.c.l.b16 %v3724
  %v6394 = vunpack.c.l.b16 %v3725
  %v6395 = vunpack.c.l.b16 %v3726
  %v6396 = vunpack.c.l.b16 %v3727
  %v6397 = vunpack.c.l.b16 %v3728
  %v6398 = vunpack.c.l.b16 %v3729
  %v6399 = vunpack.c.l.b16 %v3730
  %v6400 = vunpack.c.l.b16 %v3731
  %v6401 = vunpack.c.l.b16 %v3732
  %v6402 = vunpack.c.l.b16 %v3733
  %v6403 = vunpack.c.l.b16 %v3734
  %v6404 = vunpack.c.l.b16 %v3735
  %v6405 = vunpack.c.l.b16 %v3736
  %v6406 = vunpack.c.l.b16 %v3737
  %v6407 = vunpack.c.l.b16 %v3738
  %v6408 = vunpack.c.l.b16 %v3739
  %v6409 = vunpack.c.l.b16 %v3740
  %v6410 = vunpack.c.l.b16 %v3741
  %v6411 = vunpack.c.l.b16 %v3742
  %v6412 = vunpack.c.l.b16 %v3743
  %v6413 = vunpack.c.l.b16 %v3744
  %v6414 = vunpack.c.l.b16 %v3745
  %v6415 = vunpack.c.l.b16 %v3746
  %v6416 = vunpack.c.l.b16 %v3747
  %v6417 = vunpack.c.l.b16 %v3748
  %v6418 = vunpack.c.l.b16 %v3749
  %v6419 = vunpack.c.l.b16 %v3750
  %v6420 = vunpack.c.l.b16 %v3751
  %v6421 = vunpack.c.l.b16 %v3752
  %v6422 = vunpack.c.l.b16 %v3753
  %v6423 = vunpack.c.l.b16 %v3754
  %v6424 = vunpack.c.l.b16 %v3755
  %v6425 = vunpack.c.l.b16 %v3756
  %v6426 = vunpack.c.l.b16 %v3757
  %v6427 = vunpack.c.l.b16 %v3758
  %v6428 = vunpack.c.l.b16 %v3759
  %v6429 = vunpack.c.l.b16 %v3760
  %v6430 = vunpack.c.l.b16 %v3761
  %v6431 = vunpack.c.l.b16 %v3762
  %v6432 = vunpack.c.l.b16 %v3763
  %v6433 = vunpack.c.l.b16 %v3764
  %v6434 = vunpack.c.l.b16 %v3765
  %v6435 = vunpack.c.l.b16 %v3766
  %v6436 = vunpack.c.l.b16 %v3767
  %v6437 = vunpack.c.l.b16 %v3768
  %v6438 = vunpack.c.l.b16 %v3769
  %v6439 = vunpack.c.l.b16 %v3770
  %v6440 = vunpack.c.l.b16 %v3771
  %v6441 = vunpack.c.l.b16 %v3772
  %v6442 = vunpack.c.l.b16 %v3773
  %v6443 = vunpack.c.l.b16 %v3774
  %v6444 = vunpack.c.l.b16 %v3775
  %v6445 = vunpack.c.l.b16 %v3776
  %v6446 = vunpack.c.l.b16 %v3777
  %v6447 = vunpack.c.l.b16 %v3778
  %v6448 = vunpack.c.l.b16 %v3779
  %v6449 = vunpack.c.l.b16 %v3780
  %v6450 = vunpack.c.l.b16 %v3781
  %v6451 = vunpack.c.l.b16 %v3782
  %v6452 = vunpack.c.l.b16 %v3783
  %v6453 = vunpack.c.l.b16 %v3784
  %v6454 = vunpack.c.l.b16 %v3785
  %v6455 = vunpack.c.l.b16 %v3786
  %v6456 = vunpack.c.l.b16 %v3787
  %v6457 = vunpack.c.l.b16 %v3788
  %v6458 = vunpack.c.l.b16 %v3789
  %v6459 = vunpack.c.l.b16 %v3790
  %v6460 = vunpack.c.l.b16 %v3791
  %v6461 = vunpack.c.l.b16 %v3792
  %v6462 = vunpack.c.l.b16 %v3793
  %v6463 = vunpack.c.l.b16 %v3794
  %v6464 = vunpack.c.l.b16 %v3795
  %v6465 = vunpack.c.l.b16 %v3796
  %v6466 = vunpack.c.l.b16 %v3797
  %v6467 = vunpack.c.l.b16 %v3798
  %v6468 = vunpack.c.l.b16 %v3799
  %v6469 = vunpack.c.l.b16 %v3800
  %v6470 = vunpack.c.l.b16 %v3801
  %v6471 = vunpack.c.l.b16 %v3802
  %v6472 = vunpack.c.l.b16 %v3803
  %v6473 = vunpack.c.l.b16 %v3804
  %v6474 = vunpack.c.l.b16 %v3805
  %v6475 = vunpack.c.l.b16 %v3806
  %v6476 = vunpack.c.l.b16 %v3807
  %v6477 = vunpack.c.l.b16 %v3808
  %v6478 = vunpack.c.l.b16 %v3809
  %v6479 = vunpack.c.l.b16 %v3810
  %v6480 = vunpack.c.l.b16 %v3811
  %v6481 = vunpack.c.l.b16 %v3812
  %v6482 = vunpack.c.l.b16 %v3813
  %v6483 = vunpack.c.l.b16 %v3814
  %v6484 = vunpack.c.l.b16 %v3815
  %v6485 = vunpack.c.l.b16 %v3816
  %v6486 = vunpack.c.l.b16 %v3817
  %v6487 = vunpack.c.l.b16 %v3818
  %v6488 = vunpack.c.l.b16 %v3819
  %v6489 = vunpack.c.l.b16 %v3820
  %v6490 = vunpack.c.l.b16 %v3821
  %v6491 = vunpack.c.l.b16 %v3822
  %v6492 = vunpack.c.l.b16 %v3823
  %v6493 = vunpack.c.l.b16 %v3824
  %v6494 = vunpack.c.l.b16 %v3825
  %v6495 = vunpack.c.l.b16 %v3826
  %v6496 = vunpack.c.l.b16 %v3827
  %v6497 = vunpack.c.l.b16 %v3828
  %v6498 = vunpack.c.l.b16 %v3829
  %v6499 = vunpack.c.l.b16 %v3830
  %v6500 = vunpack.c.l.b16 %v3831
  %v6501 = vunpack.c.l.b16 %v3832
  %v6502 = vunpack.c.l.b16 %v3833
  %v6503 = vunpack.c.l.b16 %v3834
  %v6504 = vunpack.c.l.b16 %v3835
  %v6505 = vunpack.c.l.b16 %v3836
  %v6506 = vunpack.c.l.b16 %v3837
  %v6507 = vunpack.c.l.b16 %v3838
  %v6508 = vunpack.c.l.b16 %v3839
  %v6509 = vunpack.c.l.b16 %v3840
  %v6510 = vunpack.c.l.b16 %v3841
  %v6511 = vunpack.c.l.b16 %v3842
  %v6512 = vunpack.c.l.b16 %v3843
  %v6513 = vunpack.c.l.b16 %v3844
  %v6514 = vunpack.c.l.b16 %v3845
  %v6515 = vunpack.c.l.b16 %v3846
  %v6516 = vunpack.c.l.b16 %v3847
  %v6517 = vunpack.c.l.b16 %v3848
  %v6518 = vunpack.c.l.b16 %v3849
  %v6519 = vunpack.c.l.b16 %v3850
  %v6520 = vunpack.c.l.b16 %v3851
  %v6521 = vunpack.c.l.b16 %v3852
  %v6522 = vunpack.c.l.b16 %v3853
  %v6523 = vunpack.c.l.b16 %v3854
  %v6524 = vunpack.c.l.b16 %v3855
  %v6525 = vunpack.c.l.b16 %v3856
  %v6526 = vunpack.c.l.b16 %v3857
  %v6527 = vunpack.c.l.b16 %v3858
  %v6528 = vunpack.c.l.b16 %v3859
  %v6529 = vunpack.c.l.b16 %v3860
  %v6530 = vunpack.c.l.b16 %v3861
  %v6531 = vunpack.c.l.b16 %v3862
  %v6532 = vunpack.c.l.b16 %v3863
  %v6533 = vunpack.c.l.b16 %v3864
  %v6534 = vunpack.c.l.b16 %v3865
  %v6535 = vunpack.c.l.b16 %v3866
  %v6536 = vunpack.c.l.b16 %v3867
  %v6537 = vunpack.c.l.b16 %v3868
  %v6538 = vunpack.c.l.b16 %v3869
  %v6539 = vunpack.c.l.b16 %v3870
  %v6540 = vunpack.c.l.b16 %v3871
  %v6541 = vunpack.c.l.b16 %v3872
  %v6542 = vunpack.c.l.b16 %v3873
  %v6543 = vunpack.c.l.b16 %v3874
  %v6544 = vunpack.c.l.b16 %v3875
  %v6545 = vunpack.c.l.b16 %v3876
  %v6546 = vunpack.c.l.b16 %v3877
  %v6547 = vunpack.c.l.b16 %v3878
  %v6548 = vunpack.c.l.b16 %v3879
  %v6549 = vunpack.c.l.b16 %v3880
  %v6550 = vunpack.c.l.b16 %v3881
  %v6551 = vunpack.c.l.b16 %v3882
  %v6552 = vunpack.c.l.b16 %v3883
  %v6553 = vunpack.c.l.b16 %v3884
  %v6554 = vunpack.c.l.b16 %v3885
  %v6555 = vunpack.c.l.b16 %v3886
  %v6556 = vunpack.c.l.b16 %v3887
  %v6557 = vunpack.c.l.b16 %v3888
  %v6558 = vunpack.c.l.b16 %v3889
  %v6559 = vunpack.c.l.b16 %v3890
  %v6560 = vunpack.c.l.b16 %v3891
  %v6561 = vunpack.c.l.b16 %v3892
  %v6562 = vunpack.c.l.b16 %v3893
  %v6563 = vunpack.c.l.b16 %v3894
  %v6564 = vunpack.c.l.b16 %v3895
  %v6565 = vunpack.c.l.b16 %v3896
  %v6566 = vunpack.c.l.b16 %v3897
  %v6567 = vunpack.c.l.b16 %v3898
  %v6568 = vunpack.c.l.b16 %v3899
  %v6569 = vunpack.c.l.b16 %v3900
  %v6570 = vunpack.c.l.b16 %v3901
  %v6571 = vunpack.c.l.b16 %v3902
  %v6572 = vunpack.c.l.b16 %v3903
  %v6573 = vunpack.c.l.b16 %v3904
  %v6574 = vunpack.c.l.b16 %v3905
  %v6575 = vunpack.c.l.b16 %v3906
  %v6576 = vunpack.c.l.b16 %v3907
  %v6577 = vunpack.c.l.b16 %v3908
  %v6578 = vunpack.c.l.b16 %v3909
  %v6579 = vunpack.c.l.b16 %v3910
  %v6580 = vunpack.c.l.b16 %v3911
  %v6581 = vunpack.c.l.b16 %v3912
  %v6582 = vunpack.c.l.b16 %v3913
  %v6583 = vunpack.c.l.b16 %v3914
  %v6584 = vunpack.c.l.b16 %v3915
  %v6585 = vunpack.c.l.b16 %v3916
  %v6586 = vunpack.c.l.b16 %v3917
  %v6587 = vunpack.c.l.b16 %v3918
  %v6588 = vpack.c.b16 %v6333, %v6332
  %v6589 = vpack.c.b16 %v6335, %v6334
  %v6590 = vpack.c.b16 %v6337, %v6336
  %v6591 = vpack.c.b16 %v6339, %v6338
  %v6592 = vpack.c.b16 %v6341, %v6340
  %v6593 = vpack.c.b16 %v6343, %v6342
  %v6594 = vpack.c.b16 %v6345, %v6344
  %v6595 = vpack.c.b16 %v6347, %v6346
  %v6596 = vpack.c.b16 %v6349, %v6348
  %v6597 = vpack.c.b16 %v6351, %v6350
  %v6598 = vpack.c.b16 %v6353, %v6352
  %v6599 = vpack.c.b16 %v6355, %v6354
  %v6600 = vpack.c.b16 %v6357, %v6356
  %v6601 = vpack.c.b16 %v6359, %v6358
  %v6602 = vpack.c.b16 %v6361, %v6360
  %v6603 = vpack.c.b16 %v6363, %v6362
  %v6604 = vpack.c.b16 %v6365, %v6364
  %v6605 = vpack.c.b16 %v6367, %v6366
  %v6606 = vpack.c.b16 %v6369, %v6368
  %v6607 = vpack.c.b16 %v6371, %v6370
  %v6608 = vpack.c.b16 %v6373, %v6372
  %v6609 = vpack.c.b16 %v6375, %v6374
  %v6610 = vpack.c.b16 %v6377, %v6376
  %v6611 = vpack.c.b16 %v6379, %v6378
  %v6612 = vpack.c.b16 %v6381, %v6380
  %v6613 = vpack.c.b16 %v6383, %v6382
  %v6614 = vpack.c.b16 %v6385, %v6384
  %v6615 = vpack.c.b16 %v6387, %v6386
  %v6616 = vpack.c.b16 %v6389, %v6388
  %v6617 = vpack.c.b16 %v6391, %v6390
  %v6618 = vpack.c.b16 %v6393, %v6392
  %v6619 = vpack.c.b16 %v6395, %v6394
  %v6620 = vpack.c.b16 %v6397, %v6396
  %v6621 = vpack.c.b16 %v6399, %v6398
  %v6622 = vpack.c.b16 %v6401, %v6400
  %v6623 = vpack.c.b16 %v6403, %v6402
  %v6624 = vpack.c.b16 %v6405, %v6404
  %v6625 = vpack.c.b16 %v6407, %v6406
  %v6626 = vpack.c.b16 %v6409, %v6408
  %v6627 = vpack.c.b16 %v6411, %v6410
  %v6628 = vpack.c.b16 %v6413, %v6412
  %v6629 = vpack.c.b16 %v6415, %v6414
  %v6630 = vpack.c.b16 %v6417, %v6416
  %v6631 = vpack.c.b16 %v6419, %v6418
  %v6632 = vpack.c.b16 %v6421, %v6420
  %v6633 = vpack.c.b16 %v6423, %v6422
  %v6634 = vpack.c.b16 %v6425, %v6424
  %v6635 = vpack.c.b16 %v6427, %v6426
  %v6636 = vpack.c.b16 %v6429, %v6428
  %v6637 = vpack.c.b16 %v6431, %v6430
  %v6638 = vpack.c.b16 %v6433, %v6432
  %v6639 = vpack.c.b16 %v6435, %v6434
  %v6640 = vpack.c.b16 %v6437, %v6436
  %v6641 = vpack.c.b16 %v6439, %v6438
  %v6642 = vpack.c.b16 %v6441, %v6440
  %v6643 = vpack.c.b16 %v6443, %v6442
  %v6644 = vpack.c.b16 %v6445, %v6444
  %v6645 = vpack.c.b16 %v6447, %v6446
  %v6646 = vpack.c.b16 %v6449, %v6448
  %v6647 = vpack.c.b16 %v6451, %v6450
  %v6648 = vpack.c.b16 %v6453, %v6452
  %v6649 = vpack.c.b16 %v6455, %v6454
  %v6650 = vpack.c.b16 %v6457, %v6456
  %v6651 = vpack.c.b16 %v6459, %v6458
  %v6652 = vpack.c.b16 %v6461, %v6460
  %v6653 = vpack.c.b16 %v6463, %v6462
  %v6654 = vpack.c.b16 %v6465, %v6464
  %v6655 = vpack.c.b16 %v6467, %v6466
  %v6656 = vpack.c.b16 %v6469, %v6468
  %v6657 = vpack.c.b16 %v6471, %v6470
  %v6658 = vpack.c.b16 %v6473, %v6472
  %v6659 = vpack.c.b16 %v6475, %v6474
  %v6660 = vpack.c.b16 %v6477, %v6476
  %v6661 = vpack.c.b16 %v6479, %v6478
  %v6662 = vpack.c.b16 %v6481, %v6480
  %v6663 = vpack.c.b16 %v6483, %v6482
  %v6664 = vpack.c.b16 %v6485, %v6484
  %v6665 = vpack.c.b16 %v6487, %v6486
  %v6666 = vpack.c.b16 %v6489, %v6488
  %v6667 = vpack.c.b16 %v6491, %v6490
  %v6668 = vpack.c.b16 %v6493, %v6492
  %v6669 = vpack.c.b16 %v6495, %v6494
  %v6670 = vpack.c.b16 %v6497, %v6496
  %v6671 = vpack.c.b16 %v6499, %v6498
  %v6672 = vpack.c.b16 %v6501, %v6500
  %v6673 = vpack.c.b16 %v6503, %v6502
  %v6674 = vpack.c.b16 %v6505, %v6504
  %v6675 = vpack.c.b16 %v6507, %v6506
  %v6676 = vpack.c.b16 %v6509, %v6508
  %v6677 = vpack.c.b16 %v6511, %v6510
  %v6678 = vpack.c.b16 %v6513, %v6512
  %v6679 = vpack.c.b16 %v6515, %v6514
  %v6680 = vpack.c.b16 %v6517, %v6516
  %v6681 = vpack.c.b16 %v6519, %v6518
  %v6682 = vpack.c.b16 %v6521, %v6520
  %v6683 = vpack.c.b16 %v6523, %v6522
  %v6684 = vpack.c.b16 %v6525, %v6524
  %v6685 = vpack.c.b16 %v6527, %v6526
  %v6686 = vpack.c.b16 %v6529, %v6528
  %v6687 = vpack.c.b16 %v6531, %v6530
  %v6688 = vpack.c.b16 %v6533, %v6532
  %v6689 = vpack.c.b16 %v6535, %v6534
  %v6690 = vpack.c.b16 %v6537, %v6536
  %v6691 = vpack.c.b16 %v6539, %v6538
  %v6692 = vpack.c.b16 %v6541, %v6540
  %v6693 = vpack.c.b16 %v6543, %v6542
  %v6694 = vpack.c.b16 %v6545, %v6544
  %v6695 = vpack.c.b16 %v6547, %v6546
  %v6696 = vpack.c.b16 %v6549, %v6548
  %v6697 = vpack.c.b16 %v6551, %v6550
  %v6698 = vpack.c.b16 %v6553, %v6552
  %v6699 = vpack.c.b16 %v6555, %v6554
  %v6700 = vpack.c.b16 %v6557, %v6556
  %v6701 = vpack.c.b16 %v6559, %v6558
  %v6702 = vpack.c.b16 %v6561, %v6560
  %v6703 = vpack.c.b16 %v6563, %v6562
  %v6704 = vpack.c.b16 %v6565, %v6564
  %v6705 = vpack.c.b16 %v6567, %v6566
  %v6706 = vpack.c.b16 %v6569, %v6568
  %v6707 = vpack.c.b16 %v6571, %v6570
  %v6708 = vpack.c.b16 %v6573, %v6572
  %v6709 = vpack.c.b16 %v6575, %v6574
  %v6710 = vpack.c.b16 %v6577, %v6576
  %v6711 = vpack.c.b16 %v6579, %v6578
  %v6712 = vpack.c.b16 %v6581, %v6580
  %v6713 = vpack.c.b16 %v6583, %v6582
  %v6714 = vpack.c.b16 %v6585, %v6584
  %v6715 = vpack.c.b16 %v6587, %v6586
  %6844 = vmatprep.subr.bf16.mxu0 0
  %6845 = vmatpush1.bf16.msra.mxu0 %v6588
  %6846 = vmatprep.subr.bf16.mxu0 0
  %6847 = vmatpush1.bf16.msra.mxu0 %v6589
  %6848 = vmatprep.subr.bf16.mxu0 0
  %6849 = vmatpush1.bf16.msra.mxu0 %v6590
  %6850 = vmatprep.subr.bf16.mxu0 0
  %6851 = vmatpush1.bf16.msra.mxu0 %v6591
  %6852 = vmatprep.subr.bf16.mxu0 0
  %6853 = vmatpush1.bf16.msra.mxu0 %v6592
  %6854 = vmatprep.subr.bf16.mxu0 0
  %6855 = vmatpush1.bf16.msra.mxu0 %v6593
  %6856 = vmatprep.subr.bf16.mxu0 0
  %6857 = vmatpush1.bf16.msra.mxu0 %v6594
  %6858 = vmatprep.subr.bf16.mxu0 0
  %6859 = vmatpush1.bf16.msra.mxu0 %v6595
  %6860 = vmatprep.subr.bf16.mxu0 0
  %6861 = vmatpush1.bf16.msra.mxu0 %v6596
  %6862 = vmatprep.subr.bf16.mxu0 0
  %6863 = vmatpush1.bf16.msra.mxu0 %v6597
  %6864 = vmatprep.subr.bf16.mxu0 0
  %6865 = vmatpush1.bf16.msra.mxu0 %v6598
  %6866 = vmatprep.subr.bf16.mxu0 0
  %6867 = vmatpush1.bf16.msra.mxu0 %v6599
  %6868 = vmatprep.subr.bf16.mxu0 0
  %6869 = vmatpush1.bf16.msra.mxu0 %v6600
  %6870 = vmatprep.subr.bf16.mxu0 0
  %6871 = vmatpush1.bf16.msra.mxu0 %v6601
  %6872 = vmatprep.subr.bf16.mxu0 0
  %6873 = vmatpush1.bf16.msra.mxu0 %v6602
  %6874 = vmatprep.subr.bf16.mxu0 0
  %6875 = vmatpush1.bf16.msra.mxu0 %v6603
  %6876 = vmatprep.mubr.bf16.mxu0 %v6057
  %6877 = vmatmul.mubr.bf16.gmra.mrb[0].mxu0 %v6056
  %v6878 = vpop.f32.mrb[0].mxu0
  %v6879 = vadd.f32 %v6075, %v6878
  %v6880 = vpop.f32.mrb[0].mxu0
  %v6881 = vpop.f32.mrb[0].mxu0
  %v6882 = vadd.f32 %v6075, %v6881
  %v6883 = vpop.f32.mrb[0].mxu0
  %6884 = vdwg.mxu0
  %6885 = vmatprep.subr.bf16.mxu0 0
  %6886 = vmatpush1.bf16.msra.mxu0 %v6604
  %6887 = vmatprep.subr.bf16.mxu0 0
  %6888 = vmatpush1.bf16.msra.mxu0 %v6605
  %6889 = vmatprep.subr.bf16.mxu0 0
  %6890 = vmatpush1.bf16.msra.mxu0 %v6606
  %6891 = vmatprep.subr.bf16.mxu0 0
  %6892 = vmatpush1.bf16.msra.mxu0 %v6607
  %6893 = vmatprep.subr.bf16.mxu0 0
  %6894 = vmatpush1.bf16.msra.mxu0 %v6608
  %6895 = vmatprep.subr.bf16.mxu0 0
  %6896 = vmatpush1.bf16.msra.mxu0 %v6609
  %6897 = vmatprep.subr.bf16.mxu0 0
  %6898 = vmatpush1.bf16.msra.mxu0 %v6610
  %6899 = vmatprep.subr.bf16.mxu0 0
  %6900 = vmatpush1.bf16.msra.mxu0 %v6611
  %6901 = vmatprep.subr.bf16.mxu0 0
  %6902 = vmatpush1.bf16.msra.mxu0 %v6612
  %6903 = vmatprep.subr.bf16.mxu0 0
  %6904 = vmatpush1.bf16.msra.mxu0 %v6613
  %6905 = vmatprep.subr.bf16.mxu0 0
  %6906 = vmatpush1.bf16.msra.mxu0 %v6614
  %6907 = vmatprep.subr.bf16.mxu0 0
  %6908 = vmatpush1.bf16.msra.mxu0 %v6615
  %6909 = vmatprep.subr.bf16.mxu0 0
  %6910 = vmatpush1.bf16.msra.mxu0 %v6616
  %6911 = vmatprep.subr.bf16.mxu0 0
  %6912 = vmatpush1.bf16.msra.mxu0 %v6617
  %6913 = vmatprep.subr.bf16.mxu0 0
  %6914 = vmatpush1.bf16.msra.mxu0 %v6618
  %6915 = vmatprep.subr.bf16.mxu0 0
  %6916 = vmatpush1.bf16.msra.mxu0 %v6619
  %6917 = vmatprep.mubr.bf16.mxu0 %v6059
  %6918 = vmatmul.mubr.bf16.gmra.mrb[0].mxu0 %v6058
  %v6919 = vpop.f32.mrb[0].mxu0
  %v6920 = vadd.f32 %v6879, %v6919
  %v6921 = vpop.f32.mrb[0].mxu0
  %v6922 = vpop.f32.mrb[0].mxu0
  %v6923 = vadd.f32 %v6882, %v6922
  %v6924 = vpop.f32.mrb[0].mxu0
  %6925 = vdwg.mxu0
  %6926 = vmatprep.subr.bf16.mxu0 0
  %6927 = vmatpush1.bf16.msra.mxu0 %v6620
  %6928 = vmatprep.subr.bf16.mxu0 0
  %6929 = vmatpush1.bf16.msra.mxu0 %v6621
  %6930 = vmatprep.subr.bf16.mxu0 0
  %6931 = vmatpush1.bf16.msra.mxu0 %v6622
  %6932 = vmatprep.subr.bf16.mxu0 0
  %6933 = vmatpush1.bf16.msra.mxu0 %v6623
  %6934 = vmatprep.subr.bf16.mxu0 0
  %6935 = vmatpush1.bf16.msra.mxu0 %v6624
  %6936 = vmatprep.subr.bf16.mxu0 0
  %6937 = vmatpush1.bf16.msra.mxu0 %v6625
  %6938 = vmatprep.subr.bf16.mxu0 0
  %6939 = vmatpush1.bf16.msra.mxu0 %v6626
  %6940 = vmatprep.subr.bf16.mxu0 0
  %6941 = vmatpush1.bf16.msra.mxu0 %v6627
  %6942 = vmatprep.subr.bf16.mxu0 0
  %6943 = vmatpush1.bf16.msra.mxu0 %v6628
  %6944 = vmatprep.subr.bf16.mxu0 0
  %6945 = vmatpush1.bf16.msra.mxu0 %v6629
  %6946 = vmatprep.subr.bf16.mxu0 0
  %6947 = vmatpush1.bf16.msra.mxu0 %v6630
  %6948 = vmatprep.subr.bf16.mxu0 0
  %6949 = vmatpush1.bf16.msra.mxu0 %v6631
  %6950 = vmatprep.subr.bf16.mxu0 0
  %6951 = vmatpush1.bf16.msra.mxu0 %v6632
  %6952 = vmatprep.subr.bf16.mxu0 0
  %6953 = vmatpush1.bf16.msra.mxu0 %v6633
  %6954 = vmatprep.subr.bf16.mxu0 0
  %6955 = vmatpush1.bf16.msra.mxu0 %v6634
  %6956 = vmatprep.subr.bf16.mxu0 0
  %6957 = vmatpush1.bf16.msra.mxu0 %v6635
  %6958 = vmatprep.mubr.bf16.mxu0 %v6061
  %6959 = vmatmul.mubr.bf16.gmra.mrb[0].mxu0 %v6060
  %v6960 = vpop.f32.mrb[0].mxu0
  %v6961 = vadd.f32 %v6920, %v6960
  %v6962 = vpop.f32.mrb[0].mxu0
  %v6963 = vpop.f32.mrb[0].mxu0
  %v6964 = vadd.f32 %v6923, %v6963
  %v6965 = vpop.f32.mrb[0].mxu0
  %6966 = vdwg.mxu0
  %6967 = vmatprep.subr.bf16.mxu0 0
  %6968 = vmatpush1.bf16.msra.mxu0 %v6636
  %6969 = vmatprep.subr.bf16.mxu0 0
  %6970 = vmatpush1.bf16.msra.mxu0 %v6637
  %6971 = vmatprep.subr.bf16.mxu0 0
  %6972 = vmatpush1.bf16.msra.mxu0 %v6638
  %6973 = vmatprep.subr.bf16.mxu0 0
  %6974 = vmatpush1.bf16.msra.mxu0 %v6639
  %6975 = vmatprep.subr.bf16.mxu0 0
  %6976 = vmatpush1.bf16.msra.mxu0 %v6640
  %6977 = vmatprep.subr.bf16.mxu0 0
  %6978 = vmatpush1.bf16.msra.mxu0 %v6641
  %6979 = vmatprep.subr.bf16.mxu0 0
  %6980 = vmatpush1.bf16.msra.mxu0 %v6642
  %6981 = vmatprep.subr.bf16.mxu0 0
  %6982 = vmatpush1.bf16.msra.mxu0 %v6643
  %6983 = vmatprep.subr.bf16.mxu0 0
  %6984 = vmatpush1.bf16.msra.mxu0 %v6644
  %6985 = vmatprep.subr.bf16.mxu0 0
  %6986 = vmatpush1.bf16.msra.mxu0 %v6645
  %6987 = vmatprep.subr.bf16.mxu0 0
  %6988 = vmatpush1.bf16.msra.mxu0 %v6646
  %6989 = vmatprep.subr.bf16.mxu0 0
  %6990 = vmatpush1.bf16.msra.mxu0 %v6647
  %6991 = vmatprep.subr.bf16.mxu0 0
  %6992 = vmatpush1.bf16.msra.mxu0 %v6648
  %6993 = vmatprep.subr.bf16.mxu0 0
  %6994 = vmatpush1.bf16.msra.mxu0 %v6649
  %6995 = vmatprep.subr.bf16.mxu0 0
  %6996 = vmatpush1.bf16.msra.mxu0 %v6650
  %6997 = vmatprep.subr.bf16.mxu0 0
  %6998 = vmatpush1.bf16.msra.mxu0 %v6651
  %6999 = vmatprep.mubr.bf16.mxu0 %v6063
  %7000 = vmatmul.mubr.bf16.gmra.mrb[0].mxu0 %v6062
  %v7001 = vpop.f32.mrb[0].mxu0
  %v7002 = vadd.f32 %v6961, %v7001
  %v7003 = vpop.f32.mrb[0].mxu0
  %v7004 = vpop.f32.mrb[0].mxu0
  %v7005 = vadd.f32 %v6964, %v7004
  %v7006 = vpop.f32.mrb[0].mxu0
  %7007 = vdwg.mxu0
  %7008 = vmatprep.subr.bf16.mxu0 0
  %7009 = vmatpush1.bf16.msra.mxu0 %v6652
  %7010 = vmatprep.subr.bf16.mxu0 0
  %7011 = vmatpush1.bf16.msra.mxu0 %v6653
  %7012 = vmatprep.subr.bf16.mxu0 0
  %7013 = vmatpush1.bf16.msra.mxu0 %v6654
  %7014 = vmatprep.subr.bf16.mxu0 0
  %7015 = vmatpush1.bf16.msra.mxu0 %v6655
  %7016 = vmatprep.subr.bf16.mxu0 0
  %7017 = vmatpush1.bf16.msra.mxu0 %v6656
  %7018 = vmatprep.subr.bf16.mxu0 0
  %7019 = vmatpush1.bf16.msra.mxu0 %v6657
  %7020 = vmatprep.subr.bf16.mxu0 0
  %7021 = vmatpush1.bf16.msra.mxu0 %v6658
  %7022 = vmatprep.subr.bf16.mxu0 0
  %7023 = vmatpush1.bf16.msra.mxu0 %v6659
  %7024 = vmatprep.subr.bf16.mxu0 0
  %7025 = vmatpush1.bf16.msra.mxu0 %v6660
  %7026 = vmatprep.subr.bf16.mxu0 0
  %7027 = vmatpush1.bf16.msra.mxu0 %v6661
  %7028 = vmatprep.subr.bf16.mxu0 0
  %7029 = vmatpush1.bf16.msra.mxu0 %v6662
  %7030 = vmatprep.subr.bf16.mxu0 0
  %7031 = vmatpush1.bf16.msra.mxu0 %v6663
  %7032 = vmatprep.subr.bf16.mxu0 0
  %7033 = vmatpush1.bf16.msra.mxu0 %v6664
  %7034 = vmatprep.subr.bf16.mxu0 0
  %7035 = vmatpush1.bf16.msra.mxu0 %v6665
  %7036 = vmatprep.subr.bf16.mxu0 0
  %7037 = vmatpush1.bf16.msra.mxu0 %v6666
  %7038 = vmatprep.subr.bf16.mxu0 0
  %7039 = vmatpush1.bf16.msra.mxu0 %v6667
  %7040 = vmatprep.mubr.bf16.mxu0 %v6065
  %7041 = vmatmul.mubr.bf16.gmra.mrb[0].mxu0 %v6064
  %v7042 = vpop.f32.mrb[0].mxu0
  %v7043 = vadd.f32 %v7002, %v7042
  %v7044 = vpop.f32.mrb[0].mxu0
  %v7045 = vpop.f32.mrb[0].mxu0
  %v7046 = vadd.f32 %v7005, %v7045
  %v7047 = vpop.f32.mrb[0].mxu0
  %7048 = vdwg.mxu0
  %7049 = vmatprep.subr.bf16.mxu0 0
  %7050 = vmatpush1.bf16.msra.mxu0 %v6668
  %7051 = vmatprep.subr.bf16.mxu0 0
  %7052 = vmatpush1.bf16.msra.mxu0 %v6669
  %7053 = vmatprep.subr.bf16.mxu0 0
  %7054 = vmatpush1.bf16.msra.mxu0 %v6670
  %7055 = vmatprep.subr.bf16.mxu0 0
  %7056 = vmatpush1.bf16.msra.mxu0 %v6671
  %7057 = vmatprep.subr.bf16.mxu0 0
  %7058 = vmatpush1.bf16.msra.mxu0 %v6672
  %7059 = vmatprep.subr.bf16.mxu0 0
  %7060 = vmatpush1.bf16.msra.mxu0 %v6673
  %7061 = vmatprep.subr.bf16.mxu0 0
  %7062 = vmatpush1.bf16.msra.mxu0 %v6674
  %7063 = vmatprep.subr.bf16.mxu0 0
  %7064 = vmatpush1.bf16.msra.mxu0 %v6675
  %7065 = vmatprep.subr.bf16.mxu0 0
  %7066 = vmatpush1.bf16.msra.mxu0 %v6676
  %7067 = vmatprep.subr.bf16.mxu0 0
  %7068 = vmatpush1.bf16.msra.mxu0 %v6677
  %7069 = vmatprep.subr.bf16.mxu0 0
  %7070 = vmatpush1.bf16.msra.mxu0 %v6678
  %7071 = vmatprep.subr.bf16.mxu0 0
  %7072 = vmatpush1.bf16.msra.mxu0 %v6679
  %7073 = vmatprep.subr.bf16.mxu0 0
  %7074 = vmatpush1.bf16.msra.mxu0 %v6680
  %7075 = vmatprep.subr.bf16.mxu0 0
  %7076 = vmatpush1.bf16.msra.mxu0 %v6681
  %7077 = vmatprep.subr.bf16.mxu0 0
  %7078 = vmatpush1.bf16.msra.mxu0 %v6682
  %7079 = vmatprep.subr.bf16.mxu0 0
  %7080 = vmatpush1.bf16.msra.mxu0 %v6683
  %7081 = vmatprep.mubr.bf16.mxu0 %v6067
  %7082 = vmatmul.mubr.bf16.gmra.mrb[0].mxu0 %v6066
  %v7083 = vpop.f32.mrb[0].mxu0
  %v7084 = vadd.f32 %v7043, %v7083
  %v7085 = vpop.f32.mrb[0].mxu0
  %v7086 = vpop.f32.mrb[0].mxu0
  %v7087 = vadd.f32 %v7046, %v7086
  %v7088 = vpop.f32.mrb[0].mxu0
  %7089 = vdwg.mxu0
  %7090 = vmatprep.subr.bf16.mxu0 0
  %7091 = vmatpush1.bf16.msra.mxu0 %v6684
  %7092 = vmatprep.subr.bf16.mxu0 0
  %7093 = vmatpush1.bf16.msra.mxu0 %v6685
  %7094 = vmatprep.subr.bf16.mxu0 0
  %7095 = vmatpush1.bf16.msra.mxu0 %v6686
  %7096 = vmatprep.subr.bf16.mxu0 0
  %7097 = vmatpush1.bf16.msra.mxu0 %v6687
  %7098 = vmatprep.subr.bf16.mxu0 0
  %7099 = vmatpush1.bf16.msra.mxu0 %v6688
  %7100 = vmatprep.subr.bf16.mxu0 0
  %7101 = vmatpush1.bf16.msra.mxu0 %v6689
  %7102 = vmatprep.subr.bf16.mxu0 0
  %7103 = vmatpush1.bf16.msra.mxu0 %v6690
  %7104 = vmatprep.subr.bf16.mxu0 0
  %7105 = vmatpush1.bf16.msra.mxu0 %v6691
  %7106 = vmatprep.subr.bf16.mxu0 0
  %7107 = vmatpush1.bf16.msra.mxu0 %v6692
  %7108 = vmatprep.subr.bf16.mxu0 0
  %7109 = vmatpush1.bf16.msra.mxu0 %v6693
  %7110 = vmatprep.subr.bf16.mxu0 0
  %7111 = vmatpush1.bf16.msra.mxu0 %v6694
  %7112 = vmatprep.subr.bf16.mxu0 0
  %7113 = vmatpush1.bf16.msra.mxu0 %v6695
  %7114 = vmatprep.subr.bf16.mxu0 0
  %7115 = vmatpush1.bf16.msra.mxu0 %v6696
  %7116 = vmatprep.subr.bf16.mxu0 0
  %7117 = vmatpush1.bf16.msra.mxu0 %v6697
  %7118 = vmatprep.subr.bf16.mxu0 0
  %7119 = vmatpush1.bf16.msra.mxu0 %v6698
  %7120 = vmatprep.subr.bf16.mxu0 0
  %7121 = vmatpush1.bf16.msra.mxu0 %v6699
  %7122 = vmatprep.mubr.bf16.mxu0 %v6069
  %7123 = vmatmul.mubr.bf16.gmra.mrb[0].mxu0 %v6068
  %v7124 = vpop.f32.mrb[0].mxu0
  %v7125 = vadd.f32 %v7084, %v7124
  %v7126 = vpop.f32.mrb[0].mxu0
  %v7127 = vpop.f32.mrb[0].mxu0
  %v7128 = vadd.f32 %v7087, %v7127
  %v7129 = vpop.f32.mrb[0].mxu0
  %7130 = vdwg.mxu0
  %7131 = vmatprep.subr.bf16.mxu0 0
  %7132 = vmatpush1.bf16.msra.mxu0 %v6700
  %7133 = vmatprep.subr.bf16.mxu0 0
  %7134 = vmatpush1.bf16.msra.mxu0 %v6701
  %7135 = vmatprep.subr.bf16.mxu0 0
  %7136 = vmatpush1.bf16.msra.mxu0 %v6702
  %7137 = vmatprep.subr.bf16.mxu0 0
  %7138 = vmatpush1.bf16.msra.mxu0 %v6703
  %7139 = vmatprep.subr.bf16.mxu0 0
  %7140 = vmatpush1.bf16.msra.mxu0 %v6704
  %7141 = vmatprep.subr.bf16.mxu0 0
  %7142 = vmatpush1.bf16.msra.mxu0 %v6705
  %7143 = vmatprep.subr.bf16.mxu0 0
  %7144 = vmatpush1.bf16.msra.mxu0 %v6706
  %7145 = vmatprep.subr.bf16.mxu0 0
  %7146 = vmatpush1.bf16.msra.mxu0 %v6707
  %7147 = vmatprep.subr.bf16.mxu0 0
  %7148 = vmatpush1.bf16.msra.mxu0 %v6708
  %7149 = vmatprep.subr.bf16.mxu0 0
  %7150 = vmatpush1.bf16.msra.mxu0 %v6709
  %7151 = vmatprep.subr.bf16.mxu0 0
  %7152 = vmatpush1.bf16.msra.mxu0 %v6710
  %7153 = vmatprep.subr.bf16.mxu0 0
  %7154 = vmatpush1.bf16.msra.mxu0 %v6711
  %7155 = vmatprep.subr.bf16.mxu0 0
  %7156 = vmatpush1.bf16.msra.mxu0 %v6712
  %7157 = vmatprep.subr.bf16.mxu0 0
  %7158 = vmatpush1.bf16.msra.mxu0 %v6713
  %7159 = vmatprep.subr.bf16.mxu0 0
  %7160 = vmatpush1.bf16.msra.mxu0 %v6714
  %7161 = vmatprep.subr.bf16.mxu0 0
  %7162 = vmatpush1.bf16.msra.mxu0 %v6715
  %7163 = vmatprep.mubr.bf16.mxu0 %v6071
  %7164 = vmatmul.mubr.bf16.gmra.mrb[0].mxu0 %v6070
  %v7165 = vpop.f32.mrb[0].mxu0
  %v7166 = vadd.f32 %v7125, %v7165
  %v7167 = vpop.f32.mrb[0].mxu0
  %v7168 = vpop.f32.mrb[0].mxu0
  %v7169 = vadd.f32 %v7128, %v7168
  %v7170 = vpop.f32.mrb[0].mxu0
  %7171 = vdwg.mxu0
  %v7172 = vadd.f32 %v5450, %v7166
  %v7173 = vadd.f32 %v5451, %v7169
  %v7174 = vsel %vm357, %v7172, 0.0
  %7175 = vadd.xlane.f32.xlu0 %v7174
  %v7176 = vpop.xlane.xlu0 %7175
  %v7177 = vsel %vm357, %v7173, 0.0
  %7178 = vadd.xlane.f32.xlu0 %v7177
  %v7179 = vpop.xlane.xlu0 %7178
  %v7180 = vmul.f32 %v7176, %v1824
  %v7181 = vmul.f32 %v7179, %v1824
  %v7182 = vmul.f32 %v7172, %v7172
  %v7183 = vmul.f32 %v7173, %v7173
  %v7184 = vsel %vm357, %v7182, 0.0
  %7185 = vadd.xlane.f32.xlu0 %v7184
  %v7186 = vpop.xlane.xlu0 %7185
  %v7187 = vsel %vm357, %v7183, 0.0
  %7188 = vadd.xlane.f32.xlu0 %v7187
  %v7189 = vpop.xlane.xlu0 %7188
  %v7190 = vmul.f32 %v7186, %v1824
  %v7191 = vmul.f32 %v7189, %v1824
  %v7192 = vmul.f32 %v7180, %v7180
  %v7193 = vmul.f32 %v7181, %v7181
  %v7194 = vsub.f32 %v7190, %v7192
  %v7195 = vsub.f32 %v7191, %v7193
  %v7196 = vsub.f32 %v7172, %v7180
  %v7197 = vsub.f32 %v7173, %v7181
  %v7198 = vadd.f32 %v7194, 1e-05
  %v7199 = vadd.f32 %v7195, 1e-05
  %v7200 = vrsqrt.pop %v7198
  %v7201 = vrsqrt.pop %v7199
  %v7202 = vmul.f32 %v7196, %v7200
  %v7203 = vmul.f32 %v7197, %v7201
  %v7204 = vlaneseq
  %v7205 = vshrl.u32 %v7204, 7
  %v7206 = vsub.s32 6, %v7205
  %v7207 = vrot.slane %v3920, %v7206
  %v7208 = vmul.f32 %v7202, %v7207
  %v7209 = vmul.f32 %v7203, %v7207
  %v7210 = vlaneseq
  %v7211 = vshrl.u32 %v7210, 7
  %v7212 = vsub.s32 7, %v7211
  %v7213 = vrot.slane %v3920, %v7212
  %v7214 = vadd.f32 %v7208, %v7213
  %v7215 = vadd.f32 %v7209, %v7213
  %v7216 = vld [vmem:[%s4] sm:$0xff]
  %v7217 = vld [vmem:[%s4 + $0x8] sm:$0xff]
  %v7218 = vld [vmem:[%s4 + $0x10] sm:$0xff]
  %v7219 = vld [vmem:[%s4 + $0x18] sm:$0xff]
  %v7220 = vld [vmem:[%s4 + $0x20] sm:$0xff]
  %v7221 = vld [vmem:[%s4 + $0x28] sm:$0xff]
  %v7222 = vld [vmem:[%s4 + $0x30] sm:$0xff]
  %v7223 = vld [vmem:[%s4 + $0x38] sm:$0xff]
  %v7224 = vld [vmem:[%s4 + $0x40] sm:$0xf]
  %v7225 = vld [vmem:[%s4 + $0x44] sm:$0xff]
  %v7226 = vld [vmem:[%s4 + $0x4c] sm:$0xff]
  %v7227 = vld [vmem:[%s4 + $0x54] sm:$0xff]
  %v7228 = vld [vmem:[%s4 + $0x5c] sm:$0xff]
  %v7229 = vld [vmem:[%s4 + $0x64] sm:$0xff]
  %v7230 = vld [vmem:[%s4 + $0x6c] sm:$0xff]
  %v7231 = vld [vmem:[%s4 + $0x74] sm:$0xff]
  %v7232 = vld [vmem:[%s4 + $0x7c] sm:$0xff]
  %v7233 = vld [vmem:[%s4 + $0x84] sm:$0xf]
  %v7234 = vld [vmem:[%s4 + $0x88] sm:$0xff]
  %v7235 = vld [vmem:[%s4 + $0x90] sm:$0xff]
  %v7236 = vld [vmem:[%s4 + $0x98] sm:$0xff]
  %v7237 = vld [vmem:[%s4 + $0xa0] sm:$0xff]
  %v7238 = vld [vmem:[%s4 + $0xa8] sm:$0xff]
  %v7239 = vld [vmem:[%s4 + $0xb0] sm:$0xff]
  %v7240 = vld [vmem:[%s4 + $0xb8] sm:$0xff]
  %v7241 = vld [vmem:[%s4 + $0xc0] sm:$0xff]
  %v7242 = vld [vmem:[%s4 + $0xc8] sm:$0xf]
  %v7243 = vld [vmem:[%s4 + $0xcc] sm:$0xff]
  %v7244 = vld [vmem:[%s4 + $0xd4] sm:$0xff]
  %v7245 = vld [vmem:[%s4 + $0xdc] sm:$0xff]
  %v7246 = vld [vmem:[%s4 + $0xe4] sm:$0xff]
  %v7247 = vld [vmem:[%s4 + $0xec] sm:$0xff]
  %v7248 = vld [vmem:[%s4 + $0xf4] sm:$0xff]
  %v7249 = vld [vmem:[%s4 + $0xfc] sm:$0xff]
  %v7250 = vld [vmem:[%s4 + $0x104] sm:$0xff]
  %v7251 = vld [vmem:[%s4 + $0x10c] sm:$0xf]
  %v7252 = vld [vmem:[%s6] sm:$0x7f]
  %v7253 = vld [vmem:[%s6 + $0x8] sm:$0x7f]
  %v7254 = vld [vmem:[%s6 + $0x10] sm:$0x7f]
  %v7255 = vld [vmem:[%s6 + $0x18] sm:$0x7f]
  %v7256 = vld [vmem:[%s6 + $0x20] sm:$0x7f]
  %v7257 = vld [vmem:[%s6 + $0x28] sm:$0x7f]
  %v7258 = vld [vmem:[%s6 + $0x30] sm:$0x7f]
  %v7259 = vld [vmem:[%s6 + $0x38] sm:$0x7f]
  %v7260 = vld [vmem:[%s6 + $0x40] sm:$0x7f]
  %v7261 = vld [vmem:[%s6 + $0x48] sm:$0x7f]
  %v7262 = vld [vmem:[%s6 + $0x50] sm:$0x7f]
  %v7263 = vld [vmem:[%s6 + $0x58] sm:$0x7f]
  %v7264 = vld [vmem:[%s6 + $0x60] sm:$0x7f]
  %v7265 = vld [vmem:[%s6 + $0x68] sm:$0x7f]
  %v7266 = vld [vmem:[%s6 + $0x70] sm:$0x7f]
  %v7267 = vld [vmem:[%s6 + $0x78] sm:$0x7f]
  %v7268 = vld [vmem:[%s5] sm:$0xf]
  %v7269 = vld [vmem:[%s5 + $0x4] sm:$0xf]
  %v7270 = vld [vmem:[%s5 + $0x8] sm:$0xf]
  %v7271 = vld [vmem:[%s5 + $0xc] sm:$0xf]
  %v7272 = vld [vmem:[%s5 + $0x10] sm:$0xf]
  %v7273 = vld [vmem:[%s5 + $0x14] sm:$0xf]
  %v7274 = vld [vmem:[%s5 + $0x18] sm:$0xf]
  %v7275 = vld [vmem:[%s5 + $0x1c] sm:$0xf]
  %v7276 = vld [vmem:[%s5 + $0x20] sm:$0xf]
  %v7277 = vld [vmem:[%s5 + $0x24] sm:$0xf]
  %v7278 = vld [vmem:[%s5 + $0x28] sm:$0xf]
  %v7279 = vld [vmem:[%s5 + $0x2c] sm:$0xf]
  %v7280 = vld [vmem:[%s5 + $0x30] sm:$0xf]
  %v7281 = vld [vmem:[%s5 + $0x34] sm:$0xf]
  %v7282 = vld [vmem:[%s5 + $0x38] sm:$0xf]
  %v7283 = vld [vmem:[%s5 + $0x3c] sm:$0xf]
  %v7284 = vld [vmem:[%s5 + $0x40] sm:$0xf]
  %v7285 = vld [vmem:[%s5 + $0x44] sm:$0xf]
  %v7286 = vld [vmem:[%s5 + $0x48] sm:$0xf]
  %v7287 = vld [vmem:[%s5 + $0x4c] sm:$0xf]
  %v7288 = vld [vmem:[%s5 + $0x50] sm:$0xf]
  %v7289 = vld [vmem:[%s5 + $0x54] sm:$0xf]
  %v7290 = vld [vmem:[%s5 + $0x58] sm:$0xf]
  %v7291 = vld [vmem:[%s5 + $0x5c] sm:$0xf]
  %v7292 = vld [vmem:[%s5 + $0x60] sm:$0xf]
  %v7293 = vld [vmem:[%s5 + $0x64] sm:$0xf]
  %v7294 = vld [vmem:[%s5 + $0x68] sm:$0xf]
  %v7295 = vld [vmem:[%s5 + $0x6c] sm:$0xf]
  %v7296 = vld [vmem:[%s5 + $0x70] sm:$0xf]
  %v7297 = vld [vmem:[%s5 + $0x74] sm:$0xf]
  %v7298 = vld [vmem:[%s5 + $0x78] sm:$0xf]
  %v7299 = vld [vmem:[%s5 + $0x7c] sm:$0xf]
  %v7300 = vld [vmem:[%s5 + $0x80] sm:$0xf]
  %v7301 = vld [vmem:[%s5 + $0x84] sm:$0xf]
  %v7302 = vld [vmem:[%s5 + $0x88] sm:$0xf]
  %v7303 = vld [vmem:[%s5 + $0x8c] sm:$0xf]
  %v7304 = vld [vmem:[%s5 + $0x90] sm:$0xf]
  %v7305 = vld [vmem:[%s5 + $0x94] sm:$0xf]
  %v7306 = vld [vmem:[%s5 + $0x98] sm:$0xf]
  %v7307 = vld [vmem:[%s5 + $0x9c] sm:$0xf]
  %v7308 = vld [vmem:[%s5 + $0xa0] sm:$0xf]
  %v7309 = vld [vmem:[%s5 + $0xa4] sm:$0xf]
  %v7310 = vld [vmem:[%s5 + $0xa8] sm:$0xf]
  %v7311 = vld [vmem:[%s5 + $0xac] sm:$0xf]
  %v7312 = vld [vmem:[%s5 + $0xb0] sm:$0xf]
  %v7313 = vld [vmem:[%s5 + $0xb4] sm:$0xf]
  %v7314 = vld [vmem:[%s5 + $0xb8] sm:$0xf]
  %v7315 = vld [vmem:[%s5 + $0xbc] sm:$0xf]
  %v7316 = vld [vmem:[%s5 + $0xc0] sm:$0xf]
  %v7317 = vld [vmem:[%s5 + $0xc4] sm:$0xf]
  %v7318 = vld [vmem:[%s5 + $0xc8] sm:$0xf]
  %v7319 = vld [vmem:[%s5 + $0xcc] sm:$0xf]
  %v7320 = vld [vmem:[%s5 + $0xd0] sm:$0xf]
  %v7321 = vld [vmem:[%s5 + $0xd4] sm:$0xf]
  %v7322 = vld [vmem:[%s5 + $0xd8] sm:$0xf]
  %v7323 = vld [vmem:[%s5 + $0xdc] sm:$0xf]
  %v7324 = vld [vmem:[%s5 + $0xe0] sm:$0xf]
  %v7325 = vld [vmem:[%s5 + $0xe4] sm:$0xf]
  %v7326 = vld [vmem:[%s5 + $0xe8] sm:$0xf]
  %v7327 = vld [vmem:[%s5 + $0xec] sm:$0xf]
  %v7328 = vld [vmem:[%s5 + $0xf0] sm:$0xf]
  %v7329 = vld [vmem:[%s5 + $0xf4] sm:$0xf]
  %v7330 = vld [vmem:[%s5 + $0xf8] sm:$0xf]
  %v7331 = vld [vmem:[%s5 + $0xfc] sm:$0xf]
  %v7332 = vld [vmem:[%s5 + $0x100] sm:$0xf]
  %v7333 = vld [vmem:[%s5 + $0x104] sm:$0xf]
  %v7334 = vld [vmem:[%s5 + $0x108] sm:$0xf]
  %v7335 = vld [vmem:[%s5 + $0x10c] sm:$0xf]
  %v7336 = vld [vmem:[%s5 + $0x110] sm:$0xf]
  %v7337 = vld [vmem:[%s5 + $0x114] sm:$0xf]
  %v7338 = vld [vmem:[%s5 + $0x118] sm:$0xf]
  %v7339 = vld [vmem:[%s5 + $0x11c] sm:$0xf]
  %v7340 = vld [vmem:[%s5 + $0x120] sm:$0xf]
  %v7341 = vld [vmem:[%s5 + $0x124] sm:$0xf]
  %v7342 = vld [vmem:[%s5 + $0x128] sm:$0xf]
  %v7343 = vld [vmem:[%s5 + $0x12c] sm:$0xf]
  %v7344 = vld [vmem:[%s5 + $0x130] sm:$0xf]
  %v7345 = vld [vmem:[%s5 + $0x134] sm:$0xf]
  %v7346 = vld [vmem:[%s5 + $0x138] sm:$0xf]
  %v7347 = vld [vmem:[%s5 + $0x13c] sm:$0xf]
  %v7348 = vld [vmem:[%s5 + $0x140] sm:$0xf]
  %v7349 = vld [vmem:[%s5 + $0x144] sm:$0xf]
  %v7350 = vld [vmem:[%s5 + $0x148] sm:$0xf]
  %v7351 = vld [vmem:[%s5 + $0x14c] sm:$0xf]
  %v7352 = vld [vmem:[%s5 + $0x150] sm:$0xf]
  %v7353 = vld [vmem:[%s5 + $0x154] sm:$0xf]
  %v7354 = vld [vmem:[%s5 + $0x158] sm:$0xf]
  %v7355 = vld [vmem:[%s5 + $0x15c] sm:$0xf]
  %v7356 = vld [vmem:[%s5 + $0x160] sm:$0xf]
  %v7357 = vld [vmem:[%s5 + $0x164] sm:$0xf]
  %v7358 = vld [vmem:[%s5 + $0x168] sm:$0xf]
  %v7359 = vld [vmem:[%s5 + $0x16c] sm:$0xf]
  %v7360 = vld [vmem:[%s5 + $0x170] sm:$0xf]
  %v7361 = vld [vmem:[%s5 + $0x174] sm:$0xf]
  %v7362 = vld [vmem:[%s5 + $0x178] sm:$0xf]
  %v7363 = vld [vmem:[%s5 + $0x17c] sm:$0xf]
  %v7364 = vld [vmem:[%s5 + $0x180] sm:$0xf]
  %v7365 = vld [vmem:[%s5 + $0x184] sm:$0xf]
  %v7366 = vld [vmem:[%s5 + $0x188] sm:$0xf]
  %v7367 = vld [vmem:[%s5 + $0x18c] sm:$0xf]
  %v7368 = vld [vmem:[%s5 + $0x190] sm:$0xf]
  %v7369 = vld [vmem:[%s5 + $0x194] sm:$0xf]
  %v7370 = vld [vmem:[%s5 + $0x198] sm:$0xf]
  %v7371 = vld [vmem:[%s5 + $0x19c] sm:$0xf]
  %v7372 = vld [vmem:[%s5 + $0x1a0] sm:$0xf]
  %v7373 = vld [vmem:[%s5 + $0x1a4] sm:$0xf]
  %v7374 = vld [vmem:[%s5 + $0x1a8] sm:$0xf]
  %v7375 = vld [vmem:[%s5 + $0x1ac] sm:$0xf]
  %v7376 = vld [vmem:[%s5 + $0x1b0] sm:$0xf]
  %v7377 = vld [vmem:[%s5 + $0x1b4] sm:$0xf]
  %v7378 = vld [vmem:[%s5 + $0x1b8] sm:$0xf]
  %v7379 = vld [vmem:[%s5 + $0x1bc] sm:$0xf]
  %v7380 = vld [vmem:[%s5 + $0x1c0] sm:$0xf]
  %v7381 = vld [vmem:[%s5 + $0x1c4] sm:$0xf]
  %v7382 = vld [vmem:[%s5 + $0x1c8] sm:$0xf]
  %v7383 = vld [vmem:[%s5 + $0x1cc] sm:$0xf]
  %v7384 = vld [vmem:[%s5 + $0x1d0] sm:$0xf]
  %v7385 = vld [vmem:[%s5 + $0x1d4] sm:$0xf]
  %v7386 = vld [vmem:[%s5 + $0x1d8] sm:$0xf]
  %v7387 = vld [vmem:[%s5 + $0x1dc] sm:$0xf]
  %v7388 = vld [vmem:[%s5 + $0x1e0] sm:$0xf]
  %v7389 = vld [vmem:[%s5 + $0x1e4] sm:$0xf]
  %v7390 = vld [vmem:[%s5 + $0x1e8] sm:$0xf]
  %v7391 = vld [vmem:[%s5 + $0x1ec] sm:$0xf]
  %v7392 = vld [vmem:[%s5 + $0x1f0] sm:$0xf]
  %v7393 = vld [vmem:[%s5 + $0x1f4] sm:$0xf]
  %v7394 = vld [vmem:[%s5 + $0x1f8] sm:$0xf]
  %v7395 = vld [vmem:[%s5 + $0x1fc] sm:$0xf]
  %v7396 = vld [vmem:[%s5 + $0x200] sm:$0xf]
  %v7397 = vld [vmem:[%s5 + $0x204] sm:$0xf]
  %v7398 = vld [vmem:[%s5 + $0x208] sm:$0xf]
  %v7399 = vld [vmem:[%s5 + $0x20c] sm:$0xf]
  %v7400 = vld [vmem:[%s5 + $0x210] sm:$0xf]
  %v7401 = vld [vmem:[%s5 + $0x214] sm:$0xf]
  %v7402 = vld [vmem:[%s5 + $0x218] sm:$0xf]
  %v7403 = vld [vmem:[%s5 + $0x21c] sm:$0xf]
  %v7404 = vld [vmem:[%s5 + $0x220] sm:$0xf]
  %v7405 = vld [vmem:[%s5 + $0x224] sm:$0xf]
  %v7406 = vld [vmem:[%s5 + $0x228] sm:$0xf]
  %v7407 = vld [vmem:[%s5 + $0x22c] sm:$0xf]
  %v7408 = vld [vmem:[%s5 + $0x230] sm:$0xf]
  %v7409 = vld [vmem:[%s5 + $0x234] sm:$0xf]
  %v7410 = vld [vmem:[%s5 + $0x238] sm:$0xf]
  %v7411 = vld [vmem:[%s5 + $0x23c] sm:$0xf]
  %v7412 = vld [vmem:[%s5 + $0x240] sm:$0xf]
  %v7413 = vld [vmem:[%s5 + $0x244] sm:$0xf]
  %v7414 = vld [vmem:[%s5 + $0x248] sm:$0xf]
  %v7415 = vld [vmem:[%s5 + $0x24c] sm:$0xf]
  %v7416 = vld [vmem:[%s5 + $0x250] sm:$0xf]
  %v7417 = vld [vmem:[%s5 + $0x254] sm:$0xf]
  %v7418 = vld [vmem:[%s5 + $0x258] sm:$0xf]
  %v7419 = vld [vmem:[%s5 + $0x25c] sm:$0xf]
  %v7420 = vld [vmem:[%s5 + $0x260] sm:$0xf]
  %v7421 = vld [vmem:[%s5 + $0x264] sm:$0xf]
  %v7422 = vld [vmem:[%s5 + $0x268] sm:$0xf]
  %v7423 = vld [vmem:[%s5 + $0x26c] sm:$0xf]
  %v7424 = vld [vmem:[%s5 + $0x270] sm:$0xf]
  %v7425 = vld [vmem:[%s5 + $0x274] sm:$0xf]
  %v7426 = vld [vmem:[%s5 + $0x278] sm:$0xf]
  %v7427 = vld [vmem:[%s5 + $0x27c] sm:$0xf]
  %v7428 = vld [vmem:[%s5 + $0x280] sm:$0xf]
  %v7429 = vld [vmem:[%s5 + $0x284] sm:$0xf]
  %v7430 = vld [vmem:[%s5 + $0x288] sm:$0xf]
  %v7431 = vld [vmem:[%s5 + $0x28c] sm:$0xf]
  %v7432 = vld [vmem:[%s5 + $0x290] sm:$0xf]
  %v7433 = vld [vmem:[%s5 + $0x294] sm:$0xf]
  %v7434 = vld [vmem:[%s5 + $0x298] sm:$0xf]
  %v7435 = vld [vmem:[%s5 + $0x29c] sm:$0xf]
  %v7436 = vld [vmem:[%s5 + $0x2a0] sm:$0xf]
  %v7437 = vld [vmem:[%s5 + $0x2a4] sm:$0xf]
  %v7438 = vld [vmem:[%s5 + $0x2a8] sm:$0xf]
  %v7439 = vld [vmem:[%s5 + $0x2ac] sm:$0xf]
  %v7440 = vld [vmem:[%s5 + $0x2b0] sm:$0xf]
  %v7441 = vld [vmem:[%s5 + $0x2b4] sm:$0xf]
  %v7442 = vld [vmem:[%s5 + $0x2b8] sm:$0xf]
  %v7443 = vld [vmem:[%s5 + $0x2bc] sm:$0xf]
  %v7444 = vld [vmem:[%s5 + $0x2c0] sm:$0xf]
  %v7445 = vld [vmem:[%s5 + $0x2c4] sm:$0xf]
  %v7446 = vld [vmem:[%s5 + $0x2c8] sm:$0xf]
  %v7447 = vld [vmem:[%s5 + $0x2cc] sm:$0xf]
  %v7448 = vld [vmem:[%s5 + $0x2d0] sm:$0xf]
  %v7449 = vld [vmem:[%s5 + $0x2d4] sm:$0xf]
  %v7450 = vld [vmem:[%s5 + $0x2d8] sm:$0xf]
  %v7451 = vld [vmem:[%s5 + $0x2dc] sm:$0xf]
  %v7452 = vld [vmem:[%s5 + $0x2e0] sm:$0xf]
  %v7453 = vld [vmem:[%s5 + $0x2e4] sm:$0xf]
  %v7454 = vld [vmem:[%s5 + $0x2e8] sm:$0xf]
  %v7455 = vld [vmem:[%s5 + $0x2ec] sm:$0xf]
  %v7456 = vld [vmem:[%s5 + $0x2f0] sm:$0xf]
  %v7457 = vld [vmem:[%s5 + $0x2f4] sm:$0xf]
  %v7458 = vld [vmem:[%s5 + $0x2f8] sm:$0xf]
  %v7459 = vld [vmem:[%s5 + $0x2fc] sm:$0xf]
  %v7460 = vld [vmem:[%s5 + $0x300] sm:$0xf]
  %v7461 = vld [vmem:[%s5 + $0x304] sm:$0xf]
  %v7462 = vld [vmem:[%s5 + $0x308] sm:$0xf]
  %v7463 = vld [vmem:[%s5 + $0x30c] sm:$0xf]
  %v7464 = vld [vmem:[%s5 + $0x310] sm:$0xf]
  %v7465 = vld [vmem:[%s5 + $0x314] sm:$0xf]
  %v7466 = vld [vmem:[%s5 + $0x318] sm:$0xf]
  %v7467 = vld [vmem:[%s5 + $0x31c] sm:$0xf]
  %v7468 = vld [vmem:[%s5 + $0x320] sm:$0xf]
  %v7469 = vld [vmem:[%s5 + $0x324] sm:$0xf]
  %v7470 = vld [vmem:[%s5 + $0x328] sm:$0xf]
  %v7471 = vld [vmem:[%s5 + $0x32c] sm:$0xf]
  %v7472 = vld [vmem:[%s5 + $0x330] sm:$0xf]
  %v7473 = vld [vmem:[%s5 + $0x334] sm:$0xf]
  %v7474 = vld [vmem:[%s5 + $0x338] sm:$0xf]
  %v7475 = vld [vmem:[%s5 + $0x33c] sm:$0xf]
  %v7476 = vld [vmem:[%s5 + $0x340] sm:$0xf]
  %v7477 = vld [vmem:[%s5 + $0x344] sm:$0xf]
  %v7478 = vld [vmem:[%s5 + $0x348] sm:$0xf]
  %v7479 = vld [vmem:[%s5 + $0x34c] sm:$0xf]
  %v7480 = vld [vmem:[%s5 + $0x350] sm:$0xf]
  %v7481 = vld [vmem:[%s5 + $0x354] sm:$0xf]
  %v7482 = vld [vmem:[%s5 + $0x358] sm:$0xf]
  %v7483 = vld [vmem:[%s5 + $0x35c] sm:$0xf]
  %v7484 = vld [vmem:[%s5 + $0x360] sm:$0xf]
  %v7485 = vld [vmem:[%s5 + $0x364] sm:$0xf]
  %v7486 = vld [vmem:[%s5 + $0x368] sm:$0xf]
  %v7487 = vld [vmem:[%s5 + $0x36c] sm:$0xf]
  %v7488 = vld [vmem:[%s5 + $0x370] sm:$0xf]
  %v7489 = vld [vmem:[%s5 + $0x374] sm:$0xf]
  %v7490 = vld [vmem:[%s5 + $0x378] sm:$0xf]
  %v7491 = vld [vmem:[%s5 + $0x37c] sm:$0xf]
  %v7492 = vld [vmem:[%s5 + $0x380] sm:$0xf]
  %v7493 = vld [vmem:[%s5 + $0x384] sm:$0xf]
  %v7494 = vld [vmem:[%s5 + $0x388] sm:$0xf]
  %v7495 = vld [vmem:[%s5 + $0x38c] sm:$0xf]
  %v7496 = vld [vmem:[%s5 + $0x390] sm:$0xf]
  %v7497 = vld [vmem:[%s5 + $0x394] sm:$0xf]
  %v7498 = vld [vmem:[%s5 + $0x398] sm:$0xf]
  %v7499 = vld [vmem:[%s5 + $0x39c] sm:$0xf]
  %v7500 = vld [vmem:[%s5 + $0x3a0] sm:$0xf]
  %v7501 = vld [vmem:[%s5 + $0x3a4] sm:$0xf]
  %v7502 = vld [vmem:[%s5 + $0x3a8] sm:$0xf]
  %v7503 = vld [vmem:[%s5 + $0x3ac] sm:$0xf]
  %v7504 = vld [vmem:[%s5 + $0x3b0] sm:$0xf]
  %v7505 = vld [vmem:[%s5 + $0x3b4] sm:$0xf]
  %v7506 = vld [vmem:[%s5 + $0x3b8] sm:$0xf]
  %v7507 = vld [vmem:[%s5 + $0x3bc] sm:$0xf]
  %v7508 = vld [vmem:[%s5 + $0x3c0] sm:$0xf]
  %v7509 = vld [vmem:[%s5 + $0x3c4] sm:$0xf]
  %v7510 = vld [vmem:[%s5 + $0x3c8] sm:$0xf]
  %v7511 = vld [vmem:[%s5 + $0x3cc] sm:$0xf]
  %v7512 = vld [vmem:[%s5 + $0x3d0] sm:$0xf]
  %v7513 = vld [vmem:[%s5 + $0x3d4] sm:$0xf]
  %v7514 = vld [vmem:[%s5 + $0x3d8] sm:$0xf]
  %v7515 = vld [vmem:[%s5 + $0x3dc] sm:$0xf]
  %v7516 = vld [vmem:[%s5 + $0x3e0] sm:$0xf]
  %v7517 = vld [vmem:[%s5 + $0x3e4] sm:$0xf]
  %v7518 = vld [vmem:[%s5 + $0x3e8] sm:$0xf]
  %v7519 = vld [vmem:[%s5 + $0x3ec] sm:$0xf]
  %v7520 = vld [vmem:[%s5 + $0x3f0] sm:$0xf]
  %v7521 = vld [vmem:[%s5 + $0x3f4] sm:$0xf]
  %v7522 = vld [vmem:[%s5 + $0x3f8] sm:$0xf]
  %v7523 = vld [vmem:[%s5 + $0x3fc] sm:$0xf]
  %v7524 = vpack.c.bf16 %v7214, %v7214
  %v7525 = vpack.c.bf16 %v7215, %v7215
  %v7526 = vlaneseq
  %v7527 = vshrl.u32 %v7526, 7
  %v7528 = vsub.s32 0, %v7527
  %v7529 = vrot.slane %v7252, %v7528
  %v7532 = vunpack.c.l.b16 %v7524
  %v7533 = vunpack.c.l.b16 %v7525
  %v7534 = vrot.slane %v7532, 7
  %v7535 = vrot.slane %v7533, 6
  %vm7536 = vcmask 1041409
  %v7537 = vsel %vm7536, %v7535, %v7534
  %v7538 = vpack.c.b16 %v7537, %v7537
  %v7543 = vunpack.c.l.b16 %v7216
  %v7544 = vunpack.c.l.b16 %v7225
  %v7545 = vunpack.c.l.b16 %v7234
  %v7546 = vunpack.c.l.b16 %v7243
  %v7547 = vpack.c.b16 %v7544, %v7543
  %v7548 = vpack.c.b16 %v7546, %v7545
  %v7552 = vsel %vm357, %v7538, 0
  %7554 = vmatprep.subr.bf16.mxu0 0
  %7555 = vmatpush1.bf16.msra.mxu0 %v7547
  %7556 = vmatprep.subr.bf16.mxu0 0
  %7557 = vmatpush1.bf16.msra.mxu0 %v7548
  %7558 = vmatprep.subr.bf16.mxu0 0
  %7559 = vmatpush1.bf16.msra.mxu0 0
  %7560 = vmatprep.subr.bf16.mxu0 0
  %7561 = vmatpush1.bf16.msra.mxu0 0
  %7562 = vmatprep.subr.bf16.mxu0 0
  %7563 = vmatpush1.bf16.msra.mxu0 0
  %7564 = vmatprep.subr.bf16.mxu0 0
  %7565 = vmatpush1.bf16.msra.mxu0 0
  %7566 = vmatprep.subr.bf16.mxu0 0
  %7567 = vmatpush1.bf16.msra.mxu0 0
  %7568 = vmatprep.subr.bf16.mxu0 0
  %7569 = vmatpush1.bf16.msra.mxu0 0
  %7570 = vmatprep.subr.bf16.mxu0 0
  %7571 = vmatpush1.bf16.msra.mxu0 0
  %7572 = vmatprep.subr.bf16.mxu0 0
  %7573 = vmatpush1.bf16.msra.mxu0 0
  %7574 = vmatprep.subr.bf16.mxu0 0
  %7575 = vmatpush1.bf16.msra.mxu0 0
  %7576 = vmatprep.subr.bf16.mxu0 0
  %7577 = vmatpush1.bf16.msra.mxu0 0
  %7578 = vmatprep.subr.bf16.mxu0 0
  %7579 = vmatpush1.bf16.msra.mxu0 0
  %7580 = vmatprep.subr.bf16.mxu0 0
  %7581 = vmatpush1.bf16.msra.mxu0 0
  %7582 = vmatprep.subr.bf16.mxu0 0
  %7583 = vmatpush1.bf16.msra.mxu0 0
  %7584 = vmatprep.subr.bf16.mxu0 0
  %7585 = vmatpush1.bf16.msra.mxu0 0
  %7586 = vmatprep.mubr.bf16.mxu0 0
  %7587 = vmatmul.mubr.bf16.gmra.mrb[0].mxu0 %v7552
  %v7588 = vpop.f32.mrb[0].mxu0
  %v7589 = vadd.f32 %v7529, %v7588
  %v7590 = vpop.f32.mrb[0].mxu0
  %v7591 = vpop.f32.mrb[0].mxu0
  %v7592 = vpop.f32.mrb[0].mxu0
  %7593 = vdwg.mxu0
  %v7595 = vrot.slane %v7589, 1
  %v7596 = vrot.slane %v7589, 2
  %v7599 = vadd.f32 %v7214, %v7595
  %v7600 = vadd.f32 %v7215, %v7596
  %v7603 = vrot.slane %v7600, 7
  %vm7606 = vcmask 261127
  %v7607 = vsel %vm7606, %v7599, 0.0
  %7608 = vadd.xlane.f32.xlu0 %v7607
  %v7609 = vpop.xlane.xlu0 %7608
  %vm7610 = vcmask 253952
  %v7611 = vsel %vm7610, %v7603, 0.0
  %7612 = vadd.xlane.f32.xlu0 %v7611
  %v7613 = vpop.xlane.xlu0 %7612
  %v7614 = vmul.f32 %v7609, %v1824
  %v7615 = vmul.f32 %v7613, %v1824
  %v7616 = vmul.f32 %v7599, %v7599
  %v7617 = vmul.f32 %v7600, %v7600
  %v7620 = vrot.slane %v7617, 7
  %v7623 = vsel %vm7606, %v7616, 0.0
  %7624 = vadd.xlane.f32.xlu0 %v7623
  %v7625 = vpop.xlane.xlu0 %7624
  %v7626 = vsel %vm7610, %v7620, 0.0
  %7627 = vadd.xlane.f32.xlu0 %v7626
  %v7628 = vpop.xlane.xlu0 %7627
  %v7629 = vmul.f32 %v7625, %v1824
  %v7630 = vmul.f32 %v7628, %v1824
  %v7631 = vmul.f32 %v7614, %v7614
  %v7632 = vmul.f32 %v7615, %v7615
  %v7633 = vsub.f32 %v7629, %v7631
  %v7634 = vsub.f32 %v7630, %v7632
  %v7637 = vrot.slane %v7615, 1
  %v7640 = vsub.f32 %v7599, %v7614
  %v7641 = vsub.f32 %v7600, %v7637
  %v7642 = vadd.f32 %v7633, 1e-05
  %v7643 = vadd.f32 %v7634, 1e-05
  %v7644 = vrsqrt.pop %v7642
  %v7645 = vrsqrt.pop %v7643
  %v7648 = vrot.slane %v7645, 1
  %v7651 = vmul.f32 %v7640, %v7644
  %v7652 = vmul.f32 %v7641, %v7648
  %v7653 = vlaneseq
  %v7654 = vshrl.u32 %v7653, 7
  %v7655 = vsub.s32 1, %v7654
  %v7656 = vrot.slane %v7252, %v7655
  %v7657 = vmul.f32 %v7651, %v7656
  %v7658 = vmul.f32 %v7652, %v7656
  %v7659 = vlaneseq
  %v7660 = vshrl.u32 %v7659, 7
  %v7661 = vsub.s32 2, %v7660
  %v7662 = vrot.slane %v7252, %v7661
  %v7663 = vadd.f32 %v7657, %v7662
  %v7664 = vadd.f32 %v7658, %v7662
  %v7665 = vpack.c.bf16 %v7663, %v7663
  %v7666 = vpack.c.bf16 %v7664, %v7664
  %v7667 = vlaneseq
  %v7668 = vshrl.u32 %v7667, 7
  %v7669 = vsub.s32 3, %v7668
  %v7670 = vrot.slane %v7252, %v7669
  %v7671 = vlaneseq
  %v7672 = vshrl.u32 %v7671, 7
  %v7673 = vsub.s32 3, %v7672
  %v7674 = vrot.slane %v7253, %v7673
  %v7675 = vlaneseq
  %v7676 = vshrl.u32 %v7675, 7
  %v7677 = vsub.s32 3, %v7676
  %v7678 = vrot.slane %v7254, %v7677
  %v7679 = vlaneseq
  %v7680 = vshrl.u32 %v7679, 7
  %v7681 = vsub.s32 3, %v7680
  %v7682 = vrot.slane %v7255, %v7681
  %v7683 = vlaneseq
  %v7684 = vshrl.u32 %v7683, 7
  %v7685 = vsub.s32 3, %v7684
  %v7686 = vrot.slane %v7256, %v7685
  %v7687 = vlaneseq
  %v7688 = vshrl.u32 %v7687, 7
  %v7689 = vsub.s32 3, %v7688
  %v7690 = vrot.slane %v7257, %v7689
  %v7691 = vlaneseq
  %v7692 = vshrl.u32 %v7691, 7
  %v7693 = vsub.s32 3, %v7692
  %v7694 = vrot.slane %v7258, %v7693
  %v7695 = vlaneseq
  %v7696 = vshrl.u32 %v7695, 7
  %v7697 = vsub.s32 3, %v7696
  %v7698 = vrot.slane %v7259, %v7697
  %v7699 = vlaneseq
  %v7700 = vshrl.u32 %v7699, 7
  %v7701 = vsub.s32 3, %v7700
  %v7702 = vrot.slane %v7260, %v7701
  %v7703 = vlaneseq
  %v7704 = vshrl.u32 %v7703, 7
  %v7705 = vsub.s32 3, %v7704
  %v7706 = vrot.slane %v7261, %v7705
  %v7707 = vlaneseq
  %v7708 = vshrl.u32 %v7707, 7
  %v7709 = vsub.s32 3, %v7708
  %v7710 = vrot.slane %v7262, %v7709
  %v7711 = vlaneseq
  %v7712 = vshrl.u32 %v7711, 7
  %v7713 = vsub.s32 3, %v7712
  %v7714 = vrot.slane %v7263, %v7713
  %v7715 = vlaneseq
  %v7716 = vshrl.u32 %v7715, 7
  %v7717 = vsub.s32 3, %v7716
  %v7718 = vrot.slane %v7264, %v7717
  %v7719 = vlaneseq
  %v7720 = vshrl.u32 %v7719, 7
  %v7721 = vsub.s32 3, %v7720
  %v7722 = vrot.slane %v7265, %v7721
  %v7723 = vlaneseq
  %v7724 = vshrl.u32 %v7723, 7
  %v7725 = vsub.s32 3, %v7724
  %v7726 = vrot.slane %v7266, %v7725
  %v7727 = vlaneseq
  %v7728 = vshrl.u32 %v7727, 7
  %v7729 = vsub.s32 3, %v7728
  %v7730 = vrot.slane %v7267, %v7729
  %v7733 = vunpack.c.l.b16 %v7665
  %v7734 = vunpack.c.l.b16 %v7666
  %v7735 = vrot.slane %v7733, 7
  %v7736 = vrot.slane %v7734, 6
  %v7737 = vsel %vm7536, %v7736, %v7735
  %v7738 = vpack.c.b16 %v7737, %v7737
  %v7771 = vunpack.c.h.b16 %v7216
  %v7772 = vunpack.c.l.b16 %v7217
  %v7773 = vunpack.c.h.b16 %v7217
  %v7774 = vunpack.c.l.b16 %v7218
  %v7775 = vunpack.c.h.b16 %v7218
  %v7776 = vunpack.c.l.b16 %v7219
  %v7777 = vunpack.c.h.b16 %v7219
  %v7778 = vunpack.c.l.b16 %v7220
  %v7779 = vunpack.c.h.b16 %v7220
  %v7780 = vunpack.c.l.b16 %v7221
  %v7781 = vunpack.c.h.b16 %v7221
  %v7782 = vunpack.c.l.b16 %v7222
  %v7783 = vunpack.c.h.b16 %v7222
  %v7784 = vunpack.c.l.b16 %v7223
  %v7785 = vunpack.c.h.b16 %v7223
  %v7786 = vunpack.c.l.b16 %v7224
  %v7787 = vunpack.c.h.b16 %v7225
  %v7788 = vunpack.c.l.b16 %v7226
  %v7789 = vunpack.c.h.b16 %v7226
  %v7790 = vunpack.c.l.b16 %v7227
  %v7791 = vunpack.c.h.b16 %v7227
  %v7792 = vunpack.c.l.b16 %v7228
  %v7793 = vunpack.c.h.b16 %v7228
  %v7794 = vunpack.c.l.b16 %v7229
  %v7795 = vunpack.c.h.b16 %v7229
  %v7796 = vunpack.c.l.b16 %v7230
  %v7797 = vunpack.c.h.b16 %v7230
  %v7798 = vunpack.c.l.b16 %v7231
  %v7799 = vunpack.c.h.b16 %v7231
  %v7800 = vunpack.c.l.b16 %v7232
  %v7801 = vunpack.c.h.b16 %v7232
  %v7802 = vunpack.c.l.b16 %v7233
  %v7803 = vunpack.c.h.b16 %v7234
  %v7804 = vunpack.c.l.b16 %v7235
  %v7805 = vunpack.c.h.b16 %v7235
  %v7806 = vunpack.c.l.b16 %v7236
  %v7807 = vunpack.c.h.b16 %v7236
  %v7808 = vunpack.c.l.b16 %v7237
  %v7809 = vunpack.c.h.b16 %v7237
  %v7810 = vunpack.c.l.b16 %v7238
  %v7811 = vunpack.c.h.b16 %v7238
  %v7812 = vunpack.c.l.b16 %v7239
  %v7813 = vunpack.c.h.b16 %v7239
  %v7814 = vunpack.c.l.b16 %v7240
  %v7815 = vunpack.c.h.b16 %v7240
  %v7816 = vunpack.c.l.b16 %v7241
  %v7817 = vunpack.c.h.b16 %v7241
  %v7818 = vunpack.c.l.b16 %v7242
  %v7819 = vunpack.c.h.b16 %v7243
  %v7820 = vunpack.c.l.b16 %v7244
  %v7821 = vunpack.c.h.b16 %v7244
  %v7822 = vunpack.c.l.b16 %v7245
  %v7823 = vunpack.c.h.b16 %v7245
  %v7824 = vunpack.c.l.b16 %v7246
  %v7825 = vunpack.c.h.b16 %v7246
  %v7826 = vunpack.c.l.b16 %v7247
  %v7827 = vunpack.c.h.b16 %v7247
  %v7828 = vunpack.c.l.b16 %v7248
  %v7829 = vunpack.c.h.b16 %v7248
  %v7830 = vunpack.c.l.b16 %v7249
  %v7831 = vunpack.c.h.b16 %v7249
  %v7832 = vunpack.c.l.b16 %v7250
  %v7833 = vunpack.c.h.b16 %v7250
  %v7834 = vunpack.c.l.b16 %v7251
  %v7835 = vpack.c.b16 %v7787, %v7771
  %v7836 = vpack.c.b16 %v7788, %v7772
  %v7837 = vpack.c.b16 %v7789, %v7773
  %v7838 = vpack.c.b16 %v7790, %v7774
  %v7839 = vpack.c.b16 %v7791, %v7775
  %v7840 = vpack.c.b16 %v7792, %v7776
  %v7841 = vpack.c.b16 %v7793, %v7777
  %v7842 = vpack.c.b16 %v7794, %v7778
  %v7843 = vpack.c.b16 %v7795, %v7779
  %v7844 = vpack.c.b16 %v7796, %v7780
  %v7845 = vpack.c.b16 %v7797, %v7781
  %v7846 = vpack.c.b16 %v7798, %v7782
  %v7847 = vpack.c.b16 %v7799, %v7783
  %v7848 = vpack.c.b16 %v7800, %v7784
  %v7849 = vpack.c.b16 %v7801, %v7785
  %v7850 = vpack.c.b16 %v7802, %v7786
  %v7851 = vpack.c.b16 %v7819, %v7803
  %v7852 = vpack.c.b16 %v7820, %v7804
  %v7853 = vpack.c.b16 %v7821, %v7805
  %v7854 = vpack.c.b16 %v7822, %v7806
  %v7855 = vpack.c.b16 %v7823, %v7807
  %v7856 = vpack.c.b16 %v7824, %v7808
  %v7857 = vpack.c.b16 %v7825, %v7809
  %v7858 = vpack.c.b16 %v7826, %v7810
  %v7859 = vpack.c.b16 %v7827, %v7811
  %v7860 = vpack.c.b16 %v7828, %v7812
  %v7861 = vpack.c.b16 %v7829, %v7813
  %v7862 = vpack.c.b16 %v7830, %v7814
  %v7863 = vpack.c.b16 %v7831, %v7815
  %v7864 = vpack.c.b16 %v7832, %v7816
  %v7865 = vpack.c.b16 %v7833, %v7817
  %v7866 = vpack.c.b16 %v7834, %v7818
  %7867 = vrot.lane.b32.xlu0 %v7547, 96
  %v7868 = vpop.permute.xlu0 %7867
  %7869 = vrot.lane.b32.xlu0 %v7835, 96
  %v7870 = vpop.permute.xlu0 %7869
  %7871 = vrot.lane.b32.xlu0 %v7836, 96
  %v7872 = vpop.permute.xlu0 %7871
  %7873 = vrot.lane.b32.xlu0 %v7837, 96
  %v7874 = vpop.permute.xlu0 %7873
  %7875 = vrot.lane.b32.xlu0 %v7838, 96
  %v7876 = vpop.permute.xlu0 %7875
  %7877 = vrot.lane.b32.xlu0 %v7839, 96
  %v7878 = vpop.permute.xlu0 %7877
  %7879 = vrot.lane.b32.xlu0 %v7840, 96
  %v7880 = vpop.permute.xlu0 %7879
  %7881 = vrot.lane.b32.xlu0 %v7841, 96
  %v7882 = vpop.permute.xlu0 %7881
  %7883 = vrot.lane.b32.xlu0 %v7842, 96
  %v7884 = vpop.permute.xlu0 %7883
  %7885 = vrot.lane.b32.xlu0 %v7843, 96
  %v7886 = vpop.permute.xlu0 %7885
  %7887 = vrot.lane.b32.xlu0 %v7844, 96
  %v7888 = vpop.permute.xlu0 %7887
  %7889 = vrot.lane.b32.xlu0 %v7845, 96
  %v7890 = vpop.permute.xlu0 %7889
  %7891 = vrot.lane.b32.xlu0 %v7846, 96
  %v7892 = vpop.permute.xlu0 %7891
  %7893 = vrot.lane.b32.xlu0 %v7847, 96
  %v7894 = vpop.permute.xlu0 %7893
  %7895 = vrot.lane.b32.xlu0 %v7848, 96
  %v7896 = vpop.permute.xlu0 %7895
  %7897 = vrot.lane.b32.xlu0 %v7849, 96
  %v7898 = vpop.permute.xlu0 %7897
  %7899 = vrot.lane.b32.xlu0 %v7850, 96
  %v7900 = vpop.permute.xlu0 %7899
  %7901 = vrot.lane.b32.xlu0 %v7548, 96
  %v7902 = vpop.permute.xlu0 %7901
  %7903 = vrot.lane.b32.xlu0 %v7851, 96
  %v7904 = vpop.permute.xlu0 %7903
  %7905 = vrot.lane.b32.xlu0 %v7852, 96
  %v7906 = vpop.permute.xlu0 %7905
  %7907 = vrot.lane.b32.xlu0 %v7853, 96
  %v7908 = vpop.permute.xlu0 %7907
  %7909 = vrot.lane.b32.xlu0 %v7854, 96
  %v7910 = vpop.permute.xlu0 %7909
  %7911 = vrot.lane.b32.xlu0 %v7855, 96
  %v7912 = vpop.permute.xlu0 %7911
  %7913 = vrot.lane.b32.xlu0 %v7856, 96
  %v7914 = vpop.permute.xlu0 %7913
  %7915 = vrot.lane.b32.xlu0 %v7857, 96
  %v7916 = vpop.permute.xlu0 %7915
  %7917 = vrot.lane.b32.xlu0 %v7858, 96
  %v7918 = vpop.permute.xlu0 %7917
  %7919 = vrot.lane.b32.xlu0 %v7859, 96
  %v7920 = vpop.permute.xlu0 %7919
  %7921 = vrot.lane.b32.xlu0 %v7860, 96
  %v7922 = vpop.permute.xlu0 %7921
  %7923 = vrot.lane.b32.xlu0 %v7861, 96
  %v7924 = vpop.permute.xlu0 %7923
  %7925 = vrot.lane.b32.xlu0 %v7862, 96
  %v7926 = vpop.permute.xlu0 %7925
  %7927 = vrot.lane.b32.xlu0 %v7863, 96
  %v7928 = vpop.permute.xlu0 %7927
  %7929 = vrot.lane.b32.xlu0 %v7864, 96
  %v7930 = vpop.permute.xlu0 %7929
  %7931 = vrot.lane.b32.xlu0 %v7865, 96
  %v7932 = vpop.permute.xlu0 %7931
  %7933 = vrot.lane.b32.xlu0 %v7866, 96
  %v7934 = vpop.permute.xlu0 %7933
  %vm7935 = vcmask 785408
  %v7936 = vsel %vm7935, %v7868, %v7870
  %v7937 = vsel %vm7935, %v7870, %v7872
  %v7938 = vsel %vm7935, %v7872, %v7874
  %v7939 = vsel %vm7935, %v7874, %v7876
  %v7940 = vsel %vm7935, %v7876, %v7878
  %v7941 = vsel %vm7935, %v7878, %v7880
  %v7942 = vsel %vm7935, %v7880, %v7882
  %v7943 = vsel %vm7935, %v7882, %v7884
  %v7944 = vsel %vm7935, %v7884, %v7886
  %v7945 = vsel %vm7935, %v7886, %v7888
  %v7946 = vsel %vm7935, %v7888, %v7890
  %v7947 = vsel %vm7935, %v7890, %v7892
  %v7948 = vsel %vm7935, %v7892, %v7894
  %v7949 = vsel %vm7935, %v7894, %v7896
  %v7950 = vsel %vm7935, %v7896, %v7898
  %v7951 = vsel %vm7935, %v7898, %v7900
  %v7952 = vsel %vm7935, %v7902, %v7904
  %v7953 = vsel %vm7935, %v7904, %v7906
  %v7954 = vsel %vm7935, %v7906, %v7908
  %v7955 = vsel %vm7935, %v7908, %v7910
  %v7956 = vsel %vm7935, %v7910, %v7912
  %v7957 = vsel %vm7935, %v7912, %v7914
  %v7958 = vsel %vm7935, %v7914, %v7916
  %v7959 = vsel %vm7935, %v7916, %v7918
  %v7960 = vsel %vm7935, %v7918, %v7920
  %v7961 = vsel %vm7935, %v7920, %v7922
  %v7962 = vsel %vm7935, %v7922, %v7924
  %v7963 = vsel %vm7935, %v7924, %v7926
  %v7964 = vsel %vm7935, %v7926, %v7928
  %v7965 = vsel %vm7935, %v7928, %v7930
  %v7966 = vsel %vm7935, %v7930, %v7932
  %v7967 = vsel %vm7935, %v7932, %v7934
  %v8001 = vsel %vm357, %v7738, 0
  %8003 = vmatprep.subr.bf16.mxu0 %v7937
  %8004 = vmatpush1.bf16.msra.mxu0 %v7936
  %8005 = vmatprep.subr.bf16.mxu0 %v7953
  %8006 = vmatpush1.bf16.msra.mxu0 %v7952
  %8007 = vmatprep.subr.bf16.mxu0 0
  %8008 = vmatpush1.bf16.msra.mxu0 0
  %8009 = vmatprep.subr.bf16.mxu0 0
  %8010 = vmatpush1.bf16.msra.mxu0 0
  %8011 = vmatprep.subr.bf16.mxu0 0
  %8012 = vmatpush1.bf16.msra.mxu0 0
  %8013 = vmatprep.subr.bf16.mxu0 0
  %8014 = vmatpush1.bf16.msra.mxu0 0
  %8015 = vmatprep.subr.bf16.mxu0 0
  %8016 = vmatpush1.bf16.msra.mxu0 0
  %8017 = vmatprep.subr.bf16.mxu0 0
  %8018 = vmatpush1.bf16.msra.mxu0 0
  %8019 = vmatprep.subr.bf16.mxu0 0
  %8020 = vmatpush1.bf16.msra.mxu0 0
  %8021 = vmatprep.subr.bf16.mxu0 0
  %8022 = vmatpush1.bf16.msra.mxu0 0
  %8023 = vmatprep.subr.bf16.mxu0 0
  %8024 = vmatpush1.bf16.msra.mxu0 0
  %8025 = vmatprep.subr.bf16.mxu0 0
  %8026 = vmatpush1.bf16.msra.mxu0 0
  %8027 = vmatprep.subr.bf16.mxu0 0
  %8028 = vmatpush1.bf16.msra.mxu0 0
  %8029 = vmatprep.subr.bf16.mxu0 0
  %8030 = vmatpush1.bf16.msra.mxu0 0
  %8031 = vmatprep.subr.bf16.mxu0 0
  %8032 = vmatpush1.bf16.msra.mxu0 0
  %8033 = vmatprep.subr.bf16.mxu0 0
  %8034 = vmatpush1.bf16.msra.mxu0 0
  %8035 = vmatprep.mubr.bf16.mxu0 0
  %8036 = vmatmul.mubr.bf16.gmra.mrb[0].mxu0 %v8001
  %v8037 = vpop.f32.mrb[0].mxu0
  %v8038 = vadd.f32 %v7670, %v8037
  %v8039 = vpop.f32.mrb[0].mxu0
  %v8040 = vadd.f32 %v7674, %v8039
  %v8041 = vpop.f32.mrb[0].mxu0
  %v8042 = vpop.f32.mrb[0].mxu0
  %8043 = vdwg.mxu0
  %8044 = vmatprep.subr.bf16.mxu0 %v7939
  %8045 = vmatpush1.bf16.msra.mxu0 %v7938
  %8046 = vmatprep.subr.bf16.mxu0 %v7955
  %8047 = vmatpush1.bf16.msra.mxu0 %v7954
  %8048 = vmatprep.subr.bf16.mxu0 0
  %8049 = vmatpush1.bf16.msra.mxu0 0
  %8050 = vmatprep.subr.bf16.mxu0 0
  %8051 = vmatpush1.bf16.msra.mxu0 0
  %8052 = vmatprep.subr.bf16.mxu0 0
  %8053 = vmatpush1.bf16.msra.mxu0 0
  %8054 = vmatprep.subr.bf16.mxu0 0
  %8055 = vmatpush1.bf16.msra.mxu0 0
  %8056 = vmatprep.subr.bf16.mxu0 0
  %8057 = vmatpush1.bf16.msra.mxu0 0
  %8058 = vmatprep.subr.bf16.mxu0 0
  %8059 = vmatpush1.bf16.msra.mxu0 0
  %8060 = vmatprep.subr.bf16.mxu0 0
  %8061 = vmatpush1.bf16.msra.mxu0 0
  %8062 = vmatprep.subr.bf16.mxu0 0
  %8063 = vmatpush1.bf16.msra.mxu0 0
  %8064 = vmatprep.subr.bf16.mxu0 0
  %8065 = vmatpush1.bf16.msra.mxu0 0
  %8066 = vmatprep.subr.bf16.mxu0 0
  %8067 = vmatpush1.bf16.msra.mxu0 0
  %8068 = vmatprep.subr.bf16.mxu0 0
  %8069 = vmatpush1.bf16.msra.mxu0 0
  %8070 = vmatprep.subr.bf16.mxu0 0
  %8071 = vmatpush1.bf16.msra.mxu0 0
  %8072 = vmatprep.subr.bf16.mxu0 0
  %8073 = vmatpush1.bf16.msra.mxu0 0
  %8074 = vmatprep.subr.bf16.mxu0 0
  %8075 = vmatpush1.bf16.msra.mxu0 0
  %8076 = vmatprep.mubr.bf16.mxu0 0
  %8077 = vmatmul.mubr.bf16.gmra.mrb[0].mxu0 %v8001
  %v8078 = vpop.f32.mrb[0].mxu0
  %v8079 = vadd.f32 %v7678, %v8078
  %v8080 = vpop.f32.mrb[0].mxu0
  %v8081 = vadd.f32 %v7682, %v8080
  %v8082 = vpop.f32.mrb[0].mxu0
  %v8083 = vpop.f32.mrb[0].mxu0
  %8084 = vdwg.mxu0
  %8085 = vmatprep.subr.bf16.mxu0 %v7941
  %8086 = vmatpush1.bf16.msra.mxu0 %v7940
  %8087 = vmatprep.subr.bf16.mxu0 %v7957
  %8088 = vmatpush1.bf16.msra.mxu0 %v7956
  %8089 = vmatprep.subr.bf16.mxu0 0
  %8090 = vmatpush1.bf16.msra.mxu0 0
  %8091 = vmatprep.subr.bf16.mxu0 0
  %8092 = vmatpush1.bf16.msra.mxu0 0
  %8093 = vmatprep.subr.bf16.mxu0 0
  %8094 = vmatpush1.bf16.msra.mxu0 0
  %8095 = vmatprep.subr.bf16.mxu0 0
  %8096 = vmatpush1.bf16.msra.mxu0 0
  %8097 = vmatprep.subr.bf16.mxu0 0
  %8098 = vmatpush1.bf16.msra.mxu0 0
  %8099 = vmatprep.subr.bf16.mxu0 0
  %8100 = vmatpush1.bf16.msra.mxu0 0
  %8101 = vmatprep.subr.bf16.mxu0 0
  %8102 = vmatpush1.bf16.msra.mxu0 0
  %8103 = vmatprep.subr.bf16.mxu0 0
  %8104 = vmatpush1.bf16.msra.mxu0 0
  %8105 = vmatprep.subr.bf16.mxu0 0
  %8106 = vmatpush1.bf16.msra.mxu0 0
  %8107 = vmatprep.subr.bf16.mxu0 0
  %8108 = vmatpush1.bf16.msra.mxu0 0
  %8109 = vmatprep.subr.bf16.mxu0 0
  %8110 = vmatpush1.bf16.msra.mxu0 0
  %8111 = vmatprep.subr.bf16.mxu0 0
  %8112 = vmatpush1.bf16.msra.mxu0 0
  %8113 = vmatprep.subr.bf16.mxu0 0
  %8114 = vmatpush1.bf16.msra.mxu0 0
  %8115 = vmatprep.subr.bf16.mxu0 0
  %8116 = vmatpush1.bf16.msra.mxu0 0
  %8117 = vmatprep.mubr.bf16.mxu0 0
  %8118 = vmatmul.mubr.bf16.gmra.mrb[0].mxu0 %v8001
  %v8119 = vpop.f32.mrb[0].mxu0
  %v8120 = vadd.f32 %v7686, %v8119
  %v8121 = vpop.f32.mrb[0].mxu0
  %v8122 = vadd.f32 %v7690, %v8121
  %v8123 = vpop.f32.mrb[0].mxu0
  %v8124 = vpop.f32.mrb[0].mxu0
  %8125 = vdwg.mxu0
  %8126 = vmatprep.subr.bf16.mxu0 %v7943
  %8127 = vmatpush1.bf16.msra.mxu0 %v7942
  %8128 = vmatprep.subr.bf16.mxu0 %v7959
  %8129 = vmatpush1.bf16.msra.mxu0 %v7958
  %8130 = vmatprep.subr.bf16.mxu0 0
  %8131 = vmatpush1.bf16.msra.mxu0 0
  %8132 = vmatprep.subr.bf16.mxu0 0
  %8133 = vmatpush1.bf16.msra.mxu0 0
  %8134 = vmatprep.subr.bf16.mxu0 0
  %8135 = vmatpush1.bf16.msra.mxu0 0
  %8136 = vmatprep.subr.bf16.mxu0 0
  %8137 = vmatpush1.bf16.msra.mxu0 0
  %8138 = vmatprep.subr.bf16.mxu0 0
  %8139 = vmatpush1.bf16.msra.mxu0 0
  %8140 = vmatprep.subr.bf16.mxu0 0
  %8141 = vmatpush1.bf16.msra.mxu0 0
  %8142 = vmatprep.subr.bf16.mxu0 0
  %8143 = vmatpush1.bf16.msra.mxu0 0
  %8144 = vmatprep.subr.bf16.mxu0 0
  %8145 = vmatpush1.bf16.msra.mxu0 0
  %8146 = vmatprep.subr.bf16.mxu0 0
  %8147 = vmatpush1.bf16.msra.mxu0 0
  %8148 = vmatprep.subr.bf16.mxu0 0
  %8149 = vmatpush1.bf16.msra.mxu0 0
  %8150 = vmatprep.subr.bf16.mxu0 0
  %8151 = vmatpush1.bf16.msra.mxu0 0
  %8152 = vmatprep.subr.bf16.mxu0 0
  %8153 = vmatpush1.bf16.msra.mxu0 0
  %8154 = vmatprep.subr.bf16.mxu0 0
  %8155 = vmatpush1.bf16.msra.mxu0 0
  %8156 = vmatprep.subr.bf16.mxu0 0
  %8157 = vmatpush1.bf16.msra.mxu0 0
  %8158 = vmatprep.mubr.bf16.mxu0 0
  %8159 = vmatmul.mubr.bf16.gmra.mrb[0].mxu0 %v8001
  %v8160 = vpop.f32.mrb[0].mxu0
  %v8161 = vadd.f32 %v7694, %v8160
  %v8162 = vpop.f32.mrb[0].mxu0
  %v8163 = vadd.f32 %v7698, %v8162
  %v8164 = vpop.f32.mrb[0].mxu0
  %v8165 = vpop.f32.mrb[0].mxu0
  %8166 = vdwg.mxu0
  %8167 = vmatprep.subr.bf16.mxu0 %v7945
  %8168 = vmatpush1.bf16.msra.mxu0 %v7944
  %8169 = vmatprep.subr.bf16.mxu0 %v7961
  %8170 = vmatpush1.bf16.msra.mxu0 %v7960
  %8171 = vmatprep.subr.bf16.mxu0 0
  %8172 = vmatpush1.bf16.msra.mxu0 0
  %8173 = vmatprep.subr.bf16.mxu0 0
  %8174 = vmatpush1.bf16.msra.mxu0 0
  %8175 = vmatprep.subr.bf16.mxu0 0
  %8176 = vmatpush1.bf16.msra.mxu0 0
  %8177 = vmatprep.subr.bf16.mxu0 0
  %8178 = vmatpush1.bf16.msra.mxu0 0
  %8179 = vmatprep.subr.bf16.mxu0 0
  %8180 = vmatpush1.bf16.msra.mxu0 0
  %8181 = vmatprep.subr.bf16.mxu0 0
  %8182 = vmatpush1.bf16.msra.mxu0 0
  %8183 = vmatprep.subr.bf16.mxu0 0
  %8184 = vmatpush1.bf16.msra.mxu0 0
  %8185 = vmatprep.subr.bf16.mxu0 0
  %8186 = vmatpush1.bf16.msra.mxu0 0
  %8187 = vmatprep.subr.bf16.mxu0 0
  %8188 = vmatpush1.bf16.msra.mxu0 0
  %8189 = vmatprep.subr.bf16.mxu0 0
  %8190 = vmatpush1.bf16.msra.mxu0 0
  %8191 = vmatprep.subr.bf16.mxu0 0
  %8192 = vmatpush1.bf16.msra.mxu0 0
  %8193 = vmatprep.subr.bf16.mxu0 0
  %8194 = vmatpush1.bf16.msra.mxu0 0
  %8195 = vmatprep.subr.bf16.mxu0 0
  %8196 = vmatpush1.bf16.msra.mxu0 0
  %8197 = vmatprep.subr.bf16.mxu0 0
  %8198 = vmatpush1.bf16.msra.mxu0 0
  %8199 = vmatprep.mubr.bf16.mxu0 0
  %8200 = vmatmul.mubr.bf16.gmra.mrb[0].mxu0 %v8001
  %v8201 = vpop.f32.mrb[0].mxu0
  %v8202 = vadd.f32 %v7702, %v8201
  %v8203 = vpop.f32.mrb[0].mxu0
  %v8204 = vadd.f32 %v7706, %v8203
  %v8205 = vpop.f32.mrb[0].mxu0
  %v8206 = vpop.f32.mrb[0].mxu0
  %8207 = vdwg.mxu0
  %8208 = vmatprep.subr.bf16.mxu0 %v7947
  %8209 = vmatpush1.bf16.msra.mxu0 %v7946
  %8210 = vmatprep.subr.bf16.mxu0 %v7963
  %8211 = vmatpush1.bf16.msra.mxu0 %v7962
  %8212 = vmatprep.subr.bf16.mxu0 0
  %8213 = vmatpush1.bf16.msra.mxu0 0
  %8214 = vmatprep.subr.bf16.mxu0 0
  %8215 = vmatpush1.bf16.msra.mxu0 0
  %8216 = vmatprep.subr.bf16.mxu0 0
  %8217 = vmatpush1.bf16.msra.mxu0 0
  %8218 = vmatprep.subr.bf16.mxu0 0
  %8219 = vmatpush1.bf16.msra.mxu0 0
  %8220 = vmatprep.subr.bf16.mxu0 0
  %8221 = vmatpush1.bf16.msra.mxu0 0
  %8222 = vmatprep.subr.bf16.mxu0 0
  %8223 = vmatpush1.bf16.msra.mxu0 0
  %8224 = vmatprep.subr.bf16.mxu0 0
  %8225 = vmatpush1.bf16.msra.mxu0 0
  %8226 = vmatprep.subr.bf16.mxu0 0
  %8227 = vmatpush1.bf16.msra.mxu0 0
  %8228 = vmatprep.subr.bf16.mxu0 0
  %8229 = vmatpush1.bf16.msra.mxu0 0
  %8230 = vmatprep.subr.bf16.mxu0 0
  %8231 = vmatpush1.bf16.msra.mxu0 0
  %8232 = vmatprep.subr.bf16.mxu0 0
  %8233 = vmatpush1.bf16.msra.mxu0 0
  %8234 = vmatprep.subr.bf16.mxu0 0
  %8235 = vmatpush1.bf16.msra.mxu0 0
  %8236 = vmatprep.subr.bf16.mxu0 0
  %8237 = vmatpush1.bf16.msra.mxu0 0
  %8238 = vmatprep.subr.bf16.mxu0 0
  %8239 = vmatpush1.bf16.msra.mxu0 0
  %8240 = vmatprep.mubr.bf16.mxu0 0
  %8241 = vmatmul.mubr.bf16.gmra.mrb[0].mxu0 %v8001
  %v8242 = vpop.f32.mrb[0].mxu0
  %v8243 = vadd.f32 %v7710, %v8242
  %v8244 = vpop.f32.mrb[0].mxu0
  %v8245 = vadd.f32 %v7714, %v8244
  %v8246 = vpop.f32.mrb[0].mxu0
  %v8247 = vpop.f32.mrb[0].mxu0
  %8248 = vdwg.mxu0
  %8249 = vmatprep.subr.bf16.mxu0 %v7949
  %8250 = vmatpush1.bf16.msra.mxu0 %v7948
  %8251 = vmatprep.subr.bf16.mxu0 %v7965
  %8252 = vmatpush1.bf16.msra.mxu0 %v7964
  %8253 = vmatprep.subr.bf16.mxu0 0
  %8254 = vmatpush1.bf16.msra.mxu0 0
  %8255 = vmatprep.subr.bf16.mxu0 0
  %8256 = vmatpush1.bf16.msra.mxu0 0
  %8257 = vmatprep.subr.bf16.mxu0 0
  %8258 = vmatpush1.bf16.msra.mxu0 0
  %8259 = vmatprep.subr.bf16.mxu0 0
  %8260 = vmatpush1.bf16.msra.mxu0 0
  %8261 = vmatprep.subr.bf16.mxu0 0
  %8262 = vmatpush1.bf16.msra.mxu0 0
  %8263 = vmatprep.subr.bf16.mxu0 0
  %8264 = vmatpush1.bf16.msra.mxu0 0
  %8265 = vmatprep.subr.bf16.mxu0 0
  %8266 = vmatpush1.bf16.msra.mxu0 0
  %8267 = vmatprep.subr.bf16.mxu0 0
  %8268 = vmatpush1.bf16.msra.mxu0 0
  %8269 = vmatprep.subr.bf16.mxu0 0
  %8270 = vmatpush1.bf16.msra.mxu0 0
  %8271 = vmatprep.subr.bf16.mxu0 0
  %8272 = vmatpush1.bf16.msra.mxu0 0
  %8273 = vmatprep.subr.bf16.mxu0 0
  %8274 = vmatpush1.bf16.msra.mxu0 0
  %8275 = vmatprep.subr.bf16.mxu0 0
  %8276 = vmatpush1.bf16.msra.mxu0 0
  %8277 = vmatprep.subr.bf16.mxu0 0
  %8278 = vmatpush1.bf16.msra.mxu0 0
  %8279 = vmatprep.subr.bf16.mxu0 0
  %8280 = vmatpush1.bf16.msra.mxu0 0
  %8281 = vmatprep.mubr.bf16.mxu0 0
  %8282 = vmatmul.mubr.bf16.gmra.mrb[0].mxu0 %v8001
  %v8283 = vpop.f32.mrb[0].mxu0
  %v8284 = vadd.f32 %v7718, %v8283
  %v8285 = vpop.f32.mrb[0].mxu0
  %v8286 = vadd.f32 %v7722, %v8285
  %v8287 = vpop.f32.mrb[0].mxu0
  %v8288 = vpop.f32.mrb[0].mxu0
  %8289 = vdwg.mxu0
  %8290 = vmatprep.subr.bf16.mxu0 %v7951
  %8291 = vmatpush1.bf16.msra.mxu0 %v7950
  %8292 = vmatprep.subr.bf16.mxu0 %v7967
  %8293 = vmatpush1.bf16.msra.mxu0 %v7966
  %8294 = vmatprep.subr.bf16.mxu0 0
  %8295 = vmatpush1.bf16.msra.mxu0 0
  %8296 = vmatprep.subr.bf16.mxu0 0
  %8297 = vmatpush1.bf16.msra.mxu0 0
  %8298 = vmatprep.subr.bf16.mxu0 0
  %8299 = vmatpush1.bf16.msra.mxu0 0
  %8300 = vmatprep.subr.bf16.mxu0 0
  %8301 = vmatpush1.bf16.msra.mxu0 0
  %8302 = vmatprep.subr.bf16.mxu0 0
  %8303 = vmatpush1.bf16.msra.mxu0 0
  %8304 = vmatprep.subr.bf16.mxu0 0
  %8305 = vmatpush1.bf16.msra.mxu0 0
  %8306 = vmatprep.subr.bf16.mxu0 0
  %8307 = vmatpush1.bf16.msra.mxu0 0
  %8308 = vmatprep.subr.bf16.mxu0 0
  %8309 = vmatpush1.bf16.msra.mxu0 0
  %8310 = vmatprep.subr.bf16.mxu0 0
  %8311 = vmatpush1.bf16.msra.mxu0 0
  %8312 = vmatprep.subr.bf16.mxu0 0
  %8313 = vmatpush1.bf16.msra.mxu0 0
  %8314 = vmatprep.subr.bf16.mxu0 0
  %8315 = vmatpush1.bf16.msra.mxu0 0
  %8316 = vmatprep.subr.bf16.mxu0 0
  %8317 = vmatpush1.bf16.msra.mxu0 0
  %8318 = vmatprep.subr.bf16.mxu0 0
  %8319 = vmatpush1.bf16.msra.mxu0 0
  %8320 = vmatprep.subr.bf16.mxu0 0
  %8321 = vmatpush1.bf16.msra.mxu0 0
  %8322 = vmatprep.mubr.bf16.mxu0 0
  %8323 = vmatmul.mubr.bf16.gmra.mrb[0].mxu0 %v8001
  %v8324 = vpop.f32.mrb[0].mxu0
  %v8325 = vadd.f32 %v7726, %v8324
  %v8326 = vpop.f32.mrb[0].mxu0
  %v8327 = vadd.f32 %v7730, %v8326
  %v8328 = vpop.f32.mrb[0].mxu0
  %v8329 = vpop.f32.mrb[0].mxu0
  %8330 = vdwg.mxu0
  %v8331 = vmax.f32 %v8038, 0.0
  %v8332 = vmax.f32 %v8040, 0.0
  %v8333 = vmax.f32 %v8079, 0.0
  %v8334 = vmax.f32 %v8081, 0.0
  %v8335 = vmax.f32 %v8120, 0.0
  %v8336 = vmax.f32 %v8122, 0.0
  %v8337 = vmax.f32 %v8161, 0.0
  %v8338 = vmax.f32 %v8163, 0.0
  %v8339 = vmax.f32 %v8202, 0.0
  %v8340 = vmax.f32 %v8204, 0.0
  %v8341 = vmax.f32 %v8243, 0.0
  %v8342 = vmax.f32 %v8245, 0.0
  %v8343 = vmax.f32 %v8284, 0.0
  %v8344 = vmax.f32 %v8286, 0.0
  %v8345 = vmax.f32 %v8325, 0.0
  %v8346 = vmax.f32 %v8327, 0.0
  %v8347 = vpack.c.bf16 %v8331, %v8331
  %v8348 = vpack.c.bf16 %v8332, %v8332
  %v8349 = vpack.c.bf16 %v8333, %v8333
  %v8350 = vpack.c.bf16 %v8334, %v8334
  %v8351 = vpack.c.bf16 %v8335, %v8335
  %v8352 = vpack.c.bf16 %v8336, %v8336
  %v8353 = vpack.c.bf16 %v8337, %v8337
  %v8354 = vpack.c.bf16 %v8338, %v8338
  %v8355 = vpack.c.bf16 %v8339, %v8339
  %v8356 = vpack.c.bf16 %v8340, %v8340
  %v8357 = vpack.c.bf16 %v8341, %v8341
  %v8358 = vpack.c.bf16 %v8342, %v8342
  %v8359 = vpack.c.bf16 %v8343, %v8343
  %v8360 = vpack.c.bf16 %v8344, %v8344
  %v8361 = vpack.c.bf16 %v8345, %v8345
  %v8362 = vpack.c.bf16 %v8346, %v8346
  %v8363 = vlaneseq
  %v8364 = vshrl.u32 %v8363, 7
  %v8365 = vsub.s32 4, %v8364
  %v8366 = vrot.slane %v7252, %v8365
  %v8623 = vunpack.c.l.b16 %v7268
  %v8624 = vunpack.c.l.b16 %v7269
  %v8625 = vunpack.c.l.b16 %v7270
  %v8626 = vunpack.c.l.b16 %v7271
  %v8627 = vunpack.c.l.b16 %v7272
  %v8628 = vunpack.c.l.b16 %v7273
  %v8629 = vunpack.c.l.b16 %v7274
  %v8630 = vunpack.c.l.b16 %v7275
  %v8631 = vunpack.c.l.b16 %v7276
  %v8632 = vunpack.c.l.b16 %v7277
  %v8633 = vunpack.c.l.b16 %v7278
  %v8634 = vunpack.c.l.b16 %v7279
  %v8635 = vunpack.c.l.b16 %v7280
  %v8636 = vunpack.c.l.b16 %v7281
  %v8637 = vunpack.c.l.b16 %v7282
  %v8638 = vunpack.c.l.b16 %v7283
  %v8639 = vunpack.c.l.b16 %v7284
  %v8640 = vunpack.c.l.b16 %v7285
  %v8641 = vunpack.c.l.b16 %v7286
  %v8642 = vunpack.c.l.b16 %v7287
  %v8643 = vunpack.c.l.b16 %v7288
  %v8644 = vunpack.c.l.b16 %v7289
  %v8645 = vunpack.c.l.b16 %v7290
  %v8646 = vunpack.c.l.b16 %v7291
  %v8647 = vunpack.c.l.b16 %v7292
  %v8648 = vunpack.c.l.b16 %v7293
  %v8649 = vunpack.c.l.b16 %v7294
  %v8650 = vunpack.c.l.b16 %v7295
  %v8651 = vunpack.c.l.b16 %v7296
  %v8652 = vunpack.c.l.b16 %v7297
  %v8653 = vunpack.c.l.b16 %v7298
  %v8654 = vunpack.c.l.b16 %v7299
  %v8655 = vunpack.c.l.b16 %v7300
  %v8656 = vunpack.c.l.b16 %v7301
  %v8657 = vunpack.c.l.b16 %v7302
  %v8658 = vunpack.c.l.b16 %v7303
  %v8659 = vunpack.c.l.b16 %v7304
  %v8660 = vunpack.c.l.b16 %v7305
  %v8661 = vunpack.c.l.b16 %v7306
  %v8662 = vunpack.c.l.b16 %v7307
  %v8663 = vunpack.c.l.b16 %v7308
  %v8664 = vunpack.c.l.b16 %v7309
  %v8665 = vunpack.c.l.b16 %v7310
  %v8666 = vunpack.c.l.b16 %v7311
  %v8667 = vunpack.c.l.b16 %v7312
  %v8668 = vunpack.c.l.b16 %v7313
  %v8669 = vunpack.c.l.b16 %v7314
  %v8670 = vunpack.c.l.b16 %v7315
  %v8671 = vunpack.c.l.b16 %v7316
  %v8672 = vunpack.c.l.b16 %v7317
  %v8673 = vunpack.c.l.b16 %v7318
  %v8674 = vunpack.c.l.b16 %v7319
  %v8675 = vunpack.c.l.b16 %v7320
  %v8676 = vunpack.c.l.b16 %v7321
  %v8677 = vunpack.c.l.b16 %v7322
  %v8678 = vunpack.c.l.b16 %v7323
  %v8679 = vunpack.c.l.b16 %v7324
  %v8680 = vunpack.c.l.b16 %v7325
  %v8681 = vunpack.c.l.b16 %v7326
  %v8682 = vunpack.c.l.b16 %v7327
  %v8683 = vunpack.c.l.b16 %v7328
  %v8684 = vunpack.c.l.b16 %v7329
  %v8685 = vunpack.c.l.b16 %v7330
  %v8686 = vunpack.c.l.b16 %v7331
  %v8687 = vunpack.c.l.b16 %v7332
  %v8688 = vunpack.c.l.b16 %v7333
  %v8689 = vunpack.c.l.b16 %v7334
  %v8690 = vunpack.c.l.b16 %v7335
  %v8691 = vunpack.c.l.b16 %v7336
  %v8692 = vunpack.c.l.b16 %v7337
  %v8693 = vunpack.c.l.b16 %v7338
  %v8694 = vunpack.c.l.b16 %v7339
  %v8695 = vunpack.c.l.b16 %v7340
  %v8696 = vunpack.c.l.b16 %v7341
  %v8697 = vunpack.c.l.b16 %v7342
  %v8698 = vunpack.c.l.b16 %v7343
  %v8699 = vunpack.c.l.b16 %v7344
  %v8700 = vunpack.c.l.b16 %v7345
  %v8701 = vunpack.c.l.b16 %v7346
  %v8702 = vunpack.c.l.b16 %v7347
  %v8703 = vunpack.c.l.b16 %v7348
  %v8704 = vunpack.c.l.b16 %v7349
  %v8705 = vunpack.c.l.b16 %v7350
  %v8706 = vunpack.c.l.b16 %v7351
  %v8707 = vunpack.c.l.b16 %v7352
  %v8708 = vunpack.c.l.b16 %v7353
  %v8709 = vunpack.c.l.b16 %v7354
  %v8710 = vunpack.c.l.b16 %v7355
  %v8711 = vunpack.c.l.b16 %v7356
  %v8712 = vunpack.c.l.b16 %v7357
  %v8713 = vunpack.c.l.b16 %v7358
  %v8714 = vunpack.c.l.b16 %v7359
  %v8715 = vunpack.c.l.b16 %v7360
  %v8716 = vunpack.c.l.b16 %v7361
  %v8717 = vunpack.c.l.b16 %v7362
  %v8718 = vunpack.c.l.b16 %v7363
  %v8719 = vunpack.c.l.b16 %v7364
  %v8720 = vunpack.c.l.b16 %v7365
  %v8721 = vunpack.c.l.b16 %v7366
  %v8722 = vunpack.c.l.b16 %v7367
  %v8723 = vunpack.c.l.b16 %v7368
  %v8724 = vunpack.c.l.b16 %v7369
  %v8725 = vunpack.c.l.b16 %v7370
  %v8726 = vunpack.c.l.b16 %v7371
  %v8727 = vunpack.c.l.b16 %v7372
  %v8728 = vunpack.c.l.b16 %v7373
  %v8729 = vunpack.c.l.b16 %v7374
  %v8730 = vunpack.c.l.b16 %v7375
  %v8731 = vunpack.c.l.b16 %v7376
  %v8732 = vunpack.c.l.b16 %v7377
  %v8733 = vunpack.c.l.b16 %v7378
  %v8734 = vunpack.c.l.b16 %v7379
  %v8735 = vunpack.c.l.b16 %v7380
  %v8736 = vunpack.c.l.b16 %v7381
  %v8737 = vunpack.c.l.b16 %v7382
  %v8738 = vunpack.c.l.b16 %v7383
  %v8739 = vunpack.c.l.b16 %v7384
  %v8740 = vunpack.c.l.b16 %v7385
  %v8741 = vunpack.c.l.b16 %v7386
  %v8742 = vunpack.c.l.b16 %v7387
  %v8743 = vunpack.c.l.b16 %v7388
  %v8744 = vunpack.c.l.b16 %v7389
  %v8745 = vunpack.c.l.b16 %v7390
  %v8746 = vunpack.c.l.b16 %v7391
  %v8747 = vunpack.c.l.b16 %v7392
  %v8748 = vunpack.c.l.b16 %v7393
  %v8749 = vunpack.c.l.b16 %v7394
  %v8750 = vunpack.c.l.b16 %v7395
  %v8751 = vunpack.c.l.b16 %v7396
  %v8752 = vunpack.c.l.b16 %v7397
  %v8753 = vunpack.c.l.b16 %v7398
  %v8754 = vunpack.c.l.b16 %v7399
  %v8755 = vunpack.c.l.b16 %v7400
  %v8756 = vunpack.c.l.b16 %v7401
  %v8757 = vunpack.c.l.b16 %v7402
  %v8758 = vunpack.c.l.b16 %v7403
  %v8759 = vunpack.c.l.b16 %v7404
  %v8760 = vunpack.c.l.b16 %v7405
  %v8761 = vunpack.c.l.b16 %v7406
  %v8762 = vunpack.c.l.b16 %v7407
  %v8763 = vunpack.c.l.b16 %v7408
  %v8764 = vunpack.c.l.b16 %v7409
  %v8765 = vunpack.c.l.b16 %v7410
  %v8766 = vunpack.c.l.b16 %v7411
  %v8767 = vunpack.c.l.b16 %v7412
  %v8768 = vunpack.c.l.b16 %v7413
  %v8769 = vunpack.c.l.b16 %v7414
  %v8770 = vunpack.c.l.b16 %v7415
  %v8771 = vunpack.c.l.b16 %v7416
  %v8772 = vunpack.c.l.b16 %v7417
  %v8773 = vunpack.c.l.b16 %v7418
  %v8774 = vunpack.c.l.b16 %v7419
  %v8775 = vunpack.c.l.b16 %v7420
  %v8776 = vunpack.c.l.b16 %v7421
  %v8777 = vunpack.c.l.b16 %v7422
  %v8778 = vunpack.c.l.b16 %v7423
  %v8779 = vunpack.c.l.b16 %v7424
  %v8780 = vunpack.c.l.b16 %v7425
  %v8781 = vunpack.c.l.b16 %v7426
  %v8782 = vunpack.c.l.b16 %v7427
  %v8783 = vunpack.c.l.b16 %v7428
  %v8784 = vunpack.c.l.b16 %v7429
  %v8785 = vunpack.c.l.b16 %v7430
  %v8786 = vunpack.c.l.b16 %v7431
  %v8787 = vunpack.c.l.b16 %v7432
  %v8788 = vunpack.c.l.b16 %v7433
  %v8789 = vunpack.c.l.b16 %v7434
  %v8790 = vunpack.c.l.b16 %v7435
  %v8791 = vunpack.c.l.b16 %v7436
  %v8792 = vunpack.c.l.b16 %v7437
  %v8793 = vunpack.c.l.b16 %v7438
  %v8794 = vunpack.c.l.b16 %v7439
  %v8795 = vunpack.c.l.b16 %v7440
  %v8796 = vunpack.c.l.b16 %v7441
  %v8797 = vunpack.c.l.b16 %v7442
  %v8798 = vunpack.c.l.b16 %v7443
  %v8799 = vunpack.c.l.b16 %v7444
  %v8800 = vunpack.c.l.b16 %v7445
  %v8801 = vunpack.c.l.b16 %v7446
  %v8802 = vunpack.c.l.b16 %v7447
  %v8803 = vunpack.c.l.b16 %v7448
  %v8804 = vunpack.c.l.b16 %v7449
  %v8805 = vunpack.c.l.b16 %v7450
  %v8806 = vunpack.c.l.b16 %v7451
  %v8807 = vunpack.c.l.b16 %v7452
  %v8808 = vunpack.c.l.b16 %v7453
  %v8809 = vunpack.c.l.b16 %v7454
  %v8810 = vunpack.c.l.b16 %v7455
  %v8811 = vunpack.c.l.b16 %v7456
  %v8812 = vunpack.c.l.b16 %v7457
  %v8813 = vunpack.c.l.b16 %v7458
  %v8814 = vunpack.c.l.b16 %v7459
  %v8815 = vunpack.c.l.b16 %v7460
  %v8816 = vunpack.c.l.b16 %v7461
  %v8817 = vunpack.c.l.b16 %v7462
  %v8818 = vunpack.c.l.b16 %v7463
  %v8819 = vunpack.c.l.b16 %v7464
  %v8820 = vunpack.c.l.b16 %v7465
  %v8821 = vunpack.c.l.b16 %v7466
  %v8822 = vunpack.c.l.b16 %v7467
  %v8823 = vunpack.c.l.b16 %v7468
  %v8824 = vunpack.c.l.b16 %v7469
  %v8825 = vunpack.c.l.b16 %v7470
  %v8826 = vunpack.c.l.b16 %v7471
  %v8827 = vunpack.c.l.b16 %v7472
  %v8828 = vunpack.c.l.b16 %v7473
  %v8829 = vunpack.c.l.b16 %v7474
  %v8830 = vunpack.c.l.b16 %v7475
  %v8831 = vunpack.c.l.b16 %v7476
  %v8832 = vunpack.c.l.b16 %v7477
  %v8833 = vunpack.c.l.b16 %v7478
  %v8834 = vunpack.c.l.b16 %v7479
  %v8835 = vunpack.c.l.b16 %v7480
  %v8836 = vunpack.c.l.b16 %v7481
  %v8837 = vunpack.c.l.b16 %v7482
  %v8838 = vunpack.c.l.b16 %v7483
  %v8839 = vunpack.c.l.b16 %v7484
  %v8840 = vunpack.c.l.b16 %v7485
  %v8841 = vunpack.c.l.b16 %v7486
  %v8842 = vunpack.c.l.b16 %v7487
  %v8843 = vunpack.c.l.b16 %v7488
  %v8844 = vunpack.c.l.b16 %v7489
  %v8845 = vunpack.c.l.b16 %v7490
  %v8846 = vunpack.c.l.b16 %v7491
  %v8847 = vunpack.c.l.b16 %v7492
  %v8848 = vunpack.c.l.b16 %v7493
  %v8849 = vunpack.c.l.b16 %v7494
  %v8850 = vunpack.c.l.b16 %v7495
  %v8851 = vunpack.c.l.b16 %v7496
  %v8852 = vunpack.c.l.b16 %v7497
  %v8853 = vunpack.c.l.b16 %v7498
  %v8854 = vunpack.c.l.b16 %v7499
  %v8855 = vunpack.c.l.b16 %v7500
  %v8856 = vunpack.c.l.b16 %v7501
  %v8857 = vunpack.c.l.b16 %v7502
  %v8858 = vunpack.c.l.b16 %v7503
  %v8859 = vunpack.c.l.b16 %v7504
  %v8860 = vunpack.c.l.b16 %v7505
  %v8861 = vunpack.c.l.b16 %v7506
  %v8862 = vunpack.c.l.b16 %v7507
  %v8863 = vunpack.c.l.b16 %v7508
  %v8864 = vunpack.c.l.b16 %v7509
  %v8865 = vunpack.c.l.b16 %v7510
  %v8866 = vunpack.c.l.b16 %v7511
  %v8867 = vunpack.c.l.b16 %v7512
  %v8868 = vunpack.c.l.b16 %v7513
  %v8869 = vunpack.c.l.b16 %v7514
  %v8870 = vunpack.c.l.b16 %v7515
  %v8871 = vunpack.c.l.b16 %v7516
  %v8872 = vunpack.c.l.b16 %v7517
  %v8873 = vunpack.c.l.b16 %v7518
  %v8874 = vunpack.c.l.b16 %v7519
  %v8875 = vunpack.c.l.b16 %v7520
  %v8876 = vunpack.c.l.b16 %v7521
  %v8877 = vunpack.c.l.b16 %v7522
  %v8878 = vunpack.c.l.b16 %v7523
  %v8879 = vpack.c.b16 %v8624, %v8623
  %v8880 = vpack.c.b16 %v8626, %v8625
  %v8881 = vpack.c.b16 %v8628, %v8627
  %v8882 = vpack.c.b16 %v8630, %v8629
  %v8883 = vpack.c.b16 %v8632, %v8631
  %v8884 = vpack.c.b16 %v8634, %v8633
  %v8885 = vpack.c.b16 %v8636, %v8635
  %v8886 = vpack.c.b16 %v8638, %v8637
  %v8887 = vpack.c.b16 %v8640, %v8639
  %v8888 = vpack.c.b16 %v8642, %v8641
  %v8889 = vpack.c.b16 %v8644, %v8643
  %v8890 = vpack.c.b16 %v8646, %v8645
  %v8891 = vpack.c.b16 %v8648, %v8647
  %v8892 = vpack.c.b16 %v8650, %v8649
  %v8893 = vpack.c.b16 %v8652, %v8651
  %v8894 = vpack.c.b16 %v8654, %v8653
  %v8895 = vpack.c.b16 %v8656, %v8655
  %v8896 = vpack.c.b16 %v8658, %v8657
  %v8897 = vpack.c.b16 %v8660, %v8659
  %v8898 = vpack.c.b16 %v8662, %v8661
  %v8899 = vpack.c.b16 %v8664, %v8663
  %v8900 = vpack.c.b16 %v8666, %v8665
  %v8901 = vpack.c.b16 %v8668, %v8667
  %v8902 = vpack.c.b16 %v8670, %v8669
  %v8903 = vpack.c.b16 %v8672, %v8671
  %v8904 = vpack.c.b16 %v8674, %v8673
  %v8905 = vpack.c.b16 %v8676, %v8675
  %v8906 = vpack.c.b16 %v8678, %v8677
  %v8907 = vpack.c.b16 %v8680, %v8679
  %v8908 = vpack.c.b16 %v8682, %v8681
  %v8909 = vpack.c.b16 %v8684, %v8683
  %v8910 = vpack.c.b16 %v8686, %v8685
  %v8911 = vpack.c.b16 %v8688, %v8687
  %v8912 = vpack.c.b16 %v8690, %v8689
  %v8913 = vpack.c.b16 %v8692, %v8691
  %v8914 = vpack.c.b16 %v8694, %v8693
  %v8915 = vpack.c.b16 %v8696, %v8695
  %v8916 = vpack.c.b16 %v8698, %v8697
  %v8917 = vpack.c.b16 %v8700, %v8699
  %v8918 = vpack.c.b16 %v8702, %v8701
  %v8919 = vpack.c.b16 %v8704, %v8703
  %v8920 = vpack.c.b16 %v8706, %v8705
  %v8921 = vpack.c.b16 %v8708, %v8707
  %v8922 = vpack.c.b16 %v8710, %v8709
  %v8923 = vpack.c.b16 %v8712, %v8711
  %v8924 = vpack.c.b16 %v8714, %v8713
  %v8925 = vpack.c.b16 %v8716, %v8715
  %v8926 = vpack.c.b16 %v8718, %v8717
  %v8927 = vpack.c.b16 %v8720, %v8719
  %v8928 = vpack.c.b16 %v8722, %v8721
  %v8929 = vpack.c.b16 %v8724, %v8723
  %v8930 = vpack.c.b16 %v8726, %v8725
  %v8931 = vpack.c.b16 %v8728, %v8727
  %v8932 = vpack.c.b16 %v8730, %v8729
  %v8933 = vpack.c.b16 %v8732, %v8731
  %v8934 = vpack.c.b16 %v8734, %v8733
  %v8935 = vpack.c.b16 %v8736, %v8735
  %v8936 = vpack.c.b16 %v8738, %v8737
  %v8937 = vpack.c.b16 %v8740, %v8739
  %v8938 = vpack.c.b16 %v8742, %v8741
  %v8939 = vpack.c.b16 %v8744, %v8743
  %v8940 = vpack.c.b16 %v8746, %v8745
  %v8941 = vpack.c.b16 %v8748, %v8747
  %v8942 = vpack.c.b16 %v8750, %v8749
  %v8943 = vpack.c.b16 %v8752, %v8751
  %v8944 = vpack.c.b16 %v8754, %v8753
  %v8945 = vpack.c.b16 %v8756, %v8755
  %v8946 = vpack.c.b16 %v8758, %v8757
  %v8947 = vpack.c.b16 %v8760, %v8759
  %v8948 = vpack.c.b16 %v8762, %v8761
  %v8949 = vpack.c.b16 %v8764, %v8763
  %v8950 = vpack.c.b16 %v8766, %v8765
  %v8951 = vpack.c.b16 %v8768, %v8767
  %v8952 = vpack.c.b16 %v8770, %v8769
  %v8953 = vpack.c.b16 %v8772, %v8771
  %v8954 = vpack.c.b16 %v8774, %v8773
  %v8955 = vpack.c.b16 %v8776, %v8775
  %v8956 = vpack.c.b16 %v8778, %v8777
  %v8957 = vpack.c.b16 %v8780, %v8779
  %v8958 = vpack.c.b16 %v8782, %v8781
  %v8959 = vpack.c.b16 %v8784, %v8783
  %v8960 = vpack.c.b16 %v8786, %v8785
  %v8961 = vpack.c.b16 %v8788, %v8787
  %v8962 = vpack.c.b16 %v8790, %v8789
  %v8963 = vpack.c.b16 %v8792, %v8791
  %v8964 = vpack.c.b16 %v8794, %v8793
  %v8965 = vpack.c.b16 %v8796, %v8795
  %v8966 = vpack.c.b16 %v8798, %v8797
  %v8967 = vpack.c.b16 %v8800, %v8799
  %v8968 = vpack.c.b16 %v8802, %v8801
  %v8969 = vpack.c.b16 %v8804, %v8803
  %v8970 = vpack.c.b16 %v8806, %v8805
  %v8971 = vpack.c.b16 %v8808, %v8807
  %v8972 = vpack.c.b16 %v8810, %v8809
  %v8973 = vpack.c.b16 %v8812, %v8811
  %v8974 = vpack.c.b16 %v8814, %v8813
  %v8975 = vpack.c.b16 %v8816, %v8815
  %v8976 = vpack.c.b16 %v8818, %v8817
  %v8977 = vpack.c.b16 %v8820, %v8819
  %v8978 = vpack.c.b16 %v8822, %v8821
  %v8979 = vpack.c.b16 %v8824, %v8823
  %v8980 = vpack.c.b16 %v8826, %v8825
  %v8981 = vpack.c.b16 %v8828, %v8827
  %v8982 = vpack.c.b16 %v8830, %v8829
  %v8983 = vpack.c.b16 %v8832, %v8831
  %v8984 = vpack.c.b16 %v8834, %v8833
  %v8985 = vpack.c.b16 %v8836, %v8835
  %v8986 = vpack.c.b16 %v8838, %v8837
  %v8987 = vpack.c.b16 %v8840, %v8839
  %v8988 = vpack.c.b16 %v8842, %v8841
  %v8989 = vpack.c.b16 %v8844, %v8843
  %v8990 = vpack.c.b16 %v8846, %v8845
  %v8991 = vpack.c.b16 %v8848, %v8847
  %v8992 = vpack.c.b16 %v8850, %v8849
  %v8993 = vpack.c.b16 %v8852, %v8851
  %v8994 = vpack.c.b16 %v8854, %v8853
  %v8995 = vpack.c.b16 %v8856, %v8855
  %v8996 = vpack.c.b16 %v8858, %v8857
  %v8997 = vpack.c.b16 %v8860, %v8859
  %v8998 = vpack.c.b16 %v8862, %v8861
  %v8999 = vpack.c.b16 %v8864, %v8863
  %v9000 = vpack.c.b16 %v8866, %v8865
  %v9001 = vpack.c.b16 %v8868, %v8867
  %v9002 = vpack.c.b16 %v8870, %v8869
  %v9003 = vpack.c.b16 %v8872, %v8871
  %v9004 = vpack.c.b16 %v8874, %v8873
  %v9005 = vpack.c.b16 %v8876, %v8875
  %v9006 = vpack.c.b16 %v8878, %v8877
  %9135 = vmatprep.subr.bf16.mxu0 0
  %9136 = vmatpush1.bf16.msra.mxu0 %v8879
  %9137 = vmatprep.subr.bf16.mxu0 0
  %9138 = vmatpush1.bf16.msra.mxu0 %v8880
  %9139 = vmatprep.subr.bf16.mxu0 0
  %9140 = vmatpush1.bf16.msra.mxu0 %v8881
  %9141 = vmatprep.subr.bf16.mxu0 0
  %9142 = vmatpush1.bf16.msra.mxu0 %v8882
  %9143 = vmatprep.subr.bf16.mxu0 0
  %9144 = vmatpush1.bf16.msra.mxu0 %v8883
  %9145 = vmatprep.subr.bf16.mxu0 0
  %9146 = vmatpush1.bf16.msra.mxu0 %v8884
  %9147 = vmatprep.subr.bf16.mxu0 0
  %9148 = vmatpush1.bf16.msra.mxu0 %v8885
  %9149 = vmatprep.subr.bf16.mxu0 0
  %9150 = vmatpush1.bf16.msra.mxu0 %v8886
  %9151 = vmatprep.subr.bf16.mxu0 0
  %9152 = vmatpush1.bf16.msra.mxu0 %v8887
  %9153 = vmatprep.subr.bf16.mxu0 0
  %9154 = vmatpush1.bf16.msra.mxu0 %v8888
  %9155 = vmatprep.subr.bf16.mxu0 0
  %9156 = vmatpush1.bf16.msra.mxu0 %v8889
  %9157 = vmatprep.subr.bf16.mxu0 0
  %9158 = vmatpush1.bf16.msra.mxu0 %v8890
  %9159 = vmatprep.subr.bf16.mxu0 0
  %9160 = vmatpush1.bf16.msra.mxu0 %v8891
  %9161 = vmatprep.subr.bf16.mxu0 0
  %9162 = vmatpush1.bf16.msra.mxu0 %v8892
  %9163 = vmatprep.subr.bf16.mxu0 0
  %9164 = vmatpush1.bf16.msra.mxu0 %v8893
  %9165 = vmatprep.subr.bf16.mxu0 0
  %9166 = vmatpush1.bf16.msra.mxu0 %v8894
  %9167 = vmatprep.mubr.bf16.mxu0 %v8348
  %9168 = vmatmul.mubr.bf16.gmra.mrb[0].mxu0 %v8347
  %v9169 = vpop.f32.mrb[0].mxu0
  %v9170 = vadd.f32 %v8366, %v9169
  %v9171 = vpop.f32.mrb[0].mxu0
  %v9172 = vpop.f32.mrb[0].mxu0
  %v9173 = vpop.f32.mrb[0].mxu0
  %9174 = vdwg.mxu0
  %9175 = vmatprep.subr.bf16.mxu0 0
  %9176 = vmatpush1.bf16.msra.mxu0 %v8895
  %9177 = vmatprep.subr.bf16.mxu0 0
  %9178 = vmatpush1.bf16.msra.mxu0 %v8896
  %9179 = vmatprep.subr.bf16.mxu0 0
  %9180 = vmatpush1.bf16.msra.mxu0 %v8897
  %9181 = vmatprep.subr.bf16.mxu0 0
  %9182 = vmatpush1.bf16.msra.mxu0 %v8898
  %9183 = vmatprep.subr.bf16.mxu0 0
  %9184 = vmatpush1.bf16.msra.mxu0 %v8899
  %9185 = vmatprep.subr.bf16.mxu0 0
  %9186 = vmatpush1.bf16.msra.mxu0 %v8900
  %9187 = vmatprep.subr.bf16.mxu0 0
  %9188 = vmatpush1.bf16.msra.mxu0 %v8901
  %9189 = vmatprep.subr.bf16.mxu0 0
  %9190 = vmatpush1.bf16.msra.mxu0 %v8902
  %9191 = vmatprep.subr.bf16.mxu0 0
  %9192 = vmatpush1.bf16.msra.mxu0 %v8903
  %9193 = vmatprep.subr.bf16.mxu0 0
  %9194 = vmatpush1.bf16.msra.mxu0 %v8904
  %9195 = vmatprep.subr.bf16.mxu0 0
  %9196 = vmatpush1.bf16.msra.mxu0 %v8905
  %9197 = vmatprep.subr.bf16.mxu0 0
  %9198 = vmatpush1.bf16.msra.mxu0 %v8906
  %9199 = vmatprep.subr.bf16.mxu0 0
  %9200 = vmatpush1.bf16.msra.mxu0 %v8907
  %9201 = vmatprep.subr.bf16.mxu0 0
  %9202 = vmatpush1.bf16.msra.mxu0 %v8908
  %9203 = vmatprep.subr.bf16.mxu0 0
  %9204 = vmatpush1.bf16.msra.mxu0 %v8909
  %9205 = vmatprep.subr.bf16.mxu0 0
  %9206 = vmatpush1.bf16.msra.mxu0 %v8910
  %9207 = vmatprep.mubr.bf16.mxu0 %v8350
  %9208 = vmatmul.mubr.bf16.gmra.mrb[0].mxu0 %v8349
  %v9209 = vpop.f32.mrb[0].mxu0
  %v9210 = vadd.f32 %v9170, %v9209
  %v9211 = vpop.f32.mrb[0].mxu0
  %v9212 = vpop.f32.mrb[0].mxu0
  %v9213 = vpop.f32.mrb[0].mxu0
  %9214 = vdwg.mxu0
  %9215 = vmatprep.subr.bf16.mxu0 0
  %9216 = vmatpush1.bf16.msra.mxu0 %v8911
  %9217 = vmatprep.subr.bf16.mxu0 0
  %9218 = vmatpush1.bf16.msra.mxu0 %v8912
  %9219 = vmatprep.subr.bf16.mxu0 0
  %9220 = vmatpush1.bf16.msra.mxu0 %v8913
  %9221 = vmatprep.subr.bf16.mxu0 0
  %9222 = vmatpush1.bf16.msra.mxu0 %v8914
  %9223 = vmatprep.subr.bf16.mxu0 0
  %9224 = vmatpush1.bf16.msra.mxu0 %v8915
  %9225 = vmatprep.subr.bf16.mxu0 0
  %9226 = vmatpush1.bf16.msra.mxu0 %v8916
  %9227 = vmatprep.subr.bf16.mxu0 0
  %9228 = vmatpush1.bf16.msra.mxu0 %v8917
  %9229 = vmatprep.subr.bf16.mxu0 0
  %9230 = vmatpush1.bf16.msra.mxu0 %v8918
  %9231 = vmatprep.subr.bf16.mxu0 0
  %9232 = vmatpush1.bf16.msra.mxu0 %v8919
  %9233 = vmatprep.subr.bf16.mxu0 0
  %9234 = vmatpush1.bf16.msra.mxu0 %v8920
  %9235 = vmatprep.subr.bf16.mxu0 0
  %9236 = vmatpush1.bf16.msra.mxu0 %v8921
  %9237 = vmatprep.subr.bf16.mxu0 0
  %9238 = vmatpush1.bf16.msra.mxu0 %v8922
  %9239 = vmatprep.subr.bf16.mxu0 0
  %9240 = vmatpush1.bf16.msra.mxu0 %v8923
  %9241 = vmatprep.subr.bf16.mxu0 0
  %9242 = vmatpush1.bf16.msra.mxu0 %v8924
  %9243 = vmatprep.subr.bf16.mxu0 0
  %9244 = vmatpush1.bf16.msra.mxu0 %v8925
  %9245 = vmatprep.subr.bf16.mxu0 0
  %9246 = vmatpush1.bf16.msra.mxu0 %v8926
  %9247 = vmatprep.mubr.bf16.mxu0 %v8352
  %9248 = vmatmul.mubr.bf16.gmra.mrb[0].mxu0 %v8351
  %v9249 = vpop.f32.mrb[0].mxu0
  %v9250 = vadd.f32 %v9210, %v9249
  %v9251 = vpop.f32.mrb[0].mxu0
  %v9252 = vpop.f32.mrb[0].mxu0
  %v9253 = vpop.f32.mrb[0].mxu0
  %9254 = vdwg.mxu0
  %9255 = vmatprep.subr.bf16.mxu0 0
  %9256 = vmatpush1.bf16.msra.mxu0 %v8927
  %9257 = vmatprep.subr.bf16.mxu0 0
  %9258 = vmatpush1.bf16.msra.mxu0 %v8928
  %9259 = vmatprep.subr.bf16.mxu0 0
  %9260 = vmatpush1.bf16.msra.mxu0 %v8929
  %9261 = vmatprep.subr.bf16.mxu0 0
  %9262 = vmatpush1.bf16.msra.mxu0 %v8930
  %9263 = vmatprep.subr.bf16.mxu0 0
  %9264 = vmatpush1.bf16.msra.mxu0 %v8931
  %9265 = vmatprep.subr.bf16.mxu0 0
  %9266 = vmatpush1.bf16.msra.mxu0 %v8932
  %9267 = vmatprep.subr.bf16.mxu0 0
  %9268 = vmatpush1.bf16.msra.mxu0 %v8933
  %9269 = vmatprep.subr.bf16.mxu0 0
  %9270 = vmatpush1.bf16.msra.mxu0 %v8934
  %9271 = vmatprep.subr.bf16.mxu0 0
  %9272 = vmatpush1.bf16.msra.mxu0 %v8935
  %9273 = vmatprep.subr.bf16.mxu0 0
  %9274 = vmatpush1.bf16.msra.mxu0 %v8936
  %9275 = vmatprep.subr.bf16.mxu0 0
  %9276 = vmatpush1.bf16.msra.mxu0 %v8937
  %9277 = vmatprep.subr.bf16.mxu0 0
  %9278 = vmatpush1.bf16.msra.mxu0 %v8938
  %9279 = vmatprep.subr.bf16.mxu0 0
  %9280 = vmatpush1.bf16.msra.mxu0 %v8939
  %9281 = vmatprep.subr.bf16.mxu0 0
  %9282 = vmatpush1.bf16.msra.mxu0 %v8940
  %9283 = vmatprep.subr.bf16.mxu0 0
  %9284 = vmatpush1.bf16.msra.mxu0 %v8941
  %9285 = vmatprep.subr.bf16.mxu0 0
  %9286 = vmatpush1.bf16.msra.mxu0 %v8942
  %9287 = vmatprep.mubr.bf16.mxu0 %v8354
  %9288 = vmatmul.mubr.bf16.gmra.mrb[0].mxu0 %v8353
  %v9289 = vpop.f32.mrb[0].mxu0
  %v9290 = vadd.f32 %v9250, %v9289
  %v9291 = vpop.f32.mrb[0].mxu0
  %v9292 = vpop.f32.mrb[0].mxu0
  %v9293 = vpop.f32.mrb[0].mxu0
  %9294 = vdwg.mxu0
  %9295 = vmatprep.subr.bf16.mxu0 0
  %9296 = vmatpush1.bf16.msra.mxu0 %v8943
  %9297 = vmatprep.subr.bf16.mxu0 0
  %9298 = vmatpush1.bf16.msra.mxu0 %v8944
  %9299 = vmatprep.subr.bf16.mxu0 0
  %9300 = vmatpush1.bf16.msra.mxu0 %v8945
  %9301 = vmatprep.subr.bf16.mxu0 0
  %9302 = vmatpush1.bf16.msra.mxu0 %v8946
  %9303 = vmatprep.subr.bf16.mxu0 0
  %9304 = vmatpush1.bf16.msra.mxu0 %v8947
  %9305 = vmatprep.subr.bf16.mxu0 0
  %9306 = vmatpush1.bf16.msra.mxu0 %v8948
  %9307 = vmatprep.subr.bf16.mxu0 0
  %9308 = vmatpush1.bf16.msra.mxu0 %v8949
  %9309 = vmatprep.subr.bf16.mxu0 0
  %9310 = vmatpush1.bf16.msra.mxu0 %v8950
  %9311 = vmatprep.subr.bf16.mxu0 0
  %9312 = vmatpush1.bf16.msra.mxu0 %v8951
  %9313 = vmatprep.subr.bf16.mxu0 0
  %9314 = vmatpush1.bf16.msra.mxu0 %v8952
  %9315 = vmatprep.subr.bf16.mxu0 0
  %9316 = vmatpush1.bf16.msra.mxu0 %v8953
  %9317 = vmatprep.subr.bf16.mxu0 0
  %9318 = vmatpush1.bf16.msra.mxu0 %v8954
  %9319 = vmatprep.subr.bf16.mxu0 0
  %9320 = vmatpush1.bf16.msra.mxu0 %v8955
  %9321 = vmatprep.subr.bf16.mxu0 0
  %9322 = vmatpush1.bf16.msra.mxu0 %v8956
  %9323 = vmatprep.subr.bf16.mxu0 0
  %9324 = vmatpush1.bf16.msra.mxu0 %v8957
  %9325 = vmatprep.subr.bf16.mxu0 0
  %9326 = vmatpush1.bf16.msra.mxu0 %v8958
  %9327 = vmatprep.mubr.bf16.mxu0 %v8356
  %9328 = vmatmul.mubr.bf16.gmra.mrb[0].mxu0 %v8355
  %v9329 = vpop.f32.mrb[0].mxu0
  %v9330 = vadd.f32 %v9290, %v9329
  %v9331 = vpop.f32.mrb[0].mxu0
  %v9332 = vpop.f32.mrb[0].mxu0
  %v9333 = vpop.f32.mrb[0].mxu0
  %9334 = vdwg.mxu0
  %9335 = vmatprep.subr.bf16.mxu0 0
  %9336 = vmatpush1.bf16.msra.mxu0 %v8959
  %9337 = vmatprep.subr.bf16.mxu0 0
  %9338 = vmatpush1.bf16.msra.mxu0 %v8960
  %9339 = vmatprep.subr.bf16.mxu0 0
  %9340 = vmatpush1.bf16.msra.mxu0 %v8961
  %9341 = vmatprep.subr.bf16.mxu0 0
  %9342 = vmatpush1.bf16.msra.mxu0 %v8962
  %9343 = vmatprep.subr.bf16.mxu0 0
  %9344 = vmatpush1.bf16.msra.mxu0 %v8963
  %9345 = vmatprep.subr.bf16.mxu0 0
  %9346 = vmatpush1.bf16.msra.mxu0 %v8964
  %9347 = vmatprep.subr.bf16.mxu0 0
  %9348 = vmatpush1.bf16.msra.mxu0 %v8965
  %9349 = vmatprep.subr.bf16.mxu0 0
  %9350 = vmatpush1.bf16.msra.mxu0 %v8966
  %9351 = vmatprep.subr.bf16.mxu0 0
  %9352 = vmatpush1.bf16.msra.mxu0 %v8967
  %9353 = vmatprep.subr.bf16.mxu0 0
  %9354 = vmatpush1.bf16.msra.mxu0 %v8968
  %9355 = vmatprep.subr.bf16.mxu0 0
  %9356 = vmatpush1.bf16.msra.mxu0 %v8969
  %9357 = vmatprep.subr.bf16.mxu0 0
  %9358 = vmatpush1.bf16.msra.mxu0 %v8970
  %9359 = vmatprep.subr.bf16.mxu0 0
  %9360 = vmatpush1.bf16.msra.mxu0 %v8971
  %9361 = vmatprep.subr.bf16.mxu0 0
  %9362 = vmatpush1.bf16.msra.mxu0 %v8972
  %9363 = vmatprep.subr.bf16.mxu0 0
  %9364 = vmatpush1.bf16.msra.mxu0 %v8973
  %9365 = vmatprep.subr.bf16.mxu0 0
  %9366 = vmatpush1.bf16.msra.mxu0 %v8974
  %9367 = vmatprep.mubr.bf16.mxu0 %v8358
  %9368 = vmatmul.mubr.bf16.gmra.mrb[0].mxu0 %v8357
  %v9369 = vpop.f32.mrb[0].mxu0
  %v9370 = vadd.f32 %v9330, %v9369
  %v9371 = vpop.f32.mrb[0].mxu0
  %v9372 = vpop.f32.mrb[0].mxu0
  %v9373 = vpop.f32.mrb[0].mxu0
  %9374 = vdwg.mxu0
  %9375 = vmatprep.subr.bf16.mxu0 0
  %9376 = vmatpush1.bf16.msra.mxu0 %v8975
  %9377 = vmatprep.subr.bf16.mxu0 0
  %9378 = vmatpush1.bf16.msra.mxu0 %v8976
  %9379 = vmatprep.subr.bf16.mxu0 0
  %9380 = vmatpush1.bf16.msra.mxu0 %v8977
  %9381 = vmatprep.subr.bf16.mxu0 0
  %9382 = vmatpush1.bf16.msra.mxu0 %v8978
  %9383 = vmatprep.subr.bf16.mxu0 0
  %9384 = vmatpush1.bf16.msra.mxu0 %v8979
  %9385 = vmatprep.subr.bf16.mxu0 0
  %9386 = vmatpush1.bf16.msra.mxu0 %v8980
  %9387 = vmatprep.subr.bf16.mxu0 0
  %9388 = vmatpush1.bf16.msra.mxu0 %v8981
  %9389 = vmatprep.subr.bf16.mxu0 0
  %9390 = vmatpush1.bf16.msra.mxu0 %v8982
  %9391 = vmatprep.subr.bf16.mxu0 0
  %9392 = vmatpush1.bf16.msra.mxu0 %v8983
  %9393 = vmatprep.subr.bf16.mxu0 0
  %9394 = vmatpush1.bf16.msra.mxu0 %v8984
  %9395 = vmatprep.subr.bf16.mxu0 0
  %9396 = vmatpush1.bf16.msra.mxu0 %v8985
  %9397 = vmatprep.subr.bf16.mxu0 0
  %9398 = vmatpush1.bf16.msra.mxu0 %v8986
  %9399 = vmatprep.subr.bf16.mxu0 0
  %9400 = vmatpush1.bf16.msra.mxu0 %v8987
  %9401 = vmatprep.subr.bf16.mxu0 0
  %9402 = vmatpush1.bf16.msra.mxu0 %v8988
  %9403 = vmatprep.subr.bf16.mxu0 0
  %9404 = vmatpush1.bf16.msra.mxu0 %v8989
  %9405 = vmatprep.subr.bf16.mxu0 0
  %9406 = vmatpush1.bf16.msra.mxu0 %v8990
  %9407 = vmatprep.mubr.bf16.mxu0 %v8360
  %9408 = vmatmul.mubr.bf16.gmra.mrb[0].mxu0 %v8359
  %v9409 = vpop.f32.mrb[0].mxu0
  %v9410 = vadd.f32 %v9370, %v9409
  %v9411 = vpop.f32.mrb[0].mxu0
  %v9412 = vpop.f32.mrb[0].mxu0
  %v9413 = vpop.f32.mrb[0].mxu0
  %9414 = vdwg.mxu0
  %9415 = vmatprep.subr.bf16.mxu0 0
  %9416 = vmatpush1.bf16.msra.mxu0 %v8991
  %9417 = vmatprep.subr.bf16.mxu0 0
  %9418 = vmatpush1.bf16.msra.mxu0 %v8992
  %9419 = vmatprep.subr.bf16.mxu0 0
  %9420 = vmatpush1.bf16.msra.mxu0 %v8993
  %9421 = vmatprep.subr.bf16.mxu0 0
  %9422 = vmatpush1.bf16.msra.mxu0 %v8994
  %9423 = vmatprep.subr.bf16.mxu0 0
  %9424 = vmatpush1.bf16.msra.mxu0 %v8995
  %9425 = vmatprep.subr.bf16.mxu0 0
  %9426 = vmatpush1.bf16.msra.mxu0 %v8996
  %9427 = vmatprep.subr.bf16.mxu0 0
  %9428 = vmatpush1.bf16.msra.mxu0 %v8997
  %9429 = vmatprep.subr.bf16.mxu0 0
  %9430 = vmatpush1.bf16.msra.mxu0 %v8998
  %9431 = vmatprep.subr.bf16.mxu0 0
  %9432 = vmatpush1.bf16.msra.mxu0 %v8999
  %9433 = vmatprep.subr.bf16.mxu0 0
  %9434 = vmatpush1.bf16.msra.mxu0 %v9000
  %9435 = vmatprep.subr.bf16.mxu0 0
  %9436 = vmatpush1.bf16.msra.mxu0 %v9001
  %9437 = vmatprep.subr.bf16.mxu0 0
  %9438 = vmatpush1.bf16.msra.mxu0 %v9002
  %9439 = vmatprep.subr.bf16.mxu0 0
  %9440 = vmatpush1.bf16.msra.mxu0 %v9003
  %9441 = vmatprep.subr.bf16.mxu0 0
  %9442 = vmatpush1.bf16.msra.mxu0 %v9004
  %9443 = vmatprep.subr.bf16.mxu0 0
  %9444 = vmatpush1.bf16.msra.mxu0 %v9005
  %9445 = vmatprep.subr.bf16.mxu0 0
  %9446 = vmatpush1.bf16.msra.mxu0 %v9006
  %9447 = vmatprep.mubr.bf16.mxu0 %v8362
  %9448 = vmatmul.mubr.bf16.gmra.mrb[0].mxu0 %v8361
  %v9449 = vpop.f32.mrb[0].mxu0
  %v9450 = vadd.f32 %v9410, %v9449
  %v9451 = vpop.f32.mrb[0].mxu0
  %v9452 = vpop.f32.mrb[0].mxu0
  %v9453 = vpop.f32.mrb[0].mxu0
  %9454 = vdwg.mxu0
  %v9456 = vrot.slane %v9450, 1
  %v9457 = vrot.slane %v9450, 2
  %v9460 = vadd.f32 %v7663, %v9456
  %v9461 = vadd.f32 %v7664, %v9457
  %v9464 = vrot.slane %v9461, 7
  %v9467 = vsel %vm7606, %v9460, 0.0
  %9468 = vadd.xlane.f32.xlu0 %v9467
  %v9469 = vpop.xlane.xlu0 %9468
  %v9470 = vsel %vm7610, %v9464, 0.0
  %9471 = vadd.xlane.f32.xlu0 %v9470
  %v9472 = vpop.xlane.xlu0 %9471
  %v9473 = vmul.f32 %v9469, %v1824
  %v9474 = vmul.f32 %v9472, %v1824
  %v9475 = vmul.f32 %v9460, %v9460
  %v9476 = vmul.f32 %v9461, %v9461
  %v9479 = vrot.slane %v9476, 7
  %v9482 = vsel %vm7606, %v9475, 0.0
  %9483 = vadd.xlane.f32.xlu0 %v9482
  %v9484 = vpop.xlane.xlu0 %9483
  %v9485 = vsel %vm7610, %v9479, 0.0
  %9486 = vadd.xlane.f32.xlu0 %v9485
  %v9487 = vpop.xlane.xlu0 %9486
  %v9488 = vmul.f32 %v9484, %v1824
  %v9489 = vmul.f32 %v9487, %v1824
  %v9490 = vmul.f32 %v9473, %v9473
  %v9491 = vmul.f32 %v9474, %v9474
  %v9492 = vsub.f32 %v9488, %v9490
  %v9493 = vsub.f32 %v9489, %v9491
  %v9496 = vrot.slane %v9474, 1
  %v9499 = vsub.f32 %v9460, %v9473
  %v9500 = vsub.f32 %v9461, %v9496
  %v9501 = vadd.f32 %v9492, 1e-05
  %v9502 = vadd.f32 %v9493, 1e-05
  %v9503 = vrsqrt.pop %v9501
  %v9504 = vrsqrt.pop %v9502
  %v9507 = vrot.slane %v9504, 1
  %v9510 = vmul.f32 %v9499, %v9503
  %v9511 = vmul.f32 %v9500, %v9507
  %v9512 = vlaneseq
  %v9513 = vshrl.u32 %v9512, 7
  %v9514 = vsub.s32 5, %v9513
  %v9515 = vrot.slane %v7252, %v9514
  %v9516 = vmul.f32 %v9510, %v9515
  %v9517 = vmul.f32 %v9511, %v9515
  %v9518 = vlaneseq
  %v9519 = vshrl.u32 %v9518, 7
  %v9520 = vsub.s32 6, %v9519
  %v9521 = vrot.slane %v7252, %v9520
  %v9522 = vadd.f32 %v9516, %v9521
  %v9523 = vadd.f32 %v9517, %v9521
  %v9524 = vpack.c.bf16 %v9522, %v9522
  %v9525 = vpack.c.bf16 %v9523, %v9523
  %v9528 = vunpack.c.l.b16 %v9524
  %v9529 = vunpack.c.l.b16 %v9525
  %v9530 = vrot.slane %v9528, 7
  %v9531 = vrot.slane %v9529, 6
  %v9532 = vsel %vm7536, %v9531, %v9530
  %v9533 = vpack.c.b16 %v9532, %v9532
  %v9535 = vsel %vm357, %v9533, 0
  %9537 = vmatprep.subr.bf16.mxu0 0
  %9538 = vmatpush1.bf16.msra.mxu0 %v7547
  %9539 = vmatprep.subr.bf16.mxu0 0
  %9540 = vmatpush1.bf16.msra.mxu0 %v7548
  %9541 = vmatprep.subr.bf16.mxu0 0
  %9542 = vmatpush1.bf16.msra.mxu0 0
  %9543 = vmatprep.subr.bf16.mxu0 0
  %9544 = vmatpush1.bf16.msra.mxu0 0
  %9545 = vmatprep.subr.bf16.mxu0 0
  %9546 = vmatpush1.bf16.msra.mxu0 0
  %9547 = vmatprep.subr.bf16.mxu0 0
  %9548 = vmatpush1.bf16.msra.mxu0 0
  %9549 = vmatprep.subr.bf16.mxu0 0
  %9550 = vmatpush1.bf16.msra.mxu0 0
  %9551 = vmatprep.subr.bf16.mxu0 0
  %9552 = vmatpush1.bf16.msra.mxu0 0
  %9553 = vmatprep.subr.bf16.mxu0 0
  %9554 = vmatpush1.bf16.msra.mxu0 0
  %9555 = vmatprep.subr.bf16.mxu0 0
  %9556 = vmatpush1.bf16.msra.mxu0 0
  %9557 = vmatprep.subr.bf16.mxu0 0
  %9558 = vmatpush1.bf16.msra.mxu0 0
  %9559 = vmatprep.subr.bf16.mxu0 0
  %9560 = vmatpush1.bf16.msra.mxu0 0
  %9561 = vmatprep.subr.bf16.mxu0 0
  %9562 = vmatpush1.bf16.msra.mxu0 0
  %9563 = vmatprep.subr.bf16.mxu0 0
  %9564 = vmatpush1.bf16.msra.mxu0 0
  %9565 = vmatprep.subr.bf16.mxu0 0
  %9566 = vmatpush1.bf16.msra.mxu0 0
  %9567 = vmatprep.subr.bf16.mxu0 0
  %9568 = vmatpush1.bf16.msra.mxu0 0
  %9569 = vmatprep.mubr.bf16.mxu0 0
  %9570 = vmatmul.mubr.bf16.gmra.mrb[0].mxu0 %v9535
  %v9571 = vpop.f32.mrb[0].mxu0
  %v9572 = vadd.f32 %v7529, %v9571
  %v9573 = vpop.f32.mrb[0].mxu0
  %v9574 = vpop.f32.mrb[0].mxu0
  %v9575 = vpop.f32.mrb[0].mxu0
  %9576 = vdwg.mxu0
  %v9578 = vrot.slane %v9572, 1
  %v9579 = vrot.slane %v9572, 2
  %v9582 = vadd.f32 %v9522, %v9578
  %v9583 = vadd.f32 %v9523, %v9579
  %v9586 = vrot.slane %v9583, 7
  %v9589 = vsel %vm7606, %v9582, 0.0
  %9590 = vadd.xlane.f32.xlu0 %v9589
  %v9591 = vpop.xlane.xlu0 %9590
  %v9592 = vsel %vm7610, %v9586, 0.0
  %9593 = vadd.xlane.f32.xlu0 %v9592
  %v9594 = vpop.xlane.xlu0 %9593
  %v9595 = vmul.f32 %v9591, %v1824
  %v9596 = vmul.f32 %v9594, %v1824
  %v9597 = vmul.f32 %v9582, %v9582
  %v9598 = vmul.f32 %v9583, %v9583
  %v9601 = vrot.slane %v9598, 7
  %v9604 = vsel %vm7606, %v9597, 0.0
  %9605 = vadd.xlane.f32.xlu0 %v9604
  %v9606 = vpop.xlane.xlu0 %9605
  %v9607 = vsel %vm7610, %v9601, 0.0
  %9608 = vadd.xlane.f32.xlu0 %v9607
  %v9609 = vpop.xlane.xlu0 %9608
  %v9610 = vmul.f32 %v9606, %v1824
  %v9611 = vmul.f32 %v9609, %v1824
  %v9612 = vmul.f32 %v9595, %v9595
  %v9613 = vmul.f32 %v9596, %v9596
  %v9614 = vsub.f32 %v9610, %v9612
  %v9615 = vsub.f32 %v9611, %v9613
  %v9618 = vrot.slane %v9596, 1
  %v9621 = vsub.f32 %v9582, %v9595
  %v9622 = vsub.f32 %v9583, %v9618
  %v9623 = vadd.f32 %v9614, 1e-05
  %v9624 = vadd.f32 %v9615, 1e-05
  %v9625 = vrsqrt.pop %v9623
  %v9626 = vrsqrt.pop %v9624
  %v9629 = vrot.slane %v9626, 1
  %v9632 = vmul.f32 %v9621, %v9625
  %v9633 = vmul.f32 %v9622, %v9629
  %v9634 = vmul.f32 %v9632, %v7656
  %v9635 = vmul.f32 %v9633, %v7656
  %v9636 = vadd.f32 %v9634, %v7662
  %v9637 = vadd.f32 %v9635, %v7662
  %v9638 = vpack.c.bf16 %v9636, %v9636
  %v9639 = vpack.c.bf16 %v9637, %v9637
  %v9642 = vunpack.c.l.b16 %v9638
  %v9643 = vunpack.c.l.b16 %v9639
  %v9644 = vrot.slane %v9642, 7
  %v9645 = vrot.slane %v9643, 6
  %v9646 = vsel %vm7536, %v9645, %v9644
  %v9647 = vpack.c.b16 %v9646, %v9646
  %v9649 = vsel %vm357, %v9647, 0
  %9651 = vmatprep.subr.bf16.mxu0 %v7937
  %9652 = vmatpush1.bf16.msra.mxu0 %v7936
  %9653 = vmatprep.subr.bf16.mxu0 %v7953
  %9654 = vmatpush1.bf16.msra.mxu0 %v7952
  %9655 = vmatprep.subr.bf16.mxu0 0
  %9656 = vmatpush1.bf16.msra.mxu0 0
  %9657 = vmatprep.subr.bf16.mxu0 0
  %9658 = vmatpush1.bf16.msra.mxu0 0
  %9659 = vmatprep.subr.bf16.mxu0 0
  %9660 = vmatpush1.bf16.msra.mxu0 0
  %9661 = vmatprep.subr.bf16.mxu0 0
  %9662 = vmatpush1.bf16.msra.mxu0 0
  %9663 = vmatprep.subr.bf16.mxu0 0
  %9664 = vmatpush1.bf16.msra.mxu0 0
  %9665 = vmatprep.subr.bf16.mxu0 0
  %9666 = vmatpush1.bf16.msra.mxu0 0
  %9667 = vmatprep.subr.bf16.mxu0 0
  %9668 = vmatpush1.bf16.msra.mxu0 0
  %9669 = vmatprep.subr.bf16.mxu0 0
  %9670 = vmatpush1.bf16.msra.mxu0 0
  %9671 = vmatprep.subr.bf16.mxu0 0
  %9672 = vmatpush1.bf16.msra.mxu0 0
  %9673 = vmatprep.subr.bf16.mxu0 0
  %9674 = vmatpush1.bf16.msra.mxu0 0
  %9675 = vmatprep.subr.bf16.mxu0 0
  %9676 = vmatpush1.bf16.msra.mxu0 0
  %9677 = vmatprep.subr.bf16.mxu0 0
  %9678 = vmatpush1.bf16.msra.mxu0 0
  %9679 = vmatprep.subr.bf16.mxu0 0
  %9680 = vmatpush1.bf16.msra.mxu0 0
  %9681 = vmatprep.subr.bf16.mxu0 0
  %9682 = vmatpush1.bf16.msra.mxu0 0
  %9683 = vmatprep.mubr.bf16.mxu0 0
  %9684 = vmatmul.mubr.bf16.gmra.mrb[0].mxu0 %v9649
  %v9685 = vpop.f32.mrb[0].mxu0
  %v9686 = vadd.f32 %v7670, %v9685
  %v9687 = vpop.f32.mrb[0].mxu0
  %v9688 = vadd.f32 %v7674, %v9687
  %v9689 = vpop.f32.mrb[0].mxu0
  %v9690 = vpop.f32.mrb[0].mxu0
  %9691 = vdwg.mxu0
  %9692 = vmatprep.subr.bf16.mxu0 %v7939
  %9693 = vmatpush1.bf16.msra.mxu0 %v7938
  %9694 = vmatprep.subr.bf16.mxu0 %v7955
  %9695 = vmatpush1.bf16.msra.mxu0 %v7954
  %9696 = vmatprep.subr.bf16.mxu0 0
  %9697 = vmatpush1.bf16.msra.mxu0 0
  %9698 = vmatprep.subr.bf16.mxu0 0
  %9699 = vmatpush1.bf16.msra.mxu0 0
  %9700 = vmatprep.subr.bf16.mxu0 0
  %9701 = vmatpush1.bf16.msra.mxu0 0
  %9702 = vmatprep.subr.bf16.mxu0 0
  %9703 = vmatpush1.bf16.msra.mxu0 0
  %9704 = vmatprep.subr.bf16.mxu0 0
  %9705 = vmatpush1.bf16.msra.mxu0 0
  %9706 = vmatprep.subr.bf16.mxu0 0
  %9707 = vmatpush1.bf16.msra.mxu0 0
  %9708 = vmatprep.subr.bf16.mxu0 0
  %9709 = vmatpush1.bf16.msra.mxu0 0
  %9710 = vmatprep.subr.bf16.mxu0 0
  %9711 = vmatpush1.bf16.msra.mxu0 0
  %9712 = vmatprep.subr.bf16.mxu0 0
  %9713 = vmatpush1.bf16.msra.mxu0 0
  %9714 = vmatprep.subr.bf16.mxu0 0
  %9715 = vmatpush1.bf16.msra.mxu0 0
  %9716 = vmatprep.subr.bf16.mxu0 0
  %9717 = vmatpush1.bf16.msra.mxu0 0
  %9718 = vmatprep.subr.bf16.mxu0 0
  %9719 = vmatpush1.bf16.msra.mxu0 0
  %9720 = vmatprep.subr.bf16.mxu0 0
  %9721 = vmatpush1.bf16.msra.mxu0 0
  %9722 = vmatprep.subr.bf16.mxu0 0
  %9723 = vmatpush1.bf16.msra.mxu0 0
  %9724 = vmatprep.mubr.bf16.mxu0 0
  %9725 = vmatmul.mubr.bf16.gmra.mrb[0].mxu0 %v9649
  %v9726 = vpop.f32.mrb[0].mxu0
  %v9727 = vadd.f32 %v7678, %v9726
  %v9728 = vpop.f32.mrb[0].mxu0
  %v9729 = vadd.f32 %v7682, %v9728
  %v9730 = vpop.f32.mrb[0].mxu0
  %v9731 = vpop.f32.mrb[0].mxu0
  %9732 = vdwg.mxu0
  %9733 = vmatprep.subr.bf16.mxu0 %v7941
  %9734 = vmatpush1.bf16.msra.mxu0 %v7940
  %9735 = vmatprep.subr.bf16.mxu0 %v7957
  %9736 = vmatpush1.bf16.msra.mxu0 %v7956
  %9737 = vmatprep.subr.bf16.mxu0 0
  %9738 = vmatpush1.bf16.msra.mxu0 0
  %9739 = vmatprep.subr.bf16.mxu0 0
  %9740 = vmatpush1.bf16.msra.mxu0 0
  %9741 = vmatprep.subr.bf16.mxu0 0
  %9742 = vmatpush1.bf16.msra.mxu0 0
  %9743 = vmatprep.subr.bf16.mxu0 0
  %9744 = vmatpush1.bf16.msra.mxu0 0
  %9745 = vmatprep.subr.bf16.mxu0 0
  %9746 = vmatpush1.bf16.msra.mxu0 0
  %9747 = vmatprep.subr.bf16.mxu0 0
  %9748 = vmatpush1.bf16.msra.mxu0 0
  %9749 = vmatprep.subr.bf16.mxu0 0
  %9750 = vmatpush1.bf16.msra.mxu0 0
  %9751 = vmatprep.subr.bf16.mxu0 0
  %9752 = vmatpush1.bf16.msra.mxu0 0
  %9753 = vmatprep.subr.bf16.mxu0 0
  %9754 = vmatpush1.bf16.msra.mxu0 0
  %9755 = vmatprep.subr.bf16.mxu0 0
  %9756 = vmatpush1.bf16.msra.mxu0 0
  %9757 = vmatprep.subr.bf16.mxu0 0
  %9758 = vmatpush1.bf16.msra.mxu0 0
  %9759 = vmatprep.subr.bf16.mxu0 0
  %9760 = vmatpush1.bf16.msra.mxu0 0
  %9761 = vmatprep.subr.bf16.mxu0 0
  %9762 = vmatpush1.bf16.msra.mxu0 0
  %9763 = vmatprep.subr.bf16.mxu0 0
  %9764 = vmatpush1.bf16.msra.mxu0 0
  %9765 = vmatprep.mubr.bf16.mxu0 0
  %9766 = vmatmul.mubr.bf16.gmra.mrb[0].mxu0 %v9649
  %v9767 = vpop.f32.mrb[0].mxu0
  %v9768 = vadd.f32 %v7686, %v9767
  %v9769 = vpop.f32.mrb[0].mxu0
  %v9770 = vadd.f32 %v7690, %v9769
  %v9771 = vpop.f32.mrb[0].mxu0
  %v9772 = vpop.f32.mrb[0].mxu0
  %9773 = vdwg.mxu0
  %9774 = vmatprep.subr.bf16.mxu0 %v7943
  %9775 = vmatpush1.bf16.msra.mxu0 %v7942
  %9776 = vmatprep.subr.bf16.mxu0 %v7959
  %9777 = vmatpush1.bf16.msra.mxu0 %v7958
  %9778 = vmatprep.subr.bf16.mxu0 0
  %9779 = vmatpush1.bf16.msra.mxu0 0
  %9780 = vmatprep.subr.bf16.mxu0 0
  %9781 = vmatpush1.bf16.msra.mxu0 0
  %9782 = vmatprep.subr.bf16.mxu0 0
  %9783 = vmatpush1.bf16.msra.mxu0 0
  %9784 = vmatprep.subr.bf16.mxu0 0
  %9785 = vmatpush1.bf16.msra.mxu0 0
  %9786 = vmatprep.subr.bf16.mxu0 0
  %9787 = vmatpush1.bf16.msra.mxu0 0
  %9788 = vmatprep.subr.bf16.mxu0 0
  %9789 = vmatpush1.bf16.msra.mxu0 0
  %9790 = vmatprep.subr.bf16.mxu0 0
  %9791 = vmatpush1.bf16.msra.mxu0 0
  %9792 = vmatprep.subr.bf16.mxu0 0
  %9793 = vmatpush1.bf16.msra.mxu0 0
  %9794 = vmatprep.subr.bf16.mxu0 0
  %9795 = vmatpush1.bf16.msra.mxu0 0
  %9796 = vmatprep.subr.bf16.mxu0 0
  %9797 = vmatpush1.bf16.msra.mxu0 0
  %9798 = vmatprep.subr.bf16.mxu0 0
  %9799 = vmatpush1.bf16.msra.mxu0 0
  %9800 = vmatprep.subr.bf16.mxu0 0
  %9801 = vmatpush1.bf16.msra.mxu0 0
  %9802 = vmatprep.subr.bf16.mxu0 0
  %9803 = vmatpush1.bf16.msra.mxu0 0
  %9804 = vmatprep.subr.bf16.mxu0 0
  %9805 = vmatpush1.bf16.msra.mxu0 0
  %9806 = vmatprep.mubr.bf16.mxu0 0
  %9807 = vmatmul.mubr.bf16.gmra.mrb[0].mxu0 %v9649
  %v9808 = vpop.f32.mrb[0].mxu0
  %v9809 = vadd.f32 %v7694, %v9808
  %v9810 = vpop.f32.mrb[0].mxu0
  %v9811 = vadd.f32 %v7698, %v9810
  %v9812 = vpop.f32.mrb[0].mxu0
  %v9813 = vpop.f32.mrb[0].mxu0
  %9814 = vdwg.mxu0
  %9815 = vmatprep.subr.bf16.mxu0 %v7945
  %9816 = vmatpush1.bf16.msra.mxu0 %v7944
  %9817 = vmatprep.subr.bf16.mxu0 %v7961
  %9818 = vmatpush1.bf16.msra.mxu0 %v7960
  %9819 = vmatprep.subr.bf16.mxu0 0
  %9820 = vmatpush1.bf16.msra.mxu0 0
  %9821 = vmatprep.subr.bf16.mxu0 0
  %9822 = vmatpush1.bf16.msra.mxu0 0
  %9823 = vmatprep.subr.bf16.mxu0 0
  %9824 = vmatpush1.bf16.msra.mxu0 0
  %9825 = vmatprep.subr.bf16.mxu0 0
  %9826 = vmatpush1.bf16.msra.mxu0 0
  %9827 = vmatprep.subr.bf16.mxu0 0
  %9828 = vmatpush1.bf16.msra.mxu0 0
  %9829 = vmatprep.subr.bf16.mxu0 0
  %9830 = vmatpush1.bf16.msra.mxu0 0
  %9831 = vmatprep.subr.bf16.mxu0 0
  %9832 = vmatpush1.bf16.msra.mxu0 0
  %9833 = vmatprep.subr.bf16.mxu0 0
  %9834 = vmatpush1.bf16.msra.mxu0 0
  %9835 = vmatprep.subr.bf16.mxu0 0
  %9836 = vmatpush1.bf16.msra.mxu0 0
  %9837 = vmatprep.subr.bf16.mxu0 0
  %9838 = vmatpush1.bf16.msra.mxu0 0
  %9839 = vmatprep.subr.bf16.mxu0 0
  %9840 = vmatpush1.bf16.msra.mxu0 0
  %9841 = vmatprep.subr.bf16.mxu0 0
  %9842 = vmatpush1.bf16.msra.mxu0 0
  %9843 = vmatprep.subr.bf16.mxu0 0
  %9844 = vmatpush1.bf16.msra.mxu0 0
  %9845 = vmatprep.subr.bf16.mxu0 0
  %9846 = vmatpush1.bf16.msra.mxu0 0
  %9847 = vmatprep.mubr.bf16.mxu0 0
  %9848 = vmatmul.mubr.bf16.gmra.mrb[0].mxu0 %v9649
  %v9849 = vpop.f32.mrb[0].mxu0
  %v9850 = vadd.f32 %v7702, %v9849
  %v9851 = vpop.f32.mrb[0].mxu0
  %v9852 = vadd.f32 %v7706, %v9851
  %v9853 = vpop.f32.mrb[0].mxu0
  %v9854 = vpop.f32.mrb[0].mxu0
  %9855 = vdwg.mxu0
  %9856 = vmatprep.subr.bf16.mxu0 %v7947
  %9857 = vmatpush1.bf16.msra.mxu0 %v7946
  %9858 = vmatprep.subr.bf16.mxu0 %v7963
  %9859 = vmatpush1.bf16.msra.mxu0 %v7962
  %9860 = vmatprep.subr.bf16.mxu0 0
  %9861 = vmatpush1.bf16.msra.mxu0 0
  %9862 = vmatprep.subr.bf16.mxu0 0
  %9863 = vmatpush1.bf16.msra.mxu0 0
  %9864 = vmatprep.subr.bf16.mxu0 0
  %9865 = vmatpush1.bf16.msra.mxu0 0
  %9866 = vmatprep.subr.bf16.mxu0 0
  %9867 = vmatpush1.bf16.msra.mxu0 0
  %9868 = vmatprep.subr.bf16.mxu0 0
  %9869 = vmatpush1.bf16.msra.mxu0 0
  %9870 = vmatprep.subr.bf16.mxu0 0
  %9871 = vmatpush1.bf16.msra.mxu0 0
  %9872 = vmatprep.subr.bf16.mxu0 0
  %9873 = vmatpush1.bf16.msra.mxu0 0
  %9874 = vmatprep.subr.bf16.mxu0 0
  %9875 = vmatpush1.bf16.msra.mxu0 0
  %9876 = vmatprep.subr.bf16.mxu0 0
  %9877 = vmatpush1.bf16.msra.mxu0 0
  %9878 = vmatprep.subr.bf16.mxu0 0
  %9879 = vmatpush1.bf16.msra.mxu0 0
  %9880 = vmatprep.subr.bf16.mxu0 0
  %9881 = vmatpush1.bf16.msra.mxu0 0
  %9882 = vmatprep.subr.bf16.mxu0 0
  %9883 = vmatpush1.bf16.msra.mxu0 0
  %9884 = vmatprep.subr.bf16.mxu0 0
  %9885 = vmatpush1.bf16.msra.mxu0 0
  %9886 = vmatprep.subr.bf16.mxu0 0
  %9887 = vmatpush1.bf16.msra.mxu0 0
  %9888 = vmatprep.mubr.bf16.mxu0 0
  %9889 = vmatmul.mubr.bf16.gmra.mrb[0].mxu0 %v9649
  %v9890 = vpop.f32.mrb[0].mxu0
  %v9891 = vadd.f32 %v7710, %v9890
  %v9892 = vpop.f32.mrb[0].mxu0
  %v9893 = vadd.f32 %v7714, %v9892
  %v9894 = vpop.f32.mrb[0].mxu0
  %v9895 = vpop.f32.mrb[0].mxu0
  %9896 = vdwg.mxu0
  %9897 = vmatprep.subr.bf16.mxu0 %v7949
  %9898 = vmatpush1.bf16.msra.mxu0 %v7948
  %9899 = vmatprep.subr.bf16.mxu0 %v7965
  %9900 = vmatpush1.bf16.msra.mxu0 %v7964
  %9901 = vmatprep.subr.bf16.mxu0 0
  %9902 = vmatpush1.bf16.msra.mxu0 0
  %9903 = vmatprep.subr.bf16.mxu0 0
  %9904 = vmatpush1.bf16.msra.mxu0 0
  %9905 = vmatprep.subr.bf16.mxu0 0
  %9906 = vmatpush1.bf16.msra.mxu0 0
  %9907 = vmatprep.subr.bf16.mxu0 0
  %9908 = vmatpush1.bf16.msra.mxu0 0
  %9909 = vmatprep.subr.bf16.mxu0 0
  %9910 = vmatpush1.bf16.msra.mxu0 0
  %9911 = vmatprep.subr.bf16.mxu0 0
  %9912 = vmatpush1.bf16.msra.mxu0 0
  %9913 = vmatprep.subr.bf16.mxu0 0
  %9914 = vmatpush1.bf16.msra.mxu0 0
  %9915 = vmatprep.subr.bf16.mxu0 0
  %9916 = vmatpush1.bf16.msra.mxu0 0
  %9917 = vmatprep.subr.bf16.mxu0 0
  %9918 = vmatpush1.bf16.msra.mxu0 0
  %9919 = vmatprep.subr.bf16.mxu0 0
  %9920 = vmatpush1.bf16.msra.mxu0 0
  %9921 = vmatprep.subr.bf16.mxu0 0
  %9922 = vmatpush1.bf16.msra.mxu0 0
  %9923 = vmatprep.subr.bf16.mxu0 0
  %9924 = vmatpush1.bf16.msra.mxu0 0
  %9925 = vmatprep.subr.bf16.mxu0 0
  %9926 = vmatpush1.bf16.msra.mxu0 0
  %9927 = vmatprep.subr.bf16.mxu0 0
  %9928 = vmatpush1.bf16.msra.mxu0 0
  %9929 = vmatprep.mubr.bf16.mxu0 0
  %9930 = vmatmul.mubr.bf16.gmra.mrb[0].mxu0 %v9649
  %v9931 = vpop.f32.mrb[0].mxu0
  %v9932 = vadd.f32 %v7718, %v9931
  %v9933 = vpop.f32.mrb[0].mxu0
  %v9934 = vadd.f32 %v7722, %v9933
  %v9935 = vpop.f32.mrb[0].mxu0
  %v9936 = vpop.f32.mrb[0].mxu0
  %9937 = vdwg.mxu0
  %9938 = vmatprep.subr.bf16.mxu0 %v7951
  %9939 = vmatpush1.bf16.msra.mxu0 %v7950
  %9940 = vmatprep.subr.bf16.mxu0 %v7967
  %9941 = vmatpush1.bf16.msra.mxu0 %v7966
  %9942 = vmatprep.subr.bf16.mxu0 0
  %9943 = vmatpush1.bf16.msra.mxu0 0
  %9944 = vmatprep.subr.bf16.mxu0 0
  %9945 = vmatpush1.bf16.msra.mxu0 0
  %9946 = vmatprep.subr.bf16.mxu0 0
  %9947 = vmatpush1.bf16.msra.mxu0 0
  %9948 = vmatprep.subr.bf16.mxu0 0
  %9949 = vmatpush1.bf16.msra.mxu0 0
  %9950 = vmatprep.subr.bf16.mxu0 0
  %9951 = vmatpush1.bf16.msra.mxu0 0
  %9952 = vmatprep.subr.bf16.mxu0 0
  %9953 = vmatpush1.bf16.msra.mxu0 0
  %9954 = vmatprep.subr.bf16.mxu0 0
  %9955 = vmatpush1.bf16.msra.mxu0 0
  %9956 = vmatprep.subr.bf16.mxu0 0
  %9957 = vmatpush1.bf16.msra.mxu0 0
  %9958 = vmatprep.subr.bf16.mxu0 0
  %9959 = vmatpush1.bf16.msra.mxu0 0
  %9960 = vmatprep.subr.bf16.mxu0 0
  %9961 = vmatpush1.bf16.msra.mxu0 0
  %9962 = vmatprep.subr.bf16.mxu0 0
  %9963 = vmatpush1.bf16.msra.mxu0 0
  %9964 = vmatprep.subr.bf16.mxu0 0
  %9965 = vmatpush1.bf16.msra.mxu0 0
  %9966 = vmatprep.subr.bf16.mxu0 0
  %9967 = vmatpush1.bf16.msra.mxu0 0
  %9968 = vmatprep.subr.bf16.mxu0 0
  %9969 = vmatpush1.bf16.msra.mxu0 0
  %9970 = vmatprep.mubr.bf16.mxu0 0
  %9971 = vmatmul.mubr.bf16.gmra.mrb[0].mxu0 %v9649
  %v9972 = vpop.f32.mrb[0].mxu0
  %v9973 = vadd.f32 %v7726, %v9972
  %v9974 = vpop.f32.mrb[0].mxu0
  %v9975 = vadd.f32 %v7730, %v9974
  %v9976 = vpop.f32.mrb[0].mxu0
  %v9977 = vpop.f32.mrb[0].mxu0
  %9978 = vdwg.mxu0
  %v9979 = vmax.f32 %v9686, 0.0
  %v9980 = vmax.f32 %v9688, 0.0
  %v9981 = vmax.f32 %v9727, 0.0
  %v9982 = vmax.f32 %v9729, 0.0
  %v9983 = vmax.f32 %v9768, 0.0
  %v9984 = vmax.f32 %v9770, 0.0
  %v9985 = vmax.f32 %v9809, 0.0
  %v9986 = vmax.f32 %v9811, 0.0
  %v9987 = vmax.f32 %v9850, 0.0
  %v9988 = vmax.f32 %v9852, 0.0
  %v9989 = vmax.f32 %v9891, 0.0
  %v9990 = vmax.f32 %v9893, 0.0
  %v9991 = vmax.f32 %v9932, 0.0
  %v9992 = vmax.f32 %v9934, 0.0
  %v9993 = vmax.f32 %v9973, 0.0
  %v9994 = vmax.f32 %v9975, 0.0
  %v9995 = vpack.c.bf16 %v9979, %v9979
  %v9996 = vpack.c.bf16 %v9980, %v9980
  %v9997 = vpack.c.bf16 %v9981, %v9981
  %v9998 = vpack.c.bf16 %v9982, %v9982
  %v9999 = vpack.c.bf16 %v9983, %v9983
  %v10000 = vpack.c.bf16 %v9984, %v9984
  %v10001 = vpack.c.bf16 %v9985, %v9985
  %v10002 = vpack.c.bf16 %v9986, %v9986
  %v10003 = vpack.c.bf16 %v9987, %v9987
  %v10004 = vpack.c.bf16 %v9988, %v9988
  %v10005 = vpack.c.bf16 %v9989, %v9989
  %v10006 = vpack.c.bf16 %v9990, %v9990
  %v10007 = vpack.c.bf16 %v9991, %v9991
  %v10008 = vpack.c.bf16 %v9992, %v9992
  %v10009 = vpack.c.bf16 %v9993, %v9993
  %v10010 = vpack.c.bf16 %v9994, %v9994
  %10011 = vmatprep.subr.bf16.mxu0 0
  %10012 = vmatpush1.bf16.msra.mxu0 %v8879
  %10013 = vmatprep.subr.bf16.mxu0 0
  %10014 = vmatpush1.bf16.msra.mxu0 %v8880
  %10015 = vmatprep.subr.bf16.mxu0 0
  %10016 = vmatpush1.bf16.msra.mxu0 %v8881
  %10017 = vmatprep.subr.bf16.mxu0 0
  %10018 = vmatpush1.bf16.msra.mxu0 %v8882
  %10019 = vmatprep.subr.bf16.mxu0 0
  %10020 = vmatpush1.bf16.msra.mxu0 %v8883
  %10021 = vmatprep.subr.bf16.mxu0 0
  %10022 = vmatpush1.bf16.msra.mxu0 %v8884
  %10023 = vmatprep.subr.bf16.mxu0 0
  %10024 = vmatpush1.bf16.msra.mxu0 %v8885
  %10025 = vmatprep.subr.bf16.mxu0 0
  %10026 = vmatpush1.bf16.msra.mxu0 %v8886
  %10027 = vmatprep.subr.bf16.mxu0 0
  %10028 = vmatpush1.bf16.msra.mxu0 %v8887
  %10029 = vmatprep.subr.bf16.mxu0 0
  %10030 = vmatpush1.bf16.msra.mxu0 %v8888
  %10031 = vmatprep.subr.bf16.mxu0 0
  %10032 = vmatpush1.bf16.msra.mxu0 %v8889
  %10033 = vmatprep.subr.bf16.mxu0 0
  %10034 = vmatpush1.bf16.msra.mxu0 %v8890
  %10035 = vmatprep.subr.bf16.mxu0 0
  %10036 = vmatpush1.bf16.msra.mxu0 %v8891
  %10037 = vmatprep.subr.bf16.mxu0 0
  %10038 = vmatpush1.bf16.msra.mxu0 %v8892
  %10039 = vmatprep.subr.bf16.mxu0 0
  %10040 = vmatpush1.bf16.msra.mxu0 %v8893
  %10041 = vmatprep.subr.bf16.mxu0 0
  %10042 = vmatpush1.bf16.msra.mxu0 %v8894
  %10043 = vmatprep.mubr.bf16.mxu0 %v9996
  %10044 = vmatmul.mubr.bf16.gmra.mrb[0].mxu0 %v9995
  %v10045 = vpop.f32.mrb[0].mxu0
  %v10046 = vadd.f32 %v8366, %v10045
  %v10047 = vpop.f32.mrb[0].mxu0
  %v10048 = vpop.f32.mrb[0].mxu0
  %v10049 = vpop.f32.mrb[0].mxu0
  %10050 = vdwg.mxu0
  %10051 = vmatprep.subr.bf16.mxu0 0
  %10052 = vmatpush1.bf16.msra.mxu0 %v8895
  %10053 = vmatprep.subr.bf16.mxu0 0
  %10054 = vmatpush1.bf16.msra.mxu0 %v8896
  %10055 = vmatprep.subr.bf16.mxu0 0
  %10056 = vmatpush1.bf16.msra.mxu0 %v8897
  %10057 = vmatprep.subr.bf16.mxu0 0
  %10058 = vmatpush1.bf16.msra.mxu0 %v8898
  %10059 = vmatprep.subr.bf16.mxu0 0
  %10060 = vmatpush1.bf16.msra.mxu0 %v8899
  %10061 = vmatprep.subr.bf16.mxu0 0
  %10062 = vmatpush1.bf16.msra.mxu0 %v8900
  %10063 = vmatprep.subr.bf16.mxu0 0
  %10064 = vmatpush1.bf16.msra.mxu0 %v8901
  %10065 = vmatprep.subr.bf16.mxu0 0
  %10066 = vmatpush1.bf16.msra.mxu0 %v8902
  %10067 = vmatprep.subr.bf16.mxu0 0
  %10068 = vmatpush1.bf16.msra.mxu0 %v8903
  %10069 = vmatprep.subr.bf16.mxu0 0
  %10070 = vmatpush1.bf16.msra.mxu0 %v8904
  %10071 = vmatprep.subr.bf16.mxu0 0
  %10072 = vmatpush1.bf16.msra.mxu0 %v8905
  %10073 = vmatprep.subr.bf16.mxu0 0
  %10074 = vmatpush1.bf16.msra.mxu0 %v8906
  %10075 = vmatprep.subr.bf16.mxu0 0
  %10076 = vmatpush1.bf16.msra.mxu0 %v8907
  %10077 = vmatprep.subr.bf16.mxu0 0
  %10078 = vmatpush1.bf16.msra.mxu0 %v8908
  %10079 = vmatprep.subr.bf16.mxu0 0
  %10080 = vmatpush1.bf16.msra.mxu0 %v8909
  %10081 = vmatprep.subr.bf16.mxu0 0
  %10082 = vmatpush1.bf16.msra.mxu0 %v8910
  %10083 = vmatprep.mubr.bf16.mxu0 %v9998
  %10084 = vmatmul.mubr.bf16.gmra.mrb[0].mxu0 %v9997
  %v10085 = vpop.f32.mrb[0].mxu0
  %v10086 = vadd.f32 %v10046, %v10085
  %v10087 = vpop.f32.mrb[0].mxu0
  %v10088 = vpop.f32.mrb[0].mxu0
  %v10089 = vpop.f32.mrb[0].mxu0
  %10090 = vdwg.mxu0
  %10091 = vmatprep.subr.bf16.mxu0 0
  %10092 = vmatpush1.bf16.msra.mxu0 %v8911
  %10093 = vmatprep.subr.bf16.mxu0 0
  %10094 = vmatpush1.bf16.msra.mxu0 %v8912
  %10095 = vmatprep.subr.bf16.mxu0 0
  %10096 = vmatpush1.bf16.msra.mxu0 %v8913
  %10097 = vmatprep.subr.bf16.mxu0 0
  %10098 = vmatpush1.bf16.msra.mxu0 %v8914
  %10099 = vmatprep.subr.bf16.mxu0 0
  %10100 = vmatpush1.bf16.msra.mxu0 %v8915
  %10101 = vmatprep.subr.bf16.mxu0 0
  %10102 = vmatpush1.bf16.msra.mxu0 %v8916
  %10103 = vmatprep.subr.bf16.mxu0 0
  %10104 = vmatpush1.bf16.msra.mxu0 %v8917
  %10105 = vmatprep.subr.bf16.mxu0 0
  %10106 = vmatpush1.bf16.msra.mxu0 %v8918
  %10107 = vmatprep.subr.bf16.mxu0 0
  %10108 = vmatpush1.bf16.msra.mxu0 %v8919
  %10109 = vmatprep.subr.bf16.mxu0 0
  %10110 = vmatpush1.bf16.msra.mxu0 %v8920
  %10111 = vmatprep.subr.bf16.mxu0 0
  %10112 = vmatpush1.bf16.msra.mxu0 %v8921
  %10113 = vmatprep.subr.bf16.mxu0 0
  %10114 = vmatpush1.bf16.msra.mxu0 %v8922
  %10115 = vmatprep.subr.bf16.mxu0 0
  %10116 = vmatpush1.bf16.msra.mxu0 %v8923
  %10117 = vmatprep.subr.bf16.mxu0 0
  %10118 = vmatpush1.bf16.msra.mxu0 %v8924
  %10119 = vmatprep.subr.bf16.mxu0 0
  %10120 = vmatpush1.bf16.msra.mxu0 %v8925
  %10121 = vmatprep.subr.bf16.mxu0 0
  %10122 = vmatpush1.bf16.msra.mxu0 %v8926
  %10123 = vmatprep.mubr.bf16.mxu0 %v10000
  %10124 = vmatmul.mubr.bf16.gmra.mrb[0].mxu0 %v9999
  %v10125 = vpop.f32.mrb[0].mxu0
  %v10126 = vadd.f32 %v10086, %v10125
  %v10127 = vpop.f32.mrb[0].mxu0
  %v10128 = vpop.f32.mrb[0].mxu0
  %v10129 = vpop.f32.mrb[0].mxu0
  %10130 = vdwg.mxu0
  %10131 = vmatprep.subr.bf16.mxu0 0
  %10132 = vmatpush1.bf16.msra.mxu0 %v8927
  %10133 = vmatprep.subr.bf16.mxu0 0
  %10134 = vmatpush1.bf16.msra.mxu0 %v8928
  %10135 = vmatprep.subr.bf16.mxu0 0
  %10136 = vmatpush1.bf16.msra.mxu0 %v8929
  %10137 = vmatprep.subr.bf16.mxu0 0
  %10138 = vmatpush1.bf16.msra.mxu0 %v8930
  %10139 = vmatprep.subr.bf16.mxu0 0
  %10140 = vmatpush1.bf16.msra.mxu0 %v8931
  %10141 = vmatprep.subr.bf16.mxu0 0
  %10142 = vmatpush1.bf16.msra.mxu0 %v8932
  %10143 = vmatprep.subr.bf16.mxu0 0
  %10144 = vmatpush1.bf16.msra.mxu0 %v8933
  %10145 = vmatprep.subr.bf16.mxu0 0
  %10146 = vmatpush1.bf16.msra.mxu0 %v8934
  %10147 = vmatprep.subr.bf16.mxu0 0
  %10148 = vmatpush1.bf16.msra.mxu0 %v8935
  %10149 = vmatprep.subr.bf16.mxu0 0
  %10150 = vmatpush1.bf16.msra.mxu0 %v8936
  %10151 = vmatprep.subr.bf16.mxu0 0
  %10152 = vmatpush1.bf16.msra.mxu0 %v8937
  %10153 = vmatprep.subr.bf16.mxu0 0
  %10154 = vmatpush1.bf16.msra.mxu0 %v8938
  %10155 = vmatprep.subr.bf16.mxu0 0
  %10156 = vmatpush1.bf16.msra.mxu0 %v8939
  %10157 = vmatprep.subr.bf16.mxu0 0
  %10158 = vmatpush1.bf16.msra.mxu0 %v8940
  %10159 = vmatprep.subr.bf16.mxu0 0
  %10160 = vmatpush1.bf16.msra.mxu0 %v8941
  %10161 = vmatprep.subr.bf16.mxu0 0
  %10162 = vmatpush1.bf16.msra.mxu0 %v8942
  %10163 = vmatprep.mubr.bf16.mxu0 %v10002
  %10164 = vmatmul.mubr.bf16.gmra.mrb[0].mxu0 %v10001
  %v10165 = vpop.f32.mrb[0].mxu0
  %v10166 = vadd.f32 %v10126, %v10165
  %v10167 = vpop.f32.mrb[0].mxu0
  %v10168 = vpop.f32.mrb[0].mxu0
  %v10169 = vpop.f32.mrb[0].mxu0
  %10170 = vdwg.mxu0
  %10171 = vmatprep.subr.bf16.mxu0 0
  %10172 = vmatpush1.bf16.msra.mxu0 %v8943
  %10173 = vmatprep.subr.bf16.mxu0 0
  %10174 = vmatpush1.bf16.msra.mxu0 %v8944
  %10175 = vmatprep.subr.bf16.mxu0 0
  %10176 = vmatpush1.bf16.msra.mxu0 %v8945
  %10177 = vmatprep.subr.bf16.mxu0 0
  %10178 = vmatpush1.bf16.msra.mxu0 %v8946
  %10179 = vmatprep.subr.bf16.mxu0 0
  %10180 = vmatpush1.bf16.msra.mxu0 %v8947
  %10181 = vmatprep.subr.bf16.mxu0 0
  %10182 = vmatpush1.bf16.msra.mxu0 %v8948
  %10183 = vmatprep.subr.bf16.mxu0 0
  %10184 = vmatpush1.bf16.msra.mxu0 %v8949
  %10185 = vmatprep.subr.bf16.mxu0 0
  %10186 = vmatpush1.bf16.msra.mxu0 %v8950
  %10187 = vmatprep.subr.bf16.mxu0 0
  %10188 = vmatpush1.bf16.msra.mxu0 %v8951
  %10189 = vmatprep.subr.bf16.mxu0 0
  %10190 = vmatpush1.bf16.msra.mxu0 %v8952
  %10191 = vmatprep.subr.bf16.mxu0 0
  %10192 = vmatpush1.bf16.msra.mxu0 %v8953
  %10193 = vmatprep.subr.bf16.mxu0 0
  %10194 = vmatpush1.bf16.msra.mxu0 %v8954
  %10195 = vmatprep.subr.bf16.mxu0 0
  %10196 = vmatpush1.bf16.msra.mxu0 %v8955
  %10197 = vmatprep.subr.bf16.mxu0 0
  %10198 = vmatpush1.bf16.msra.mxu0 %v8956
  %10199 = vmatprep.subr.bf16.mxu0 0
  %10200 = vmatpush1.bf16.msra.mxu0 %v8957
  %10201 = vmatprep.subr.bf16.mxu0 0
  %10202 = vmatpush1.bf16.msra.mxu0 %v8958
  %10203 = vmatprep.mubr.bf16.mxu0 %v10004
  %10204 = vmatmul.mubr.bf16.gmra.mrb[0].mxu0 %v10003
  %v10205 = vpop.f32.mrb[0].mxu0
  %v10206 = vadd.f32 %v10166, %v10205
  %v10207 = vpop.f32.mrb[0].mxu0
  %v10208 = vpop.f32.mrb[0].mxu0
  %v10209 = vpop.f32.mrb[0].mxu0
  %10210 = vdwg.mxu0
  %10211 = vmatprep.subr.bf16.mxu0 0
  %10212 = vmatpush1.bf16.msra.mxu0 %v8959
  %10213 = vmatprep.subr.bf16.mxu0 0
  %10214 = vmatpush1.bf16.msra.mxu0 %v8960
  %10215 = vmatprep.subr.bf16.mxu0 0
  %10216 = vmatpush1.bf16.msra.mxu0 %v8961
  %10217 = vmatprep.subr.bf16.mxu0 0
  %10218 = vmatpush1.bf16.msra.mxu0 %v8962
  %10219 = vmatprep.subr.bf16.mxu0 0
  %10220 = vmatpush1.bf16.msra.mxu0 %v8963
  %10221 = vmatprep.subr.bf16.mxu0 0
  %10222 = vmatpush1.bf16.msra.mxu0 %v8964
  %10223 = vmatprep.subr.bf16.mxu0 0
  %10224 = vmatpush1.bf16.msra.mxu0 %v8965
  %10225 = vmatprep.subr.bf16.mxu0 0
  %10226 = vmatpush1.bf16.msra.mxu0 %v8966
  %10227 = vmatprep.subr.bf16.mxu0 0
  %10228 = vmatpush1.bf16.msra.mxu0 %v8967
  %10229 = vmatprep.subr.bf16.mxu0 0
  %10230 = vmatpush1.bf16.msra.mxu0 %v8968
  %10231 = vmatprep.subr.bf16.mxu0 0
  %10232 = vmatpush1.bf16.msra.mxu0 %v8969
  %10233 = vmatprep.subr.bf16.mxu0 0
  %10234 = vmatpush1.bf16.msra.mxu0 %v8970
  %10235 = vmatprep.subr.bf16.mxu0 0
  %10236 = vmatpush1.bf16.msra.mxu0 %v8971
  %10237 = vmatprep.subr.bf16.mxu0 0
  %10238 = vmatpush1.bf16.msra.mxu0 %v8972
  %10239 = vmatprep.subr.bf16.mxu0 0
  %10240 = vmatpush1.bf16.msra.mxu0 %v8973
  %10241 = vmatprep.subr.bf16.mxu0 0
  %10242 = vmatpush1.bf16.msra.mxu0 %v8974
  %10243 = vmatprep.mubr.bf16.mxu0 %v10006
  %10244 = vmatmul.mubr.bf16.gmra.mrb[0].mxu0 %v10005
  %v10245 = vpop.f32.mrb[0].mxu0
  %v10246 = vadd.f32 %v10206, %v10245
  %v10247 = vpop.f32.mrb[0].mxu0
  %v10248 = vpop.f32.mrb[0].mxu0
  %v10249 = vpop.f32.mrb[0].mxu0
  %10250 = vdwg.mxu0
  %10251 = vmatprep.subr.bf16.mxu0 0
  %10252 = vmatpush1.bf16.msra.mxu0 %v8975
  %10253 = vmatprep.subr.bf16.mxu0 0
  %10254 = vmatpush1.bf16.msra.mxu0 %v8976
  %10255 = vmatprep.subr.bf16.mxu0 0
  %10256 = vmatpush1.bf16.msra.mxu0 %v8977
  %10257 = vmatprep.subr.bf16.mxu0 0
  %10258 = vmatpush1.bf16.msra.mxu0 %v8978
  %10259 = vmatprep.subr.bf16.mxu0 0
  %10260 = vmatpush1.bf16.msra.mxu0 %v8979
  %10261 = vmatprep.subr.bf16.mxu0 0
  %10262 = vmatpush1.bf16.msra.mxu0 %v8980
  %10263 = vmatprep.subr.bf16.mxu0 0
  %10264 = vmatpush1.bf16.msra.mxu0 %v8981
  %10265 = vmatprep.subr.bf16.mxu0 0
  %10266 = vmatpush1.bf16.msra.mxu0 %v8982
  %10267 = vmatprep.subr.bf16.mxu0 0
  %10268 = vmatpush1.bf16.msra.mxu0 %v8983
  %10269 = vmatprep.subr.bf16.mxu0 0
  %10270 = vmatpush1.bf16.msra.mxu0 %v8984
  %10271 = vmatprep.subr.bf16.mxu0 0
  %10272 = vmatpush1.bf16.msra.mxu0 %v8985
  %10273 = vmatprep.subr.bf16.mxu0 0
  %10274 = vmatpush1.bf16.msra.mxu0 %v8986
  %10275 = vmatprep.subr.bf16.mxu0 0
  %10276 = vmatpush1.bf16.msra.mxu0 %v8987
  %10277 = vmatprep.subr.bf16.mxu0 0
  %10278 = vmatpush1.bf16.msra.mxu0 %v8988
  %10279 = vmatprep.subr.bf16.mxu0 0
  %10280 = vmatpush1.bf16.msra.mxu0 %v8989
  %10281 = vmatprep.subr.bf16.mxu0 0
  %10282 = vmatpush1.bf16.msra.mxu0 %v8990
  %10283 = vmatprep.mubr.bf16.mxu0 %v10008
  %10284 = vmatmul.mubr.bf16.gmra.mrb[0].mxu0 %v10007
  %v10285 = vpop.f32.mrb[0].mxu0
  %v10286 = vadd.f32 %v10246, %v10285
  %v10287 = vpop.f32.mrb[0].mxu0
  %v10288 = vpop.f32.mrb[0].mxu0
  %v10289 = vpop.f32.mrb[0].mxu0
  %10290 = vdwg.mxu0
  %10291 = vmatprep.subr.bf16.mxu0 0
  %10292 = vmatpush1.bf16.msra.mxu0 %v8991
  %10293 = vmatprep.subr.bf16.mxu0 0
  %10294 = vmatpush1.bf16.msra.mxu0 %v8992
  %10295 = vmatprep.subr.bf16.mxu0 0
  %10296 = vmatpush1.bf16.msra.mxu0 %v8993
  %10297 = vmatprep.subr.bf16.mxu0 0
  %10298 = vmatpush1.bf16.msra.mxu0 %v8994
  %10299 = vmatprep.subr.bf16.mxu0 0
  %10300 = vmatpush1.bf16.msra.mxu0 %v8995
  %10301 = vmatprep.subr.bf16.mxu0 0
  %10302 = vmatpush1.bf16.msra.mxu0 %v8996
  %10303 = vmatprep.subr.bf16.mxu0 0
  %10304 = vmatpush1.bf16.msra.mxu0 %v8997
  %10305 = vmatprep.subr.bf16.mxu0 0
  %10306 = vmatpush1.bf16.msra.mxu0 %v8998
  %10307 = vmatprep.subr.bf16.mxu0 0
  %10308 = vmatpush1.bf16.msra.mxu0 %v8999
  %10309 = vmatprep.subr.bf16.mxu0 0
  %10310 = vmatpush1.bf16.msra.mxu0 %v9000
  %10311 = vmatprep.subr.bf16.mxu0 0
  %10312 = vmatpush1.bf16.msra.mxu0 %v9001
  %10313 = vmatprep.subr.bf16.mxu0 0
  %10314 = vmatpush1.bf16.msra.mxu0 %v9002
  %10315 = vmatprep.subr.bf16.mxu0 0
  %10316 = vmatpush1.bf16.msra.mxu0 %v9003
  %10317 = vmatprep.subr.bf16.mxu0 0
  %10318 = vmatpush1.bf16.msra.mxu0 %v9004
  %10319 = vmatprep.subr.bf16.mxu0 0
  %10320 = vmatpush1.bf16.msra.mxu0 %v9005
  %10321 = vmatprep.subr.bf16.mxu0 0
  %10322 = vmatpush1.bf16.msra.mxu0 %v9006
  %10323 = vmatprep.mubr.bf16.mxu0 %v10010
  %10324 = vmatmul.mubr.bf16.gmra.mrb[0].mxu0 %v10009
  %v10325 = vpop.f32.mrb[0].mxu0
  %v10326 = vadd.f32 %v10286, %v10325
  %v10327 = vpop.f32.mrb[0].mxu0
  %v10328 = vpop.f32.mrb[0].mxu0
  %v10329 = vpop.f32.mrb[0].mxu0
  %10330 = vdwg.mxu0
  %v10332 = vrot.slane %v10326, 1
  %v10333 = vrot.slane %v10326, 2
  %v10336 = vadd.f32 %v9636, %v10332
  %v10337 = vadd.f32 %v9637, %v10333
  %v10340 = vrot.slane %v10337, 7
  %v10343 = vsel %vm7606, %v10336, 0.0
  %10344 = vadd.xlane.f32.xlu0 %v10343
  %v10345 = vpop.xlane.xlu0 %10344
  %v10346 = vsel %vm7610, %v10340, 0.0
  %10347 = vadd.xlane.f32.xlu0 %v10346
  %v10348 = vpop.xlane.xlu0 %10347
  %v10349 = vmul.f32 %v10345, %v1824
  %v10350 = vmul.f32 %v10348, %v1824
  %v10351 = vmul.f32 %v10336, %v10336
  %v10352 = vmul.f32 %v10337, %v10337
  %v10355 = vrot.slane %v10352, 7
  %v10358 = vsel %vm7606, %v10351, 0.0
  %10359 = vadd.xlane.f32.xlu0 %v10358
  %v10360 = vpop.xlane.xlu0 %10359
  %v10361 = vsel %vm7610, %v10355, 0.0
  %10362 = vadd.xlane.f32.xlu0 %v10361
  %v10363 = vpop.xlane.xlu0 %10362
  %v10364 = vmul.f32 %v10360, %v1824
  %v10365 = vmul.f32 %v10363, %v1824
  %v10366 = vmul.f32 %v10349, %v10349
  %v10367 = vmul.f32 %v10350, %v10350
  %v10368 = vsub.f32 %v10364, %v10366
  %v10369 = vsub.f32 %v10365, %v10367
  %v10372 = vrot.slane %v10350, 1
  %v10375 = vsub.f32 %v10336, %v10349
  %v10376 = vsub.f32 %v10337, %v10372
  %v10377 = vadd.f32 %v10368, 1e-05
  %v10378 = vadd.f32 %v10369, 1e-05
  %v10379 = vrsqrt.pop %v10377
  %v10380 = vrsqrt.pop %v10378
  %v10383 = vrot.slane %v10380, 1
  %v10386 = vmul.f32 %v10375, %v10379
  %v10387 = vmul.f32 %v10376, %v10383
  %v10388 = vmul.f32 %v10386, %v9515
  %v10389 = vmul.f32 %v10387, %v9515
  %v10390 = vadd.f32 %v10388, %v9521
  %v10391 = vadd.f32 %v10389, %v9521
  %v10392 = vpack.c.bf16 %v10390, %v10390
  %v10393 = vpack.c.bf16 %v10391, %v10391
  %v10396 = vunpack.c.l.b16 %v10392
  %v10397 = vunpack.c.l.b16 %v10393
  %v10398 = vrot.slane %v10396, 7
  %v10399 = vrot.slane %v10397, 6
  %v10400 = vsel %vm7536, %v10399, %v10398
  %v10401 = vpack.c.b16 %v10400, %v10400
  %v10403 = vsel %vm357, %v10401, 0
  %10405 = vmatprep.subr.bf16.mxu0 0
  %10406 = vmatpush1.bf16.msra.mxu0 %v7547
  %10407 = vmatprep.subr.bf16.mxu0 0
  %10408 = vmatpush1.bf16.msra.mxu0 %v7548
  %10409 = vmatprep.subr.bf16.mxu0 0
  %10410 = vmatpush1.bf16.msra.mxu0 0
  %10411 = vmatprep.subr.bf16.mxu0 0
  %10412 = vmatpush1.bf16.msra.mxu0 0
  %10413 = vmatprep.subr.bf16.mxu0 0
  %10414 = vmatpush1.bf16.msra.mxu0 0
  %10415 = vmatprep.subr.bf16.mxu0 0
  %10416 = vmatpush1.bf16.msra.mxu0 0
  %10417 = vmatprep.subr.bf16.mxu0 0
  %10418 = vmatpush1.bf16.msra.mxu0 0
  %10419 = vmatprep.subr.bf16.mxu0 0
  %10420 = vmatpush1.bf16.msra.mxu0 0
  %10421 = vmatprep.subr.bf16.mxu0 0
  %10422 = vmatpush1.bf16.msra.mxu0 0
  %10423 = vmatprep.subr.bf16.mxu0 0
  %10424 = vmatpush1.bf16.msra.mxu0 0
  %10425 = vmatprep.subr.bf16.mxu0 0
  %10426 = vmatpush1.bf16.msra.mxu0 0
  %10427 = vmatprep.subr.bf16.mxu0 0
  %10428 = vmatpush1.bf16.msra.mxu0 0
  %10429 = vmatprep.subr.bf16.mxu0 0
  %10430 = vmatpush1.bf16.msra.mxu0 0
  %10431 = vmatprep.subr.bf16.mxu0 0
  %10432 = vmatpush1.bf16.msra.mxu0 0
  %10433 = vmatprep.subr.bf16.mxu0 0
  %10434 = vmatpush1.bf16.msra.mxu0 0
  %10435 = vmatprep.subr.bf16.mxu0 0
  %10436 = vmatpush1.bf16.msra.mxu0 0
  %10437 = vmatprep.mubr.bf16.mxu0 0
  %10438 = vmatmul.mubr.bf16.gmra.mrb[0].mxu0 %v10403
  %v10439 = vpop.f32.mrb[0].mxu0
  %v10440 = vadd.f32 %v7529, %v10439
  %v10441 = vpop.f32.mrb[0].mxu0
  %v10442 = vpop.f32.mrb[0].mxu0
  %v10443 = vpop.f32.mrb[0].mxu0
  %10444 = vdwg.mxu0
  %v10446 = vrot.slane %v10440, 1
  %v10447 = vrot.slane %v10440, 2
  %v10450 = vadd.f32 %v10390, %v10446
  %v10451 = vadd.f32 %v10391, %v10447
  %v10454 = vrot.slane %v10451, 7
  %v10457 = vsel %vm7606, %v10450, 0.0
  %10458 = vadd.xlane.f32.xlu0 %v10457
  %v10459 = vpop.xlane.xlu0 %10458
  %v10460 = vsel %vm7610, %v10454, 0.0
  %10461 = vadd.xlane.f32.xlu0 %v10460
  %v10462 = vpop.xlane.xlu0 %10461
  %v10463 = vmul.f32 %v10459, %v1824
  %v10464 = vmul.f32 %v10462, %v1824
  %v10465 = vmul.f32 %v10450, %v10450
  %v10466 = vmul.f32 %v10451, %v10451
  %v10469 = vrot.slane %v10466, 7
  %v10472 = vsel %vm7606, %v10465, 0.0
  %10473 = vadd.xlane.f32.xlu0 %v10472
  %v10474 = vpop.xlane.xlu0 %10473
  %v10475 = vsel %vm7610, %v10469, 0.0
  %10476 = vadd.xlane.f32.xlu0 %v10475
  %v10477 = vpop.xlane.xlu0 %10476
  %v10478 = vmul.f32 %v10474, %v1824
  %v10479 = vmul.f32 %v10477, %v1824
  %v10480 = vmul.f32 %v10463, %v10463
  %v10481 = vmul.f32 %v10464, %v10464
  %v10482 = vsub.f32 %v10478, %v10480
  %v10483 = vsub.f32 %v10479, %v10481
  %v10486 = vrot.slane %v10464, 1
  %v10489 = vsub.f32 %v10450, %v10463
  %v10490 = vsub.f32 %v10451, %v10486
  %v10491 = vadd.f32 %v10482, 1e-05
  %v10492 = vadd.f32 %v10483, 1e-05
  %v10493 = vrsqrt.pop %v10491
  %v10494 = vrsqrt.pop %v10492
  %v10497 = vrot.slane %v10494, 1
  %v10500 = vmul.f32 %v10489, %v10493
  %v10501 = vmul.f32 %v10490, %v10497
  %v10502 = vmul.f32 %v10500, %v7656
  %v10503 = vmul.f32 %v10501, %v7656
  %v10504 = vadd.f32 %v10502, %v7662
  %v10505 = vadd.f32 %v10503, %v7662
  %v10506 = vpack.c.bf16 %v10504, %v10504
  %v10507 = vpack.c.bf16 %v10505, %v10505
  %v10510 = vunpack.c.l.b16 %v10506
  %v10511 = vunpack.c.l.b16 %v10507
  %v10512 = vrot.slane %v10510, 7
  %v10513 = vrot.slane %v10511, 6
  %v10514 = vsel %vm7536, %v10513, %v10512
  %v10515 = vpack.c.b16 %v10514, %v10514
  %v10517 = vsel %vm357, %v10515, 0
  %10519 = vmatprep.subr.bf16.mxu0 %v7937
  %10520 = vmatpush1.bf16.msra.mxu0 %v7936
  %10521 = vmatprep.subr.bf16.mxu0 %v7953
  %10522 = vmatpush1.bf16.msra.mxu0 %v7952
  %10523 = vmatprep.subr.bf16.mxu0 0
  %10524 = vmatpush1.bf16.msra.mxu0 0
  %10525 = vmatprep.subr.bf16.mxu0 0
  %10526 = vmatpush1.bf16.msra.mxu0 0
  %10527 = vmatprep.subr.bf16.mxu0 0
  %10528 = vmatpush1.bf16.msra.mxu0 0
  %10529 = vmatprep.subr.bf16.mxu0 0
  %10530 = vmatpush1.bf16.msra.mxu0 0
  %10531 = vmatprep.subr.bf16.mxu0 0
  %10532 = vmatpush1.bf16.msra.mxu0 0
  %10533 = vmatprep.subr.bf16.mxu0 0
  %10534 = vmatpush1.bf16.msra.mxu0 0
  %10535 = vmatprep.subr.bf16.mxu0 0
  %10536 = vmatpush1.bf16.msra.mxu0 0
  %10537 = vmatprep.subr.bf16.mxu0 0
  %10538 = vmatpush1.bf16.msra.mxu0 0
  %10539 = vmatprep.subr.bf16.mxu0 0
  %10540 = vmatpush1.bf16.msra.mxu0 0
  %10541 = vmatprep.subr.bf16.mxu0 0
  %10542 = vmatpush1.bf16.msra.mxu0 0
  %10543 = vmatprep.subr.bf16.mxu0 0
  %10544 = vmatpush1.bf16.msra.mxu0 0
  %10545 = vmatprep.subr.bf16.mxu0 0
  %10546 = vmatpush1.bf16.msra.mxu0 0
  %10547 = vmatprep.subr.bf16.mxu0 0
  %10548 = vmatpush1.bf16.msra.mxu0 0
  %10549 = vmatprep.subr.bf16.mxu0 0
  %10550 = vmatpush1.bf16.msra.mxu0 0
  %10551 = vmatprep.mubr.bf16.mxu0 0
  %10552 = vmatmul.mubr.bf16.gmra.mrb[0].mxu0 %v10517
  %v10553 = vpop.f32.mrb[0].mxu0
  %v10554 = vadd.f32 %v7670, %v10553
  %v10555 = vpop.f32.mrb[0].mxu0
  %v10556 = vadd.f32 %v7674, %v10555
  %v10557 = vpop.f32.mrb[0].mxu0
  %v10558 = vpop.f32.mrb[0].mxu0
  %10559 = vdwg.mxu0
  %10560 = vmatprep.subr.bf16.mxu0 %v7939
  %10561 = vmatpush1.bf16.msra.mxu0 %v7938
  %10562 = vmatprep.subr.bf16.mxu0 %v7955
  %10563 = vmatpush1.bf16.msra.mxu0 %v7954
  %10564 = vmatprep.subr.bf16.mxu0 0
  %10565 = vmatpush1.bf16.msra.mxu0 0
  %10566 = vmatprep.subr.bf16.mxu0 0
  %10567 = vmatpush1.bf16.msra.mxu0 0
  %10568 = vmatprep.subr.bf16.mxu0 0
  %10569 = vmatpush1.bf16.msra.mxu0 0
  %10570 = vmatprep.subr.bf16.mxu0 0
  %10571 = vmatpush1.bf16.msra.mxu0 0
  %10572 = vmatprep.subr.bf16.mxu0 0
  %10573 = vmatpush1.bf16.msra.mxu0 0
  %10574 = vmatprep.subr.bf16.mxu0 0
  %10575 = vmatpush1.bf16.msra.mxu0 0
  %10576 = vmatprep.subr.bf16.mxu0 0
  %10577 = vmatpush1.bf16.msra.mxu0 0
  %10578 = vmatprep.subr.bf16.mxu0 0
  %10579 = vmatpush1.bf16.msra.mxu0 0
  %10580 = vmatprep.subr.bf16.mxu0 0
  %10581 = vmatpush1.bf16.msra.mxu0 0
  %10582 = vmatprep.subr.bf16.mxu0 0
  %10583 = vmatpush1.bf16.msra.mxu0 0
  %10584 = vmatprep.subr.bf16.mxu0 0
  %10585 = vmatpush1.bf16.msra.mxu0 0
  %10586 = vmatprep.subr.bf16.mxu0 0
  %10587 = vmatpush1.bf16.msra.mxu0 0
  %10588 = vmatprep.subr.bf16.mxu0 0
  %10589 = vmatpush1.bf16.msra.mxu0 0
  %10590 = vmatprep.subr.bf16.mxu0 0
  %10591 = vmatpush1.bf16.msra.mxu0 0
  %10592 = vmatprep.mubr.bf16.mxu0 0
  %10593 = vmatmul.mubr.bf16.gmra.mrb[0].mxu0 %v10517
  %v10594 = vpop.f32.mrb[0].mxu0
  %v10595 = vadd.f32 %v7678, %v10594
  %v10596 = vpop.f32.mrb[0].mxu0
  %v10597 = vadd.f32 %v7682, %v10596
  %v10598 = vpop.f32.mrb[0].mxu0
  %v10599 = vpop.f32.mrb[0].mxu0
  %10600 = vdwg.mxu0
  %10601 = vmatprep.subr.bf16.mxu0 %v7941
  %10602 = vmatpush1.bf16.msra.mxu0 %v7940
  %10603 = vmatprep.subr.bf16.mxu0 %v7957
  %10604 = vmatpush1.bf16.msra.mxu0 %v7956
  %10605 = vmatprep.subr.bf16.mxu0 0
  %10606 = vmatpush1.bf16.msra.mxu0 0
  %10607 = vmatprep.subr.bf16.mxu0 0
  %10608 = vmatpush1.bf16.msra.mxu0 0
  %10609 = vmatprep.subr.bf16.mxu0 0
  %10610 = vmatpush1.bf16.msra.mxu0 0
  %10611 = vmatprep.subr.bf16.mxu0 0
  %10612 = vmatpush1.bf16.msra.mxu0 0
  %10613 = vmatprep.subr.bf16.mxu0 0
  %10614 = vmatpush1.bf16.msra.mxu0 0
  %10615 = vmatprep.subr.bf16.mxu0 0
  %10616 = vmatpush1.bf16.msra.mxu0 0
  %10617 = vmatprep.subr.bf16.mxu0 0
  %10618 = vmatpush1.bf16.msra.mxu0 0
  %10619 = vmatprep.subr.bf16.mxu0 0
  %10620 = vmatpush1.bf16.msra.mxu0 0
  %10621 = vmatprep.subr.bf16.mxu0 0
  %10622 = vmatpush1.bf16.msra.mxu0 0
  %10623 = vmatprep.subr.bf16.mxu0 0
  %10624 = vmatpush1.bf16.msra.mxu0 0
  %10625 = vmatprep.subr.bf16.mxu0 0
  %10626 = vmatpush1.bf16.msra.mxu0 0
  %10627 = vmatprep.subr.bf16.mxu0 0
  %10628 = vmatpush1.bf16.msra.mxu0 0
  %10629 = vmatprep.subr.bf16.mxu0 0
  %10630 = vmatpush1.bf16.msra.mxu0 0
  %10631 = vmatprep.subr.bf16.mxu0 0
  %10632 = vmatpush1.bf16.msra.mxu0 0
  %10633 = vmatprep.mubr.bf16.mxu0 0
  %10634 = vmatmul.mubr.bf16.gmra.mrb[0].mxu0 %v10517
  %v10635 = vpop.f32.mrb[0].mxu0
  %v10636 = vadd.f32 %v7686, %v10635
  %v10637 = vpop.f32.mrb[0].mxu0
  %v10638 = vadd.f32 %v7690, %v10637
  %v10639 = vpop.f32.mrb[0].mxu0
  %v10640 = vpop.f32.mrb[0].mxu0
  %10641 = vdwg.mxu0
  %10642 = vmatprep.subr.bf16.mxu0 %v7943
  %10643 = vmatpush1.bf16.msra.mxu0 %v7942
  %10644 = vmatprep.subr.bf16.mxu0 %v7959
  %10645 = vmatpush1.bf16.msra.mxu0 %v7958
  %10646 = vmatprep.subr.bf16.mxu0 0
  %10647 = vmatpush1.bf16.msra.mxu0 0
  %10648 = vmatprep.subr.bf16.mxu0 0
  %10649 = vmatpush1.bf16.msra.mxu0 0
  %10650 = vmatprep.subr.bf16.mxu0 0
  %10651 = vmatpush1.bf16.msra.mxu0 0
  %10652 = vmatprep.subr.bf16.mxu0 0
  %10653 = vmatpush1.bf16.msra.mxu0 0
  %10654 = vmatprep.subr.bf16.mxu0 0
  %10655 = vmatpush1.bf16.msra.mxu0 0
  %10656 = vmatprep.subr.bf16.mxu0 0
  %10657 = vmatpush1.bf16.msra.mxu0 0
  %10658 = vmatprep.subr.bf16.mxu0 0
  %10659 = vmatpush1.bf16.msra.mxu0 0
  %10660 = vmatprep.subr.bf16.mxu0 0
  %10661 = vmatpush1.bf16.msra.mxu0 0
  %10662 = vmatprep.subr.bf16.mxu0 0
  %10663 = vmatpush1.bf16.msra.mxu0 0
  %10664 = vmatprep.subr.bf16.mxu0 0
  %10665 = vmatpush1.bf16.msra.mxu0 0
  %10666 = vmatprep.subr.bf16.mxu0 0
  %10667 = vmatpush1.bf16.msra.mxu0 0
  %10668 = vmatprep.subr.bf16.mxu0 0
  %10669 = vmatpush1.bf16.msra.mxu0 0
  %10670 = vmatprep.subr.bf16.mxu0 0
  %10671 = vmatpush1.bf16.msra.mxu0 0
  %10672 = vmatprep.subr.bf16.mxu0 0
  %10673 = vmatpush1.bf16.msra.mxu0 0
  %10674 = vmatprep.mubr.bf16.mxu0 0
  %10675 = vmatmul.mubr.bf16.gmra.mrb[0].mxu0 %v10517
  %v10676 = vpop.f32.mrb[0].mxu0
  %v10677 = vadd.f32 %v7694, %v10676
  %v10678 = vpop.f32.mrb[0].mxu0
  %v10679 = vadd.f32 %v7698, %v10678
  %v10680 = vpop.f32.mrb[0].mxu0
  %v10681 = vpop.f32.mrb[0].mxu0
  %10682 = vdwg.mxu0
  %10683 = vmatprep.subr.bf16.mxu0 %v7945
  %10684 = vmatpush1.bf16.msra.mxu0 %v7944
  %10685 = vmatprep.subr.bf16.mxu0 %v7961
  %10686 = vmatpush1.bf16.msra.mxu0 %v7960
  %10687 = vmatprep.subr.bf16.mxu0 0
  %10688 = vmatpush1.bf16.msra.mxu0 0
  %10689 = vmatprep.subr.bf16.mxu0 0
  %10690 = vmatpush1.bf16.msra.mxu0 0
  %10691 = vmatprep.subr.bf16.mxu0 0
  %10692 = vmatpush1.bf16.msra.mxu0 0
  %10693 = vmatprep.subr.bf16.mxu0 0
  %10694 = vmatpush1.bf16.msra.mxu0 0
  %10695 = vmatprep.subr.bf16.mxu0 0
  %10696 = vmatpush1.bf16.msra.mxu0 0
  %10697 = vmatprep.subr.bf16.mxu0 0
  %10698 = vmatpush1.bf16.msra.mxu0 0
  %10699 = vmatprep.subr.bf16.mxu0 0
  %10700 = vmatpush1.bf16.msra.mxu0 0
  %10701 = vmatprep.subr.bf16.mxu0 0
  %10702 = vmatpush1.bf16.msra.mxu0 0
  %10703 = vmatprep.subr.bf16.mxu0 0
  %10704 = vmatpush1.bf16.msra.mxu0 0
  %10705 = vmatprep.subr.bf16.mxu0 0
  %10706 = vmatpush1.bf16.msra.mxu0 0
  %10707 = vmatprep.subr.bf16.mxu0 0
  %10708 = vmatpush1.bf16.msra.mxu0 0
  %10709 = vmatprep.subr.bf16.mxu0 0
  %10710 = vmatpush1.bf16.msra.mxu0 0
  %10711 = vmatprep.subr.bf16.mxu0 0
  %10712 = vmatpush1.bf16.msra.mxu0 0
  %10713 = vmatprep.subr.bf16.mxu0 0
  %10714 = vmatpush1.bf16.msra.mxu0 0
  %10715 = vmatprep.mubr.bf16.mxu0 0
  %10716 = vmatmul.mubr.bf16.gmra.mrb[0].mxu0 %v10517
  %v10717 = vpop.f32.mrb[0].mxu0
  %v10718 = vadd.f32 %v7702, %v10717
  %v10719 = vpop.f32.mrb[0].mxu0
  %v10720 = vadd.f32 %v7706, %v10719
  %v10721 = vpop.f32.mrb[0].mxu0
  %v10722 = vpop.f32.mrb[0].mxu0
  %10723 = vdwg.mxu0
  %10724 = vmatprep.subr.bf16.mxu0 %v7947
  %10725 = vmatpush1.bf16.msra.mxu0 %v7946
  %10726 = vmatprep.subr.bf16.mxu0 %v7963
  %10727 = vmatpush1.bf16.msra.mxu0 %v7962
  %10728 = vmatprep.subr.bf16.mxu0 0
  %10729 = vmatpush1.bf16.msra.mxu0 0
  %10730 = vmatprep.subr.bf16.mxu0 0
  %10731 = vmatpush1.bf16.msra.mxu0 0
  %10732 = vmatprep.subr.bf16.mxu0 0
  %10733 = vmatpush1.bf16.msra.mxu0 0
  %10734 = vmatprep.subr.bf16.mxu0 0
  %10735 = vmatpush1.bf16.msra.mxu0 0
  %10736 = vmatprep.subr.bf16.mxu0 0
  %10737 = vmatpush1.bf16.msra.mxu0 0
  %10738 = vmatprep.subr.bf16.mxu0 0
  %10739 = vmatpush1.bf16.msra.mxu0 0
  %10740 = vmatprep.subr.bf16.mxu0 0
  %10741 = vmatpush1.bf16.msra.mxu0 0
  %10742 = vmatprep.subr.bf16.mxu0 0
  %10743 = vmatpush1.bf16.msra.mxu0 0
  %10744 = vmatprep.subr.bf16.mxu0 0
  %10745 = vmatpush1.bf16.msra.mxu0 0
  %10746 = vmatprep.subr.bf16.mxu0 0
  %10747 = vmatpush1.bf16.msra.mxu0 0
  %10748 = vmatprep.subr.bf16.mxu0 0
  %10749 = vmatpush1.bf16.msra.mxu0 0
  %10750 = vmatprep.subr.bf16.mxu0 0
  %10751 = vmatpush1.bf16.msra.mxu0 0
  %10752 = vmatprep.subr.bf16.mxu0 0
  %10753 = vmatpush1.bf16.msra.mxu0 0
  %10754 = vmatprep.subr.bf16.mxu0 0
  %10755 = vmatpush1.bf16.msra.mxu0 0
  %10756 = vmatprep.mubr.bf16.mxu0 0
  %10757 = vmatmul.mubr.bf16.gmra.mrb[0].mxu0 %v10517
  %v10758 = vpop.f32.mrb[0].mxu0
  %v10759 = vadd.f32 %v7710, %v10758
  %v10760 = vpop.f32.mrb[0].mxu0
  %v10761 = vadd.f32 %v7714, %v10760
  %v10762 = vpop.f32.mrb[0].mxu0
  %v10763 = vpop.f32.mrb[0].mxu0
  %10764 = vdwg.mxu0
  %10765 = vmatprep.subr.bf16.mxu0 %v7949
  %10766 = vmatpush1.bf16.msra.mxu0 %v7948
  %10767 = vmatprep.subr.bf16.mxu0 %v7965
  %10768 = vmatpush1.bf16.msra.mxu0 %v7964
  %10769 = vmatprep.subr.bf16.mxu0 0
  %10770 = vmatpush1.bf16.msra.mxu0 0
  %10771 = vmatprep.subr.bf16.mxu0 0
  %10772 = vmatpush1.bf16.msra.mxu0 0
  %10773 = vmatprep.subr.bf16.mxu0 0
  %10774 = vmatpush1.bf16.msra.mxu0 0
  %10775 = vmatprep.subr.bf16.mxu0 0
  %10776 = vmatpush1.bf16.msra.mxu0 0
  %10777 = vmatprep.subr.bf16.mxu0 0
  %10778 = vmatpush1.bf16.msra.mxu0 0
  %10779 = vmatprep.subr.bf16.mxu0 0
  %10780 = vmatpush1.bf16.msra.mxu0 0
  %10781 = vmatprep.subr.bf16.mxu0 0
  %10782 = vmatpush1.bf16.msra.mxu0 0
  %10783 = vmatprep.subr.bf16.mxu0 0
  %10784 = vmatpush1.bf16.msra.mxu0 0
  %10785 = vmatprep.subr.bf16.mxu0 0
  %10786 = vmatpush1.bf16.msra.mxu0 0
  %10787 = vmatprep.subr.bf16.mxu0 0
  %10788 = vmatpush1.bf16.msra.mxu0 0
  %10789 = vmatprep.subr.bf16.mxu0 0
  %10790 = vmatpush1.bf16.msra.mxu0 0
  %10791 = vmatprep.subr.bf16.mxu0 0
  %10792 = vmatpush1.bf16.msra.mxu0 0
  %10793 = vmatprep.subr.bf16.mxu0 0
  %10794 = vmatpush1.bf16.msra.mxu0 0
  %10795 = vmatprep.subr.bf16.mxu0 0
  %10796 = vmatpush1.bf16.msra.mxu0 0
  %10797 = vmatprep.mubr.bf16.mxu0 0
  %10798 = vmatmul.mubr.bf16.gmra.mrb[0].mxu0 %v10517
  %v10799 = vpop.f32.mrb[0].mxu0
  %v10800 = vadd.f32 %v7718, %v10799
  %v10801 = vpop.f32.mrb[0].mxu0
  %v10802 = vadd.f32 %v7722, %v10801
  %v10803 = vpop.f32.mrb[0].mxu0
  %v10804 = vpop.f32.mrb[0].mxu0
  %10805 = vdwg.mxu0
  %10806 = vmatprep.subr.bf16.mxu0 %v7951
  %10807 = vmatpush1.bf16.msra.mxu0 %v7950
  %10808 = vmatprep.subr.bf16.mxu0 %v7967
  %10809 = vmatpush1.bf16.msra.mxu0 %v7966
  %10810 = vmatprep.subr.bf16.mxu0 0
  %10811 = vmatpush1.bf16.msra.mxu0 0
  %10812 = vmatprep.subr.bf16.mxu0 0
  %10813 = vmatpush1.bf16.msra.mxu0 0
  %10814 = vmatprep.subr.bf16.mxu0 0
  %10815 = vmatpush1.bf16.msra.mxu0 0
  %10816 = vmatprep.subr.bf16.mxu0 0
  %10817 = vmatpush1.bf16.msra.mxu0 0
  %10818 = vmatprep.subr.bf16.mxu0 0
  %10819 = vmatpush1.bf16.msra.mxu0 0
  %10820 = vmatprep.subr.bf16.mxu0 0
  %10821 = vmatpush1.bf16.msra.mxu0 0
  %10822 = vmatprep.subr.bf16.mxu0 0
  %10823 = vmatpush1.bf16.msra.mxu0 0
  %10824 = vmatprep.subr.bf16.mxu0 0
  %10825 = vmatpush1.bf16.msra.mxu0 0
  %10826 = vmatprep.subr.bf16.mxu0 0
  %10827 = vmatpush1.bf16.msra.mxu0 0
  %10828 = vmatprep.subr.bf16.mxu0 0
  %10829 = vmatpush1.bf16.msra.mxu0 0
  %10830 = vmatprep.subr.bf16.mxu0 0
  %10831 = vmatpush1.bf16.msra.mxu0 0
  %10832 = vmatprep.subr.bf16.mxu0 0
  %10833 = vmatpush1.bf16.msra.mxu0 0
  %10834 = vmatprep.subr.bf16.mxu0 0
  %10835 = vmatpush1.bf16.msra.mxu0 0
  %10836 = vmatprep.subr.bf16.mxu0 0
  %10837 = vmatpush1.bf16.msra.mxu0 0
  %10838 = vmatprep.mubr.bf16.mxu0 0
  %10839 = vmatmul.mubr.bf16.gmra.mrb[0].mxu0 %v10517
  %v10840 = vpop.f32.mrb[0].mxu0
  %v10841 = vadd.f32 %v7726, %v10840
  %v10842 = vpop.f32.mrb[0].mxu0
  %v10843 = vadd.f32 %v7730, %v10842
  %v10844 = vpop.f32.mrb[0].mxu0
  %v10845 = vpop.f32.mrb[0].mxu0
  %10846 = vdwg.mxu0
  %v10847 = vmax.f32 %v10554, 0.0
  %v10848 = vmax.f32 %v10556, 0.0
  %v10849 = vmax.f32 %v10595, 0.0
  %v10850 = vmax.f32 %v10597, 0.0
  %v10851 = vmax.f32 %v10636, 0.0
  %v10852 = vmax.f32 %v10638, 0.0
  %v10853 = vmax.f32 %v10677, 0.0
  %v10854 = vmax.f32 %v10679, 0.0
  %v10855 = vmax.f32 %v10718, 0.0
  %v10856 = vmax.f32 %v10720, 0.0
  %v10857 = vmax.f32 %v10759, 0.0
  %v10858 = vmax.f32 %v10761, 0.0
  %v10859 = vmax.f32 %v10800, 0.0
  %v10860 = vmax.f32 %v10802, 0.0
  %v10861 = vmax.f32 %v10841, 0.0
  %v10862 = vmax.f32 %v10843, 0.0
  %v10863 = vpack.c.bf16 %v10847, %v10847
  %v10864 = vpack.c.bf16 %v10848, %v10848
  %v10865 = vpack.c.bf16 %v10849, %v10849
  %v10866 = vpack.c.bf16 %v10850, %v10850
  %v10867 = vpack.c.bf16 %v10851, %v10851
  %v10868 = vpack.c.bf16 %v10852, %v10852
  %v10869 = vpack.c.bf16 %v10853, %v10853
  %v10870 = vpack.c.bf16 %v10854, %v10854
  %v10871 = vpack.c.bf16 %v10855, %v10855
  %v10872 = vpack.c.bf16 %v10856, %v10856
  %v10873 = vpack.c.bf16 %v10857, %v10857
  %v10874 = vpack.c.bf16 %v10858, %v10858
  %v10875 = vpack.c.bf16 %v10859, %v10859
  %v10876 = vpack.c.bf16 %v10860, %v10860
  %v10877 = vpack.c.bf16 %v10861, %v10861
  %v10878 = vpack.c.bf16 %v10862, %v10862
  %10879 = vmatprep.subr.bf16.mxu0 0
  %10880 = vmatpush1.bf16.msra.mxu0 %v8879
  %10881 = vmatprep.subr.bf16.mxu0 0
  %10882 = vmatpush1.bf16.msra.mxu0 %v8880
  %10883 = vmatprep.subr.bf16.mxu0 0
  %10884 = vmatpush1.bf16.msra.mxu0 %v8881
  %10885 = vmatprep.subr.bf16.mxu0 0
  %10886 = vmatpush1.bf16.msra.mxu0 %v8882
  %10887 = vmatprep.subr.bf16.mxu0 0
  %10888 = vmatpush1.bf16.msra.mxu0 %v8883
  %10889 = vmatprep.subr.bf16.mxu0 0
  %10890 = vmatpush1.bf16.msra.mxu0 %v8884
  %10891 = vmatprep.subr.bf16.mxu0 0
  %10892 = vmatpush1.bf16.msra.mxu0 %v8885
  %10893 = vmatprep.subr.bf16.mxu0 0
  %10894 = vmatpush1.bf16.msra.mxu0 %v8886
  %10895 = vmatprep.subr.bf16.mxu0 0
  %10896 = vmatpush1.bf16.msra.mxu0 %v8887
  %10897 = vmatprep.subr.bf16.mxu0 0
  %10898 = vmatpush1.bf16.msra.mxu0 %v8888
  %10899 = vmatprep.subr.bf16.mxu0 0
  %10900 = vmatpush1.bf16.msra.mxu0 %v8889
  %10901 = vmatprep.subr.bf16.mxu0 0
  %10902 = vmatpush1.bf16.msra.mxu0 %v8890
  %10903 = vmatprep.subr.bf16.mxu0 0
  %10904 = vmatpush1.bf16.msra.mxu0 %v8891
  %10905 = vmatprep.subr.bf16.mxu0 0
  %10906 = vmatpush1.bf16.msra.mxu0 %v8892
  %10907 = vmatprep.subr.bf16.mxu0 0
  %10908 = vmatpush1.bf16.msra.mxu0 %v8893
  %10909 = vmatprep.subr.bf16.mxu0 0
  %10910 = vmatpush1.bf16.msra.mxu0 %v8894
  %10911 = vmatprep.mubr.bf16.mxu0 %v10864
  %10912 = vmatmul.mubr.bf16.gmra.mrb[0].mxu0 %v10863
  %v10913 = vpop.f32.mrb[0].mxu0
  %v10914 = vadd.f32 %v8366, %v10913
  %v10915 = vpop.f32.mrb[0].mxu0
  %v10916 = vpop.f32.mrb[0].mxu0
  %v10917 = vpop.f32.mrb[0].mxu0
  %10918 = vdwg.mxu0
  %10919 = vmatprep.subr.bf16.mxu0 0
  %10920 = vmatpush1.bf16.msra.mxu0 %v8895
  %10921 = vmatprep.subr.bf16.mxu0 0
  %10922 = vmatpush1.bf16.msra.mxu0 %v8896
  %10923 = vmatprep.subr.bf16.mxu0 0
  %10924 = vmatpush1.bf16.msra.mxu0 %v8897
  %10925 = vmatprep.subr.bf16.mxu0 0
  %10926 = vmatpush1.bf16.msra.mxu0 %v8898
  %10927 = vmatprep.subr.bf16.mxu0 0
  %10928 = vmatpush1.bf16.msra.mxu0 %v8899
  %10929 = vmatprep.subr.bf16.mxu0 0
  %10930 = vmatpush1.bf16.msra.mxu0 %v8900
  %10931 = vmatprep.subr.bf16.mxu0 0
  %10932 = vmatpush1.bf16.msra.mxu0 %v8901
  %10933 = vmatprep.subr.bf16.mxu0 0
  %10934 = vmatpush1.bf16.msra.mxu0 %v8902
  %10935 = vmatprep.subr.bf16.mxu0 0
  %10936 = vmatpush1.bf16.msra.mxu0 %v8903
  %10937 = vmatprep.subr.bf16.mxu0 0
  %10938 = vmatpush1.bf16.msra.mxu0 %v8904
  %10939 = vmatprep.subr.bf16.mxu0 0
  %10940 = vmatpush1.bf16.msra.mxu0 %v8905
  %10941 = vmatprep.subr.bf16.mxu0 0
  %10942 = vmatpush1.bf16.msra.mxu0 %v8906
  %10943 = vmatprep.subr.bf16.mxu0 0
  %10944 = vmatpush1.bf16.msra.mxu0 %v8907
  %10945 = vmatprep.subr.bf16.mxu0 0
  %10946 = vmatpush1.bf16.msra.mxu0 %v8908
  %10947 = vmatprep.subr.bf16.mxu0 0
  %10948 = vmatpush1.bf16.msra.mxu0 %v8909
  %10949 = vmatprep.subr.bf16.mxu0 0
  %10950 = vmatpush1.bf16.msra.mxu0 %v8910
  %10951 = vmatprep.mubr.bf16.mxu0 %v10866
  %10952 = vmatmul.mubr.bf16.gmra.mrb[0].mxu0 %v10865
  %v10953 = vpop.f32.mrb[0].mxu0
  %v10954 = vadd.f32 %v10914, %v10953
  %v10955 = vpop.f32.mrb[0].mxu0
  %v10956 = vpop.f32.mrb[0].mxu0
  %v10957 = vpop.f32.mrb[0].mxu0
  %10958 = vdwg.mxu0
  %10959 = vmatprep.subr.bf16.mxu0 0
  %10960 = vmatpush1.bf16.msra.mxu0 %v8911
  %10961 = vmatprep.subr.bf16.mxu0 0
  %10962 = vmatpush1.bf16.msra.mxu0 %v8912
  %10963 = vmatprep.subr.bf16.mxu0 0
  %10964 = vmatpush1.bf16.msra.mxu0 %v8913
  %10965 = vmatprep.subr.bf16.mxu0 0
  %10966 = vmatpush1.bf16.msra.mxu0 %v8914
  %10967 = vmatprep.subr.bf16.mxu0 0
  %10968 = vmatpush1.bf16.msra.mxu0 %v8915
  %10969 = vmatprep.subr.bf16.mxu0 0
  %10970 = vmatpush1.bf16.msra.mxu0 %v8916
  %10971 = vmatprep.subr.bf16.mxu0 0
  %10972 = vmatpush1.bf16.msra.mxu0 %v8917
  %10973 = vmatprep.subr.bf16.mxu0 0
  %10974 = vmatpush1.bf16.msra.mxu0 %v8918
  %10975 = vmatprep.subr.bf16.mxu0 0
  %10976 = vmatpush1.bf16.msra.mxu0 %v8919
  %10977 = vmatprep.subr.bf16.mxu0 0
  %10978 = vmatpush1.bf16.msra.mxu0 %v8920
  %10979 = vmatprep.subr.bf16.mxu0 0
  %10980 = vmatpush1.bf16.msra.mxu0 %v8921
  %10981 = vmatprep.subr.bf16.mxu0 0
  %10982 = vmatpush1.bf16.msra.mxu0 %v8922
  %10983 = vmatprep.subr.bf16.mxu0 0
  %10984 = vmatpush1.bf16.msra.mxu0 %v8923
  %10985 = vmatprep.subr.bf16.mxu0 0
  %10986 = vmatpush1.bf16.msra.mxu0 %v8924
  %10987 = vmatprep.subr.bf16.mxu0 0
  %10988 = vmatpush1.bf16.msra.mxu0 %v8925
  %10989 = vmatprep.subr.bf16.mxu0 0
  %10990 = vmatpush1.bf16.msra.mxu0 %v8926
  %10991 = vmatprep.mubr.bf16.mxu0 %v10868
  %10992 = vmatmul.mubr.bf16.gmra.mrb[0].mxu0 %v10867
  %v10993 = vpop.f32.mrb[0].mxu0
  %v10994 = vadd.f32 %v10954, %v10993
  %v10995 = vpop.f32.mrb[0].mxu0
  %v10996 = vpop.f32.mrb[0].mxu0
  %v10997 = vpop.f32.mrb[0].mxu0
  %10998 = vdwg.mxu0
  %10999 = vmatprep.subr.bf16.mxu0 0
  %11000 = vmatpush1.bf16.msra.mxu0 %v8927
  %11001 = vmatprep.subr.bf16.mxu0 0
  %11002 = vmatpush1.bf16.msra.mxu0 %v8928
  %11003 = vmatprep.subr.bf16.mxu0 0
  %11004 = vmatpush1.bf16.msra.mxu0 %v8929
  %11005 = vmatprep.subr.bf16.mxu0 0
  %11006 = vmatpush1.bf16.msra.mxu0 %v8930
  %11007 = vmatprep.subr.bf16.mxu0 0
  %11008 = vmatpush1.bf16.msra.mxu0 %v8931
  %11009 = vmatprep.subr.bf16.mxu0 0
  %11010 = vmatpush1.bf16.msra.mxu0 %v8932
  %11011 = vmatprep.subr.bf16.mxu0 0
  %11012 = vmatpush1.bf16.msra.mxu0 %v8933
  %11013 = vmatprep.subr.bf16.mxu0 0
  %11014 = vmatpush1.bf16.msra.mxu0 %v8934
  %11015 = vmatprep.subr.bf16.mxu0 0
  %11016 = vmatpush1.bf16.msra.mxu0 %v8935
  %11017 = vmatprep.subr.bf16.mxu0 0
  %11018 = vmatpush1.bf16.msra.mxu0 %v8936
  %11019 = vmatprep.subr.bf16.mxu0 0
  %11020 = vmatpush1.bf16.msra.mxu0 %v8937
  %11021 = vmatprep.subr.bf16.mxu0 0
  %11022 = vmatpush1.bf16.msra.mxu0 %v8938
  %11023 = vmatprep.subr.bf16.mxu0 0
  %11024 = vmatpush1.bf16.msra.mxu0 %v8939
  %11025 = vmatprep.subr.bf16.mxu0 0
  %11026 = vmatpush1.bf16.msra.mxu0 %v8940
  %11027 = vmatprep.subr.bf16.mxu0 0
  %11028 = vmatpush1.bf16.msra.mxu0 %v8941
  %11029 = vmatprep.subr.bf16.mxu0 0
  %11030 = vmatpush1.bf16.msra.mxu0 %v8942
  %11031 = vmatprep.mubr.bf16.mxu0 %v10870
  %11032 = vmatmul.mubr.bf16.gmra.mrb[0].mxu0 %v10869
  %v11033 = vpop.f32.mrb[0].mxu0
  %v11034 = vadd.f32 %v10994, %v11033
  %v11035 = vpop.f32.mrb[0].mxu0
  %v11036 = vpop.f32.mrb[0].mxu0
  %v11037 = vpop.f32.mrb[0].mxu0
  %11038 = vdwg.mxu0
  %11039 = vmatprep.subr.bf16.mxu0 0
  %11040 = vmatpush1.bf16.msra.mxu0 %v8943
  %11041 = vmatprep.subr.bf16.mxu0 0
  %11042 = vmatpush1.bf16.msra.mxu0 %v8944
  %11043 = vmatprep.subr.bf16.mxu0 0
  %11044 = vmatpush1.bf16.msra.mxu0 %v8945
  %11045 = vmatprep.subr.bf16.mxu0 0
  %11046 = vmatpush1.bf16.msra.mxu0 %v8946
  %11047 = vmatprep.subr.bf16.mxu0 0
  %11048 = vmatpush1.bf16.msra.mxu0 %v8947
  %11049 = vmatprep.subr.bf16.mxu0 0
  %11050 = vmatpush1.bf16.msra.mxu0 %v8948
  %11051 = vmatprep.subr.bf16.mxu0 0
  %11052 = vmatpush1.bf16.msra.mxu0 %v8949
  %11053 = vmatprep.subr.bf16.mxu0 0
  %11054 = vmatpush1.bf16.msra.mxu0 %v8950
  %11055 = vmatprep.subr.bf16.mxu0 0
  %11056 = vmatpush1.bf16.msra.mxu0 %v8951
  %11057 = vmatprep.subr.bf16.mxu0 0
  %11058 = vmatpush1.bf16.msra.mxu0 %v8952
  %11059 = vmatprep.subr.bf16.mxu0 0
  %11060 = vmatpush1.bf16.msra.mxu0 %v8953
  %11061 = vmatprep.subr.bf16.mxu0 0
  %11062 = vmatpush1.bf16.msra.mxu0 %v8954
  %11063 = vmatprep.subr.bf16.mxu0 0
  %11064 = vmatpush1.bf16.msra.mxu0 %v8955
  %11065 = vmatprep.subr.bf16.mxu0 0
  %11066 = vmatpush1.bf16.msra.mxu0 %v8956
  %11067 = vmatprep.subr.bf16.mxu0 0
  %11068 = vmatpush1.bf16.msra.mxu0 %v8957
  %11069 = vmatprep.subr.bf16.mxu0 0
  %11070 = vmatpush1.bf16.msra.mxu0 %v8958
  %11071 = vmatprep.mubr.bf16.mxu0 %v10872
  %11072 = vmatmul.mubr.bf16.gmra.mrb[0].mxu0 %v10871
  %v11073 = vpop.f32.mrb[0].mxu0
  %v11074 = vadd.f32 %v11034, %v11073
  %v11075 = vpop.f32.mrb[0].mxu0
  %v11076 = vpop.f32.mrb[0].mxu0
  %v11077 = vpop.f32.mrb[0].mxu0
  %11078 = vdwg.mxu0
  %11079 = vmatprep.subr.bf16.mxu0 0
  %11080 = vmatpush1.bf16.msra.mxu0 %v8959
  %11081 = vmatprep.subr.bf16.mxu0 0
  %11082 = vmatpush1.bf16.msra.mxu0 %v8960
  %11083 = vmatprep.subr.bf16.mxu0 0
  %11084 = vmatpush1.bf16.msra.mxu0 %v8961
  %11085 = vmatprep.subr.bf16.mxu0 0
  %11086 = vmatpush1.bf16.msra.mxu0 %v8962
  %11087 = vmatprep.subr.bf16.mxu0 0
  %11088 = vmatpush1.bf16.msra.mxu0 %v8963
  %11089 = vmatprep.subr.bf16.mxu0 0
  %11090 = vmatpush1.bf16.msra.mxu0 %v8964
  %11091 = vmatprep.subr.bf16.mxu0 0
  %11092 = vmatpush1.bf16.msra.mxu0 %v8965
  %11093 = vmatprep.subr.bf16.mxu0 0
  %11094 = vmatpush1.bf16.msra.mxu0 %v8966
  %11095 = vmatprep.subr.bf16.mxu0 0
  %11096 = vmatpush1.bf16.msra.mxu0 %v8967
  %11097 = vmatprep.subr.bf16.mxu0 0
  %11098 = vmatpush1.bf16.msra.mxu0 %v8968
  %11099 = vmatprep.subr.bf16.mxu0 0
  %11100 = vmatpush1.bf16.msra.mxu0 %v8969
  %11101 = vmatprep.subr.bf16.mxu0 0
  %11102 = vmatpush1.bf16.msra.mxu0 %v8970
  %11103 = vmatprep.subr.bf16.mxu0 0
  %11104 = vmatpush1.bf16.msra.mxu0 %v8971
  %11105 = vmatprep.subr.bf16.mxu0 0
  %11106 = vmatpush1.bf16.msra.mxu0 %v8972
  %11107 = vmatprep.subr.bf16.mxu0 0
  %11108 = vmatpush1.bf16.msra.mxu0 %v8973
  %11109 = vmatprep.subr.bf16.mxu0 0
  %11110 = vmatpush1.bf16.msra.mxu0 %v8974
  %11111 = vmatprep.mubr.bf16.mxu0 %v10874
  %11112 = vmatmul.mubr.bf16.gmra.mrb[0].mxu0 %v10873
  %v11113 = vpop.f32.mrb[0].mxu0
  %v11114 = vadd.f32 %v11074, %v11113
  %v11115 = vpop.f32.mrb[0].mxu0
  %v11116 = vpop.f32.mrb[0].mxu0
  %v11117 = vpop.f32.mrb[0].mxu0
  %11118 = vdwg.mxu0
  %11119 = vmatprep.subr.bf16.mxu0 0
  %11120 = vmatpush1.bf16.msra.mxu0 %v8975
  %11121 = vmatprep.subr.bf16.mxu0 0
  %11122 = vmatpush1.bf16.msra.mxu0 %v8976
  %11123 = vmatprep.subr.bf16.mxu0 0
  %11124 = vmatpush1.bf16.msra.mxu0 %v8977
  %11125 = vmatprep.subr.bf16.mxu0 0
  %11126 = vmatpush1.bf16.msra.mxu0 %v8978
  %11127 = vmatprep.subr.bf16.mxu0 0
  %11128 = vmatpush1.bf16.msra.mxu0 %v8979
  %11129 = vmatprep.subr.bf16.mxu0 0
  %11130 = vmatpush1.bf16.msra.mxu0 %v8980
  %11131 = vmatprep.subr.bf16.mxu0 0
  %11132 = vmatpush1.bf16.msra.mxu0 %v8981
  %11133 = vmatprep.subr.bf16.mxu0 0
  %11134 = vmatpush1.bf16.msra.mxu0 %v8982
  %11135 = vmatprep.subr.bf16.mxu0 0
  %11136 = vmatpush1.bf16.msra.mxu0 %v8983
  %11137 = vmatprep.subr.bf16.mxu0 0
  %11138 = vmatpush1.bf16.msra.mxu0 %v8984
  %11139 = vmatprep.subr.bf16.mxu0 0
  %11140 = vmatpush1.bf16.msra.mxu0 %v8985
  %11141 = vmatprep.subr.bf16.mxu0 0
  %11142 = vmatpush1.bf16.msra.mxu0 %v8986
  %11143 = vmatprep.subr.bf16.mxu0 0
  %11144 = vmatpush1.bf16.msra.mxu0 %v8987
  %11145 = vmatprep.subr.bf16.mxu0 0
  %11146 = vmatpush1.bf16.msra.mxu0 %v8988
  %11147 = vmatprep.subr.bf16.mxu0 0
  %11148 = vmatpush1.bf16.msra.mxu0 %v8989
  %11149 = vmatprep.subr.bf16.mxu0 0
  %11150 = vmatpush1.bf16.msra.mxu0 %v8990
  %11151 = vmatprep.mubr.bf16.mxu0 %v10876
  %11152 = vmatmul.mubr.bf16.gmra.mrb[0].mxu0 %v10875
  %v11153 = vpop.f32.mrb[0].mxu0
  %v11154 = vadd.f32 %v11114, %v11153
  %v11155 = vpop.f32.mrb[0].mxu0
  %v11156 = vpop.f32.mrb[0].mxu0
  %v11157 = vpop.f32.mrb[0].mxu0
  %11158 = vdwg.mxu0
  %11159 = vmatprep.subr.bf16.mxu0 0
  %11160 = vmatpush1.bf16.msra.mxu0 %v8991
  %11161 = vmatprep.subr.bf16.mxu0 0
  %11162 = vmatpush1.bf16.msra.mxu0 %v8992
  %11163 = vmatprep.subr.bf16.mxu0 0
  %11164 = vmatpush1.bf16.msra.mxu0 %v8993
  %11165 = vmatprep.subr.bf16.mxu0 0
  %11166 = vmatpush1.bf16.msra.mxu0 %v8994
  %11167 = vmatprep.subr.bf16.mxu0 0
  %11168 = vmatpush1.bf16.msra.mxu0 %v8995
  %11169 = vmatprep.subr.bf16.mxu0 0
  %11170 = vmatpush1.bf16.msra.mxu0 %v8996
  %11171 = vmatprep.subr.bf16.mxu0 0
  %11172 = vmatpush1.bf16.msra.mxu0 %v8997
  %11173 = vmatprep.subr.bf16.mxu0 0
  %11174 = vmatpush1.bf16.msra.mxu0 %v8998
  %11175 = vmatprep.subr.bf16.mxu0 0
  %11176 = vmatpush1.bf16.msra.mxu0 %v8999
  %11177 = vmatprep.subr.bf16.mxu0 0
  %11178 = vmatpush1.bf16.msra.mxu0 %v9000
  %11179 = vmatprep.subr.bf16.mxu0 0
  %11180 = vmatpush1.bf16.msra.mxu0 %v9001
  %11181 = vmatprep.subr.bf16.mxu0 0
  %11182 = vmatpush1.bf16.msra.mxu0 %v9002
  %11183 = vmatprep.subr.bf16.mxu0 0
  %11184 = vmatpush1.bf16.msra.mxu0 %v9003
  %11185 = vmatprep.subr.bf16.mxu0 0
  %11186 = vmatpush1.bf16.msra.mxu0 %v9004
  %11187 = vmatprep.subr.bf16.mxu0 0
  %11188 = vmatpush1.bf16.msra.mxu0 %v9005
  %11189 = vmatprep.subr.bf16.mxu0 0
  %11190 = vmatpush1.bf16.msra.mxu0 %v9006
  %11191 = vmatprep.mubr.bf16.mxu0 %v10878
  %11192 = vmatmul.mubr.bf16.gmra.mrb[0].mxu0 %v10877
  %v11193 = vpop.f32.mrb[0].mxu0
  %v11194 = vadd.f32 %v11154, %v11193
  %v11195 = vpop.f32.mrb[0].mxu0
  %v11196 = vpop.f32.mrb[0].mxu0
  %v11197 = vpop.f32.mrb[0].mxu0
  %11198 = vdwg.mxu0
  %v11200 = vrot.slane %v11194, 1
  %v11201 = vrot.slane %v11194, 2
  %v11204 = vadd.f32 %v10504, %v11200
  %v11205 = vadd.f32 %v10505, %v11201
  %v11208 = vrot.slane %v11205, 7
  %v11211 = vsel %vm7606, %v11204, 0.0
  %11212 = vadd.xlane.f32.xlu0 %v11211
  %v11213 = vpop.xlane.xlu0 %11212
  %v11214 = vsel %vm7610, %v11208, 0.0
  %11215 = vadd.xlane.f32.xlu0 %v11214
  %v11216 = vpop.xlane.xlu0 %11215
  %v11217 = vmul.f32 %v11213, %v1824
  %v11218 = vmul.f32 %v11216, %v1824
  %v11219 = vmul.f32 %v11204, %v11204
  %v11220 = vmul.f32 %v11205, %v11205
  %v11223 = vrot.slane %v11220, 7
  %v11226 = vsel %vm7606, %v11219, 0.0
  %11227 = vadd.xlane.f32.xlu0 %v11226
  %v11228 = vpop.xlane.xlu0 %11227
  %v11229 = vsel %vm7610, %v11223, 0.0
  %11230 = vadd.xlane.f32.xlu0 %v11229
  %v11231 = vpop.xlane.xlu0 %11230
  %v11232 = vmul.f32 %v11228, %v1824
  %v11233 = vmul.f32 %v11231, %v1824
  %v11234 = vmul.f32 %v11217, %v11217
  %v11235 = vmul.f32 %v11218, %v11218
  %v11236 = vsub.f32 %v11232, %v11234
  %v11237 = vsub.f32 %v11233, %v11235
  %v11240 = vrot.slane %v11218, 1
  %v11243 = vsub.f32 %v11204, %v11217
  %v11244 = vsub.f32 %v11205, %v11240
  %v11245 = vadd.f32 %v11236, 1e-05
  %v11246 = vadd.f32 %v11237, 1e-05
  %v11247 = vrsqrt.pop %v11245
  %v11248 = vrsqrt.pop %v11246
  %v11251 = vrot.slane %v11248, 1
  %v11254 = vmul.f32 %v11243, %v11247
  %v11255 = vmul.f32 %v11244, %v11251
  %v11256 = vmul.f32 %v11254, %v9515
  %v11257 = vmul.f32 %v11255, %v9515
  %v11258 = vadd.f32 %v11256, %v9521
  %v11259 = vadd.f32 %v11257, %v9521
  %v11260 = vpack.c.bf16 %v11258, %v11258
  %v11261 = vpack.c.bf16 %v11259, %v11259
  %v11264 = vunpack.c.l.b16 %v11260
  %v11265 = vunpack.c.l.b16 %v11261
  %v11266 = vrot.slane %v11264, 7
  %v11267 = vrot.slane %v11265, 6
  %v11268 = vsel %vm7536, %v11267, %v11266
  %v11269 = vpack.c.b16 %v11268, %v11268
  %v11271 = vsel %vm357, %v11269, 0
  %11273 = vmatprep.subr.bf16.mxu0 0
  %11274 = vmatpush1.bf16.msra.mxu0 %v7547
  %11275 = vmatprep.subr.bf16.mxu0 0
  %11276 = vmatpush1.bf16.msra.mxu0 %v7548
  %11277 = vmatprep.subr.bf16.mxu0 0
  %11278 = vmatpush1.bf16.msra.mxu0 0
  %11279 = vmatprep.subr.bf16.mxu0 0
  %11280 = vmatpush1.bf16.msra.mxu0 0
  %11281 = vmatprep.subr.bf16.mxu0 0
  %11282 = vmatpush1.bf16.msra.mxu0 0
  %11283 = vmatprep.subr.bf16.mxu0 0
  %11284 = vmatpush1.bf16.msra.mxu0 0
  %11285 = vmatprep.subr.bf16.mxu0 0
  %11286 = vmatpush1.bf16.msra.mxu0 0
  %11287 = vmatprep.subr.bf16.mxu0 0
  %11288 = vmatpush1.bf16.msra.mxu0 0
  %11289 = vmatprep.subr.bf16.mxu0 0
  %11290 = vmatpush1.bf16.msra.mxu0 0
  %11291 = vmatprep.subr.bf16.mxu0 0
  %11292 = vmatpush1.bf16.msra.mxu0 0
  %11293 = vmatprep.subr.bf16.mxu0 0
  %11294 = vmatpush1.bf16.msra.mxu0 0
  %11295 = vmatprep.subr.bf16.mxu0 0
  %11296 = vmatpush1.bf16.msra.mxu0 0
  %11297 = vmatprep.subr.bf16.mxu0 0
  %11298 = vmatpush1.bf16.msra.mxu0 0
  %11299 = vmatprep.subr.bf16.mxu0 0
  %11300 = vmatpush1.bf16.msra.mxu0 0
  %11301 = vmatprep.subr.bf16.mxu0 0
  %11302 = vmatpush1.bf16.msra.mxu0 0
  %11303 = vmatprep.subr.bf16.mxu0 0
  %11304 = vmatpush1.bf16.msra.mxu0 0
  %11305 = vmatprep.mubr.bf16.mxu0 0
  %11306 = vmatmul.mubr.bf16.gmra.mrb[0].mxu0 %v11271
  %v11307 = vpop.f32.mrb[0].mxu0
  %v11308 = vadd.f32 %v7529, %v11307
  %v11309 = vpop.f32.mrb[0].mxu0
  %v11310 = vpop.f32.mrb[0].mxu0
  %v11311 = vpop.f32.mrb[0].mxu0
  %11312 = vdwg.mxu0
  %v11314 = vrot.slane %v11308, 1
  %v11315 = vrot.slane %v11308, 2
  %v11318 = vadd.f32 %v11258, %v11314
  %v11319 = vadd.f32 %v11259, %v11315
  %v11322 = vrot.slane %v11319, 7
  %v11325 = vsel %vm7606, %v11318, 0.0
  %11326 = vadd.xlane.f32.xlu0 %v11325
  %v11327 = vpop.xlane.xlu0 %11326
  %v11328 = vsel %vm7610, %v11322, 0.0
  %11329 = vadd.xlane.f32.xlu0 %v11328
  %v11330 = vpop.xlane.xlu0 %11329
  %v11331 = vmul.f32 %v11327, %v1824
  %v11332 = vmul.f32 %v11330, %v1824
  %v11333 = vmul.f32 %v11318, %v11318
  %v11334 = vmul.f32 %v11319, %v11319
  %v11337 = vrot.slane %v11334, 7
  %v11340 = vsel %vm7606, %v11333, 0.0
  %11341 = vadd.xlane.f32.xlu0 %v11340
  %v11342 = vpop.xlane.xlu0 %11341
  %v11343 = vsel %vm7610, %v11337, 0.0
  %11344 = vadd.xlane.f32.xlu0 %v11343
  %v11345 = vpop.xlane.xlu0 %11344
  %v11346 = vmul.f32 %v11342, %v1824
  %v11347 = vmul.f32 %v11345, %v1824
  %v11348 = vmul.f32 %v11331, %v11331
  %v11349 = vmul.f32 %v11332, %v11332
  %v11350 = vsub.f32 %v11346, %v11348
  %v11351 = vsub.f32 %v11347, %v11349
  %v11354 = vrot.slane %v11332, 1
  %v11357 = vsub.f32 %v11318, %v11331
  %v11358 = vsub.f32 %v11319, %v11354
  %v11359 = vadd.f32 %v11350, 1e-05
  %v11360 = vadd.f32 %v11351, 1e-05
  %v11361 = vrsqrt.pop %v11359
  %v11362 = vrsqrt.pop %v11360
  %v11365 = vrot.slane %v11362, 1
  %v11368 = vmul.f32 %v11357, %v11361
  %v11369 = vmul.f32 %v11358, %v11365
  %v11370 = vmul.f32 %v11368, %v7656
  %v11371 = vmul.f32 %v11369, %v7656
  %v11372 = vadd.f32 %v11370, %v7662
  %v11373 = vadd.f32 %v11371, %v7662
  %v11374 = vpack.c.bf16 %v11372, %v11372
  %v11375 = vpack.c.bf16 %v11373, %v11373
  %v11378 = vunpack.c.l.b16 %v11374
  %v11379 = vunpack.c.l.b16 %v11375
  %v11380 = vrot.slane %v11378, 7
  %v11381 = vrot.slane %v11379, 6
  %v11382 = vsel %vm7536, %v11381, %v11380
  %v11383 = vpack.c.b16 %v11382, %v11382
  %v11385 = vsel %vm357, %v11383, 0
  %11387 = vmatprep.subr.bf16.mxu0 %v7937
  %11388 = vmatpush1.bf16.msra.mxu0 %v7936
  %11389 = vmatprep.subr.bf16.mxu0 %v7953
  %11390 = vmatpush1.bf16.msra.mxu0 %v7952
  %11391 = vmatprep.subr.bf16.mxu0 0
  %11392 = vmatpush1.bf16.msra.mxu0 0
  %11393 = vmatprep.subr.bf16.mxu0 0
  %11394 = vmatpush1.bf16.msra.mxu0 0
  %11395 = vmatprep.subr.bf16.mxu0 0
  %11396 = vmatpush1.bf16.msra.mxu0 0
  %11397 = vmatprep.subr.bf16.mxu0 0
  %11398 = vmatpush1.bf16.msra.mxu0 0
  %11399 = vmatprep.subr.bf16.mxu0 0
  %11400 = vmatpush1.bf16.msra.mxu0 0
  %11401 = vmatprep.subr.bf16.mxu0 0
  %11402 = vmatpush1.bf16.msra.mxu0 0
  %11403 = vmatprep.subr.bf16.mxu0 0
  %11404 = vmatpush1.bf16.msra.mxu0 0
  %11405 = vmatprep.subr.bf16.mxu0 0
  %11406 = vmatpush1.bf16.msra.mxu0 0
  %11407 = vmatprep.subr.bf16.mxu0 0
  %11408 = vmatpush1.bf16.msra.mxu0 0
  %11409 = vmatprep.subr.bf16.mxu0 0
  %11410 = vmatpush1.bf16.msra.mxu0 0
  %11411 = vmatprep.subr.bf16.mxu0 0
  %11412 = vmatpush1.bf16.msra.mxu0 0
  %11413 = vmatprep.subr.bf16.mxu0 0
  %11414 = vmatpush1.bf16.msra.mxu0 0
  %11415 = vmatprep.subr.bf16.mxu0 0
  %11416 = vmatpush1.bf16.msra.mxu0 0
  %11417 = vmatprep.subr.bf16.mxu0 0
  %11418 = vmatpush1.bf16.msra.mxu0 0
  %11419 = vmatprep.mubr.bf16.mxu0 0
  %11420 = vmatmul.mubr.bf16.gmra.mrb[0].mxu0 %v11385
  %v11421 = vpop.f32.mrb[0].mxu0
  %v11422 = vadd.f32 %v7670, %v11421
  %v11423 = vpop.f32.mrb[0].mxu0
  %v11424 = vadd.f32 %v7674, %v11423
  %v11425 = vpop.f32.mrb[0].mxu0
  %v11426 = vpop.f32.mrb[0].mxu0
  %11427 = vdwg.mxu0
  %11428 = vmatprep.subr.bf16.mxu0 %v7939
  %11429 = vmatpush1.bf16.msra.mxu0 %v7938
  %11430 = vmatprep.subr.bf16.mxu0 %v7955
  %11431 = vmatpush1.bf16.msra.mxu0 %v7954
  %11432 = vmatprep.subr.bf16.mxu0 0
  %11433 = vmatpush1.bf16.msra.mxu0 0
  %11434 = vmatprep.subr.bf16.mxu0 0
  %11435 = vmatpush1.bf16.msra.mxu0 0
  %11436 = vmatprep.subr.bf16.mxu0 0
  %11437 = vmatpush1.bf16.msra.mxu0 0
  %11438 = vmatprep.subr.bf16.mxu0 0
  %11439 = vmatpush1.bf16.msra.mxu0 0
  %11440 = vmatprep.subr.bf16.mxu0 0
  %11441 = vmatpush1.bf16.msra.mxu0 0
  %11442 = vmatprep.subr.bf16.mxu0 0
  %11443 = vmatpush1.bf16.msra.mxu0 0
  %11444 = vmatprep.subr.bf16.mxu0 0
  %11445 = vmatpush1.bf16.msra.mxu0 0
  %11446 = vmatprep.subr.bf16.mxu0 0
  %11447 = vmatpush1.bf16.msra.mxu0 0
  %11448 = vmatprep.subr.bf16.mxu0 0
  %11449 = vmatpush1.bf16.msra.mxu0 0
  %11450 = vmatprep.subr.bf16.mxu0 0
  %11451 = vmatpush1.bf16.msra.mxu0 0
  %11452 = vmatprep.subr.bf16.mxu0 0
  %11453 = vmatpush1.bf16.msra.mxu0 0
  %11454 = vmatprep.subr.bf16.mxu0 0
  %11455 = vmatpush1.bf16.msra.mxu0 0
  %11456 = vmatprep.subr.bf16.mxu0 0
  %11457 = vmatpush1.bf16.msra.mxu0 0
  %11458 = vmatprep.subr.bf16.mxu0 0
  %11459 = vmatpush1.bf16.msra.mxu0 0
  %11460 = vmatprep.mubr.bf16.mxu0 0
  %11461 = vmatmul.mubr.bf16.gmra.mrb[0].mxu0 %v11385
  %v11462 = vpop.f32.mrb[0].mxu0
  %v11463 = vadd.f32 %v7678, %v11462
  %v11464 = vpop.f32.mrb[0].mxu0
  %v11465 = vadd.f32 %v7682, %v11464
  %v11466 = vpop.f32.mrb[0].mxu0
  %v11467 = vpop.f32.mrb[0].mxu0
  %11468 = vdwg.mxu0
  %11469 = vmatprep.subr.bf16.mxu0 %v7941
  %11470 = vmatpush1.bf16.msra.mxu0 %v7940
  %11471 = vmatprep.subr.bf16.mxu0 %v7957
  %11472 = vmatpush1.bf16.msra.mxu0 %v7956
  %11473 = vmatprep.subr.bf16.mxu0 0
  %11474 = vmatpush1.bf16.msra.mxu0 0
  %11475 = vmatprep.subr.bf16.mxu0 0
  %11476 = vmatpush1.bf16.msra.mxu0 0
  %11477 = vmatprep.subr.bf16.mxu0 0
  %11478 = vmatpush1.bf16.msra.mxu0 0
  %11479 = vmatprep.subr.bf16.mxu0 0
  %11480 = vmatpush1.bf16.msra.mxu0 0
  %11481 = vmatprep.subr.bf16.mxu0 0
  %11482 = vmatpush1.bf16.msra.mxu0 0
  %11483 = vmatprep.subr.bf16.mxu0 0
  %11484 = vmatpush1.bf16.msra.mxu0 0
  %11485 = vmatprep.subr.bf16.mxu0 0
  %11486 = vmatpush1.bf16.msra.mxu0 0
  %11487 = vmatprep.subr.bf16.mxu0 0
  %11488 = vmatpush1.bf16.msra.mxu0 0
  %11489 = vmatprep.subr.bf16.mxu0 0
  %11490 = vmatpush1.bf16.msra.mxu0 0
  %11491 = vmatprep.subr.bf16.mxu0 0
  %11492 = vmatpush1.bf16.msra.mxu0 0
  %11493 = vmatprep.subr.bf16.mxu0 0
  %11494 = vmatpush1.bf16.msra.mxu0 0
  %11495 = vmatprep.subr.bf16.mxu0 0
  %11496 = vmatpush1.bf16.msra.mxu0 0
  %11497 = vmatprep.subr.bf16.mxu0 0
  %11498 = vmatpush1.bf16.msra.mxu0 0
  %11499 = vmatprep.subr.bf16.mxu0 0
  %11500 = vmatpush1.bf16.msra.mxu0 0
  %11501 = vmatprep.mubr.bf16.mxu0 0
  %11502 = vmatmul.mubr.bf16.gmra.mrb[0].mxu0 %v11385
  %v11503 = vpop.f32.mrb[0].mxu0
  %v11504 = vadd.f32 %v7686, %v11503
  %v11505 = vpop.f32.mrb[0].mxu0
  %v11506 = vadd.f32 %v7690, %v11505
  %v11507 = vpop.f32.mrb[0].mxu0
  %v11508 = vpop.f32.mrb[0].mxu0
  %11509 = vdwg.mxu0
  %11510 = vmatprep.subr.bf16.mxu0 %v7943
  %11511 = vmatpush1.bf16.msra.mxu0 %v7942
  %11512 = vmatprep.subr.bf16.mxu0 %v7959
  %11513 = vmatpush1.bf16.msra.mxu0 %v7958
  %11514 = vmatprep.subr.bf16.mxu0 0
  %11515 = vmatpush1.bf16.msra.mxu0 0
  %11516 = vmatprep.subr.bf16.mxu0 0
  %11517 = vmatpush1.bf16.msra.mxu0 0
  %11518 = vmatprep.subr.bf16.mxu0 0
  %11519 = vmatpush1.bf16.msra.mxu0 0
  %11520 = vmatprep.subr.bf16.mxu0 0
  %11521 = vmatpush1.bf16.msra.mxu0 0
  %11522 = vmatprep.subr.bf16.mxu0 0
  %11523 = vmatpush1.bf16.msra.mxu0 0
  %11524 = vmatprep.subr.bf16.mxu0 0
  %11525 = vmatpush1.bf16.msra.mxu0 0
  %11526 = vmatprep.subr.bf16.mxu0 0
  %11527 = vmatpush1.bf16.msra.mxu0 0
  %11528 = vmatprep.subr.bf16.mxu0 0
  %11529 = vmatpush1.bf16.msra.mxu0 0
  %11530 = vmatprep.subr.bf16.mxu0 0
  %11531 = vmatpush1.bf16.msra.mxu0 0
  %11532 = vmatprep.subr.bf16.mxu0 0
  %11533 = vmatpush1.bf16.msra.mxu0 0
  %11534 = vmatprep.subr.bf16.mxu0 0
  %11535 = vmatpush1.bf16.msra.mxu0 0
  %11536 = vmatprep.subr.bf16.mxu0 0
  %11537 = vmatpush1.bf16.msra.mxu0 0
  %11538 = vmatprep.subr.bf16.mxu0 0
  %11539 = vmatpush1.bf16.msra.mxu0 0
  %11540 = vmatprep.subr.bf16.mxu0 0
  %11541 = vmatpush1.bf16.msra.mxu0 0
  %11542 = vmatprep.mubr.bf16.mxu0 0
  %11543 = vmatmul.mubr.bf16.gmra.mrb[0].mxu0 %v11385
  %v11544 = vpop.f32.mrb[0].mxu0
  %v11545 = vadd.f32 %v7694, %v11544
  %v11546 = vpop.f32.mrb[0].mxu0
  %v11547 = vadd.f32 %v7698, %v11546
  %v11548 = vpop.f32.mrb[0].mxu0
  %v11549 = vpop.f32.mrb[0].mxu0
  %11550 = vdwg.mxu0
  %11551 = vmatprep.subr.bf16.mxu0 %v7945
  %11552 = vmatpush1.bf16.msra.mxu0 %v7944
  %11553 = vmatprep.subr.bf16.mxu0 %v7961
  %11554 = vmatpush1.bf16.msra.mxu0 %v7960
  %11555 = vmatprep.subr.bf16.mxu0 0
  %11556 = vmatpush1.bf16.msra.mxu0 0
  %11557 = vmatprep.subr.bf16.mxu0 0
  %11558 = vmatpush1.bf16.msra.mxu0 0
  %11559 = vmatprep.subr.bf16.mxu0 0
  %11560 = vmatpush1.bf16.msra.mxu0 0
  %11561 = vmatprep.subr.bf16.mxu0 0
  %11562 = vmatpush1.bf16.msra.mxu0 0
  %11563 = vmatprep.subr.bf16.mxu0 0
  %11564 = vmatpush1.bf16.msra.mxu0 0
  %11565 = vmatprep.subr.bf16.mxu0 0
  %11566 = vmatpush1.bf16.msra.mxu0 0
  %11567 = vmatprep.subr.bf16.mxu0 0
  %11568 = vmatpush1.bf16.msra.mxu0 0
  %11569 = vmatprep.subr.bf16.mxu0 0
  %11570 = vmatpush1.bf16.msra.mxu0 0
  %11571 = vmatprep.subr.bf16.mxu0 0
  %11572 = vmatpush1.bf16.msra.mxu0 0
  %11573 = vmatprep.subr.bf16.mxu0 0
  %11574 = vmatpush1.bf16.msra.mxu0 0
  %11575 = vmatprep.subr.bf16.mxu0 0
  %11576 = vmatpush1.bf16.msra.mxu0 0
  %11577 = vmatprep.subr.bf16.mxu0 0
  %11578 = vmatpush1.bf16.msra.mxu0 0
  %11579 = vmatprep.subr.bf16.mxu0 0
  %11580 = vmatpush1.bf16.msra.mxu0 0
  %11581 = vmatprep.subr.bf16.mxu0 0
  %11582 = vmatpush1.bf16.msra.mxu0 0
  %11583 = vmatprep.mubr.bf16.mxu0 0
  %11584 = vmatmul.mubr.bf16.gmra.mrb[0].mxu0 %v11385
  %v11585 = vpop.f32.mrb[0].mxu0
  %v11586 = vadd.f32 %v7702, %v11585
  %v11587 = vpop.f32.mrb[0].mxu0
  %v11588 = vadd.f32 %v7706, %v11587
  %v11589 = vpop.f32.mrb[0].mxu0
  %v11590 = vpop.f32.mrb[0].mxu0
  %11591 = vdwg.mxu0
  %11592 = vmatprep.subr.bf16.mxu0 %v7947
  %11593 = vmatpush1.bf16.msra.mxu0 %v7946
  %11594 = vmatprep.subr.bf16.mxu0 %v7963
  %11595 = vmatpush1.bf16.msra.mxu0 %v7962
  %11596 = vmatprep.subr.bf16.mxu0 0
  %11597 = vmatpush1.bf16.msra.mxu0 0
  %11598 = vmatprep.subr.bf16.mxu0 0
  %11599 = vmatpush1.bf16.msra.mxu0 0
  %11600 = vmatprep.subr.bf16.mxu0 0
  %11601 = vmatpush1.bf16.msra.mxu0 0
  %11602 = vmatprep.subr.bf16.mxu0 0
  %11603 = vmatpush1.bf16.msra.mxu0 0
  %11604 = vmatprep.subr.bf16.mxu0 0
  %11605 = vmatpush1.bf16.msra.mxu0 0
  %11606 = vmatprep.subr.bf16.mxu0 0
  %11607 = vmatpush1.bf16.msra.mxu0 0
  %11608 = vmatprep.subr.bf16.mxu0 0
  %11609 = vmatpush1.bf16.msra.mxu0 0
  %11610 = vmatprep.subr.bf16.mxu0 0
  %11611 = vmatpush1.bf16.msra.mxu0 0
  %11612 = vmatprep.subr.bf16.mxu0 0
  %11613 = vmatpush1.bf16.msra.mxu0 0
  %11614 = vmatprep.subr.bf16.mxu0 0
  %11615 = vmatpush1.bf16.msra.mxu0 0
  %11616 = vmatprep.subr.bf16.mxu0 0
  %11617 = vmatpush1.bf16.msra.mxu0 0
  %11618 = vmatprep.subr.bf16.mxu0 0
  %11619 = vmatpush1.bf16.msra.mxu0 0
  %11620 = vmatprep.subr.bf16.mxu0 0
  %11621 = vmatpush1.bf16.msra.mxu0 0
  %11622 = vmatprep.subr.bf16.mxu0 0
  %11623 = vmatpush1.bf16.msra.mxu0 0
  %11624 = vmatprep.mubr.bf16.mxu0 0
  %11625 = vmatmul.mubr.bf16.gmra.mrb[0].mxu0 %v11385
  %v11626 = vpop.f32.mrb[0].mxu0
  %v11627 = vadd.f32 %v7710, %v11626
  %v11628 = vpop.f32.mrb[0].mxu0
  %v11629 = vadd.f32 %v7714, %v11628
  %v11630 = vpop.f32.mrb[0].mxu0
  %v11631 = vpop.f32.mrb[0].mxu0
  %11632 = vdwg.mxu0
  %11633 = vmatprep.subr.bf16.mxu0 %v7949
  %11634 = vmatpush1.bf16.msra.mxu0 %v7948
  %11635 = vmatprep.subr.bf16.mxu0 %v7965
  %11636 = vmatpush1.bf16.msra.mxu0 %v7964
  %11637 = vmatprep.subr.bf16.mxu0 0
  %11638 = vmatpush1.bf16.msra.mxu0 0
  %11639 = vmatprep.subr.bf16.mxu0 0
  %11640 = vmatpush1.bf16.msra.mxu0 0
  %11641 = vmatprep.subr.bf16.mxu0 0
  %11642 = vmatpush1.bf16.msra.mxu0 0
  %11643 = vmatprep.subr.bf16.mxu0 0
  %11644 = vmatpush1.bf16.msra.mxu0 0
  %11645 = vmatprep.subr.bf16.mxu0 0
  %11646 = vmatpush1.bf16.msra.mxu0 0
  %11647 = vmatprep.subr.bf16.mxu0 0
  %11648 = vmatpush1.bf16.msra.mxu0 0
  %11649 = vmatprep.subr.bf16.mxu0 0
  %11650 = vmatpush1.bf16.msra.mxu0 0
  %11651 = vmatprep.subr.bf16.mxu0 0
  %11652 = vmatpush1.bf16.msra.mxu0 0
  %11653 = vmatprep.subr.bf16.mxu0 0
  %11654 = vmatpush1.bf16.msra.mxu0 0
  %11655 = vmatprep.subr.bf16.mxu0 0
  %11656 = vmatpush1.bf16.msra.mxu0 0
  %11657 = vmatprep.subr.bf16.mxu0 0
  %11658 = vmatpush1.bf16.msra.mxu0 0
  %11659 = vmatprep.subr.bf16.mxu0 0
  %11660 = vmatpush1.bf16.msra.mxu0 0
  %11661 = vmatprep.subr.bf16.mxu0 0
  %11662 = vmatpush1.bf16.msra.mxu0 0
  %11663 = vmatprep.subr.bf16.mxu0 0
  %11664 = vmatpush1.bf16.msra.mxu0 0
  %11665 = vmatprep.mubr.bf16.mxu0 0
  %11666 = vmatmul.mubr.bf16.gmra.mrb[0].mxu0 %v11385
  %v11667 = vpop.f32.mrb[0].mxu0
  %v11668 = vadd.f32 %v7718, %v11667
  %v11669 = vpop.f32.mrb[0].mxu0
  %v11670 = vadd.f32 %v7722, %v11669
  %v11671 = vpop.f32.mrb[0].mxu0
  %v11672 = vpop.f32.mrb[0].mxu0
  %11673 = vdwg.mxu0
  %11674 = vmatprep.subr.bf16.mxu0 %v7951
  %11675 = vmatpush1.bf16.msra.mxu0 %v7950
  %11676 = vmatprep.subr.bf16.mxu0 %v7967
  %11677 = vmatpush1.bf16.msra.mxu0 %v7966
  %11678 = vmatprep.subr.bf16.mxu0 0
  %11679 = vmatpush1.bf16.msra.mxu0 0
  %11680 = vmatprep.subr.bf16.mxu0 0
  %11681 = vmatpush1.bf16.msra.mxu0 0
  %11682 = vmatprep.subr.bf16.mxu0 0
  %11683 = vmatpush1.bf16.msra.mxu0 0
  %11684 = vmatprep.subr.bf16.mxu0 0
  %11685 = vmatpush1.bf16.msra.mxu0 0
  %11686 = vmatprep.subr.bf16.mxu0 0
  %11687 = vmatpush1.bf16.msra.mxu0 0
  %11688 = vmatprep.subr.bf16.mxu0 0
  %11689 = vmatpush1.bf16.msra.mxu0 0
  %11690 = vmatprep.subr.bf16.mxu0 0
  %11691 = vmatpush1.bf16.msra.mxu0 0
  %11692 = vmatprep.subr.bf16.mxu0 0
  %11693 = vmatpush1.bf16.msra.mxu0 0
  %11694 = vmatprep.subr.bf16.mxu0 0
  %11695 = vmatpush1.bf16.msra.mxu0 0
  %11696 = vmatprep.subr.bf16.mxu0 0
  %11697 = vmatpush1.bf16.msra.mxu0 0
  %11698 = vmatprep.subr.bf16.mxu0 0
  %11699 = vmatpush1.bf16.msra.mxu0 0
  %11700 = vmatprep.subr.bf16.mxu0 0
  %11701 = vmatpush1.bf16.msra.mxu0 0
  %11702 = vmatprep.subr.bf16.mxu0 0
  %11703 = vmatpush1.bf16.msra.mxu0 0
  %11704 = vmatprep.subr.bf16.mxu0 0
  %11705 = vmatpush1.bf16.msra.mxu0 0
  %11706 = vmatprep.mubr.bf16.mxu0 0
  %11707 = vmatmul.mubr.bf16.gmra.mrb[0].mxu0 %v11385
  %v11708 = vpop.f32.mrb[0].mxu0
  %v11709 = vadd.f32 %v7726, %v11708
  %v11710 = vpop.f32.mrb[0].mxu0
  %v11711 = vadd.f32 %v7730, %v11710
  %v11712 = vpop.f32.mrb[0].mxu0
  %v11713 = vpop.f32.mrb[0].mxu0
  %11714 = vdwg.mxu0
  %v11715 = vmax.f32 %v11422, 0.0
  %v11716 = vmax.f32 %v11424, 0.0
  %v11717 = vmax.f32 %v11463, 0.0
  %v11718 = vmax.f32 %v11465, 0.0
  %v11719 = vmax.f32 %v11504, 0.0
  %v11720 = vmax.f32 %v11506, 0.0
  %v11721 = vmax.f32 %v11545, 0.0
  %v11722 = vmax.f32 %v11547, 0.0
  %v11723 = vmax.f32 %v11586, 0.0
  %v11724 = vmax.f32 %v11588, 0.0
  %v11725 = vmax.f32 %v11627, 0.0
  %v11726 = vmax.f32 %v11629, 0.0
  %v11727 = vmax.f32 %v11668, 0.0
  %v11728 = vmax.f32 %v11670, 0.0
  %v11729 = vmax.f32 %v11709, 0.0
  %v11730 = vmax.f32 %v11711, 0.0
  %v11731 = vpack.c.bf16 %v11715, %v11715
  %v11732 = vpack.c.bf16 %v11716, %v11716
  %v11733 = vpack.c.bf16 %v11717, %v11717
  %v11734 = vpack.c.bf16 %v11718, %v11718
  %v11735 = vpack.c.bf16 %v11719, %v11719
  %v11736 = vpack.c.bf16 %v11720, %v11720
  %v11737 = vpack.c.bf16 %v11721, %v11721
  %v11738 = vpack.c.bf16 %v11722, %v11722
  %v11739 = vpack.c.bf16 %v11723, %v11723
  %v11740 = vpack.c.bf16 %v11724, %v11724
  %v11741 = vpack.c.bf16 %v11725, %v11725
  %v11742 = vpack.c.bf16 %v11726, %v11726
  %v11743 = vpack.c.bf16 %v11727, %v11727
  %v11744 = vpack.c.bf16 %v11728, %v11728
  %v11745 = vpack.c.bf16 %v11729, %v11729
  %v11746 = vpack.c.bf16 %v11730, %v11730
  %11747 = vmatprep.subr.bf16.mxu0 0
  %11748 = vmatpush1.bf16.msra.mxu0 %v8879
  %11749 = vmatprep.subr.bf16.mxu0 0
  %11750 = vmatpush1.bf16.msra.mxu0 %v8880
  %11751 = vmatprep.subr.bf16.mxu0 0
  %11752 = vmatpush1.bf16.msra.mxu0 %v8881
  %11753 = vmatprep.subr.bf16.mxu0 0
  %11754 = vmatpush1.bf16.msra.mxu0 %v8882
  %11755 = vmatprep.subr.bf16.mxu0 0
  %11756 = vmatpush1.bf16.msra.mxu0 %v8883
  %11757 = vmatprep.subr.bf16.mxu0 0
  %11758 = vmatpush1.bf16.msra.mxu0 %v8884
  %11759 = vmatprep.subr.bf16.mxu0 0
  %11760 = vmatpush1.bf16.msra.mxu0 %v8885
  %11761 = vmatprep.subr.bf16.mxu0 0
  %11762 = vmatpush1.bf16.msra.mxu0 %v8886
  %11763 = vmatprep.subr.bf16.mxu0 0
  %11764 = vmatpush1.bf16.msra.mxu0 %v8887
  %11765 = vmatprep.subr.bf16.mxu0 0
  %11766 = vmatpush1.bf16.msra.mxu0 %v8888
  %11767 = vmatprep.subr.bf16.mxu0 0
  %11768 = vmatpush1.bf16.msra.mxu0 %v8889
  %11769 = vmatprep.subr.bf16.mxu0 0
  %11770 = vmatpush1.bf16.msra.mxu0 %v8890
  %11771 = vmatprep.subr.bf16.mxu0 0
  %11772 = vmatpush1.bf16.msra.mxu0 %v8891
  %11773 = vmatprep.subr.bf16.mxu0 0
  %11774 = vmatpush1.bf16.msra.mxu0 %v8892
  %11775 = vmatprep.subr.bf16.mxu0 0
  %11776 = vmatpush1.bf16.msra.mxu0 %v8893
  %11777 = vmatprep.subr.bf16.mxu0 0
  %11778 = vmatpush1.bf16.msra.mxu0 %v8894
  %11779 = vmatprep.mubr.bf16.mxu0 %v11732
  %11780 = vmatmul.mubr.bf16.gmra.mrb[0].mxu0 %v11731
  %v11781 = vpop.f32.mrb[0].mxu0
  %v11782 = vadd.f32 %v8366, %v11781
  %v11783 = vpop.f32.mrb[0].mxu0
  %v11784 = vpop.f32.mrb[0].mxu0
  %v11785 = vpop.f32.mrb[0].mxu0
  %11786 = vdwg.mxu0
  %11787 = vmatprep.subr.bf16.mxu0 0
  %11788 = vmatpush1.bf16.msra.mxu0 %v8895
  %11789 = vmatprep.subr.bf16.mxu0 0
  %11790 = vmatpush1.bf16.msra.mxu0 %v8896
  %11791 = vmatprep.subr.bf16.mxu0 0
  %11792 = vmatpush1.bf16.msra.mxu0 %v8897
  %11793 = vmatprep.subr.bf16.mxu0 0
  %11794 = vmatpush1.bf16.msra.mxu0 %v8898
  %11795 = vmatprep.subr.bf16.mxu0 0
  %11796 = vmatpush1.bf16.msra.mxu0 %v8899
  %11797 = vmatprep.subr.bf16.mxu0 0
  %11798 = vmatpush1.bf16.msra.mxu0 %v8900
  %11799 = vmatprep.subr.bf16.mxu0 0
  %11800 = vmatpush1.bf16.msra.mxu0 %v8901
  %11801 = vmatprep.subr.bf16.mxu0 0
  %11802 = vmatpush1.bf16.msra.mxu0 %v8902
  %11803 = vmatprep.subr.bf16.mxu0 0
  %11804 = vmatpush1.bf16.msra.mxu0 %v8903
  %11805 = vmatprep.subr.bf16.mxu0 0
  %11806 = vmatpush1.bf16.msra.mxu0 %v8904
  %11807 = vmatprep.subr.bf16.mxu0 0
  %11808 = vmatpush1.bf16.msra.mxu0 %v8905
  %11809 = vmatprep.subr.bf16.mxu0 0
  %11810 = vmatpush1.bf16.msra.mxu0 %v8906
  %11811 = vmatprep.subr.bf16.mxu0 0
  %11812 = vmatpush1.bf16.msra.mxu0 %v8907
  %11813 = vmatprep.subr.bf16.mxu0 0
  %11814 = vmatpush1.bf16.msra.mxu0 %v8908
  %11815 = vmatprep.subr.bf16.mxu0 0
  %11816 = vmatpush1.bf16.msra.mxu0 %v8909
  %11817 = vmatprep.subr.bf16.mxu0 0
  %11818 = vmatpush1.bf16.msra.mxu0 %v8910
  %11819 = vmatprep.mubr.bf16.mxu0 %v11734
  %11820 = vmatmul.mubr.bf16.gmra.mrb[0].mxu0 %v11733
  %v11821 = vpop.f32.mrb[0].mxu0
  %v11822 = vadd.f32 %v11782, %v11821
  %v11823 = vpop.f32.mrb[0].mxu0
  %v11824 = vpop.f32.mrb[0].mxu0
  %v11825 = vpop.f32.mrb[0].mxu0
  %11826 = vdwg.mxu0
  %11827 = vmatprep.subr.bf16.mxu0 0
  %11828 = vmatpush1.bf16.msra.mxu0 %v8911
  %11829 = vmatprep.subr.bf16.mxu0 0
  %11830 = vmatpush1.bf16.msra.mxu0 %v8912
  %11831 = vmatprep.subr.bf16.mxu0 0
  %11832 = vmatpush1.bf16.msra.mxu0 %v8913
  %11833 = vmatprep.subr.bf16.mxu0 0
  %11834 = vmatpush1.bf16.msra.mxu0 %v8914
  %11835 = vmatprep.subr.bf16.mxu0 0
  %11836 = vmatpush1.bf16.msra.mxu0 %v8915
  %11837 = vmatprep.subr.bf16.mxu0 0
  %11838 = vmatpush1.bf16.msra.mxu0 %v8916
  %11839 = vmatprep.subr.bf16.mxu0 0
  %11840 = vmatpush1.bf16.msra.mxu0 %v8917
  %11841 = vmatprep.subr.bf16.mxu0 0
  %11842 = vmatpush1.bf16.msra.mxu0 %v8918
  %11843 = vmatprep.subr.bf16.mxu0 0
  %11844 = vmatpush1.bf16.msra.mxu0 %v8919
  %11845 = vmatprep.subr.bf16.mxu0 0
  %11846 = vmatpush1.bf16.msra.mxu0 %v8920
  %11847 = vmatprep.subr.bf16.mxu0 0
  %11848 = vmatpush1.bf16.msra.mxu0 %v8921
  %11849 = vmatprep.subr.bf16.mxu0 0
  %11850 = vmatpush1.bf16.msra.mxu0 %v8922
  %11851 = vmatprep.subr.bf16.mxu0 0
  %11852 = vmatpush1.bf16.msra.mxu0 %v8923
  %11853 = vmatprep.subr.bf16.mxu0 0
  %11854 = vmatpush1.bf16.msra.mxu0 %v8924
  %11855 = vmatprep.subr.bf16.mxu0 0
  %11856 = vmatpush1.bf16.msra.mxu0 %v8925
  %11857 = vmatprep.subr.bf16.mxu0 0
  %11858 = vmatpush1.bf16.msra.mxu0 %v8926
  %11859 = vmatprep.mubr.bf16.mxu0 %v11736
  %11860 = vmatmul.mubr.bf16.gmra.mrb[0].mxu0 %v11735
  %v11861 = vpop.f32.mrb[0].mxu0
  %v11862 = vadd.f32 %v11822, %v11861
  %v11863 = vpop.f32.mrb[0].mxu0
  %v11864 = vpop.f32.mrb[0].mxu0
  %v11865 = vpop.f32.mrb[0].mxu0
  %11866 = vdwg.mxu0
  %11867 = vmatprep.subr.bf16.mxu0 0
  %11868 = vmatpush1.bf16.msra.mxu0 %v8927
  %11869 = vmatprep.subr.bf16.mxu0 0
  %11870 = vmatpush1.bf16.msra.mxu0 %v8928
  %11871 = vmatprep.subr.bf16.mxu0 0
  %11872 = vmatpush1.bf16.msra.mxu0 %v8929
  %11873 = vmatprep.subr.bf16.mxu0 0
  %11874 = vmatpush1.bf16.msra.mxu0 %v8930
  %11875 = vmatprep.subr.bf16.mxu0 0
  %11876 = vmatpush1.bf16.msra.mxu0 %v8931
  %11877 = vmatprep.subr.bf16.mxu0 0
  %11878 = vmatpush1.bf16.msra.mxu0 %v8932
  %11879 = vmatprep.subr.bf16.mxu0 0
  %11880 = vmatpush1.bf16.msra.mxu0 %v8933
  %11881 = vmatprep.subr.bf16.mxu0 0
  %11882 = vmatpush1.bf16.msra.mxu0 %v8934
  %11883 = vmatprep.subr.bf16.mxu0 0
  %11884 = vmatpush1.bf16.msra.mxu0 %v8935
  %11885 = vmatprep.subr.bf16.mxu0 0
  %11886 = vmatpush1.bf16.msra.mxu0 %v8936
  %11887 = vmatprep.subr.bf16.mxu0 0
  %11888 = vmatpush1.bf16.msra.mxu0 %v8937
  %11889 = vmatprep.subr.bf16.mxu0 0
  %11890 = vmatpush1.bf16.msra.mxu0 %v8938
  %11891 = vmatprep.subr.bf16.mxu0 0
  %11892 = vmatpush1.bf16.msra.mxu0 %v8939
  %11893 = vmatprep.subr.bf16.mxu0 0
  %11894 = vmatpush1.bf16.msra.mxu0 %v8940
  %11895 = vmatprep.subr.bf16.mxu0 0
  %11896 = vmatpush1.bf16.msra.mxu0 %v8941
  %11897 = vmatprep.subr.bf16.mxu0 0
  %11898 = vmatpush1.bf16.msra.mxu0 %v8942
  %11899 = vmatprep.mubr.bf16.mxu0 %v11738
  %11900 = vmatmul.mubr.bf16.gmra.mrb[0].mxu0 %v11737
  %v11901 = vpop.f32.mrb[0].mxu0
  %v11902 = vadd.f32 %v11862, %v11901
  %v11903 = vpop.f32.mrb[0].mxu0
  %v11904 = vpop.f32.mrb[0].mxu0
  %v11905 = vpop.f32.mrb[0].mxu0
  %11906 = vdwg.mxu0
  %11907 = vmatprep.subr.bf16.mxu0 0
  %11908 = vmatpush1.bf16.msra.mxu0 %v8943
  %11909 = vmatprep.subr.bf16.mxu0 0
  %11910 = vmatpush1.bf16.msra.mxu0 %v8944
  %11911 = vmatprep.subr.bf16.mxu0 0
  %11912 = vmatpush1.bf16.msra.mxu0 %v8945
  %11913 = vmatprep.subr.bf16.mxu0 0
  %11914 = vmatpush1.bf16.msra.mxu0 %v8946
  %11915 = vmatprep.subr.bf16.mxu0 0
  %11916 = vmatpush1.bf16.msra.mxu0 %v8947
  %11917 = vmatprep.subr.bf16.mxu0 0
  %11918 = vmatpush1.bf16.msra.mxu0 %v8948
  %11919 = vmatprep.subr.bf16.mxu0 0
  %11920 = vmatpush1.bf16.msra.mxu0 %v8949
  %11921 = vmatprep.subr.bf16.mxu0 0
  %11922 = vmatpush1.bf16.msra.mxu0 %v8950
  %11923 = vmatprep.subr.bf16.mxu0 0
  %11924 = vmatpush1.bf16.msra.mxu0 %v8951
  %11925 = vmatprep.subr.bf16.mxu0 0
  %11926 = vmatpush1.bf16.msra.mxu0 %v8952
  %11927 = vmatprep.subr.bf16.mxu0 0
  %11928 = vmatpush1.bf16.msra.mxu0 %v8953
  %11929 = vmatprep.subr.bf16.mxu0 0
  %11930 = vmatpush1.bf16.msra.mxu0 %v8954
  %11931 = vmatprep.subr.bf16.mxu0 0
  %11932 = vmatpush1.bf16.msra.mxu0 %v8955
  %11933 = vmatprep.subr.bf16.mxu0 0
  %11934 = vmatpush1.bf16.msra.mxu0 %v8956
  %11935 = vmatprep.subr.bf16.mxu0 0
  %11936 = vmatpush1.bf16.msra.mxu0 %v8957
  %11937 = vmatprep.subr.bf16.mxu0 0
  %11938 = vmatpush1.bf16.msra.mxu0 %v8958
  %11939 = vmatprep.mubr.bf16.mxu0 %v11740
  %11940 = vmatmul.mubr.bf16.gmra.mrb[0].mxu0 %v11739
  %v11941 = vpop.f32.mrb[0].mxu0
  %v11942 = vadd.f32 %v11902, %v11941
  %v11943 = vpop.f32.mrb[0].mxu0
  %v11944 = vpop.f32.mrb[0].mxu0
  %v11945 = vpop.f32.mrb[0].mxu0
  %11946 = vdwg.mxu0
  %11947 = vmatprep.subr.bf16.mxu0 0
  %11948 = vmatpush1.bf16.msra.mxu0 %v8959
  %11949 = vmatprep.subr.bf16.mxu0 0
  %11950 = vmatpush1.bf16.msra.mxu0 %v8960
  %11951 = vmatprep.subr.bf16.mxu0 0
  %11952 = vmatpush1.bf16.msra.mxu0 %v8961
  %11953 = vmatprep.subr.bf16.mxu0 0
  %11954 = vmatpush1.bf16.msra.mxu0 %v8962
  %11955 = vmatprep.subr.bf16.mxu0 0
  %11956 = vmatpush1.bf16.msra.mxu0 %v8963
  %11957 = vmatprep.subr.bf16.mxu0 0
  %11958 = vmatpush1.bf16.msra.mxu0 %v8964
  %11959 = vmatprep.subr.bf16.mxu0 0
  %11960 = vmatpush1.bf16.msra.mxu0 %v8965
  %11961 = vmatprep.subr.bf16.mxu0 0
  %11962 = vmatpush1.bf16.msra.mxu0 %v8966
  %11963 = vmatprep.subr.bf16.mxu0 0
  %11964 = vmatpush1.bf16.msra.mxu0 %v8967
  %11965 = vmatprep.subr.bf16.mxu0 0
  %11966 = vmatpush1.bf16.msra.mxu0 %v8968
  %11967 = vmatprep.subr.bf16.mxu0 0
  %11968 = vmatpush1.bf16.msra.mxu0 %v8969
  %11969 = vmatprep.subr.bf16.mxu0 0
  %11970 = vmatpush1.bf16.msra.mxu0 %v8970
  %11971 = vmatprep.subr.bf16.mxu0 0
  %11972 = vmatpush1.bf16.msra.mxu0 %v8971
  %11973 = vmatprep.subr.bf16.mxu0 0
  %11974 = vmatpush1.bf16.msra.mxu0 %v8972
  %11975 = vmatprep.subr.bf16.mxu0 0
  %11976 = vmatpush1.bf16.msra.mxu0 %v8973
  %11977 = vmatprep.subr.bf16.mxu0 0
  %11978 = vmatpush1.bf16.msra.mxu0 %v8974
  %11979 = vmatprep.mubr.bf16.mxu0 %v11742
  %11980 = vmatmul.mubr.bf16.gmra.mrb[0].mxu0 %v11741
  %v11981 = vpop.f32.mrb[0].mxu0
  %v11982 = vadd.f32 %v11942, %v11981
  %v11983 = vpop.f32.mrb[0].mxu0
  %v11984 = vpop.f32.mrb[0].mxu0
  %v11985 = vpop.f32.mrb[0].mxu0
  %11986 = vdwg.mxu0
  %11987 = vmatprep.subr.bf16.mxu0 0
  %11988 = vmatpush1.bf16.msra.mxu0 %v8975
  %11989 = vmatprep.subr.bf16.mxu0 0
  %11990 = vmatpush1.bf16.msra.mxu0 %v8976
  %11991 = vmatprep.subr.bf16.mxu0 0
  %11992 = vmatpush1.bf16.msra.mxu0 %v8977
  %11993 = vmatprep.subr.bf16.mxu0 0
  %11994 = vmatpush1.bf16.msra.mxu0 %v8978
  %11995 = vmatprep.subr.bf16.mxu0 0
  %11996 = vmatpush1.bf16.msra.mxu0 %v8979
  %11997 = vmatprep.subr.bf16.mxu0 0
  %11998 = vmatpush1.bf16.msra.mxu0 %v8980
  %11999 = vmatprep.subr.bf16.mxu0 0
  %12000 = vmatpush1.bf16.msra.mxu0 %v8981
  %12001 = vmatprep.subr.bf16.mxu0 0
  %12002 = vmatpush1.bf16.msra.mxu0 %v8982
  %12003 = vmatprep.subr.bf16.mxu0 0
  %12004 = vmatpush1.bf16.msra.mxu0 %v8983
  %12005 = vmatprep.subr.bf16.mxu0 0
  %12006 = vmatpush1.bf16.msra.mxu0 %v8984
  %12007 = vmatprep.subr.bf16.mxu0 0
  %12008 = vmatpush1.bf16.msra.mxu0 %v8985
  %12009 = vmatprep.subr.bf16.mxu0 0
  %12010 = vmatpush1.bf16.msra.mxu0 %v8986
  %12011 = vmatprep.subr.bf16.mxu0 0
  %12012 = vmatpush1.bf16.msra.mxu0 %v8987
  %12013 = vmatprep.subr.bf16.mxu0 0
  %12014 = vmatpush1.bf16.msra.mxu0 %v8988
  %12015 = vmatprep.subr.bf16.mxu0 0
  %12016 = vmatpush1.bf16.msra.mxu0 %v8989
  %12017 = vmatprep.subr.bf16.mxu0 0
  %12018 = vmatpush1.bf16.msra.mxu0 %v8990
  %12019 = vmatprep.mubr.bf16.mxu0 %v11744
  %12020 = vmatmul.mubr.bf16.gmra.mrb[0].mxu0 %v11743
  %v12021 = vpop.f32.mrb[0].mxu0
  %v12022 = vadd.f32 %v11982, %v12021
  %v12023 = vpop.f32.mrb[0].mxu0
  %v12024 = vpop.f32.mrb[0].mxu0
  %v12025 = vpop.f32.mrb[0].mxu0
  %12026 = vdwg.mxu0
  %12027 = vmatprep.subr.bf16.mxu0 0
  %12028 = vmatpush1.bf16.msra.mxu0 %v8991
  %12029 = vmatprep.subr.bf16.mxu0 0
  %12030 = vmatpush1.bf16.msra.mxu0 %v8992
  %12031 = vmatprep.subr.bf16.mxu0 0
  %12032 = vmatpush1.bf16.msra.mxu0 %v8993
  %12033 = vmatprep.subr.bf16.mxu0 0
  %12034 = vmatpush1.bf16.msra.mxu0 %v8994
  %12035 = vmatprep.subr.bf16.mxu0 0
  %12036 = vmatpush1.bf16.msra.mxu0 %v8995
  %12037 = vmatprep.subr.bf16.mxu0 0
  %12038 = vmatpush1.bf16.msra.mxu0 %v8996
  %12039 = vmatprep.subr.bf16.mxu0 0
  %12040 = vmatpush1.bf16.msra.mxu0 %v8997
  %12041 = vmatprep.subr.bf16.mxu0 0
  %12042 = vmatpush1.bf16.msra.mxu0 %v8998
  %12043 = vmatprep.subr.bf16.mxu0 0
  %12044 = vmatpush1.bf16.msra.mxu0 %v8999
  %12045 = vmatprep.subr.bf16.mxu0 0
  %12046 = vmatpush1.bf16.msra.mxu0 %v9000
  %12047 = vmatprep.subr.bf16.mxu0 0
  %12048 = vmatpush1.bf16.msra.mxu0 %v9001
  %12049 = vmatprep.subr.bf16.mxu0 0
  %12050 = vmatpush1.bf16.msra.mxu0 %v9002
  %12051 = vmatprep.subr.bf16.mxu0 0
  %12052 = vmatpush1.bf16.msra.mxu0 %v9003
  %12053 = vmatprep.subr.bf16.mxu0 0
  %12054 = vmatpush1.bf16.msra.mxu0 %v9004
  %12055 = vmatprep.subr.bf16.mxu0 0
  %12056 = vmatpush1.bf16.msra.mxu0 %v9005
  %12057 = vmatprep.subr.bf16.mxu0 0
  %12058 = vmatpush1.bf16.msra.mxu0 %v9006
  %12059 = vmatprep.mubr.bf16.mxu0 %v11746
  %12060 = vmatmul.mubr.bf16.gmra.mrb[0].mxu0 %v11745
  %v12061 = vpop.f32.mrb[0].mxu0
  %v12062 = vadd.f32 %v12022, %v12061
  %v12063 = vpop.f32.mrb[0].mxu0
  %v12064 = vpop.f32.mrb[0].mxu0
  %v12065 = vpop.f32.mrb[0].mxu0
  %12066 = vdwg.mxu0
  %v12068 = vrot.slane %v12062, 1
  %v12069 = vrot.slane %v12062, 2
  %v12072 = vadd.f32 %v11372, %v12068
  %v12073 = vadd.f32 %v11373, %v12069
  %v12076 = vrot.slane %v12073, 7
  %v12079 = vsel %vm7606, %v12072, 0.0
  %12080 = vadd.xlane.f32.xlu0 %v12079
  %v12081 = vpop.xlane.xlu0 %12080
  %v12082 = vsel %vm7610, %v12076, 0.0
  %12083 = vadd.xlane.f32.xlu0 %v12082
  %v12084 = vpop.xlane.xlu0 %12083
  %v12085 = vmul.f32 %v12081, %v1824
  %v12086 = vmul.f32 %v12084, %v1824
  %v12087 = vmul.f32 %v12072, %v12072
  %v12088 = vmul.f32 %v12073, %v12073
  %v12091 = vrot.slane %v12088, 7
  %v12094 = vsel %vm7606, %v12087, 0.0
  %12095 = vadd.xlane.f32.xlu0 %v12094
  %v12096 = vpop.xlane.xlu0 %12095
  %v12097 = vsel %vm7610, %v12091, 0.0
  %12098 = vadd.xlane.f32.xlu0 %v12097
  %v12099 = vpop.xlane.xlu0 %12098
  %v12100 = vmul.f32 %v12096, %v1824
  %v12101 = vmul.f32 %v12099, %v1824
  %v12102 = vmul.f32 %v12085, %v12085
  %v12103 = vmul.f32 %v12086, %v12086
  %v12104 = vsub.f32 %v12100, %v12102
  %v12105 = vsub.f32 %v12101, %v12103
  %v12108 = vrot.slane %v12086, 1
  %v12111 = vsub.f32 %v12072, %v12085
  %v12112 = vsub.f32 %v12073, %v12108
  %v12113 = vadd.f32 %v12104, 1e-05
  %v12114 = vadd.f32 %v12105, 1e-05
  %v12115 = vrsqrt.pop %v12113
  %v12116 = vrsqrt.pop %v12114
  %v12119 = vrot.slane %v12116, 1
  %v12122 = vmul.f32 %v12111, %v12115
  %v12123 = vmul.f32 %v12112, %v12119
  %v12124 = vmul.f32 %v12122, %v9515
  %v12125 = vmul.f32 %v12123, %v9515
  %v12126 = vadd.f32 %v12124, %v9521
  %v12127 = vadd.f32 %v12125, %v9521
  %v12130 = vrot.slane %v9522, 7
  %v12131 = vrot.slane %v9523, 6
  %v12132 = vsel %vm7536, %v12131, %v12130
  %v12136 = vrot.slane %v10390, 5
  %v12137 = vrot.slane %v10391, 4
  %vm12138 = vcmask 1043459
  %v12139 = vsel %vm12138, %v12137, %v12136
  %v12143 = vrot.slane %v11258, 3
  %v12144 = vrot.slane %v11259, 2
  %vm12145 = vcmask 1045509
  %v12146 = vsel %vm12145, %v12144, %v12143
  %v12150 = vrot.slane %v12126, 1
  %vm12151 = vcmask 1047559
  %v12152 = vsel %vm12151, %v12127, %v12150
  %vm12154 = vcmask 1041408
  %v12155 = vsel %vm12154, %v12132, %v12139
  %vm12156 = vcmask 1043456
  %v12157 = vsel %vm12156, %v12155, %v12146
  %vm12158 = vcmask 1045504
  %v12159 = vsel %vm12158, %v12157, %v12152
  %v12160 = vld [vmem:[%s7] sm:$0xff]
  %v12161 = vld [vmem:[%s7 + $0x8] sm:$0xff]
  %v12162 = vld [vmem:[%s7 + $0x10] sm:$0xff]
  %v12163 = vld [vmem:[%s7 + $0x18] sm:$0xff]
  %v12164 = vld [vmem:[%s7 + $0x20] sm:$0x1]
  %v12165 = vpack.c.bf16 %v12159, %v12159
  %v12166 = vpack.c.bf16 %v12161, %v12160
  %v12167 = vpack.c.bf16 %v12163, %v12162
  %v12168 = vlaneseq
  %v12169 = vshrl.u32 %v12168, 7
  %v12170 = vsub.s32 0, %v12169
  %v12171 = vrot.slane %v12164, %v12170
  %v12173 = vsel %vm357, %v12165, 0
  %12175 = vmatprep.subr.bf16.mxu0 0
  %12176 = vmatpush1.bf16.msra.mxu0 %v12166
  %12177 = vmatprep.subr.bf16.mxu0 0
  %12178 = vmatpush1.bf16.msra.mxu0 %v12167
  %12179 = vmatprep.subr.bf16.mxu0 0
  %12180 = vmatpush1.bf16.msra.mxu0 0
  %12181 = vmatprep.subr.bf16.mxu0 0
  %12182 = vmatpush1.bf16.msra.mxu0 0
  %12183 = vmatprep.subr.bf16.mxu0 0
  %12184 = vmatpush1.bf16.msra.mxu0 0
  %12185 = vmatprep.subr.bf16.mxu0 0
  %12186 = vmatpush1.bf16.msra.mxu0 0
  %12187 = vmatprep.subr.bf16.mxu0 0
  %12188 = vmatpush1.bf16.msra.mxu0 0
  %12189 = vmatprep.subr.bf16.mxu0 0
  %12190 = vmatpush1.bf16.msra.mxu0 0
  %12191 = vmatprep.subr.bf16.mxu0 0
  %12192 = vmatpush1.bf16.msra.mxu0 0
  %12193 = vmatprep.subr.bf16.mxu0 0
  %12194 = vmatpush1.bf16.msra.mxu0 0
  %12195 = vmatprep.subr.bf16.mxu0 0
  %12196 = vmatpush1.bf16.msra.mxu0 0
  %12197 = vmatprep.subr.bf16.mxu0 0
  %12198 = vmatpush1.bf16.msra.mxu0 0
  %12199 = vmatprep.subr.bf16.mxu0 0
  %12200 = vmatpush1.bf16.msra.mxu0 0
  %12201 = vmatprep.subr.bf16.mxu0 0
  %12202 = vmatpush1.bf16.msra.mxu0 0
  %12203 = vmatprep.subr.bf16.mxu0 0
  %12204 = vmatpush1.bf16.msra.mxu0 0
  %12205 = vmatprep.subr.bf16.mxu0 0
  %12206 = vmatpush1.bf16.msra.mxu0 0
  %12207 = vmatprep.mubr.bf16.mxu0 0
  %12208 = vmatmul.mubr.bf16.gmra.mrb[0].mxu0 %v12173
  %v12209 = vpop.f32.mrb[0].mxu0
  %v12210 = vadd.f32 %v12171, %v12209
  %v12211 = vpop.f32.mrb[0].mxu0
  %v12212 = vpop.f32.mrb[0].mxu0
  %v12213 = vpop.f32.mrb[0].mxu0
  %12214 = vdwg.mxu0
  %v12216 = vrot.slane %v12210, 2
  %12217 = vrot.lane.b32.xlu0 %v12216, 4
  %v12218 = vpop.permute.xlu0 %12217
  %v12220 = vrot.slane %v12210, 4
  %12221 = vrot.lane.b32.xlu0 %v12220, 8
  %v12222 = vpop.permute.xlu0 %12221
  %v12224 = vrot.slane %v12210, 6
  %12225 = vrot.lane.b32.xlu0 %v12224, 12
  %v12226 = vpop.permute.xlu0 %12225
  %vm12228 = vcmask 31744
  %v12229 = vsel %vm12228, %v12210, %v12218
  %v12230 = vsel %vm405, %v12229, %v12222
  %vm12231 = vcmask 97280
  %v12232 = vsel %vm12231, %v12230, %v12226
  %vm12233 = vcmask 123904
  %12234 = vst.msk [vmem:[%s8] sm:$0x3] %vm12233, %v12232
  // Predicated region
  $region34: #{trajectory_predictor_forward.1} parent=0 // pred_check
    _
  $region35: #{trajectory_predictor_forward.1} parent=0 // pred_check_branch
    %12236 = sbr.rel (0) target = $region37
  $region36: #{trajectory_predictor_forward.1} parent=0 // pred_region
    _
  $region37: #{trajectory_predictor_forward.1} parent=0 // pred_fallthru
    _
  // Predicated region
  $region38: #{trajectory_predictor_forward.1} parent=0 // pred_check
    _
  $region39: #{trajectory_predictor_forward.1} parent=0 // pred_check_branch
    %12238 = sbr.rel (0) target = $region41
  $region40: #{trajectory_predictor_forward.1} parent=0 // pred_region
    _
  $region41: #{trajectory_predictor_forward.1} parent=0 // pred_fallthru
    _

</llo_original>
